<compile_context>
chip_gen: v7x
topology: tpu7x:2x2x1
jax: 0.10.0
libtpu: 0.0.40
codegen_flags: <defaults>
</compile_context>

<pallas_src>
import functools
import math

import jax
import jax.numpy as jnp
from jax import lax
from jax.experimental import pallas as pl
from jax.experimental.pallas import tpu as pltpu

_BM = 128                                  # M tile (gives >1 parallel grid step on big layers)
_BN_SCALE = 1.0 / math.sqrt(1.0 + 1e-3)    # TODO(synk): BatchNorm2d(eval, default stats, eps=1e-3)
_VMEM = pltpu.MemorySpace.VMEM
_SMEM = pltpu.MemorySpace.SMEM


def _round_up(x, m):
    return ((x + m - 1) // m) * m


# ----------------------------------------------------------------------------
# Pallas kernels
# ----------------------------------------------------------------------------

def _mm_kernel(x_ref, w_ref, b_ref, o_ref, *, act):
    """o = act(x @ w + b); bf16 operands, f32 accumulation."""
    acc = jnp.dot(x_ref[...], w_ref[...], preferred_element_type=jnp.float32)
    acc = acc + b_ref[...]
    if act == "relu":
        acc = jnp.maximum(acc, 0.0)
    elif act == "sigmoid":
        acc = jax.nn.sigmoid(acc)
    o_ref[...] = acc


def pallas_matmul(x, w, b, act="none"):
    """y = act(x @ w + b). x:(M,K), w:(K,N) bf16, b:(1,N) f32 -> (M,N) f32."""
    x = x.astype(jnp.bfloat16)
    M, K = x.shape
    N = w.shape[1]
    bm = min(_BM, _round_up(M, 8))
    Mp = _round_up(M, bm)
    if Mp != M:
        x = jnp.pad(x, ((0, Mp - M), (0, 0)))
    out = pl.pallas_call(
        functools.partial(_mm_kernel, act=act),
        out_shape=jax.ShapeDtypeStruct((Mp, N), jnp.float32),
        grid=(Mp // bm,),
        in_specs=[
            pl.BlockSpec((bm, K), lambda i: (i, 0)),
            pl.BlockSpec((K, N), lambda i: (0, 0)),
            pl.BlockSpec((1, N), lambda i: (0, 0)),
        ],
        out_specs=pl.BlockSpec((bm, N), lambda i: (i, 0)),
        compiler_params=pltpu.CompilerParams(dimension_semantics=("parallel",)),
    )(x, w, b)
    return out if Mp == M else out[:M]


def _pn_mm_kernel(x_ref, wp_ref, bp_ref, wn_ref, bn_ref, o_ref, *, slope):
    """Merged P/N conv branches: relu(x@wp+bp) + leaky_relu(x@wn+bn), one resident x tile."""
    x = x_ref[...]
    p = jnp.dot(x, wp_ref[...], preferred_element_type=jnp.float32) + bp_ref[...]
    q = jnp.dot(x, wn_ref[...], preferred_element_type=jnp.float32) + bn_ref[...]
    o_ref[...] = jnp.maximum(p, 0.0) + jnp.where(q >= 0.0, q, slope * q)


def pallas_pn_matmul(x, wp, bp, wn, bn, slope=0.2):
    x = x.astype(jnp.bfloat16)
    M, K = x.shape
    N = wp.shape[1]
    bm = min(_BM, _round_up(M, 8))
    Mp = _round_up(M, bm)
    if Mp != M:
        x = jnp.pad(x, ((0, Mp - M), (0, 0)))
    out = pl.pallas_call(
        functools.partial(_pn_mm_kernel, slope=slope),
        out_shape=jax.ShapeDtypeStruct((Mp, N), jnp.float32),
        grid=(Mp // bm,),
        in_specs=[
            pl.BlockSpec((bm, K), lambda i: (i, 0)),
            pl.BlockSpec((K, N), lambda i: (0, 0)),
            pl.BlockSpec((1, N), lambda i: (0, 0)),
            pl.BlockSpec((K, N), lambda i: (0, 0)),
            pl.BlockSpec((1, N), lambda i: (0, 0)),
        ],
        out_specs=pl.BlockSpec((bm, N), lambda i: (i, 0)),
        compiler_params=pltpu.CompilerParams(dimension_semantics=("parallel",)),
    )(x, wp, bp, wn, bn)
    return out if Mp == M else out[:M]


def _lstm_rec_kernel(xp_ref, whh_ref, o_ref, *, T, B, H):
    """Entire LSTM recurrence of one layer in a single kernel: w_hh resident in VMEM,
    h/c as f32 loop carries, gate math on VPU/EUP, one small MXU dot per step."""
    whh = whh_ref[...]

    def step(t, carry):
        h, c = carry
        xt = xp_ref[pl.ds(t, 1)][0]                                     # (B, 4H)
        gates = xt + jnp.dot(h, whh, preferred_element_type=jnp.float32)
        i = jax.nn.sigmoid(gates[:, 0:H])
        f = jax.nn.sigmoid(gates[:, H:2 * H])
        g = jnp.tanh(gates[:, 2 * H:3 * H])
        o = jax.nn.sigmoid(gates[:, 3 * H:4 * H])
        c_new = f * c + i * g
        h_new = o * jnp.tanh(c_new)
        o_ref[pl.ds(t, 1)] = h_new[None]
        return (h_new, c_new)

    init = (jnp.zeros((B, H), jnp.float32), jnp.zeros((B, H), jnp.float32))
    lax.fori_loop(0, T, step, init)


def lstm_recurrence(xproj, w_hhT):
    T, B, G = xproj.shape
    H = G // 4
    return pl.pallas_call(
        functools.partial(_lstm_rec_kernel, T=T, B=B, H=H),
        out_shape=jax.ShapeDtypeStruct((T, B, H), jnp.float32),
        in_specs=[pl.BlockSpec(memory_space=_VMEM),
                  pl.BlockSpec(memory_space=_VMEM)],
        out_specs=pl.BlockSpec(memory_space=_VMEM),
    )(xproj, w_hhT)


def _sep_node_kernel(*refs, n, swish, B):
    """Fused BiFPN node: weighted fusion of n inputs [+ swish] + zero-padded 3-tap
    depthwise over T + pointwise 1x1 matmul + bias + BN scale, in one kernel."""
    fw_ref, dw_ref, pw_ref, pb_ref = refs[0], refs[1], refs[2], refs[3]
    x_refs = refs[4:4 + n]
    o_ref = refs[4 + n]
    s_scr = refs[5 + n]
    T = x_refs[0].shape[1]
    C = x_refs[0].shape[2]
    pw = pw_ref[...]
    pb = pb_ref[...]
    d0 = dw_ref[0:1, :]
    d1 = dw_ref[1:2, :]
    d2 = dw_ref[2:3, :]
    for b in range(B):
        s = fw_ref[0] * x_refs[0][b, :, :]
        for j in range(1, n):
            s = s + fw_ref[j] * x_refs[j][b, :, :]
        if swish:
            s = s * jax.nn.sigmoid(s)
        # depthwise-3 along T using a zero border in scratch (aligned store, shifted reads)
        s_scr[...] = jnp.zeros((T + 16, C), jnp.float32)
        s_scr[8:8 + T, :] = s
        y = d0 * s_scr[7:7 + T, :] + d1 * s + d2 * s_scr[9:9 + T, :]
        z = jnp.dot(y.astype(jnp.bfloat16), pw, preferred_element_type=jnp.float32) + pb
        o_ref[b, :, :] = z * _BN_SCALE


def sep_conv_node(xs, fusion_w, sp, swish):
    """xs: list of (B, T, Cin) f32 arrays of identical shape -> (B, T, Cout) f32."""
    n = len(xs)
    B, T, C = xs[0].shape
    Cout = sp["pw"].shape[1]
    return pl.pallas_call(
        functools.partial(_sep_node_kernel, n=n, swish=swish, B=B),
        out_shape=jax.ShapeDtypeStruct((B, T, Cout), jnp.float32),
        in_specs=[pl.BlockSpec(memory_space=_SMEM),
                  pl.BlockSpec(memory_space=_VMEM),
                  pl.BlockSpec(memory_space=_VMEM),
                  pl.BlockSpec(memory_space=_VMEM)]
                 + [pl.BlockSpec(memory_space=_VMEM)] * n,
        out_specs=pl.BlockSpec(memory_space=_VMEM),
        scratch_shapes=[pltpu.VMEM((T + 16, C), jnp.float32)],
    )(fusion_w, sp["dw"], sp["pw"], sp["pb"], *xs)


# ----------------------------------------------------------------------------
# Conv / LSTM stages built on the Pallas kernels (channels-last (B, T, C) layout)
# ----------------------------------------------------------------------------

def _conv_patches(x, K, stride):
    """x:(B,T,Cin) -> (B*Tout, K*Cin) patches using slices/reshapes only (no gather)."""
    B, T, Cin = x.shape
    Tout = (T - K) // stride + 1
    n_off = K // stride
    xr = x[:, : (Tout + n_off - 1) * stride, :].reshape(B, Tout + n_off - 1, stride, Cin)
    if n_off == 1:
        pat = xr                                    # non-overlapping: pure reshape
    else:
        pat = jnp.concatenate([xr[:, j:j + Tout] for j in range(n_off)], axis=2)
    return pat.reshape(B * Tout, K * Cin), Tout


def conv1d_cl(x, layer, K, stride, act="none"):
    B = x.shape[0]
    pat, Tout = _conv_patches(x, K, stride)
    y = pallas_matmul(pat, layer["wm"], layer["b"], act=act)
    return y.reshape(B, Tout, -1)


def conv1d_pn_cl(x, p_layer, n_layer, K, stride, slope=0.2):
    # TODO(synk): P_Conv / N_Conv / PNP_Conv_operation sources unavailable; modeled as
    # Conv1d+ReLU (P) plus Conv1d+LeakyReLU(0.2) (N) combined by summation (one kernel).
    B = x.shape[0]
    pat, Tout = _conv_patches(x, K, stride)
    y = pallas_pn_matmul(pat, p_layer["wm"], p_layer["b"], n_layer["wm"], n_layer["b"], slope)
    return y.reshape(B, Tout, -1)


def lstm_forward(x_tbc, layers):
    """x:(T,B,C) -> (T,B,H).  TODO(synk): LSTM wrapper internals unavailable;
    2-layer unidirectional LSTM stand-in (PyTorch gate order i,f,g,o)."""
    T, B, _ = x_tbc.shape
    out = x_tbc
    for lp in layers:
        H = lp["w_hhT"].shape[0]
        xp = pallas_matmul(out.reshape(T * B, -1), lp["w_ihT"], lp["b"])
        out = lstm_recurrence(xp.reshape(T, B, 4 * H), lp["w_hhT"])
    return out


# ----------------------------------------------------------------------------
# Analysis_stage
# ----------------------------------------------------------------------------

FLOOR = 0.001
KERNEL_SIZE = 4
STRIDE = 4
RESAMPLE = 4
DEPTH = 5


def valid_length(length):
    length = math.ceil(length * RESAMPLE)
    for _ in range(DEPTH):
        length = math.ceil((length - KERNEL_SIZE) / STRIDE) + 1
        length = max(length, 1)
    for _ in range(DEPTH):
        length = (length - 1) * STRIDE + KERNEL_SIZE
    return int(math.ceil(length / RESAMPLE))


def analysis_forward(wav, A):
    if wav.ndim == 2:
        wav = wav[:, :, None]                        # (B, T, C=1), channels-last
    else:
        wav = jnp.transpose(wav, (0, 2, 1))
    mono = jnp.mean(wav, axis=2, keepdims=True)
    std = jnp.std(mono, axis=1, keepdims=True, ddof=1)   # torch.std (unbiased)
    wav = wav / (FLOOR + std)

    L = wav.shape[1]
    pad = valid_length(L) - L
    x = jnp.pad(wav, ((0, 0), (0, pad), (0, 0)))
    # TODO(synk): upsample2 (denoiser sinc interpolation) unavailable; nearest x2 stand-in.
    x = jnp.repeat(x, 2, axis=1)
    x = jnp.repeat(x, 2, axis=1)

    x = conv1d_pn_cl(x, A["p1"], A["np1"], K=4, stride=STRIDE)
    x = conv1d_pn_cl(x, A["p2"], A["np2"], K=4, stride=STRIDE)
    feats = [x]
    x = conv1d_cl(x, A["p3"], K=8, stride=STRIDE, act="relu")
    feats.append(x)
    x = conv1d_cl(x, A["p4"], K=8, stride=STRIDE, act="relu")
    feats.append(x)
    x = conv1d_cl(x, A["p5"], K=12, stride=STRIDE, act="relu")
    feats.append(x)

    xl = lstm_forward(jnp.transpose(x, (1, 0, 2)), A["lstm"])   # (T, B, C)
    feats.append(jnp.transpose(xl, (1, 0, 2)))                  # (B, T, C)
    return feats


# ----------------------------------------------------------------------------
# Light_BiFPN
# ----------------------------------------------------------------------------

def avg_pool_t(x, k):
    B, T, C = x.shape
    n = T // k
    return x[:, :n * k, :].reshape(B, n, k, C).mean(axis=2)


def pad_t(x, left, right):
    return jnp.pad(x, ((0, 0), (left, right), (0, 0)))


def upsample2_t(x):
    return jnp.repeat(x, 2, axis=1)        # nn.Upsample(scale=(2,1), mode='nearest')


def relu_norm(w, eps=1e-8):
    wr = jnp.maximum(w, 0.0)
    return (wr / (jnp.sum(wr) + eps)).astype(jnp.float32)


def bifpn_forward(feats, P):
    one = jnp.ones((1,), jnp.float32)
    p1, p2, p3, p4, p5 = feats
    p1_in = sep_conv_node([avg_pool_t(p1, 32)], one, P["p1_upch"], swish=False)
    p2_in = pad_t(sep_conv_node([avg_pool_t(p2, 8)], one, P["p2_upch"], swish=False), 1, 0)
    p3_in = pad_t(avg_pool_t(p3, 2), 1, 0)
    p4_in = sep_conv_node([upsample2_t(pad_t(p4, 2, 1))], one, P["p4_dnch"], swish=False)
    p5_in = sep_conv_node([upsample2_t(pad_t(p5, 2, 1))], one, P["p5_dnch"], swish=False)

    p4_mid = sep_conv_node([p4_in, p5_in], relu_norm(P["p4_w1"]), P["conv6_up"], swish=True)
    p3_mid = sep_conv_node([p3_in, p4_mid], relu_norm(P["p3_w1"]), P["conv5_up"], swish=True)
    p2_mid = sep_conv_node([p2_in, p3_mid], relu_norm(P["p2_w1"]), P["conv4_up"], swish=True)
    p1_out = sep_conv_node([p1_in, p2_mid], relu_norm(P["p1_w1"]), P["conv3_up"], swish=True)
    p2_out = sep_conv_node([p2_in, p2_mid, p1_out], relu_norm(P["p2_w2"]), P["conv4_down"], swish=True)
    p3_out = sep_conv_node([p3_in, p3_mid, p2_out], relu_norm(P["p3_w2"]), P["conv5_down"], swish=True)
    p4_out = sep_conv_node([p4_in, p4_mid, p3_out], relu_norm(P["p4_w2"]), P["conv6_down"], swish=True)
    p5_out = sep_conv_node([p5_in, p4_out], relu_norm(P["p5_w2"]), P["conv7_down"], swish=True)
    return p1_out, p2_out, p3_out, p4_out, p5_out


# ----------------------------------------------------------------------------
# Estimation_stage
# ----------------------------------------------------------------------------

def estimation_stage_forward(wav, P):
    feats = analysis_forward(wav, P["a"])
    outs = bifpn_forward(feats, P["bifpn"])
    f0 = jnp.concatenate(outs, axis=-1)                 # (B, F, 240), already channels-last
    B, F_, C = f0.shape
    y = pallas_matmul(f0.reshape(B * F_, C), P["ln"]["w"], P["ln"]["b"], act="sigmoid")
    return y.reshape(B, F_, -1)                         # (B, F, 360)


# ----------------------------------------------------------------------------
# Deterministic parameter init (synthetic; torch-like uniform(+-1/sqrt(fan_in)))
# and one-time weight preparation (transpose / bias fold / bf16 cast).
# ----------------------------------------------------------------------------

def init_params(key):
    keys = iter(jax.random.split(key, 128))

    def u(shape, fan_in):
        bound = 1.0 / math.sqrt(fan_in)
        return jax.random.uniform(next(keys), shape, jnp.float32, -bound, bound)

    def conv_p(cin, cout, k):
        return {"w": u((cout, cin, k), cin * k), "b": u((cout,), cin * k)}

    def sep_p(cin, cout):
        # TODO(synk): SeparableConvBlock source unavailable; depthwise(3)+pointwise(1x1)+BN stand-in.
        return {"dw": u((cin, 3), 3), "pw": u((cin, cout), cin), "pb": u((cout,), cin)}

    def lstm_layer(cin, h):
        return {"w_ih": u((4 * h, cin), h), "w_hh": u((4 * h, h), h),
                "b_ih": u((4 * h,), h), "b_hh": u((4 * h,), h)}

    hidden = 6
    a = {
        "p1": conv_p(1, hidden, 4), "np1": conv_p(1, hidden, 4),
        "p2": conv_p(hidden, hidden * 2, 4), "np2": conv_p(hidden, hidden * 2, 4),
        "p3": conv_p(hidden * 2, hidden * 4, 8),
        "p4": conv_p(hidden * 4, hidden * 8, 8),
        "p5": conv_p(hidden * 8, hidden * 16, 12),
        "lstm": [lstm_layer(hidden * 16, hidden * 16), lstm_layer(hidden * 16, hidden * 16)],
    }
    # TODO(synk): rescale_module(reference=0.1) omitted (synthetic weights, init-time only).
    nc = 48
    bif = {
        "p1_upch": sep_p(nc // 4, nc), "p2_upch": sep_p(nc // 2, nc),
        "p4_dnch": sep_p(nc * 2, nc), "p5_dnch": sep_p(nc * 2, nc),
        "conv6_up": sep_p(nc, nc), "conv5_up": sep_p(nc, nc),
        "conv4_up": sep_p(nc, nc), "conv3_up": sep_p(nc, nc),
        "conv4_down": sep_p(nc, nc), "conv5_down": sep_p(nc, nc),
        "conv6_down": sep_p(nc, nc), "conv7_down": sep_p(nc, nc),
        "p4_w1": jnp.ones(2, jnp.float32), "p3_w1": jnp.ones(2, jnp.float32),
        "p2_w1": jnp.ones(2, jnp.float32), "p1_w1": jnp.ones(2, jnp.float32),
        "p2_w2": jnp.ones(3, jnp.float32), "p3_w2": jnp.ones(3, jnp.float32),
        "p4_w2": jnp.ones(3, jnp.float32), "p5_w2": jnp.ones(2, jnp.float32),
    }
    ln = {"w": u((360, 240), 240), "b": u((360,), 240)}
    return {"a": a, "bifpn": bif, "ln": ln}


def prepare_params(raw):
    """One-time weight prep: matmul layout, folded biases, bf16 matmul operands."""
    def conv_prep(p):
        w = p["w"]                                              # (Cout, Cin, K)
        wm = jnp.transpose(w, (2, 1, 0)).reshape(-1, w.shape[0])
        return {"wm": wm.astype(jnp.bfloat16),
                "b": p["b"].reshape(1, -1).astype(jnp.float32)}

    def sep_prep(p):
        return {"dw": jnp.transpose(p["dw"]).astype(jnp.float32),   # (3, Cin)
                "pw": p["pw"].astype(jnp.bfloat16),                  # (Cin, Cout)
                "pb": p["pb"].reshape(1, -1).astype(jnp.float32)}

    def lstm_prep(lp):
        return {"w_ihT": jnp.transpose(lp["w_ih"]).astype(jnp.bfloat16),
                "b": (lp["b_ih"] + lp["b_hh"]).reshape(1, -1).astype(jnp.float32),
                "w_hhT": jnp.transpose(lp["w_hh"]).astype(jnp.float32)}

    a = raw["a"]
    ap = {k: conv_prep(a[k]) for k in ("p1", "np1", "p2", "np2", "p3", "p4", "p5")}
    ap["lstm"] = [lstm_prep(l) for l in a["lstm"]]

    bp = {}
    for k, v in raw["bifpn"].items():
        bp[k] = sep_prep(v) if isinstance(v, dict) else v.astype(jnp.float32)

    ln = {"w": jnp.transpose(raw["ln"]["w"]).astype(jnp.bfloat16),
          "b": raw["ln"]["b"].reshape(1, -1).astype(jnp.float32)}
    return {"a": ap, "bifpn": bp, "ln": ln}


# ----------------------------------------------------------------------------

if __name__ == "__main__":
    key = jax.random.PRNGKey(0)
    pkey, xkey = jax.random.split(key)
    params = prepare_params(init_params(pkey))      # weights prepped ONCE, not per forward

    # Small valid input: 2048 samples -> 16 output frames (same arithmetic that gives
    # 500 frames for the original 64000-sample / 4 s @ 16 kHz input).
    B, L = 2, 2048
    wav = jax.random.normal(xkey, (B, L), jnp.float32)

    fwd = jax.jit(estimation_stage_forward)
    out = jax.block_until_ready(fwd(wav, params))

    assert out.shape == (B, 16, 360), out.shape
    assert bool(jnp.all(jnp.isfinite(out)))
    assert bool(jnp.all((out >= 0.0) & (out <= 1.0)))
    print("KERNEL_OK")
</pallas_src>

<mosaic_0001>
module attributes {stable_mosaic.version = 11 : i64} {
  func.func @_pn_mm_kernel(%arg0: i32, %arg1: memref<128x4xbf16, #tpu.memory_space<vmem>>, %arg2: memref<4x6xbf16, #tpu.memory_space<vmem>>, %arg3: memref<1x6xf32, #tpu.memory_space<vmem>>, %arg4: memref<4x6xbf16, #tpu.memory_space<vmem>>, %arg5: memref<1x6xf32, #tpu.memory_space<vmem>>, %arg6: memref<128x6xf32, #tpu.memory_space<vmem>>) attributes {dimension_semantics = [#tpu.dimension_semantics<parallel>], iteration_bounds = array<i64: 32>, scalar_prefetch = 0 : i64, scratch_operands = 0 : i64, tpu.core_type = #tpu.core_type<tc>, window_params = [{transform_indices = @transform_0, window_bounds = array<i64: 128, 4>}, {pipeline_mode = #tpu.pipeline_mode<synchronous>, transform_indices = @transform_1, window_bounds = array<i64: 4, 6>}, {pipeline_mode = #tpu.pipeline_mode<synchronous>, transform_indices = @transform_2, window_bounds = array<i64: 1, 6>}, {pipeline_mode = #tpu.pipeline_mode<synchronous>, transform_indices = @transform_3, window_bounds = array<i64: 4, 6>}, {pipeline_mode = #tpu.pipeline_mode<synchronous>, transform_indices = @transform_4, window_bounds = array<i64: 1, 6>}, {transform_indices = @transform_5, window_bounds = array<i64: 128, 6>}]} {
    %c0 = arith.constant 0 : index
    %c0_0 = arith.constant 0 : index
    %0 = vector.load %arg1[%c0, %c0_0] : memref<128x4xbf16, #tpu.memory_space<vmem>>, vector<128x4xbf16>
    %c0_1 = arith.constant 0 : index
    %c0_2 = arith.constant 0 : index
    %1 = vector.load %arg2[%c0_1, %c0_2] : memref<4x6xbf16, #tpu.memory_space<vmem>>, vector<4x6xbf16>
    %cst = arith.constant dense<0.000000e+00> : vector<128x6xf32>
    %2 = tpu.matmul %0, %1, %cst {dimension_numbers = #tpu.dot_dimension_numbers<[1], [0], [0], [1], [0, 0, 1, 1], [], []>} : vector<128x4xbf16>, vector<4x6xbf16>, vector<128x6xf32> -> vector<128x6xf32>
    %c0_3 = arith.constant 0 : index
    %c0_4 = arith.constant 0 : index
    %3 = vector.load %arg3[%c0_3, %c0_4] : memref<1x6xf32, #tpu.memory_space<vmem>>, vector<1x6xf32>
    %4 = vector.broadcast %3 : vector<1x6xf32> to vector<128x6xf32>
    %5 = arith.addf %2, %4 : vector<128x6xf32>
    %c0_5 = arith.constant 0 : index
    %c0_6 = arith.constant 0 : index
    %6 = vector.load %arg4[%c0_5, %c0_6] : memref<4x6xbf16, #tpu.memory_space<vmem>>, vector<4x6xbf16>
    %cst_7 = arith.constant dense<0.000000e+00> : vector<128x6xf32>
    %7 = tpu.matmul %0, %6, %cst_7 {dimension_numbers = #tpu.dot_dimension_numbers<[1], [0], [0], [1], [0, 0, 1, 1], [], []>} : vector<128x4xbf16>, vector<4x6xbf16>, vector<128x6xf32> -> vector<128x6xf32>
    %c0_8 = arith.constant 0 : index
    %c0_9 = arith.constant 0 : index
    %8 = vector.load %arg5[%c0_8, %c0_9] : memref<1x6xf32, #tpu.memory_space<vmem>>, vector<1x6xf32>
    %9 = vector.broadcast %8 : vector<1x6xf32> to vector<128x6xf32>
    %10 = arith.addf %7, %9 : vector<128x6xf32>
    %cst_10 = arith.constant 0.000000e+00 : f32
    %11 = vector.broadcast %cst_10 : f32 to vector<128x6xf32>
    %12 = arith.maximumf %5, %11 : vector<128x6xf32>
    %cst_11 = arith.constant 0.000000e+00 : f32
    %13 = vector.broadcast %cst_11 : f32 to vector<128x6xf32>
    %14 = arith.cmpf oge, %10, %13 : vector<128x6xf32>
    %cst_12 = arith.constant 2.000000e-01 : f32
    %15 = vector.broadcast %cst_12 : f32 to vector<128x6xf32>
    %16 = arith.mulf %15, %10 : vector<128x6xf32>
    %17 = arith.select %14, %10, %16 : vector<128x6xi1>, vector<128x6xf32>
    %18 = arith.addf %12, %17 : vector<128x6xf32>
    %c0_13 = arith.constant 0 : index
    %c0_14 = arith.constant 0 : index
    %19 = vector.load %arg6[%c0_13, %c0_14] : memref<128x6xf32, #tpu.memory_space<vmem>>, vector<128x6xf32>
    tpu.vector_store %arg6[%c0_13, %c0_14], %18 {strides = array<i32>} : memref<128x6xf32, #tpu.memory_space<vmem>>, vector<128x6xf32>,
    return
  }
  func.func @transform_0(%arg0: i32) -> (i32, i32) {
    %c0_i32 = arith.constant 0 : i32
    %c0_i32_0 = arith.constant 0 : i32
    return %arg0, %c0_i32 : i32, i32
  }
  func.func @transform_1(%arg0: i32) -> (i32, i32) {
    %c0_i32 = arith.constant 0 : i32
    %c0_i32_0 = arith.constant 0 : i32
    %c0_i32_1 = arith.constant 0 : i32
    return %c0_i32, %c0_i32_0 : i32, i32
  }
  func.func @transform_2(%arg0: i32) -> (i32, i32) {
    %c0_i32 = arith.constant 0 : i32
    %c0_i32_0 = arith.constant 0 : i32
    %c0_i32_1 = arith.constant 0 : i32
    return %c0_i32, %c0_i32_0 : i32, i32
  }
  func.func @transform_3(%arg0: i32) -> (i32, i32) {
    %c0_i32 = arith.constant 0 : i32
    %c0_i32_0 = arith.constant 0 : i32
    %c0_i32_1 = arith.constant 0 : i32
    return %c0_i32, %c0_i32_0 : i32, i32
  }
  func.func @transform_4(%arg0: i32) -> (i32, i32) {
    %c0_i32 = arith.constant 0 : i32
    %c0_i32_0 = arith.constant 0 : i32
    %c0_i32_1 = arith.constant 0 : i32
    return %c0_i32, %c0_i32_0 : i32, i32
  }
  func.func @transform_5(%arg0: i32) -> (i32, i32) {
    %c0_i32 = arith.constant 0 : i32
    %c0_i32_0 = arith.constant 0 : i32
    return %arg0, %c0_i32 : i32, i32
  }
}

module attributes {stable_mosaic.version = 11 : i64} {
  func.func @_pn_mm_kernel(%arg0: i32, %arg1: memref<128x24xbf16, #tpu.memory_space<vmem>>, %arg2: memref<24x12xbf16, #tpu.memory_space<vmem>>, %arg3: memref<1x12xf32, #tpu.memory_space<vmem>>, %arg4: memref<24x12xbf16, #tpu.memory_space<vmem>>, %arg5: memref<1x12xf32, #tpu.memory_space<vmem>>, %arg6: memref<128x12xf32, #tpu.memory_space<vmem>>) attributes {dimension_semantics = [#tpu.dimension_semantics<parallel>], iteration_bounds = array<i64: 8>, scalar_prefetch = 0 : i64, scratch_operands = 0 : i64, tpu.core_type = #tpu.core_type<tc>, window_params = [{transform_indices = @transform_0, window_bounds = array<i64: 128, 24>}, {pipeline_mode = #tpu.pipeline_mode<synchronous>, transform_indices = @transform_1, window_bounds = array<i64: 24, 12>}, {pipeline_mode = #tpu.pipeline_mode<synchronous>, transform_indices = @transform_2, window_bounds = array<i64: 1, 12>}, {pipeline_mode = #tpu.pipeline_mode<synchronous>, transform_indices = @transform_3, window_bounds = array<i64: 24, 12>}, {pipeline_mode = #tpu.pipeline_mode<synchronous>, transform_indices = @transform_4, window_bounds = array<i64: 1, 12>}, {transform_indices = @transform_5, window_bounds = array<i64: 128, 12>}]} {
    %c0 = arith.constant 0 : index
    %c0_0 = arith.constant 0 : index
    %0 = vector.load %arg1[%c0, %c0_0] : memref<128x24xbf16, #tpu.memory_space<vmem>>, vector<128x24xbf16>
    %c0_1 = arith.constant 0 : index
    %c0_2 = arith.constant 0 : index
    %1 = vector.load %arg2[%c0_1, %c0_2] : memref<24x12xbf16, #tpu.memory_space<vmem>>, vector<24x12xbf16>
    %cst = arith.constant dense<0.000000e+00> : vector<128x12xf32>
    %2 = tpu.matmul %0, %1, %cst {dimension_numbers = #tpu.dot_dimension_numbers<[1], [0], [0], [1], [0, 0, 1, 1], [], []>} : vector<128x24xbf16>, vector<24x12xbf16>, vector<128x12xf32> -> vector<128x12xf32>
    %c0_3 = arith.constant 0 : index
    %c0_4 = arith.constant 0 : index
    %3 = vector.load %arg3[%c0_3, %c0_4] : memref<1x12xf32, #tpu.memory_space<vmem>>, vector<1x12xf32>
    %4 = vector.broadcast %3 : vector<1x12xf32> to vector<128x12xf32>
    %5 = arith.addf %2, %4 : vector<128x12xf32>
    %c0_5 = arith.constant 0 : index
    %c0_6 = arith.constant 0 : index
    %6 = vector.load %arg4[%c0_5, %c0_6] : memref<24x12xbf16, #tpu.memory_space<vmem>>, vector<24x12xbf16>
    %cst_7 = arith.constant dense<0.000000e+00> : vector<128x12xf32>
    %7 = tpu.matmul %0, %6, %cst_7 {dimension_numbers = #tpu.dot_dimension_numbers<[1], [0], [0], [1], [0, 0, 1, 1], [], []>} : vector<128x24xbf16>, vector<24x12xbf16>, vector<128x12xf32> -> vector<128x12xf32>
    %c0_8 = arith.constant 0 : index
    %c0_9 = arith.constant 0 : index
    %8 = vector.load %arg5[%c0_8, %c0_9] : memref<1x12xf32, #tpu.memory_space<vmem>>, vector<1x12xf32>
    %9 = vector.broadcast %8 : vector<1x12xf32> to vector<128x12xf32>
    %10 = arith.addf %7, %9 : vector<128x12xf32>
    %cst_10 = arith.constant 0.000000e+00 : f32
    %11 = vector.broadcast %cst_10 : f32 to vector<128x12xf32>
    %12 = arith.maximumf %5, %11 : vector<128x12xf32>
    %cst_11 = arith.constant 0.000000e+00 : f32
    %13 = vector.broadcast %cst_11 : f32 to vector<128x12xf32>
    %14 = arith.cmpf oge, %10, %13 : vector<128x12xf32>
    %cst_12 = arith.constant 2.000000e-01 : f32
    %15 = vector.broadcast %cst_12 : f32 to vector<128x12xf32>
    %16 = arith.mulf %15, %10 : vector<128x12xf32>
    %17 = arith.select %14, %10, %16 : vector<128x12xi1>, vector<128x12xf32>
    %18 = arith.addf %12, %17 : vector<128x12xf32>
    %c0_13 = arith.constant 0 : index
    %c0_14 = arith.constant 0 : index
    %19 = vector.load %arg6[%c0_13, %c0_14] : memref<128x12xf32, #tpu.memory_space<vmem>>, vector<128x12xf32>
    tpu.vector_store %arg6[%c0_13, %c0_14], %18 {strides = array<i32>} : memref<128x12xf32, #tpu.memory_space<vmem>>, vector<128x12xf32>,
    return
  }
  func.func @transform_0(%arg0: i32) -> (i32, i32) {
    %c0_i32 = arith.constant 0 : i32
    %c0_i32_0 = arith.constant 0 : i32
    return %arg0, %c0_i32 : i32, i32
  }
  func.func @transform_1(%arg0: i32) -> (i32, i32) {
    %c0_i32 = arith.constant 0 : i32
    %c0_i32_0 = arith.constant 0 : i32
    %c0_i32_1 = arith.constant 0 : i32
    return %c0_i32, %c0_i32_0 : i32, i32
  }
  func.func @transform_2(%arg0: i32) -> (i32, i32) {
    %c0_i32 = arith.constant 0 : i32
    %c0_i32_0 = arith.constant 0 : i32
    %c0_i32_1 = arith.constant 0 : i32
    return %c0_i32, %c0_i32_0 : i32, i32
  }
  func.func @transform_3(%arg0: i32) -> (i32, i32) {
    %c0_i32 = arith.constant 0 : i32
    %c0_i32_0 = arith.constant 0 : i32
    %c0_i32_1 = arith.constant 0 : i32
    return %c0_i32, %c0_i32_0 : i32, i32
  }
  func.func @transform_4(%arg0: i32) -> (i32, i32) {
    %c0_i32 = arith.constant 0 : i32
    %c0_i32_0 = arith.constant 0 : i32
    %c0_i32_1 = arith.constant 0 : i32
    return %c0_i32, %c0_i32_0 : i32, i32
  }
  func.func @transform_5(%arg0: i32) -> (i32, i32) {
    %c0_i32 = arith.constant 0 : i32
    %c0_i32_0 = arith.constant 0 : i32
    return %arg0, %c0_i32 : i32, i32
  }
}

module attributes {stable_mosaic.version = 11 : i64} {
  func.func @_mm_kernel(%arg0: i32, %arg1: memref<128x96xbf16, #tpu.memory_space<vmem>>, %arg2: memref<96x24xbf16, #tpu.memory_space<vmem>>, %arg3: memref<1x24xf32, #tpu.memory_space<vmem>>, %arg4: memref<128x24xf32, #tpu.memory_space<vmem>>) attributes {dimension_semantics = [#tpu.dimension_semantics<parallel>], iteration_bounds = array<i64: 2>, scalar_prefetch = 0 : i64, scratch_operands = 0 : i64, tpu.core_type = #tpu.core_type<tc>, window_params = [{transform_indices = @transform_0, window_bounds = array<i64: 128, 96>}, {pipeline_mode = #tpu.pipeline_mode<synchronous>, transform_indices = @transform_1, window_bounds = array<i64: 96, 24>}, {pipeline_mode = #tpu.pipeline_mode<synchronous>, transform_indices = @transform_2, window_bounds = array<i64: 1, 24>}, {transform_indices = @transform_3, window_bounds = array<i64: 128, 24>}]} {
    %c0 = arith.constant 0 : index
    %c0_0 = arith.constant 0 : index
    %0 = vector.load %arg1[%c0, %c0_0] : memref<128x96xbf16, #tpu.memory_space<vmem>>, vector<128x96xbf16>
    %c0_1 = arith.constant 0 : index
    %c0_2 = arith.constant 0 : index
    %1 = vector.load %arg2[%c0_1, %c0_2] : memref<96x24xbf16, #tpu.memory_space<vmem>>, vector<96x24xbf16>
    %cst = arith.constant dense<0.000000e+00> : vector<128x24xf32>
    %2 = tpu.matmul %0, %1, %cst {dimension_numbers = #tpu.dot_dimension_numbers<[1], [0], [0], [1], [0, 0, 1, 1], [], []>} : vector<128x96xbf16>, vector<96x24xbf16>, vector<128x24xf32> -> vector<128x24xf32>
    %c0_3 = arith.constant 0 : index
    %c0_4 = arith.constant 0 : index
    %3 = vector.load %arg3[%c0_3, %c0_4] : memref<1x24xf32, #tpu.memory_space<vmem>>, vector<1x24xf32>
    %4 = vector.broadcast %3 : vector<1x24xf32> to vector<128x24xf32>
    %5 = arith.addf %2, %4 : vector<128x24xf32>
    %cst_5 = arith.constant 0.000000e+00 : f32
    %6 = vector.broadcast %cst_5 : f32 to vector<128x24xf32>
    %7 = arith.maximumf %5, %6 : vector<128x24xf32>
    %c0_6 = arith.constant 0 : index
    %c0_7 = arith.constant 0 : index
    %8 = vector.load %arg4[%c0_6, %c0_7] : memref<128x24xf32, #tpu.memory_space<vmem>>, vector<128x24xf32>
    tpu.vector_store %arg4[%c0_6, %c0_7], %7 {strides = array<i32>} : memref<128x24xf32, #tpu.memory_space<vmem>>, vector<128x24xf32>,
    return
  }
  func.func @transform_0(%arg0: i32) -> (i32, i32) {
    %c0_i32 = arith.constant 0 : i32
    %c0_i32_0 = arith.constant 0 : i32
    return %arg0, %c0_i32 : i32, i32
  }
  func.func @transform_1(%arg0: i32) -> (i32, i32) {
    %c0_i32 = arith.constant 0 : i32
    %c0_i32_0 = arith.constant 0 : i32
    %c0_i32_1 = arith.constant 0 : i32
    return %c0_i32, %c0_i32_0 : i32, i32
  }
  func.func @transform_2(%arg0: i32) -> (i32, i32) {
    %c0_i32 = arith.constant 0 : i32
    %c0_i32_0 = arith.constant 0 : i32
    %c0_i32_1 = arith.constant 0 : i32
    return %c0_i32, %c0_i32_0 : i32, i32
  }
  func.func @transform_3(%arg0: i32) -> (i32, i32) {
    %c0_i32 = arith.constant 0 : i32
    %c0_i32_0 = arith.constant 0 : i32
    return %arg0, %c0_i32 : i32, i32
  }
}

module attributes {stable_mosaic.version = 11 : i64} {
  func.func @_mm_kernel(%arg0: i32, %arg1: memref<64x192xbf16, #tpu.memory_space<vmem>>, %arg2: memref<192x48xbf16, #tpu.memory_space<vmem>>, %arg3: memref<1x48xf32, #tpu.memory_space<vmem>>, %arg4: memref<64x48xf32, #tpu.memory_space<vmem>>) attributes {dimension_semantics = [#tpu.dimension_semantics<parallel>], iteration_bounds = array<i64: 1>, scalar_prefetch = 0 : i64, scratch_operands = 0 : i64, tpu.core_type = #tpu.core_type<tc>, window_params = [{transform_indices = @transform_0, window_bounds = array<i64: 64, 192>}, {pipeline_mode = #tpu.pipeline_mode<synchronous>, transform_indices = @transform_1, window_bounds = array<i64: 192, 48>}, {pipeline_mode = #tpu.pipeline_mode<synchronous>, transform_indices = @transform_2, window_bounds = array<i64: 1, 48>}, {transform_indices = @transform_3, window_bounds = array<i64: 64, 48>}]} {
    %c0 = arith.constant 0 : index
    %c0_0 = arith.constant 0 : index
    %0 = vector.load %arg1[%c0, %c0_0] : memref<64x192xbf16, #tpu.memory_space<vmem>>, vector<64x192xbf16>
    %c0_1 = arith.constant 0 : index
    %c0_2 = arith.constant 0 : index
    %1 = vector.load %arg2[%c0_1, %c0_2] : memref<192x48xbf16, #tpu.memory_space<vmem>>, vector<192x48xbf16>
    %cst = arith.constant dense<0.000000e+00> : vector<64x48xf32>
    %2 = tpu.matmul %0, %1, %cst {dimension_numbers = #tpu.dot_dimension_numbers<[1], [0], [0], [1], [0, 0, 1, 1], [], []>} : vector<64x192xbf16>, vector<192x48xbf16>, vector<64x48xf32> -> vector<64x48xf32>
    %c0_3 = arith.constant 0 : index
    %c0_4 = arith.constant 0 : index
    %3 = vector.load %arg3[%c0_3, %c0_4] : memref<1x48xf32, #tpu.memory_space<vmem>>, vector<1x48xf32>
    %4 = vector.broadcast %3 : vector<1x48xf32> to vector<64x48xf32>
    %5 = arith.addf %2, %4 : vector<64x48xf32>
    %cst_5 = arith.constant 0.000000e+00 : f32
    %6 = vector.broadcast %cst_5 : f32 to vector<64x48xf32>
    %7 = arith.maximumf %5, %6 : vector<64x48xf32>
    %c0_6 = arith.constant 0 : index
    %c0_7 = arith.constant 0 : index
    %8 = vector.load %arg4[%c0_6, %c0_7] : memref<64x48xf32, #tpu.memory_space<vmem>>, vector<64x48xf32>
    tpu.vector_store %arg4[%c0_6, %c0_7], %7 {strides = array<i32>} : memref<64x48xf32, #tpu.memory_space<vmem>>, vector<64x48xf32>,
    return
  }
  func.func @transform_0(%arg0: i32) -> (i32, i32) {
    %c0_i32 = arith.constant 0 : i32
    %c0_i32_0 = arith.constant 0 : i32
    return %arg0, %c0_i32 : i32, i32
  }
  func.func @transform_1(%arg0: i32) -> (i32, i32) {
    %c0_i32 = arith.constant 0 : i32
    %c0_i32_0 = arith.constant 0 : i32
    %c0_i32_1 = arith.constant 0 : i32
    return %c0_i32, %c0_i32_0 : i32, i32
  }
  func.func @transform_2(%arg0: i32) -> (i32, i32) {
    %c0_i32 = arith.constant 0 : i32
    %c0_i32_0 = arith.constant 0 : i32
    %c0_i32_1 = arith.constant 0 : i32
    return %c0_i32, %c0_i32_0 : i32, i32
  }
  func.func @transform_3(%arg0: i32) -> (i32, i32) {
    %c0_i32 = arith.constant 0 : i32
    %c0_i32_0 = arith.constant 0 : i32
    return %arg0, %c0_i32 : i32, i32
  }
}

module attributes {stable_mosaic.version = 11 : i64} {
  func.func @_mm_kernel(%arg0: i32, %arg1: memref<16x576xbf16, #tpu.memory_space<vmem>>, %arg2: memref<576x96xbf16, #tpu.memory_space<vmem>>, %arg3: memref<1x96xf32, #tpu.memory_space<vmem>>, %arg4: memref<16x96xf32, #tpu.memory_space<vmem>>) attributes {dimension_semantics = [#tpu.dimension_semantics<parallel>], iteration_bounds = array<i64: 1>, scalar_prefetch = 0 : i64, scratch_operands = 0 : i64, tpu.core_type = #tpu.core_type<tc>, window_params = [{transform_indices = @transform_0, window_bounds = array<i64: 16, 576>}, {pipeline_mode = #tpu.pipeline_mode<synchronous>, transform_indices = @transform_1, window_bounds = array<i64: 576, 96>}, {pipeline_mode = #tpu.pipeline_mode<synchronous>, transform_indices = @transform_2, window_bounds = array<i64: 1, 96>}, {transform_indices = @transform_3, window_bounds = array<i64: 16, 96>}]} {
    %c0 = arith.constant 0 : index
    %c0_0 = arith.constant 0 : index
    %0 = vector.load %arg1[%c0, %c0_0] : memref<16x576xbf16, #tpu.memory_space<vmem>>, vector<16x576xbf16>
    %c0_1 = arith.constant 0 : index
    %c0_2 = arith.constant 0 : index
    %1 = vector.load %arg2[%c0_1, %c0_2] : memref<576x96xbf16, #tpu.memory_space<vmem>>, vector<576x96xbf16>
    %cst = arith.constant dense<0.000000e+00> : vector<16x96xf32>
    %2 = tpu.matmul %0, %1, %cst {dimension_numbers = #tpu.dot_dimension_numbers<[1], [0], [0], [1], [0, 0, 1, 1], [], []>} : vector<16x576xbf16>, vector<576x96xbf16>, vector<16x96xf32> -> vector<16x96xf32>
    %c0_3 = arith.constant 0 : index
    %c0_4 = arith.constant 0 : index
    %3 = vector.load %arg3[%c0_3, %c0_4] : memref<1x96xf32, #tpu.memory_space<vmem>>, vector<1x96xf32>
    %4 = vector.broadcast %3 : vector<1x96xf32> to vector<16x96xf32>
    %5 = arith.addf %2, %4 : vector<16x96xf32>
    %cst_5 = arith.constant 0.000000e+00 : f32
    %6 = vector.broadcast %cst_5 : f32 to vector<16x96xf32>
    %7 = arith.maximumf %5, %6 : vector<16x96xf32>
    %c0_6 = arith.constant 0 : index
    %c0_7 = arith.constant 0 : index
    %8 = vector.load %arg4[%c0_6, %c0_7] : memref<16x96xf32, #tpu.memory_space<vmem>>, vector<16x96xf32>
    tpu.vector_store %arg4[%c0_6, %c0_7], %7 {strides = array<i32>} : memref<16x96xf32, #tpu.memory_space<vmem>>, vector<16x96xf32>,
    return
  }
  func.func @transform_0(%arg0: i32) -> (i32, i32) {
    %c0_i32 = arith.constant 0 : i32
    %c0_i32_0 = arith.constant 0 : i32
    return %arg0, %c0_i32 : i32, i32
  }
  func.func @transform_1(%arg0: i32) -> (i32, i32) {
    %c0_i32 = arith.constant 0 : i32
    %c0_i32_0 = arith.constant 0 : i32
    %c0_i32_1 = arith.constant 0 : i32
    return %c0_i32, %c0_i32_0 : i32, i32
  }
  func.func @transform_2(%arg0: i32) -> (i32, i32) {
    %c0_i32 = arith.constant 0 : i32
    %c0_i32_0 = arith.constant 0 : i32
    %c0_i32_1 = arith.constant 0 : i32
    return %c0_i32, %c0_i32_0 : i32, i32
  }
  func.func @transform_3(%arg0: i32) -> (i32, i32) {
    %c0_i32 = arith.constant 0 : i32
    %c0_i32_0 = arith.constant 0 : i32
    return %arg0, %c0_i32 : i32, i32
  }
}

module attributes {stable_mosaic.version = 11 : i64} {
  func.func @_mm_kernel(%arg0: i32, %arg1: memref<16x96xbf16, #tpu.memory_space<vmem>>, %arg2: memref<96x384xbf16, #tpu.memory_space<vmem>>, %arg3: memref<1x384xf32, #tpu.memory_space<vmem>>, %arg4: memref<16x384xf32, #tpu.memory_space<vmem>>) attributes {dimension_semantics = [#tpu.dimension_semantics<parallel>], iteration_bounds = array<i64: 1>, scalar_prefetch = 0 : i64, scratch_operands = 0 : i64, tpu.core_type = #tpu.core_type<tc>, window_params = [{transform_indices = @transform_0, window_bounds = array<i64: 16, 96>}, {pipeline_mode = #tpu.pipeline_mode<synchronous>, transform_indices = @transform_1, window_bounds = array<i64: 96, 384>}, {pipeline_mode = #tpu.pipeline_mode<synchronous>, transform_indices = @transform_2, window_bounds = array<i64: 1, 384>}, {transform_indices = @transform_3, window_bounds = array<i64: 16, 384>}]} {
    %c0 = arith.constant 0 : index
    %c0_0 = arith.constant 0 : index
    %0 = vector.load %arg1[%c0, %c0_0] : memref<16x96xbf16, #tpu.memory_space<vmem>>, vector<16x96xbf16>
    %c0_1 = arith.constant 0 : index
    %c0_2 = arith.constant 0 : index
    %1 = vector.load %arg2[%c0_1, %c0_2] : memref<96x384xbf16, #tpu.memory_space<vmem>>, vector<96x384xbf16>
    %cst = arith.constant dense<0.000000e+00> : vector<16x384xf32>
    %2 = tpu.matmul %0, %1, %cst {dimension_numbers = #tpu.dot_dimension_numbers<[1], [0], [0], [1], [0, 0, 1, 1], [], []>} : vector<16x96xbf16>, vector<96x384xbf16>, vector<16x384xf32> -> vector<16x384xf32>
    %c0_3 = arith.constant 0 : index
    %c0_4 = arith.constant 0 : index
    %3 = vector.load %arg3[%c0_3, %c0_4] : memref<1x384xf32, #tpu.memory_space<vmem>>, vector<1x384xf32>
    %4 = vector.broadcast %3 : vector<1x384xf32> to vector<16x384xf32>
    %5 = arith.addf %2, %4 : vector<16x384xf32>
    %c0_5 = arith.constant 0 : index
    %c0_6 = arith.constant 0 : index
    %6 = vector.load %arg4[%c0_5, %c0_6] : memref<16x384xf32, #tpu.memory_space<vmem>>, vector<16x384xf32>
    tpu.vector_store %arg4[%c0_5, %c0_6], %5 {strides = array<i32>} : memref<16x384xf32, #tpu.memory_space<vmem>>, vector<16x384xf32>,
    return
  }
  func.func @transform_0(%arg0: i32) -> (i32, i32) {
    %c0_i32 = arith.constant 0 : i32
    %c0_i32_0 = arith.constant 0 : i32
    return %arg0, %c0_i32 : i32, i32
  }
  func.func @transform_1(%arg0: i32) -> (i32, i32) {
    %c0_i32 = arith.constant 0 : i32
    %c0_i32_0 = arith.constant 0 : i32
    %c0_i32_1 = arith.constant 0 : i32
    return %c0_i32, %c0_i32_0 : i32, i32
  }
  func.func @transform_2(%arg0: i32) -> (i32, i32) {
    %c0_i32 = arith.constant 0 : i32
    %c0_i32_0 = arith.constant 0 : i32
    %c0_i32_1 = arith.constant 0 : i32
    return %c0_i32, %c0_i32_0 : i32, i32
  }
  func.func @transform_3(%arg0: i32) -> (i32, i32) {
    %c0_i32 = arith.constant 0 : i32
    %c0_i32_0 = arith.constant 0 : i32
    return %arg0, %c0_i32 : i32, i32
  }
}

module attributes {stable_mosaic.version = 11 : i64} {
  func.func @_lstm_rec_kernel(%arg0: memref<5x2x384xf32, #tpu.memory_space<vmem>>, %arg1: memref<96x384xf32, #tpu.memory_space<vmem>>, %arg2: memref<5x2x96xf32, #tpu.memory_space<vmem>>) attributes {dimension_semantics = [], scalar_prefetch = 0 : i64, scratch_operands = 0 : i64, tpu.core_type = #tpu.core_type<tc>} {
    %c0 = arith.constant 0 : index
    %c0_0 = arith.constant 0 : index
    %0 = vector.load %arg1[%c0, %c0_0] : memref<96x384xf32, #tpu.memory_space<vmem>>, vector<96x384xf32>
    %cst = arith.constant 0.000000e+00 : f32
    %1 = vector.broadcast %cst : f32 to vector<2x96xf32>
    %cst_1 = arith.constant 0.000000e+00 : f32
    %2 = vector.broadcast %cst_1 : f32 to vector<2x96xf32>
    %c0_i32 = arith.constant 0 : i32
    %c5_i32 = arith.constant 5 : i32
    %3 = arith.addi %c0_i32, %c5_i32 : i32
    %c1_i32 = arith.constant 1 : i32
    %4:2 = scf.for %arg3 = %c0_i32 to %3 step %c1_i32 iter_args(%arg4 = %1, %arg5 = %2) -> (vector<2x96xf32>, vector<2x96xf32>)  : i32 {
      %5 = arith.index_cast %arg3 : i32 to index
      %c0_3 = arith.constant 0 : index
      %c0_4 = arith.constant 0 : index
      %6 = vector.load %arg0[%5, %c0_3, %c0_4] : memref<5x2x384xf32, #tpu.memory_space<vmem>>, vector<1x2x384xf32>
      %7 = vector.shape_cast %6 : vector<1x2x384xf32> to vector<2x384xf32>
      %cst_5 = arith.constant dense<0.000000e+00> : vector<2x384xf32>
      %8 = tpu.matmul %arg4, %0, %cst_5 {dimension_numbers = #tpu.dot_dimension_numbers<[1], [0], [0], [1], [0, 0, 1, 1], [], []>} : vector<2x96xf32>, vector<96x384xf32>, vector<2x384xf32> -> vector<2x384xf32>
      %9 = arith.addf %7, %8 : vector<2x384xf32>
      %10 = vector.extract_strided_slice %9 {offsets = [0, 0], sizes = [2, 96], strides = [1, 1]} : vector<2x384xf32> to vector<2x96xf32>
      %11 = arith.negf %10 : vector<2x96xf32>
      %12 = math.exp %11 : vector<2x96xf32>
      %cst_6 = arith.constant 1.000000e+00 : f32
      %13 = vector.broadcast %cst_6 : f32 to vector<2x96xf32>
      %14 = arith.addf %13, %12 : vector<2x96xf32>
      %15 = arith.divf %13, %14 : vector<2x96xf32>
      %16 = vector.extract_strided_slice %9 {offsets = [0, 96], sizes = [2, 96], strides = [1, 1]} : vector<2x384xf32> to vector<2x96xf32>
      %17 = arith.negf %16 : vector<2x96xf32>
      %18 = math.exp %17 : vector<2x96xf32>
      %cst_7 = arith.constant 1.000000e+00 : f32
      %19 = vector.broadcast %cst_7 : f32 to vector<2x96xf32>
      %20 = arith.addf %19, %18 : vector<2x96xf32>
      %21 = arith.divf %19, %20 : vector<2x96xf32>
      %22 = vector.extract_strided_slice %9 {offsets = [0, 192], sizes = [2, 96], strides = [1, 1]} : vector<2x384xf32> to vector<2x96xf32>
      %23 = math.tanh %22 : vector<2x96xf32>
      %24 = vector.extract_strided_slice %9 {offsets = [0, 288], sizes = [2, 96], strides = [1, 1]} : vector<2x384xf32> to vector<2x96xf32>
      %25 = arith.negf %24 : vector<2x96xf32>
      %26 = math.exp %25 : vector<2x96xf32>
      %cst_8 = arith.constant 1.000000e+00 : f32
      %27 = vector.broadcast %cst_8 : f32 to vector<2x96xf32>
      %28 = arith.addf %27, %26 : vector<2x96xf32>
      %29 = arith.divf %27, %28 : vector<2x96xf32>
      %30 = arith.mulf %21, %arg5 : vector<2x96xf32>
      %31 = arith.mulf %15, %23 : vector<2x96xf32>
      %32 = arith.addf %30, %31 : vector<2x96xf32>
      %33 = math.tanh %32 : vector<2x96xf32>
      %34 = arith.mulf %29, %33 : vector<2x96xf32>
      %35 = vector.shape_cast %34 : vector<2x96xf32> to vector<1x2x96xf32>
      %36 = arith.index_cast %arg3 : i32 to index
      %c0_9 = arith.constant 0 : index
      %c0_10 = arith.constant 0 : index
      %37 = vector.load %arg2[%36, %c0_9, %c0_10] : memref<5x2x96xf32, #tpu.memory_space<vmem>>, vector<1x2x96xf32>
      tpu.vector_store %arg2[%36, %c0_9, %c0_10], %35 {strides = array<i32>} : memref<5x2x96xf32, #tpu.memory_space<vmem>>, vector<1x2x96xf32>,
      scf.yield %34, %32 : vector<2x96xf32>, vector<2x96xf32>
    }
    %c5_i32_2 = arith.constant 5 : i32
    return
  }
}

module attributes {stable_mosaic.version = 11 : i64} {
  func.func @_sep_node_kernel(%arg0: memref<1xf32, #tpu.memory_space<smem>>, %arg1: memref<3x96xf32, #tpu.memory_space<vmem>>, %arg2: memref<96x48xbf16, #tpu.memory_space<vmem>>, %arg3: memref<1x48xf32, #tpu.memory_space<vmem>>, %arg4: memref<2x16x96xf32, #tpu.memory_space<vmem>>, %arg5: memref<2x16x48xf32, #tpu.memory_space<vmem>>, %arg6: memref<32x96xf32, #tpu.memory_space<vmem>>) attributes {dimension_semantics = [], scalar_prefetch = 0 : i64, scratch_operands = 1 : i64, tpu.core_type = #tpu.core_type<tc>} {
    %c0 = arith.constant 0 : index
    %c0_0 = arith.constant 0 : index
    %0 = vector.load %arg2[%c0, %c0_0] : memref<96x48xbf16, #tpu.memory_space<vmem>>, vector<96x48xbf16>
    %c0_1 = arith.constant 0 : index
    %c0_2 = arith.constant 0 : index
    %1 = vector.load %arg3[%c0_1, %c0_2] : memref<1x48xf32, #tpu.memory_space<vmem>>, vector<1x48xf32>
    %c0_3 = arith.constant 0 : index
    %c0_4 = arith.constant 0 : index
    %2 = vector.load %arg1[%c0_3, %c0_4] : memref<3x96xf32, #tpu.memory_space<vmem>>, vector<1x96xf32>
    %c1 = arith.constant 1 : index
    %c0_5 = arith.constant 0 : index
    %3 = vector.load %arg1[%c1, %c0_5] : memref<3x96xf32, #tpu.memory_space<vmem>>, vector<1x96xf32>
    %c2 = arith.constant 2 : index
    %c0_6 = arith.constant 0 : index
    %4 = vector.load %arg1[%c2, %c0_6] : memref<3x96xf32, #tpu.memory_space<vmem>>, vector<1x96xf32>
    %c0_7 = arith.constant 0 : index
    %5 = memref.load %arg0[%c0_7] : memref<1xf32, #tpu.memory_space<smem>>
    %c0_8 = arith.constant 0 : index
    %c0_9 = arith.constant 0 : index
    %c0_10 = arith.constant 0 : index
    %6 = vector.load %arg4[%c0_8, %c0_9, %c0_10] : memref<2x16x96xf32, #tpu.memory_space<vmem>>, vector<1x16x96xf32>
    %7 = vector.shape_cast %6 : vector<1x16x96xf32> to vector<16x96xf32>
    %8 = vector.broadcast %5 : f32 to vector<16x96xf32>
    %9 = arith.mulf %8, %7 : vector<16x96xf32>
    %cst = arith.constant 0.000000e+00 : f32
    %10 = vector.broadcast %cst : f32 to vector<32x96xf32>
    %c0_11 = arith.constant 0 : index
    %c0_12 = arith.constant 0 : index
    %11 = vector.load %arg6[%c0_11, %c0_12] : memref<32x96xf32, #tpu.memory_space<vmem>>, vector<32x96xf32>
    tpu.vector_store %arg6[%c0_11, %c0_12], %10 {strides = array<i32>} : memref<32x96xf32, #tpu.memory_space<vmem>>, vector<32x96xf32>,
    %c8 = arith.constant 8 : index
    %c0_13 = arith.constant 0 : index
    %12 = vector.load %arg6[%c8, %c0_13] : memref<32x96xf32, #tpu.memory_space<vmem>>, vector<16x96xf32>
    tpu.vector_store %arg6[%c8, %c0_13], %9 {strides = array<i32>} : memref<32x96xf32, #tpu.memory_space<vmem>>, vector<16x96xf32>,
    %c7 = arith.constant 7 : index
    %c0_14 = arith.constant 0 : index
    %13 = vector.load %arg6[%c7, %c0_14] : memref<32x96xf32, #tpu.memory_space<vmem>>, vector<16x96xf32>
    %14 = vector.broadcast %2 : vector<1x96xf32> to vector<16x96xf32>
    %15 = arith.mulf %14, %13 : vector<16x96xf32>
    %16 = vector.broadcast %3 : vector<1x96xf32> to vector<16x96xf32>
    %17 = arith.mulf %16, %9 : vector<16x96xf32>
    %18 = arith.addf %15, %17 : vector<16x96xf32>
    %c9 = arith.constant 9 : index
    %c0_15 = arith.constant 0 : index
    %19 = vector.load %arg6[%c9, %c0_15] : memref<32x96xf32, #tpu.memory_space<vmem>>, vector<16x96xf32>
    %20 = vector.broadcast %4 : vector<1x96xf32> to vector<16x96xf32>
    %21 = arith.mulf %20, %19 : vector<16x96xf32>
    %22 = arith.addf %18, %21 : vector<16x96xf32>
    %23 = arith.truncf %22 : vector<16x96xf32> to vector<16x96xbf16>
    %cst_16 = arith.constant dense<0.000000e+00> : vector<16x48xf32>
    %24 = tpu.matmul %23, %0, %cst_16 {dimension_numbers = #tpu.dot_dimension_numbers<[1], [0], [0], [1], [0, 0, 1, 1], [], []>} : vector<16x96xbf16>, vector<96x48xbf16>, vector<16x48xf32> -> vector<16x48xf32>
    %25 = vector.broadcast %1 : vector<1x48xf32> to vector<16x48xf32>
    %26 = arith.addf %24, %25 : vector<16x48xf32>
    %cst_17 = arith.constant 0.999500393 : f32
    %27 = vector.broadcast %cst_17 : f32 to vector<16x48xf32>
    %28 = arith.mulf %26, %27 : vector<16x48xf32>
    %c0_18 = arith.constant 0 : index
    %c0_19 = arith.constant 0 : index
    %c0_20 = arith.constant 0 : index
    %29 = vector.load %arg5[%c0_18, %c0_19, %c0_20] : memref<2x16x48xf32, #tpu.memory_space<vmem>>, vector<1x16x48xf32>
    %30 = vector.shape_cast %29 : vector<1x16x48xf32> to vector<16x48xf32>
    %31 = vector.shape_cast %28 : vector<16x48xf32> to vector<1x16x48xf32>
    tpu.vector_store %arg5[%c0_18, %c0_19, %c0_20], %31 {strides = array<i32>} : memref<2x16x48xf32, #tpu.memory_space<vmem>>, vector<1x16x48xf32>,
    %c0_21 = arith.constant 0 : index
    %32 = memref.load %arg0[%c0_21] : memref<1xf32, #tpu.memory_space<smem>>
    %c1_22 = arith.constant 1 : index
    %c0_23 = arith.constant 0 : index
    %c0_24 = arith.constant 0 : index
    %33 = vector.load %arg4[%c1_22, %c0_23, %c0_24] : memref<2x16x96xf32, #tpu.memory_space<vmem>>, vector<1x16x96xf32>
    %34 = vector.shape_cast %33 : vector<1x16x96xf32> to vector<16x96xf32>
    %35 = vector.broadcast %32 : f32 to vector<16x96xf32>
    %36 = arith.mulf %35, %34 : vector<16x96xf32>
    %cst_25 = arith.constant 0.000000e+00 : f32
    %37 = vector.broadcast %cst_25 : f32 to vector<32x96xf32>
    %c0_26 = arith.constant 0 : index
    %c0_27 = arith.constant 0 : index
    %38 = vector.load %arg6[%c0_26, %c0_27] : memref<32x96xf32, #tpu.memory_space<vmem>>, vector<32x96xf32>
    tpu.vector_store %arg6[%c0_26, %c0_27], %37 {strides = array<i32>} : memref<32x96xf32, #tpu.memory_space<vmem>>, vector<32x96xf32>,
    %c8_28 = arith.constant 8 : index
    %c0_29 = arith.constant 0 : index
    %39 = vector.load %arg6[%c8_28, %c0_29] : memref<32x96xf32, #tpu.memory_space<vmem>>, vector<16x96xf32>
    tpu.vector_store %arg6[%c8_28, %c0_29], %36 {strides = array<i32>} : memref<32x96xf32, #tpu.memory_space<vmem>>, vector<16x96xf32>,
    %c7_30 = arith.constant 7 : index
    %c0_31 = arith.constant 0 : index
    %40 = vector.load %arg6[%c7_30, %c0_31] : memref<32x96xf32, #tpu.memory_space<vmem>>, vector<16x96xf32>
    %41 = vector.broadcast %2 : vector<1x96xf32> to vector<16x96xf32>
    %42 = arith.mulf %41, %40 : vector<16x96xf32>
    %43 = vector.broadcast %3 : vector<1x96xf32> to vector<16x96xf32>
    %44 = arith.mulf %43, %36 : vector<16x96xf32>
    %45 = arith.addf %42, %44 : vector<16x96xf32>
    %c9_32 = arith.constant 9 : index
    %c0_33 = arith.constant 0 : index
    %46 = vector.load %arg6[%c9_32, %c0_33] : memref<32x96xf32, #tpu.memory_space<vmem>>, vector<16x96xf32>
    %47 = vector.broadcast %4 : vector<1x96xf32> to vector<16x96xf32>
    %48 = arith.mulf %47, %46 : vector<16x96xf32>
    %49 = arith.addf %45, %48 : vector<16x96xf32>
    %50 = arith.truncf %49 : vector<16x96xf32> to vector<16x96xbf16>
    %cst_34 = arith.constant dense<0.000000e+00> : vector<16x48xf32>
    %51 = tpu.matmul %50, %0, %cst_34 {dimension_numbers = #tpu.dot_dimension_numbers<[1], [0], [0], [1], [0, 0, 1, 1], [], []>} : vector<16x96xbf16>, vector<96x48xbf16>, vector<16x48xf32> -> vector<16x48xf32>
    %52 = vector.broadcast %1 : vector<1x48xf32> to vector<16x48xf32>
    %53 = arith.addf %51, %52 : vector<16x48xf32>
    %cst_35 = arith.constant 0.999500393 : f32
    %54 = vector.broadcast %cst_35 : f32 to vector<16x48xf32>
    %55 = arith.mulf %53, %54 : vector<16x48xf32>
    %c1_36 = arith.constant 1 : index
    %c0_37 = arith.constant 0 : index
    %c0_38 = arith.constant 0 : index
    %56 = vector.load %arg5[%c1_36, %c0_37, %c0_38] : memref<2x16x48xf32, #tpu.memory_space<vmem>>, vector<1x16x48xf32>
    %57 = vector.shape_cast %56 : vector<1x16x48xf32> to vector<16x48xf32>
    %58 = vector.shape_cast %55 : vector<16x48xf32> to vector<1x16x48xf32>
    tpu.vector_store %arg5[%c1_36, %c0_37, %c0_38], %58 {strides = array<i32>} : memref<2x16x48xf32, #tpu.memory_space<vmem>>, vector<1x16x48xf32>,
    return
  }
}

module attributes {stable_mosaic.version = 11 : i64} {
  func.func @_sep_node_kernel(%arg0: memref<2xf32, #tpu.memory_space<smem>>, %arg1: memref<3x48xf32, #tpu.memory_space<vmem>>, %arg2: memref<48x48xbf16, #tpu.memory_space<vmem>>, %arg3: memref<1x48xf32, #tpu.memory_space<vmem>>, %arg4: memref<2x16x48xf32, #tpu.memory_space<vmem>>, %arg5: memref<2x16x48xf32, #tpu.memory_space<vmem>>, %arg6: memref<2x16x48xf32, #tpu.memory_space<vmem>>, %arg7: memref<32x48xf32, #tpu.memory_space<vmem>>) attributes {dimension_semantics = [], scalar_prefetch = 0 : i64, scratch_operands = 1 : i64, tpu.core_type = #tpu.core_type<tc>} {
    %c0 = arith.constant 0 : index
    %c0_0 = arith.constant 0 : index
    %0 = vector.load %arg2[%c0, %c0_0] : memref<48x48xbf16, #tpu.memory_space<vmem>>, vector<48x48xbf16>
    %c0_1 = arith.constant 0 : index
    %c0_2 = arith.constant 0 : index
    %1 = vector.load %arg3[%c0_1, %c0_2] : memref<1x48xf32, #tpu.memory_space<vmem>>, vector<1x48xf32>
    %c0_3 = arith.constant 0 : index
    %c0_4 = arith.constant 0 : index
    %2 = vector.load %arg1[%c0_3, %c0_4] : memref<3x48xf32, #tpu.memory_space<vmem>>, vector<1x48xf32>
    %c1 = arith.constant 1 : index
    %c0_5 = arith.constant 0 : index
    %3 = vector.load %arg1[%c1, %c0_5] : memref<3x48xf32, #tpu.memory_space<vmem>>, vector<1x48xf32>
    %c2 = arith.constant 2 : index
    %c0_6 = arith.constant 0 : index
    %4 = vector.load %arg1[%c2, %c0_6] : memref<3x48xf32, #tpu.memory_space<vmem>>, vector<1x48xf32>
    %c0_7 = arith.constant 0 : index
    %5 = memref.load %arg0[%c0_7] : memref<2xf32, #tpu.memory_space<smem>>
    %c0_8 = arith.constant 0 : index
    %c0_9 = arith.constant 0 : index
    %c0_10 = arith.constant 0 : index
    %6 = vector.load %arg4[%c0_8, %c0_9, %c0_10] : memref<2x16x48xf32, #tpu.memory_space<vmem>>, vector<1x16x48xf32>
    %7 = vector.shape_cast %6 : vector<1x16x48xf32> to vector<16x48xf32>
    %8 = vector.broadcast %5 : f32 to vector<16x48xf32>
    %9 = arith.mulf %8, %7 : vector<16x48xf32>
    %c1_11 = arith.constant 1 : index
    %10 = memref.load %arg0[%c1_11] : memref<2xf32, #tpu.memory_space<smem>>
    %c0_12 = arith.constant 0 : index
    %c0_13 = arith.constant 0 : index
    %c0_14 = arith.constant 0 : index
    %11 = vector.load %arg5[%c0_12, %c0_13, %c0_14] : memref<2x16x48xf32, #tpu.memory_space<vmem>>, vector<1x16x48xf32>
    %12 = vector.shape_cast %11 : vector<1x16x48xf32> to vector<16x48xf32>
    %13 = vector.broadcast %10 : f32 to vector<16x48xf32>
    %14 = arith.mulf %13, %12 : vector<16x48xf32>
    %15 = arith.addf %9, %14 : vector<16x48xf32>
    %16 = arith.negf %15 : vector<16x48xf32>
    %17 = math.exp %16 : vector<16x48xf32>
    %cst = arith.constant 1.000000e+00 : f32
    %18 = vector.broadcast %cst : f32 to vector<16x48xf32>
    %19 = arith.addf %18, %17 : vector<16x48xf32>
    %20 = arith.divf %18, %19 : vector<16x48xf32>
    %21 = arith.mulf %15, %20 : vector<16x48xf32>
    %cst_15 = arith.constant 0.000000e+00 : f32
    %22 = vector.broadcast %cst_15 : f32 to vector<32x48xf32>
    %c0_16 = arith.constant 0 : index
    %c0_17 = arith.constant 0 : index
    %23 = vector.load %arg7[%c0_16, %c0_17] : memref<32x48xf32, #tpu.memory_space<vmem>>, vector<32x48xf32>
    tpu.vector_store %arg7[%c0_16, %c0_17], %22 {strides = array<i32>} : memref<32x48xf32, #tpu.memory_space<vmem>>, vector<32x48xf32>,
    %c8 = arith.constant 8 : index
    %c0_18 = arith.constant 0 : index
    %24 = vector.load %arg7[%c8, %c0_18] : memref<32x48xf32, #tpu.memory_space<vmem>>, vector<16x48xf32>
    tpu.vector_store %arg7[%c8, %c0_18], %21 {strides = array<i32>} : memref<32x48xf32, #tpu.memory_space<vmem>>, vector<16x48xf32>,
    %c7 = arith.constant 7 : index
    %c0_19 = arith.constant 0 : index
    %25 = vector.load %arg7[%c7, %c0_19] : memref<32x48xf32, #tpu.memory_space<vmem>>, vector<16x48xf32>
    %26 = vector.broadcast %2 : vector<1x48xf32> to vector<16x48xf32>
    %27 = arith.mulf %26, %25 : vector<16x48xf32>
    %28 = vector.broadcast %3 : vector<1x48xf32> to vector<16x48xf32>
    %29 = arith.mulf %28, %21 : vector<16x48xf32>
    %30 = arith.addf %27, %29 : vector<16x48xf32>
    %c9 = arith.constant 9 : index
    %c0_20 = arith.constant 0 : index
    %31 = vector.load %arg7[%c9, %c0_20] : memref<32x48xf32, #tpu.memory_space<vmem>>, vector<16x48xf32>
    %32 = vector.broadcast %4 : vector<1x48xf32> to vector<16x48xf32>
    %33 = arith.mulf %32, %31 : vector<16x48xf32>
    %34 = arith.addf %30, %33 : vector<16x48xf32>
    %35 = arith.truncf %34 : vector<16x48xf32> to vector<16x48xbf16>
    %cst_21 = arith.constant dense<0.000000e+00> : vector<16x48xf32>
    %36 = tpu.matmul %35, %0, %cst_21 {dimension_numbers = #tpu.dot_dimension_numbers<[1], [0], [0], [1], [0, 0, 1, 1], [], []>} : vector<16x48xbf16>, vector<48x48xbf16>, vector<16x48xf32> -> vector<16x48xf32>
    %37 = vector.broadcast %1 : vector<1x48xf32> to vector<16x48xf32>
    %38 = arith.addf %36, %37 : vector<16x48xf32>
    %cst_22 = arith.constant 0.999500393 : f32
    %39 = vector.broadcast %cst_22 : f32 to vector<16x48xf32>
    %40 = arith.mulf %38, %39 : vector<16x48xf32>
    %c0_23 = arith.constant 0 : index
    %c0_24 = arith.constant 0 : index
    %c0_25 = arith.constant 0 : index
    %41 = vector.load %arg6[%c0_23, %c0_24, %c0_25] : memref<2x16x48xf32, #tpu.memory_space<vmem>>, vector<1x16x48xf32>
    %42 = vector.shape_cast %41 : vector<1x16x48xf32> to vector<16x48xf32>
    %43 = vector.shape_cast %40 : vector<16x48xf32> to vector<1x16x48xf32>
    tpu.vector_store %arg6[%c0_23, %c0_24, %c0_25], %43 {strides = array<i32>} : memref<2x16x48xf32, #tpu.memory_space<vmem>>, vector<1x16x48xf32>,
    %c0_26 = arith.constant 0 : index
    %44 = memref.load %arg0[%c0_26] : memref<2xf32, #tpu.memory_space<smem>>
    %c1_27 = arith.constant 1 : index
    %c0_28 = arith.constant 0 : index
    %c0_29 = arith.constant 0 : index
    %45 = vector.load %arg4[%c1_27, %c0_28, %c0_29] : memref<2x16x48xf32, #tpu.memory_space<vmem>>, vector<1x16x48xf32>
    %46 = vector.shape_cast %45 : vector<1x16x48xf32> to vector<16x48xf32>
    %47 = vector.broadcast %44 : f32 to vector<16x48xf32>
    %48 = arith.mulf %47, %46 : vector<16x48xf32>
    %c1_30 = arith.constant 1 : index
    %49 = memref.load %arg0[%c1_30] : memref<2xf32, #tpu.memory_space<smem>>
    %c1_31 = arith.constant 1 : index
    %c0_32 = arith.constant 0 : index
    %c0_33 = arith.constant 0 : index
    %50 = vector.load %arg5[%c1_31, %c0_32, %c0_33] : memref<2x16x48xf32, #tpu.memory_space<vmem>>, vector<1x16x48xf32>
    %51 = vector.shape_cast %50 : vector<1x16x48xf32> to vector<16x48xf32>
    %52 = vector.broadcast %49 : f32 to vector<16x48xf32>
    %53 = arith.mulf %52, %51 : vector<16x48xf32>
    %54 = arith.addf %48, %53 : vector<16x48xf32>
    %55 = arith.negf %54 : vector<16x48xf32>
    %56 = math.exp %55 : vector<16x48xf32>
    %cst_34 = arith.constant 1.000000e+00 : f32
    %57 = vector.broadcast %cst_34 : f32 to vector<16x48xf32>
    %58 = arith.addf %57, %56 : vector<16x48xf32>
    %59 = arith.divf %57, %58 : vector<16x48xf32>
    %60 = arith.mulf %54, %59 : vector<16x48xf32>
    %cst_35 = arith.constant 0.000000e+00 : f32
    %61 = vector.broadcast %cst_35 : f32 to vector<32x48xf32>
    %c0_36 = arith.constant 0 : index
    %c0_37 = arith.constant 0 : index
    %62 = vector.load %arg7[%c0_36, %c0_37] : memref<32x48xf32, #tpu.memory_space<vmem>>, vector<32x48xf32>
    tpu.vector_store %arg7[%c0_36, %c0_37], %61 {strides = array<i32>} : memref<32x48xf32, #tpu.memory_space<vmem>>, vector<32x48xf32>,
    %c8_38 = arith.constant 8 : index
    %c0_39 = arith.constant 0 : index
    %63 = vector.load %arg7[%c8_38, %c0_39] : memref<32x48xf32, #tpu.memory_space<vmem>>, vector<16x48xf32>
    tpu.vector_store %arg7[%c8_38, %c0_39], %60 {strides = array<i32>} : memref<32x48xf32, #tpu.memory_space<vmem>>, vector<16x48xf32>,
    %c7_40 = arith.constant 7 : index
    %c0_41 = arith.constant 0 : index
    %64 = vector.load %arg7[%c7_40, %c0_41] : memref<32x48xf32, #tpu.memory_space<vmem>>, vector<16x48xf32>
    %65 = vector.broadcast %2 : vector<1x48xf32> to vector<16x48xf32>
    %66 = arith.mulf %65, %64 : vector<16x48xf32>
    %67 = vector.broadcast %3 : vector<1x48xf32> to vector<16x48xf32>
    %68 = arith.mulf %67, %60 : vector<16x48xf32>
    %69 = arith.addf %66, %68 : vector<16x48xf32>
    %c9_42 = arith.constant 9 : index
    %c0_43 = arith.constant 0 : index
    %70 = vector.load %arg7[%c9_42, %c0_43] : memref<32x48xf32, #tpu.memory_space<vmem>>, vector<16x48xf32>
    %71 = vector.broadcast %4 : vector<1x48xf32> to vector<16x48xf32>
    %72 = arith.mulf %71, %70 : vector<16x48xf32>
    %73 = arith.addf %69, %72 : vector<16x48xf32>
    %74 = arith.truncf %73 : vector<16x48xf32> to vector<16x48xbf16>
    %cst_44 = arith.constant dense<0.000000e+00> : vector<16x48xf32>
    %75 = tpu.matmul %74, %0, %cst_44 {dimension_numbers = #tpu.dot_dimension_numbers<[1], [0], [0], [1], [0, 0, 1, 1], [], []>} : vector<16x48xbf16>, vector<48x48xbf16>, vector<16x48xf32> -> vector<16x48xf32>
    %76 = vector.broadcast %1 : vector<1x48xf32> to vector<16x48xf32>
    %77 = arith.addf %75, %76 : vector<16x48xf32>
    %cst_45 = arith.constant 0.999500393 : f32
    %78 = vector.broadcast %cst_45 : f32 to vector<16x48xf32>
    %79 = arith.mulf %77, %78 : vector<16x48xf32>
    %c1_46 = arith.constant 1 : index
    %c0_47 = arith.constant 0 : index
    %c0_48 = arith.constant 0 : index
    %80 = vector.load %arg6[%c1_46, %c0_47, %c0_48] : memref<2x16x48xf32, #tpu.memory_space<vmem>>, vector<1x16x48xf32>
    %81 = vector.shape_cast %80 : vector<1x16x48xf32> to vector<16x48xf32>
    %82 = vector.shape_cast %79 : vector<16x48xf32> to vector<1x16x48xf32>
    tpu.vector_store %arg6[%c1_46, %c0_47, %c0_48], %82 {strides = array<i32>} : memref<2x16x48xf32, #tpu.memory_space<vmem>>, vector<1x16x48xf32>,
    return
  }
}

module attributes {stable_mosaic.version = 11 : i64} {
  func.func @_sep_node_kernel(%arg0: memref<1xf32, #tpu.memory_space<smem>>, %arg1: memref<3x24xf32, #tpu.memory_space<vmem>>, %arg2: memref<24x48xbf16, #tpu.memory_space<vmem>>, %arg3: memref<1x48xf32, #tpu.memory_space<vmem>>, %arg4: memref<2x15x24xf32, #tpu.memory_space<vmem>>, %arg5: memref<2x15x48xf32, #tpu.memory_space<vmem>>, %arg6: memref<31x24xf32, #tpu.memory_space<vmem>>) attributes {dimension_semantics = [], scalar_prefetch = 0 : i64, scratch_operands = 1 : i64, tpu.core_type = #tpu.core_type<tc>} {
    %c0 = arith.constant 0 : index
    %c0_0 = arith.constant 0 : index
    %0 = vector.load %arg2[%c0, %c0_0] : memref<24x48xbf16, #tpu.memory_space<vmem>>, vector<24x48xbf16>
    %c0_1 = arith.constant 0 : index
    %c0_2 = arith.constant 0 : index
    %1 = vector.load %arg3[%c0_1, %c0_2] : memref<1x48xf32, #tpu.memory_space<vmem>>, vector<1x48xf32>
    %c0_3 = arith.constant 0 : index
    %c0_4 = arith.constant 0 : index
    %2 = vector.load %arg1[%c0_3, %c0_4] : memref<3x24xf32, #tpu.memory_space<vmem>>, vector<1x24xf32>
    %c1 = arith.constant 1 : index
    %c0_5 = arith.constant 0 : index
    %3 = vector.load %arg1[%c1, %c0_5] : memref<3x24xf32, #tpu.memory_space<vmem>>, vector<1x24xf32>
    %c2 = arith.constant 2 : index
    %c0_6 = arith.constant 0 : index
    %4 = vector.load %arg1[%c2, %c0_6] : memref<3x24xf32, #tpu.memory_space<vmem>>, vector<1x24xf32>
    %c0_7 = arith.constant 0 : index
    %5 = memref.load %arg0[%c0_7] : memref<1xf32, #tpu.memory_space<smem>>
    %c0_8 = arith.constant 0 : index
    %c0_9 = arith.constant 0 : index
    %c0_10 = arith.constant 0 : index
    %6 = vector.load %arg4[%c0_8, %c0_9, %c0_10] : memref<2x15x24xf32, #tpu.memory_space<vmem>>, vector<1x15x24xf32>
    %7 = vector.shape_cast %6 : vector<1x15x24xf32> to vector<15x24xf32>
    %8 = vector.broadcast %5 : f32 to vector<15x24xf32>
    %9 = arith.mulf %8, %7 : vector<15x24xf32>
    %cst = arith.constant 0.000000e+00 : f32
    %10 = vector.broadcast %cst : f32 to vector<31x24xf32>
    %c0_11 = arith.constant 0 : index
    %c0_12 = arith.constant 0 : index
    %11 = vector.load %arg6[%c0_11, %c0_12] : memref<31x24xf32, #tpu.memory_space<vmem>>, vector<31x24xf32>
    tpu.vector_store %arg6[%c0_11, %c0_12], %10 {strides = array<i32>} : memref<31x24xf32, #tpu.memory_space<vmem>>, vector<31x24xf32>,
    %c8 = arith.constant 8 : index
    %c0_13 = arith.constant 0 : index
    %12 = vector.load %arg6[%c8, %c0_13] : memref<31x24xf32, #tpu.memory_space<vmem>>, vector<15x24xf32>
    tpu.vector_store %arg6[%c8, %c0_13], %9 {strides = array<i32>} : memref<31x24xf32, #tpu.memory_space<vmem>>, vector<15x24xf32>,
    %c7 = arith.constant 7 : index
    %c0_14 = arith.constant 0 : index
    %13 = vector.load %arg6[%c7, %c0_14] : memref<31x24xf32, #tpu.memory_space<vmem>>, vector<15x24xf32>
    %14 = vector.broadcast %2 : vector<1x24xf32> to vector<15x24xf32>
    %15 = arith.mulf %14, %13 : vector<15x24xf32>
    %16 = vector.broadcast %3 : vector<1x24xf32> to vector<15x24xf32>
    %17 = arith.mulf %16, %9 : vector<15x24xf32>
    %18 = arith.addf %15, %17 : vector<15x24xf32>
    %c9 = arith.constant 9 : index
    %c0_15 = arith.constant 0 : index
    %19 = vector.load %arg6[%c9, %c0_15] : memref<31x24xf32, #tpu.memory_space<vmem>>, vector<15x24xf32>
    %20 = vector.broadcast %4 : vector<1x24xf32> to vector<15x24xf32>
    %21 = arith.mulf %20, %19 : vector<15x24xf32>
    %22 = arith.addf %18, %21 : vector<15x24xf32>
    %23 = arith.truncf %22 : vector<15x24xf32> to vector<15x24xbf16>
    %cst_16 = arith.constant dense<0.000000e+00> : vector<15x48xf32>
    %24 = tpu.matmul %23, %0, %cst_16 {dimension_numbers = #tpu.dot_dimension_numbers<[1], [0], [0], [1], [0, 0, 1, 1], [], []>} : vector<15x24xbf16>, vector<24x48xbf16>, vector<15x48xf32> -> vector<15x48xf32>
    %25 = vector.broadcast %1 : vector<1x48xf32> to vector<15x48xf32>
    %26 = arith.addf %24, %25 : vector<15x48xf32>
    %cst_17 = arith.constant 0.999500393 : f32
    %27 = vector.broadcast %cst_17 : f32 to vector<15x48xf32>
    %28 = arith.mulf %26, %27 : vector<15x48xf32>
    %c0_18 = arith.constant 0 : index
    %c0_19 = arith.constant 0 : index
    %c0_20 = arith.constant 0 : index
    %29 = vector.load %arg5[%c0_18, %c0_19, %c0_20] : memref<2x15x48xf32, #tpu.memory_space<vmem>>, vector<1x15x48xf32>
    %30 = vector.shape_cast %29 : vector<1x15x48xf32> to vector<15x48xf32>
    %31 = vector.shape_cast %28 : vector<15x48xf32> to vector<1x15x48xf32>
    tpu.vector_store %arg5[%c0_18, %c0_19, %c0_20], %31 {strides = array<i32>} : memref<2x15x48xf32, #tpu.memory_space<vmem>>, vector<1x15x48xf32>,
    %c0_21 = arith.constant 0 : index
    %32 = memref.load %arg0[%c0_21] : memref<1xf32, #tpu.memory_space<smem>>
    %c1_22 = arith.constant 1 : index
    %c0_23 = arith.constant 0 : index
    %c0_24 = arith.constant 0 : index
    %33 = vector.load %arg4[%c1_22, %c0_23, %c0_24] : memref<2x15x24xf32, #tpu.memory_space<vmem>>, vector<1x15x24xf32>
    %34 = vector.shape_cast %33 : vector<1x15x24xf32> to vector<15x24xf32>
    %35 = vector.broadcast %32 : f32 to vector<15x24xf32>
    %36 = arith.mulf %35, %34 : vector<15x24xf32>
    %cst_25 = arith.constant 0.000000e+00 : f32
    %37 = vector.broadcast %cst_25 : f32 to vector<31x24xf32>
    %c0_26 = arith.constant 0 : index
    %c0_27 = arith.constant 0 : index
    %38 = vector.load %arg6[%c0_26, %c0_27] : memref<31x24xf32, #tpu.memory_space<vmem>>, vector<31x24xf32>
    tpu.vector_store %arg6[%c0_26, %c0_27], %37 {strides = array<i32>} : memref<31x24xf32, #tpu.memory_space<vmem>>, vector<31x24xf32>,
    %c8_28 = arith.constant 8 : index
    %c0_29 = arith.constant 0 : index
    %39 = vector.load %arg6[%c8_28, %c0_29] : memref<31x24xf32, #tpu.memory_space<vmem>>, vector<15x24xf32>
    tpu.vector_store %arg6[%c8_28, %c0_29], %36 {strides = array<i32>} : memref<31x24xf32, #tpu.memory_space<vmem>>, vector<15x24xf32>,
    %c7_30 = arith.constant 7 : index
    %c0_31 = arith.constant 0 : index
    %40 = vector.load %arg6[%c7_30, %c0_31] : memref<31x24xf32, #tpu.memory_space<vmem>>, vector<15x24xf32>
    %41 = vector.broadcast %2 : vector<1x24xf32> to vector<15x24xf32>
    %42 = arith.mulf %41, %40 : vector<15x24xf32>
    %43 = vector.broadcast %3 : vector<1x24xf32> to vector<15x24xf32>
    %44 = arith.mulf %43, %36 : vector<15x24xf32>
    %45 = arith.addf %42, %44 : vector<15x24xf32>
    %c9_32 = arith.constant 9 : index
    %c0_33 = arith.constant 0 : index
    %46 = vector.load %arg6[%c9_32, %c0_33] : memref<31x24xf32, #tpu.memory_space<vmem>>, vector<15x24xf32>
    %47 = vector.broadcast %4 : vector<1x24xf32> to vector<15x24xf32>
    %48 = arith.mulf %47, %46 : vector<15x24xf32>
    %49 = arith.addf %45, %48 : vector<15x24xf32>
    %50 = arith.truncf %49 : vector<15x24xf32> to vector<15x24xbf16>
    %cst_34 = arith.constant dense<0.000000e+00> : vector<15x48xf32>
    %51 = tpu.matmul %50, %0, %cst_34 {dimension_numbers = #tpu.dot_dimension_numbers<[1], [0], [0], [1], [0, 0, 1, 1], [], []>} : vector<15x24xbf16>, vector<24x48xbf16>, vector<15x48xf32> -> vector<15x48xf32>
    %52 = vector.broadcast %1 : vector<1x48xf32> to vector<15x48xf32>
    %53 = arith.addf %51, %52 : vector<15x48xf32>
    %cst_35 = arith.constant 0.999500393 : f32
    %54 = vector.broadcast %cst_35 : f32 to vector<15x48xf32>
    %55 = arith.mulf %53, %54 : vector<15x48xf32>
    %c1_36 = arith.constant 1 : index
    %c0_37 = arith.constant 0 : index
    %c0_38 = arith.constant 0 : index
    %56 = vector.load %arg5[%c1_36, %c0_37, %c0_38] : memref<2x15x48xf32, #tpu.memory_space<vmem>>, vector<1x15x48xf32>
    %57 = vector.shape_cast %56 : vector<1x15x48xf32> to vector<15x48xf32>
    %58 = vector.shape_cast %55 : vector<15x48xf32> to vector<1x15x48xf32>
    tpu.vector_store %arg5[%c1_36, %c0_37, %c0_38], %58 {strides = array<i32>} : memref<2x15x48xf32, #tpu.memory_space<vmem>>, vector<1x15x48xf32>,
    return
  }
}

module attributes {stable_mosaic.version = 11 : i64} {
  func.func @_sep_node_kernel(%arg0: memref<1xf32, #tpu.memory_space<smem>>, %arg1: memref<3x12xf32, #tpu.memory_space<vmem>>, %arg2: memref<12x48xbf16, #tpu.memory_space<vmem>>, %arg3: memref<1x48xf32, #tpu.memory_space<vmem>>, %arg4: memref<2x16x12xf32, #tpu.memory_space<vmem>>, %arg5: memref<2x16x48xf32, #tpu.memory_space<vmem>>, %arg6: memref<32x12xf32, #tpu.memory_space<vmem>>) attributes {dimension_semantics = [], scalar_prefetch = 0 : i64, scratch_operands = 1 : i64, tpu.core_type = #tpu.core_type<tc>} {
    %c0 = arith.constant 0 : index
    %c0_0 = arith.constant 0 : index
    %0 = vector.load %arg2[%c0, %c0_0] : memref<12x48xbf16, #tpu.memory_space<vmem>>, vector<12x48xbf16>
    %c0_1 = arith.constant 0 : index
    %c0_2 = arith.constant 0 : index
    %1 = vector.load %arg3[%c0_1, %c0_2] : memref<1x48xf32, #tpu.memory_space<vmem>>, vector<1x48xf32>
    %c0_3 = arith.constant 0 : index
    %c0_4 = arith.constant 0 : index
    %2 = vector.load %arg1[%c0_3, %c0_4] : memref<3x12xf32, #tpu.memory_space<vmem>>, vector<1x12xf32>
    %c1 = arith.constant 1 : index
    %c0_5 = arith.constant 0 : index
    %3 = vector.load %arg1[%c1, %c0_5] : memref<3x12xf32, #tpu.memory_space<vmem>>, vector<1x12xf32>
    %c2 = arith.constant 2 : index
    %c0_6 = arith.constant 0 : index
    %4 = vector.load %arg1[%c2, %c0_6] : memref<3x12xf32, #tpu.memory_space<vmem>>, vector<1x12xf32>
    %c0_7 = arith.constant 0 : index
    %5 = memref.load %arg0[%c0_7] : memref<1xf32, #tpu.memory_space<smem>>
    %c0_8 = arith.constant 0 : index
    %c0_9 = arith.constant 0 : index
    %c0_10 = arith.constant 0 : index
    %6 = vector.load %arg4[%c0_8, %c0_9, %c0_10] : memref<2x16x12xf32, #tpu.memory_space<vmem>>, vector<1x16x12xf32>
    %7 = vector.shape_cast %6 : vector<1x16x12xf32> to vector<16x12xf32>
    %8 = vector.broadcast %5 : f32 to vector<16x12xf32>
    %9 = arith.mulf %8, %7 : vector<16x12xf32>
    %cst = arith.constant 0.000000e+00 : f32
    %10 = vector.broadcast %cst : f32 to vector<32x12xf32>
    %c0_11 = arith.constant 0 : index
    %c0_12 = arith.constant 0 : index
    %11 = vector.load %arg6[%c0_11, %c0_12] : memref<32x12xf32, #tpu.memory_space<vmem>>, vector<32x12xf32>
    tpu.vector_store %arg6[%c0_11, %c0_12], %10 {strides = array<i32>} : memref<32x12xf32, #tpu.memory_space<vmem>>, vector<32x12xf32>,
    %c8 = arith.constant 8 : index
    %c0_13 = arith.constant 0 : index
    %12 = vector.load %arg6[%c8, %c0_13] : memref<32x12xf32, #tpu.memory_space<vmem>>, vector<16x12xf32>
    tpu.vector_store %arg6[%c8, %c0_13], %9 {strides = array<i32>} : memref<32x12xf32, #tpu.memory_space<vmem>>, vector<16x12xf32>,
    %c7 = arith.constant 7 : index
    %c0_14 = arith.constant 0 : index
    %13 = vector.load %arg6[%c7, %c0_14] : memref<32x12xf32, #tpu.memory_space<vmem>>, vector<16x12xf32>
    %14 = vector.broadcast %2 : vector<1x12xf32> to vector<16x12xf32>
    %15 = arith.mulf %14, %13 : vector<16x12xf32>
    %16 = vector.broadcast %3 : vector<1x12xf32> to vector<16x12xf32>
    %17 = arith.mulf %16, %9 : vector<16x12xf32>
    %18 = arith.addf %15, %17 : vector<16x12xf32>
    %c9 = arith.constant 9 : index
    %c0_15 = arith.constant 0 : index
    %19 = vector.load %arg6[%c9, %c0_15] : memref<32x12xf32, #tpu.memory_space<vmem>>, vector<16x12xf32>
    %20 = vector.broadcast %4 : vector<1x12xf32> to vector<16x12xf32>
    %21 = arith.mulf %20, %19 : vector<16x12xf32>
    %22 = arith.addf %18, %21 : vector<16x12xf32>
    %23 = arith.truncf %22 : vector<16x12xf32> to vector<16x12xbf16>
    %cst_16 = arith.constant dense<0.000000e+00> : vector<16x48xf32>
    %24 = tpu.matmul %23, %0, %cst_16 {dimension_numbers = #tpu.dot_dimension_numbers<[1], [0], [0], [1], [0, 0, 1, 1], [], []>} : vector<16x12xbf16>, vector<12x48xbf16>, vector<16x48xf32> -> vector<16x48xf32>
    %25 = vector.broadcast %1 : vector<1x48xf32> to vector<16x48xf32>
    %26 = arith.addf %24, %25 : vector<16x48xf32>
    %cst_17 = arith.constant 0.999500393 : f32
    %27 = vector.broadcast %cst_17 : f32 to vector<16x48xf32>
    %28 = arith.mulf %26, %27 : vector<16x48xf32>
    %c0_18 = arith.constant 0 : index
    %c0_19 = arith.constant 0 : index
    %c0_20 = arith.constant 0 : index
    %29 = vector.load %arg5[%c0_18, %c0_19, %c0_20] : memref<2x16x48xf32, #tpu.memory_space<vmem>>, vector<1x16x48xf32>
    %30 = vector.shape_cast %29 : vector<1x16x48xf32> to vector<16x48xf32>
    %31 = vector.shape_cast %28 : vector<16x48xf32> to vector<1x16x48xf32>
    tpu.vector_store %arg5[%c0_18, %c0_19, %c0_20], %31 {strides = array<i32>} : memref<2x16x48xf32, #tpu.memory_space<vmem>>, vector<1x16x48xf32>,
    %c0_21 = arith.constant 0 : index
    %32 = memref.load %arg0[%c0_21] : memref<1xf32, #tpu.memory_space<smem>>
    %c1_22 = arith.constant 1 : index
    %c0_23 = arith.constant 0 : index
    %c0_24 = arith.constant 0 : index
    %33 = vector.load %arg4[%c1_22, %c0_23, %c0_24] : memref<2x16x12xf32, #tpu.memory_space<vmem>>, vector<1x16x12xf32>
    %34 = vector.shape_cast %33 : vector<1x16x12xf32> to vector<16x12xf32>
    %35 = vector.broadcast %32 : f32 to vector<16x12xf32>
    %36 = arith.mulf %35, %34 : vector<16x12xf32>
    %cst_25 = arith.constant 0.000000e+00 : f32
    %37 = vector.broadcast %cst_25 : f32 to vector<32x12xf32>
    %c0_26 = arith.constant 0 : index
    %c0_27 = arith.constant 0 : index
    %38 = vector.load %arg6[%c0_26, %c0_27] : memref<32x12xf32, #tpu.memory_space<vmem>>, vector<32x12xf32>
    tpu.vector_store %arg6[%c0_26, %c0_27], %37 {strides = array<i32>} : memref<32x12xf32, #tpu.memory_space<vmem>>, vector<32x12xf32>,
    %c8_28 = arith.constant 8 : index
    %c0_29 = arith.constant 0 : index
    %39 = vector.load %arg6[%c8_28, %c0_29] : memref<32x12xf32, #tpu.memory_space<vmem>>, vector<16x12xf32>
    tpu.vector_store %arg6[%c8_28, %c0_29], %36 {strides = array<i32>} : memref<32x12xf32, #tpu.memory_space<vmem>>, vector<16x12xf32>,
    %c7_30 = arith.constant 7 : index
    %c0_31 = arith.constant 0 : index
    %40 = vector.load %arg6[%c7_30, %c0_31] : memref<32x12xf32, #tpu.memory_space<vmem>>, vector<16x12xf32>
    %41 = vector.broadcast %2 : vector<1x12xf32> to vector<16x12xf32>
    %42 = arith.mulf %41, %40 : vector<16x12xf32>
    %43 = vector.broadcast %3 : vector<1x12xf32> to vector<16x12xf32>
    %44 = arith.mulf %43, %36 : vector<16x12xf32>
    %45 = arith.addf %42, %44 : vector<16x12xf32>
    %c9_32 = arith.constant 9 : index
    %c0_33 = arith.constant 0 : index
    %46 = vector.load %arg6[%c9_32, %c0_33] : memref<32x12xf32, #tpu.memory_space<vmem>>, vector<16x12xf32>
    %47 = vector.broadcast %4 : vector<1x12xf32> to vector<16x12xf32>
    %48 = arith.mulf %47, %46 : vector<16x12xf32>
    %49 = arith.addf %45, %48 : vector<16x12xf32>
    %50 = arith.truncf %49 : vector<16x12xf32> to vector<16x12xbf16>
    %cst_34 = arith.constant dense<0.000000e+00> : vector<16x48xf32>
    %51 = tpu.matmul %50, %0, %cst_34 {dimension_numbers = #tpu.dot_dimension_numbers<[1], [0], [0], [1], [0, 0, 1, 1], [], []>} : vector<16x12xbf16>, vector<12x48xbf16>, vector<16x48xf32> -> vector<16x48xf32>
    %52 = vector.broadcast %1 : vector<1x48xf32> to vector<16x48xf32>
    %53 = arith.addf %51, %52 : vector<16x48xf32>
    %cst_35 = arith.constant 0.999500393 : f32
    %54 = vector.broadcast %cst_35 : f32 to vector<16x48xf32>
    %55 = arith.mulf %53, %54 : vector<16x48xf32>
    %c1_36 = arith.constant 1 : index
    %c0_37 = arith.constant 0 : index
    %c0_38 = arith.constant 0 : index
    %56 = vector.load %arg5[%c1_36, %c0_37, %c0_38] : memref<2x16x48xf32, #tpu.memory_space<vmem>>, vector<1x16x48xf32>
    %57 = vector.shape_cast %56 : vector<1x16x48xf32> to vector<16x48xf32>
    %58 = vector.shape_cast %55 : vector<16x48xf32> to vector<1x16x48xf32>
    tpu.vector_store %arg5[%c1_36, %c0_37, %c0_38], %58 {strides = array<i32>} : memref<2x16x48xf32, #tpu.memory_space<vmem>>, vector<1x16x48xf32>,
    return
  }
}

module attributes {stable_mosaic.version = 11 : i64} {
  func.func @_sep_node_kernel(%arg0: memref<3xf32, #tpu.memory_space<smem>>, %arg1: memref<3x48xf32, #tpu.memory_space<vmem>>, %arg2: memref<48x48xbf16, #tpu.memory_space<vmem>>, %arg3: memref<1x48xf32, #tpu.memory_space<vmem>>, %arg4: memref<2x16x48xf32, #tpu.memory_space<vmem>>, %arg5: memref<2x16x48xf32, #tpu.memory_space<vmem>>, %arg6: memref<2x16x48xf32, #tpu.memory_space<vmem>>, %arg7: memref<2x16x48xf32, #tpu.memory_space<vmem>>, %arg8: memref<32x48xf32, #tpu.memory_space<vmem>>) attributes {dimension_semantics = [], scalar_prefetch = 0 : i64, scratch_operands = 1 : i64, tpu.core_type = #tpu.core_type<tc>} {
    %c0 = arith.constant 0 : index
    %c0_0 = arith.constant 0 : index
    %0 = vector.load %arg2[%c0, %c0_0] : memref<48x48xbf16, #tpu.memory_space<vmem>>, vector<48x48xbf16>
    %c0_1 = arith.constant 0 : index
    %c0_2 = arith.constant 0 : index
    %1 = vector.load %arg3[%c0_1, %c0_2] : memref<1x48xf32, #tpu.memory_space<vmem>>, vector<1x48xf32>
    %c0_3 = arith.constant 0 : index
    %c0_4 = arith.constant 0 : index
    %2 = vector.load %arg1[%c0_3, %c0_4] : memref<3x48xf32, #tpu.memory_space<vmem>>, vector<1x48xf32>
    %c1 = arith.constant 1 : index
    %c0_5 = arith.constant 0 : index
    %3 = vector.load %arg1[%c1, %c0_5] : memref<3x48xf32, #tpu.memory_space<vmem>>, vector<1x48xf32>
    %c2 = arith.constant 2 : index
    %c0_6 = arith.constant 0 : index
    %4 = vector.load %arg1[%c2, %c0_6] : memref<3x48xf32, #tpu.memory_space<vmem>>, vector<1x48xf32>
    %c0_7 = arith.constant 0 : index
    %5 = memref.load %arg0[%c0_7] : memref<3xf32, #tpu.memory_space<smem>>
    %c0_8 = arith.constant 0 : index
    %c0_9 = arith.constant 0 : index
    %c0_10 = arith.constant 0 : index
    %6 = vector.load %arg4[%c0_8, %c0_9, %c0_10] : memref<2x16x48xf32, #tpu.memory_space<vmem>>, vector<1x16x48xf32>
    %7 = vector.shape_cast %6 : vector<1x16x48xf32> to vector<16x48xf32>
    %8 = vector.broadcast %5 : f32 to vector<16x48xf32>
    %9 = arith.mulf %8, %7 : vector<16x48xf32>
    %c1_11 = arith.constant 1 : index
    %10 = memref.load %arg0[%c1_11] : memref<3xf32, #tpu.memory_space<smem>>
    %c0_12 = arith.constant 0 : index
    %c0_13 = arith.constant 0 : index
    %c0_14 = arith.constant 0 : index
    %11 = vector.load %arg5[%c0_12, %c0_13, %c0_14] : memref<2x16x48xf32, #tpu.memory_space<vmem>>, vector<1x16x48xf32>
    %12 = vector.shape_cast %11 : vector<1x16x48xf32> to vector<16x48xf32>
    %13 = vector.broadcast %10 : f32 to vector<16x48xf32>
    %14 = arith.mulf %13, %12 : vector<16x48xf32>
    %15 = arith.addf %9, %14 : vector<16x48xf32>
    %c2_15 = arith.constant 2 : index
    %16 = memref.load %arg0[%c2_15] : memref<3xf32, #tpu.memory_space<smem>>
    %c0_16 = arith.constant 0 : index
    %c0_17 = arith.constant 0 : index
    %c0_18 = arith.constant 0 : index
    %17 = vector.load %arg6[%c0_16, %c0_17, %c0_18] : memref<2x16x48xf32, #tpu.memory_space<vmem>>, vector<1x16x48xf32>
    %18 = vector.shape_cast %17 : vector<1x16x48xf32> to vector<16x48xf32>
    %19 = vector.broadcast %16 : f32 to vector<16x48xf32>
    %20 = arith.mulf %19, %18 : vector<16x48xf32>
    %21 = arith.addf %15, %20 : vector<16x48xf32>
    %22 = arith.negf %21 : vector<16x48xf32>
    %23 = math.exp %22 : vector<16x48xf32>
    %cst = arith.constant 1.000000e+00 : f32
    %24 = vector.broadcast %cst : f32 to vector<16x48xf32>
    %25 = arith.addf %24, %23 : vector<16x48xf32>
    %26 = arith.divf %24, %25 : vector<16x48xf32>
    %27 = arith.mulf %21, %26 : vector<16x48xf32>
    %cst_19 = arith.constant 0.000000e+00 : f32
    %28 = vector.broadcast %cst_19 : f32 to vector<32x48xf32>
    %c0_20 = arith.constant 0 : index
    %c0_21 = arith.constant 0 : index
    %29 = vector.load %arg8[%c0_20, %c0_21] : memref<32x48xf32, #tpu.memory_space<vmem>>, vector<32x48xf32>
    tpu.vector_store %arg8[%c0_20, %c0_21], %28 {strides = array<i32>} : memref<32x48xf32, #tpu.memory_space<vmem>>, vector<32x48xf32>,
    %c8 = arith.constant 8 : index
    %c0_22 = arith.constant 0 : index
    %30 = vector.load %arg8[%c8, %c0_22] : memref<32x48xf32, #tpu.memory_space<vmem>>, vector<16x48xf32>
    tpu.vector_store %arg8[%c8, %c0_22], %27 {strides = array<i32>} : memref<32x48xf32, #tpu.memory_space<vmem>>, vector<16x48xf32>,
    %c7 = arith.constant 7 : index
    %c0_23 = arith.constant 0 : index
    %31 = vector.load %arg8[%c7, %c0_23] : memref<32x48xf32, #tpu.memory_space<vmem>>, vector<16x48xf32>
    %32 = vector.broadcast %2 : vector<1x48xf32> to vector<16x48xf32>
    %33 = arith.mulf %32, %31 : vector<16x48xf32>
    %34 = vector.broadcast %3 : vector<1x48xf32> to vector<16x48xf32>
    %35 = arith.mulf %34, %27 : vector<16x48xf32>
    %36 = arith.addf %33, %35 : vector<16x48xf32>
    %c9 = arith.constant 9 : index
    %c0_24 = arith.constant 0 : index
    %37 = vector.load %arg8[%c9, %c0_24] : memref<32x48xf32, #tpu.memory_space<vmem>>, vector<16x48xf32>
    %38 = vector.broadcast %4 : vector<1x48xf32> to vector<16x48xf32>
    %39 = arith.mulf %38, %37 : vector<16x48xf32>
    %40 = arith.addf %36, %39 : vector<16x48xf32>
    %41 = arith.truncf %40 : vector<16x48xf32> to vector<16x48xbf16>
    %cst_25 = arith.constant dense<0.000000e+00> : vector<16x48xf32>
    %42 = tpu.matmul %41, %0, %cst_25 {dimension_numbers = #tpu.dot_dimension_numbers<[1], [0], [0], [1], [0, 0, 1, 1], [], []>} : vector<16x48xbf16>, vector<48x48xbf16>, vector<16x48xf32> -> vector<16x48xf32>
    %43 = vector.broadcast %1 : vector<1x48xf32> to vector<16x48xf32>
    %44 = arith.addf %42, %43 : vector<16x48xf32>
    %cst_26 = arith.constant 0.999500393 : f32
    %45 = vector.broadcast %cst_26 : f32 to vector<16x48xf32>
    %46 = arith.mulf %44, %45 : vector<16x48xf32>
    %c0_27 = arith.constant 0 : index
    %c0_28 = arith.constant 0 : index
    %c0_29 = arith.constant 0 : index
    %47 = vector.load %arg7[%c0_27, %c0_28, %c0_29] : memref<2x16x48xf32, #tpu.memory_space<vmem>>, vector<1x16x48xf32>
    %48 = vector.shape_cast %47 : vector<1x16x48xf32> to vector<16x48xf32>
    %49 = vector.shape_cast %46 : vector<16x48xf32> to vector<1x16x48xf32>
    tpu.vector_store %arg7[%c0_27, %c0_28, %c0_29], %49 {strides = array<i32>} : memref<2x16x48xf32, #tpu.memory_space<vmem>>, vector<1x16x48xf32>,
    %c0_30 = arith.constant 0 : index
    %50 = memref.load %arg0[%c0_30] : memref<3xf32, #tpu.memory_space<smem>>
    %c1_31 = arith.constant 1 : index
    %c0_32 = arith.constant 0 : index
    %c0_33 = arith.constant 0 : index
    %51 = vector.load %arg4[%c1_31, %c0_32, %c0_33] : memref<2x16x48xf32, #tpu.memory_space<vmem>>, vector<1x16x48xf32>
    %52 = vector.shape_cast %51 : vector<1x16x48xf32> to vector<16x48xf32>
    %53 = vector.broadcast %50 : f32 to vector<16x48xf32>
    %54 = arith.mulf %53, %52 : vector<16x48xf32>
    %c1_34 = arith.constant 1 : index
    %55 = memref.load %arg0[%c1_34] : memref<3xf32, #tpu.memory_space<smem>>
    %c1_35 = arith.constant 1 : index
    %c0_36 = arith.constant 0 : index
    %c0_37 = arith.constant 0 : index
    %56 = vector.load %arg5[%c1_35, %c0_36, %c0_37] : memref<2x16x48xf32, #tpu.memory_space<vmem>>, vector<1x16x48xf32>
    %57 = vector.shape_cast %56 : vector<1x16x48xf32> to vector<16x48xf32>
    %58 = vector.broadcast %55 : f32 to vector<16x48xf32>
    %59 = arith.mulf %58, %57 : vector<16x48xf32>
    %60 = arith.addf %54, %59 : vector<16x48xf32>
    %c2_38 = arith.constant 2 : index
    %61 = memref.load %arg0[%c2_38] : memref<3xf32, #tpu.memory_space<smem>>
    %c1_39 = arith.constant 1 : index
    %c0_40 = arith.constant 0 : index
    %c0_41 = arith.constant 0 : index
    %62 = vector.load %arg6[%c1_39, %c0_40, %c0_41] : memref<2x16x48xf32, #tpu.memory_space<vmem>>, vector<1x16x48xf32>
    %63 = vector.shape_cast %62 : vector<1x16x48xf32> to vector<16x48xf32>
    %64 = vector.broadcast %61 : f32 to vector<16x48xf32>
    %65 = arith.mulf %64, %63 : vector<16x48xf32>
    %66 = arith.addf %60, %65 : vector<16x48xf32>
    %67 = arith.negf %66 : vector<16x48xf32>
    %68 = math.exp %67 : vector<16x48xf32>
    %cst_42 = arith.constant 1.000000e+00 : f32
    %69 = vector.broadcast %cst_42 : f32 to vector<16x48xf32>
    %70 = arith.addf %69, %68 : vector<16x48xf32>
    %71 = arith.divf %69, %70 : vector<16x48xf32>
    %72 = arith.mulf %66, %71 : vector<16x48xf32>
    %cst_43 = arith.constant 0.000000e+00 : f32
    %73 = vector.broadcast %cst_43 : f32 to vector<32x48xf32>
    %c0_44 = arith.constant 0 : index
    %c0_45 = arith.constant 0 : index
    %74 = vector.load %arg8[%c0_44, %c0_45] : memref<32x48xf32, #tpu.memory_space<vmem>>, vector<32x48xf32>
    tpu.vector_store %arg8[%c0_44, %c0_45], %73 {strides = array<i32>} : memref<32x48xf32, #tpu.memory_space<vmem>>, vector<32x48xf32>,
    %c8_46 = arith.constant 8 : index
    %c0_47 = arith.constant 0 : index
    %75 = vector.load %arg8[%c8_46, %c0_47] : memref<32x48xf32, #tpu.memory_space<vmem>>, vector<16x48xf32>
    tpu.vector_store %arg8[%c8_46, %c0_47], %72 {strides = array<i32>} : memref<32x48xf32, #tpu.memory_space<vmem>>, vector<16x48xf32>,
    %c7_48 = arith.constant 7 : index
    %c0_49 = arith.constant 0 : index
    %76 = vector.load %arg8[%c7_48, %c0_49] : memref<32x48xf32, #tpu.memory_space<vmem>>, vector<16x48xf32>
    %77 = vector.broadcast %2 : vector<1x48xf32> to vector<16x48xf32>
    %78 = arith.mulf %77, %76 : vector<16x48xf32>
    %79 = vector.broadcast %3 : vector<1x48xf32> to vector<16x48xf32>
    %80 = arith.mulf %79, %72 : vector<16x48xf32>
    %81 = arith.addf %78, %80 : vector<16x48xf32>
    %c9_50 = arith.constant 9 : index
    %c0_51 = arith.constant 0 : index
    %82 = vector.load %arg8[%c9_50, %c0_51] : memref<32x48xf32, #tpu.memory_space<vmem>>, vector<16x48xf32>
    %83 = vector.broadcast %4 : vector<1x48xf32> to vector<16x48xf32>
    %84 = arith.mulf %83, %82 : vector<16x48xf32>
    %85 = arith.addf %81, %84 : vector<16x48xf32>
    %86 = arith.truncf %85 : vector<16x48xf32> to vector<16x48xbf16>
    %cst_52 = arith.constant dense<0.000000e+00> : vector<16x48xf32>
    %87 = tpu.matmul %86, %0, %cst_52 {dimension_numbers = #tpu.dot_dimension_numbers<[1], [0], [0], [1], [0, 0, 1, 1], [], []>} : vector<16x48xbf16>, vector<48x48xbf16>, vector<16x48xf32> -> vector<16x48xf32>
    %88 = vector.broadcast %1 : vector<1x48xf32> to vector<16x48xf32>
    %89 = arith.addf %87, %88 : vector<16x48xf32>
    %cst_53 = arith.constant 0.999500393 : f32
    %90 = vector.broadcast %cst_53 : f32 to vector<16x48xf32>
    %91 = arith.mulf %89, %90 : vector<16x48xf32>
    %c1_54 = arith.constant 1 : index
    %c0_55 = arith.constant 0 : index
    %c0_56 = arith.constant 0 : index
    %92 = vector.load %arg7[%c1_54, %c0_55, %c0_56] : memref<2x16x48xf32, #tpu.memory_space<vmem>>, vector<1x16x48xf32>
    %93 = vector.shape_cast %92 : vector<1x16x48xf32> to vector<16x48xf32>
    %94 = vector.shape_cast %91 : vector<16x48xf32> to vector<1x16x48xf32>
    tpu.vector_store %arg7[%c1_54, %c0_55, %c0_56], %94 {strides = array<i32>} : memref<2x16x48xf32, #tpu.memory_space<vmem>>, vector<1x16x48xf32>,
    return
  }
}

module attributes {stable_mosaic.version = 11 : i64} {
  func.func @_mm_kernel(%arg0: i32, %arg1: memref<32x240xbf16, #tpu.memory_space<vmem>>, %arg2: memref<240x360xbf16, #tpu.memory_space<vmem>>, %arg3: memref<1x360xf32, #tpu.memory_space<vmem>>, %arg4: memref<32x360xf32, #tpu.memory_space<vmem>>) attributes {dimension_semantics = [#tpu.dimension_semantics<parallel>], iteration_bounds = array<i64: 1>, scalar_prefetch = 0 : i64, scratch_operands = 0 : i64, tpu.core_type = #tpu.core_type<tc>, window_params = [{transform_indices = @transform_0, window_bounds = array<i64: 32, 240>}, {pipeline_mode = #tpu.pipeline_mode<synchronous>, transform_indices = @transform_1, window_bounds = array<i64: 240, 360>}, {pipeline_mode = #tpu.pipeline_mode<synchronous>, transform_indices = @transform_2, window_bounds = array<i64: 1, 360>}, {transform_indices = @transform_3, window_bounds = array<i64: 32, 360>}]} {
    %c0 = arith.constant 0 : index
    %c0_0 = arith.constant 0 : index
    %0 = vector.load %arg1[%c0, %c0_0] : memref<32x240xbf16, #tpu.memory_space<vmem>>, vector<32x240xbf16>
    %c0_1 = arith.constant 0 : index
    %c0_2 = arith.constant 0 : index
    %1 = vector.load %arg2[%c0_1, %c0_2] : memref<240x360xbf16, #tpu.memory_space<vmem>>, vector<240x360xbf16>
    %cst = arith.constant dense<0.000000e+00> : vector<32x360xf32>
    %2 = tpu.matmul %0, %1, %cst {dimension_numbers = #tpu.dot_dimension_numbers<[1], [0], [0], [1], [0, 0, 1, 1], [], []>} : vector<32x240xbf16>, vector<240x360xbf16>, vector<32x360xf32> -> vector<32x360xf32>
    %c0_3 = arith.constant 0 : index
    %c0_4 = arith.constant 0 : index
    %3 = vector.load %arg3[%c0_3, %c0_4] : memref<1x360xf32, #tpu.memory_space<vmem>>, vector<1x360xf32>
    %4 = vector.broadcast %3 : vector<1x360xf32> to vector<32x360xf32>
    %5 = arith.addf %2, %4 : vector<32x360xf32>
    %6 = arith.negf %5 : vector<32x360xf32>
    %7 = math.exp %6 : vector<32x360xf32>
    %cst_5 = arith.constant 1.000000e+00 : f32
    %8 = vector.broadcast %cst_5 : f32 to vector<32x360xf32>
    %9 = arith.addf %8, %7 : vector<32x360xf32>
    %10 = arith.divf %8, %9 : vector<32x360xf32>
    %c0_6 = arith.constant 0 : index
    %c0_7 = arith.constant 0 : index
    %11 = vector.load %arg4[%c0_6, %c0_7] : memref<32x360xf32, #tpu.memory_space<vmem>>, vector<32x360xf32>
    tpu.vector_store %arg4[%c0_6, %c0_7], %10 {strides = array<i32>} : memref<32x360xf32, #tpu.memory_space<vmem>>, vector<32x360xf32>,
    return
  }
  func.func @transform_0(%arg0: i32) -> (i32, i32) {
    %c0_i32 = arith.constant 0 : i32
    %c0_i32_0 = arith.constant 0 : i32
    return %arg0, %c0_i32 : i32, i32
  }
  func.func @transform_1(%arg0: i32) -> (i32, i32) {
    %c0_i32 = arith.constant 0 : i32
    %c0_i32_0 = arith.constant 0 : i32
    %c0_i32_1 = arith.constant 0 : i32
    return %c0_i32, %c0_i32_0 : i32, i32
  }
  func.func @transform_2(%arg0: i32) -> (i32, i32) {
    %c0_i32 = arith.constant 0 : i32
    %c0_i32_0 = arith.constant 0 : i32
    %c0_i32_1 = arith.constant 0 : i32
    return %c0_i32, %c0_i32_0 : i32, i32
  }
  func.func @transform_3(%arg0: i32) -> (i32, i32) {
    %c0_i32 = arith.constant 0 : i32
    %c0_i32_0 = arith.constant 0 : i32
    return %arg0, %c0_i32 : i32, i32
  }
}

</mosaic_0001>

<llo_original>
// kernel: estimation_stage_forward.22
$region0: #{estimation_stage_forward.22}
  #allocation0 [shape = 'u32[]', space=smem, size = 0x4, offset = 0x4, fixed_abs, tag = 'smem constant byte address 0x4 - core index']
  #allocation1 [shape = 'u32[144,128]{1,0:T(1,128)}', space=vmem, size = 0x12000, scoped, tag = 'internal scratch']
  %s0 = inlined_call_operand.vmem [shape: bf16[4096,4], index: 0, kind: input, shape index: {}]
  %s1 = inlined_call_operand.vmem [shape: bf16[4,6], index: 1, kind: input, shape index: {}]
  %s2 = inlined_call_operand.vmem [shape: f32[1,6], index: 2, kind: input, shape index: {}]
  %s3 = inlined_call_operand.vmem [shape: bf16[4,6], index: 3, kind: input, shape index: {}]
  %s4 = inlined_call_operand.vmem [shape: f32[1,6], index: 4, kind: input, shape index: {}]
  %s5 = inlined_call_operand.vmem [shape: f32[4096,6], index: 5, kind: output, shape index: {}]
  %s6 = sld [smem:[#allocation0]]
  $region53: #{estimation_stage_forward.22} parent=0
    _
  %s8 = ssub.s32 1, %s6
  %s9 = scalar_select 0, %s8, %s6
  loop: start=0, step=1, limit=34
  $region2: #{estimation_stage_forward.22} parent=0 // loop_pre_header
    _
  $region3: #{estimation_stage_forward.22} parent=0 // loop_header
    %s11 = sphi 0, %s15
    %p12 = scmp.ge.s32.totalorder %s11, 34
    %s21 = sphi 0, %s23
    %s24 = sphi 0, %s21
    %s25 = sphi 0, %s24
    %s41 = sphi 0, %s25
    %s45 = sphi 0, %s45
    %s47 = sphi 0, %s45
    %s48 = sphi 0, %s47
    %s62 = sphi 0, %s48
    %s66 = sphi 0, %s66
    %s68 = sphi 0, %s66
    %s69 = sphi 0, %s68
    %s83 = sphi 0, %s69
    %s87 = sphi 0, %s87
    %s89 = sphi 0, %s87
    %s90 = sphi 0, %s89
    %s104 = sphi 0, %s90
    %s108 = sphi 0, %s108
    %s110 = sphi 0, %s108
    %s111 = sphi 0, %s110
    %s125 = sphi 0, %s111
    %s131 = sphi 0, %s133
    %s134 = sphi 0, %s131
    %s135 = sphi 0, %s134
    %s151 = sphi 0, %s135
  $region4: #{estimation_stage_forward.22} parent=0 // loop_header_branch
    %14 = sbr.rel (%p12) target = $region8
  $region5: #{estimation_stage_forward.22} parent=0 // loop_body
    %s16 = ssub.s32 %s11, 1
    %s17 = ssub.s32 %s11, 2
    %s18 = sadd.s32 %s11, 1
    %s19 = ssub.s32 %s11, %s18
    %p20 = scmp.eq.s32.totalorder %s19, 0
    %s22 = sadd.s32 %s21, 1
    %s23 = scalar_select %p20, %s21, %s22
    %p26 = pneg %p20
    %p27 = scmp.eq.s32.totalorder %s11, 31
    %p28 = por %p26, %p27
    %p29 = scmp.ne.s32.totalorder %s21, %s24
    %p30 = scmp.eq.s32.totalorder %s11, 0
    %p31 = por %p29, %p30
    %p32 = scmp.ne.s32.totalorder %s21, %s24
    %p33 = scmp.eq.s32.totalorder %s16, 31
    %p34 = por %p32, %p33
    %p35 = scmp.ne.s32.totalorder %s24, %s25
    %p36 = scmp.eq.s32.totalorder %s16, 0
    %p37 = por %p35, %p36
    %p38 = scmp.ne.s32.totalorder %s24, %s25
    %p39 = scmp.eq.s32.totalorder %s17, 31
    %p40 = por %p38, %p39
    %p42 = scmp.ne.s32.totalorder %s25, %s41
    %p43 = scmp.eq.s32.totalorder %s17, 0
    %p44 = por %p42, %p43
    %s46 = sadd.s32 %s45, 1
    %p49 = scmp.eq.s32.totalorder %s11, 31
    %p50 = scmp.ne.s32.totalorder %s45, %s47
    %p51 = scmp.eq.s32.totalorder %s11, 0
    %p52 = por %p50, %p51
    %p53 = scmp.ne.s32.totalorder %s45, %s47
    %p54 = scmp.eq.s32.totalorder %s16, 31
    %p55 = por %p53, %p54
    %p56 = scmp.ne.s32.totalorder %s47, %s48
    %p57 = scmp.eq.s32.totalorder %s16, 0
    %p58 = por %p56, %p57
    %p59 = scmp.ne.s32.totalorder %s47, %s48
    %p60 = scmp.eq.s32.totalorder %s17, 31
    %p61 = por %p59, %p60
    %p63 = scmp.ne.s32.totalorder %s48, %s62
    %p64 = scmp.eq.s32.totalorder %s17, 0
    %p65 = por %p63, %p64
    %s67 = sadd.s32 %s66, 1
    %p70 = scmp.eq.s32.totalorder %s11, 31
    %p71 = scmp.ne.s32.totalorder %s66, %s68
    %p72 = scmp.eq.s32.totalorder %s11, 0
    %p73 = por %p71, %p72
    %p74 = scmp.ne.s32.totalorder %s66, %s68
    %p75 = scmp.eq.s32.totalorder %s16, 31
    %p76 = por %p74, %p75
    %p77 = scmp.ne.s32.totalorder %s68, %s69
    %p78 = scmp.eq.s32.totalorder %s16, 0
    %p79 = por %p77, %p78
    %p80 = scmp.ne.s32.totalorder %s68, %s69
    %p81 = scmp.eq.s32.totalorder %s17, 31
    %p82 = por %p80, %p81
    %p84 = scmp.ne.s32.totalorder %s69, %s83
    %p85 = scmp.eq.s32.totalorder %s17, 0
    %p86 = por %p84, %p85
    %s88 = sadd.s32 %s87, 1
    %p91 = scmp.eq.s32.totalorder %s11, 31
    %p92 = scmp.ne.s32.totalorder %s87, %s89
    %p93 = scmp.eq.s32.totalorder %s11, 0
    %p94 = por %p92, %p93
    %p95 = scmp.ne.s32.totalorder %s87, %s89
    %p96 = scmp.eq.s32.totalorder %s16, 31
    %p97 = por %p95, %p96
    %p98 = scmp.ne.s32.totalorder %s89, %s90
    %p99 = scmp.eq.s32.totalorder %s16, 0
    %p100 = por %p98, %p99
    %p101 = scmp.ne.s32.totalorder %s89, %s90
    %p102 = scmp.eq.s32.totalorder %s17, 31
    %p103 = por %p101, %p102
    %p105 = scmp.ne.s32.totalorder %s90, %s104
    %p106 = scmp.eq.s32.totalorder %s17, 0
    %p107 = por %p105, %p106
    %s109 = sadd.s32 %s108, 1
    %p112 = scmp.eq.s32.totalorder %s11, 31
    %p113 = scmp.ne.s32.totalorder %s108, %s110
    %p114 = scmp.eq.s32.totalorder %s11, 0
    %p115 = por %p113, %p114
    %p116 = scmp.ne.s32.totalorder %s108, %s110
    %p117 = scmp.eq.s32.totalorder %s16, 31
    %p118 = por %p116, %p117
    %p119 = scmp.ne.s32.totalorder %s110, %s111
    %p120 = scmp.eq.s32.totalorder %s16, 0
    %p121 = por %p119, %p120
    %p122 = scmp.ne.s32.totalorder %s110, %s111
    %p123 = scmp.eq.s32.totalorder %s17, 31
    %p124 = por %p122, %p123
    %p126 = scmp.ne.s32.totalorder %s111, %s125
    %p127 = scmp.eq.s32.totalorder %s17, 0
    %p128 = por %p126, %p127
    %s129 = ssub.s32 %s11, %s18
    %p130 = scmp.eq.s32.totalorder %s129, 0
    %s132 = sadd.s32 %s131, 1
    %s133 = scalar_select %p130, %s131, %s132
    %p136 = pneg %p130
    %p137 = scmp.eq.s32.totalorder %s11, 31
    %p138 = por %p136, %p137
    %p139 = scmp.ne.s32.totalorder %s131, %s134
    %p140 = scmp.eq.s32.totalorder %s11, 0
    %p141 = por %p139, %p140
    %p142 = scmp.ne.s32.totalorder %s131, %s134
    %p143 = scmp.eq.s32.totalorder %s16, 31
    %p144 = por %p142, %p143
    %p145 = scmp.ne.s32.totalorder %s134, %s135
    %p146 = scmp.eq.s32.totalorder %s16, 0
    %p147 = por %p145, %p146
    %p148 = scmp.ne.s32.totalorder %s134, %s135
    %p149 = scmp.eq.s32.totalorder %s17, 31
    %p150 = por %p148, %p149
    %p152 = scmp.ne.s32.totalorder %s135, %s151
    %p153 = scmp.eq.s32.totalorder %s17, 0
    %p154 = por %p152, %p153
    %p155 = scmp.le.s32.totalorder 1, %s11
    %p156 = scmp.lt.s32.totalorder %s11, 33
    %p157 = pnand %p155, %p156
    %p158 = pneg %p157
    // Predicated region
    $region9: #{estimation_stage_forward.22} parent=5 // pred_check
      _
    $region10: #{estimation_stage_forward.22} parent=5 // pred_check_branch
      %160 = sbr.rel (%p157) target = $region12
    $region11: #{estimation_stage_forward.22} parent=5 // pred_region
      %s161 = ssub.s32 %s11, 1
      // Predicated region
      $region13: #{estimation_stage_forward.22} parent=11 // pred_check
        %p162 = pneg %p58
      $region14: #{estimation_stage_forward.22} parent=11 // pred_check_branch
        %164 = sbr.rel (%p162) target = $region16
      $region15: #{estimation_stage_forward.22} parent=11 // pred_region
        _
      $region16: #{estimation_stage_forward.22} parent=11 // pred_fallthru
        _
      // Predicated region
      $region17: #{estimation_stage_forward.22} parent=11 // pred_check
        %p165 = pneg %p79
      $region18: #{estimation_stage_forward.22} parent=11 // pred_check_branch
        %167 = sbr.rel (%p165) target = $region20
      $region19: #{estimation_stage_forward.22} parent=11 // pred_region
        _
      $region20: #{estimation_stage_forward.22} parent=11 // pred_fallthru
        _
      // Predicated region
      $region21: #{estimation_stage_forward.22} parent=11 // pred_check
        %p168 = pneg %p100
      $region22: #{estimation_stage_forward.22} parent=11 // pred_check_branch
        %170 = sbr.rel (%p168) target = $region24
      $region23: #{estimation_stage_forward.22} parent=11 // pred_region
        _
      $region24: #{estimation_stage_forward.22} parent=11 // pred_fallthru
        _
      // Predicated region
      $region25: #{estimation_stage_forward.22} parent=11 // pred_check
        %p171 = pneg %p121
      $region26: #{estimation_stage_forward.22} parent=11 // pred_check_branch
        %173 = sbr.rel (%p171) target = $region28
      $region27: #{estimation_stage_forward.22} parent=11 // pred_region
        _
      $region28: #{estimation_stage_forward.22} parent=11 // pred_fallthru
        _
    $region12: #{estimation_stage_forward.22} parent=5 // pred_fallthru
      _
    %p174 = scmp.lt.s32.totalorder %s11, 32
    // Predicated region
    $region29: #{estimation_stage_forward.22} parent=5 // pred_check
      %p175 = pneg %p174
    $region30: #{estimation_stage_forward.22} parent=5 // pred_check_branch
      %177 = sbr.rel (%p175) target = $region32
    $region31: #{estimation_stage_forward.22} parent=5 // pred_region
      // Predicated region
      $region33: #{estimation_stage_forward.22} parent=31 // pred_check
        %p178 = pneg %p31
      $region34: #{estimation_stage_forward.22} parent=31 // pred_check_branch
        %180 = sbr.rel (%p178) target = $region36
      $region35: #{estimation_stage_forward.22} parent=31 // pred_region
        %s181 = smul.u32 16, %s11
        %p182 = scmp.lt.s32.totalorder %s181, 511
        %s183 = scalar_select %p182, %s181, 511
        %s184 = smul.addr %s183, 4
        %s185 = scalar_lea.vmem %s0, %s184
        %s186 = smul.u32 16, %s11
      $region36: #{estimation_stage_forward.22} parent=31 // pred_fallthru
        _
    $region32: #{estimation_stage_forward.22} parent=5 // pred_fallthru
      _
    %p187 = scmp.le.s32.totalorder 1, %s11
    %p188 = scmp.lt.s32.totalorder %s11, 33
    %p189 = pnand %p187, %p188
    %p190 = pneg %p189
    // Predicated region
    $region37: #{estimation_stage_forward.22} parent=5 // pred_check
      _
    $region38: #{estimation_stage_forward.22} parent=5 // pred_check_branch
      %192 = sbr.rel (%p189) target = $region40
    $region39: #{estimation_stage_forward.22} parent=5 // pred_region
      %s193 = ssub.s32 %s11, 1
      %s194 = smul.u32 16, %s16
      %p195 = scmp.lt.s32.totalorder %s194, 511
      %s196 = scalar_select %p195, %s194, 511
      %s197 = smul.addr %s196, 4
      %s198 = scalar_lea.vmem %s0, %s197
      %p199 = pneg %p37
      %p200 = pneg %p34
      %p201 = pneg %p58
      %p202 = pneg %p55
      %p203 = pneg %p79
      %p204 = pneg %p76
      %p205 = pneg %p100
      %p206 = pneg %p97
      %p207 = pneg %p121
      %p208 = pneg %p118
      %p209 = pneg %p147
      %p210 = pneg %p144
      %s211 = smul.u32 16, %s16
      %p212 = scmp.lt.s32.totalorder %s211, 511
      %s213 = scalar_select %p212, %s211, 511
      %s214 = smul.addr %s213, 8
      %s215 = scalar_lea.vmem %s5, %s214
      %s216 = smul.u32 16, %s16
      %p217 = scmp.lt.s32.totalorder %s216, 511
      %s218 = scalar_select %p217, %s216, 511
      %s219 = smul.addr %s218, 4
      %s220 = scalar_lea.vmem %s0, %s219
      %s221 = smul.u32 16, %s16
      %s222 = smul.u32 16, %s16
      %p223 = scmp.lt.s32.totalorder %s222, 511
      %s224 = scalar_select %p223, %s222, 511
      %s225 = smul.addr %s224, 8
      %s226 = scalar_lea.vmem %s5, %s225
      %s227 = smul.u32 16, %s16
      %v229 = vld [vmem:[%s220] sm:$0xf]
      %v230 = vld [vmem:[%s220 + $0x4] sm:$0xf]
      %v231 = vld [vmem:[%s220 + $0x8] sm:$0xf]
      %v232 = vld [vmem:[%s220 + $0xc] sm:$0xf]
      %v233 = vld [vmem:[%s220 + $0x10] sm:$0xf]
      %v234 = vld [vmem:[%s220 + $0x14] sm:$0xf]
      %v235 = vld [vmem:[%s220 + $0x18] sm:$0xf]
      %v236 = vld [vmem:[%s220 + $0x1c] sm:$0xf]
      %v237 = vld [vmem:[%s220 + $0x20] sm:$0xf]
      %v238 = vld [vmem:[%s220 + $0x24] sm:$0xf]
      %v239 = vld [vmem:[%s220 + $0x28] sm:$0xf]
      %v240 = vld [vmem:[%s220 + $0x2c] sm:$0xf]
      %v241 = vld [vmem:[%s220 + $0x30] sm:$0xf]
      %v242 = vld [vmem:[%s220 + $0x34] sm:$0xf]
      %v243 = vld [vmem:[%s220 + $0x38] sm:$0xf]
      %v244 = vld [vmem:[%s220 + $0x3c] sm:$0xf]
      %v245 = vld [vmem:[%s1] sm:$0x3]
      %v246 = vld [vmem:[%s2] sm:$0x1]
      %v248 = vlaneseq
      %v249 = vshrl.u32 %v248, 7
      %v250 = vsub.s32 0, %v249
      %v251 = vrot.slane %v246, %v250
      %v269 = vunpack.c.l.b16 %v229
      %v270 = vunpack.c.l.b16 %v230
      %v271 = vunpack.c.l.b16 %v231
      %v272 = vunpack.c.l.b16 %v232
      %v273 = vunpack.c.l.b16 %v233
      %v274 = vunpack.c.l.b16 %v234
      %v275 = vunpack.c.l.b16 %v235
      %v276 = vunpack.c.l.b16 %v236
      %v277 = vunpack.c.l.b16 %v237
      %v278 = vunpack.c.l.b16 %v238
      %v279 = vunpack.c.l.b16 %v239
      %v280 = vunpack.c.l.b16 %v240
      %v281 = vunpack.c.l.b16 %v241
      %v282 = vunpack.c.l.b16 %v242
      %v283 = vunpack.c.l.b16 %v243
      %v284 = vunpack.c.l.b16 %v244
      %v285 = vpack.c.b16 %v270, %v269
      %v286 = vpack.c.b16 %v272, %v271
      %v287 = vpack.c.b16 %v274, %v273
      %v288 = vpack.c.b16 %v276, %v275
      %v289 = vpack.c.b16 %v278, %v277
      %v290 = vpack.c.b16 %v280, %v279
      %v291 = vpack.c.b16 %v282, %v281
      %v292 = vpack.c.b16 %v284, %v283
      %vm293 = vcmask 31744
      %v295 = vsel %vm293, %v285, 0
      %v298 = vsel %vm293, %v286, 0
      %v301 = vsel %vm293, %v287, 0
      %v304 = vsel %vm293, %v288, 0
      %v307 = vsel %vm293, %v289, 0
      %v310 = vsel %vm293, %v290, 0
      %v313 = vsel %vm293, %v291, 0
      %v316 = vsel %vm293, %v292, 0
      %vm318 = vcmask 1041408
      %v320 = vsel %vm318, %v245, 0
      %322 = vmatprep.subr.bf16.mxu0 0
      %323 = vmatpush1.bf16.msra.mxu0 %v320
      %324 = vmatprep.subr.bf16.mxu0 0
      %325 = vmatpush1.bf16.msra.mxu0 0
      %326 = vmatprep.subr.bf16.mxu0 0
      %327 = vmatpush1.bf16.msra.mxu0 0
      %328 = vmatprep.subr.bf16.mxu0 0
      %329 = vmatpush1.bf16.msra.mxu0 0
      %330 = vmatprep.subr.bf16.mxu0 0
      %331 = vmatpush1.bf16.msra.mxu0 0
      %332 = vmatprep.subr.bf16.mxu0 0
      %333 = vmatpush1.bf16.msra.mxu0 0
      %334 = vmatprep.subr.bf16.mxu0 0
      %335 = vmatpush1.bf16.msra.mxu0 0
      %336 = vmatprep.subr.bf16.mxu0 0
      %337 = vmatpush1.bf16.msra.mxu0 0
      %338 = vmatprep.subr.bf16.mxu0 0
      %339 = vmatpush1.bf16.msra.mxu0 0
      %340 = vmatprep.subr.bf16.mxu0 0
      %341 = vmatpush1.bf16.msra.mxu0 0
      %342 = vmatprep.subr.bf16.mxu0 0
      %343 = vmatpush1.bf16.msra.mxu0 0
      %344 = vmatprep.subr.bf16.mxu0 0
      %345 = vmatpush1.bf16.msra.mxu0 0
      %346 = vmatprep.subr.bf16.mxu0 0
      %347 = vmatpush1.bf16.msra.mxu0 0
      %348 = vmatprep.subr.bf16.mxu0 0
      %349 = vmatpush1.bf16.msra.mxu0 0
      %350 = vmatprep.subr.bf16.mxu0 0
      %351 = vmatpush1.bf16.msra.mxu0 0
      %352 = vmatprep.subr.bf16.mxu0 0
      %353 = vmatpush1.bf16.msra.mxu0 0
      %354 = vmatprep.mubr.bf16.mxu0 0
      %355 = vmatmul.mubr.bf16.gmra.mrb[0].mxu0 %v295
      %v356 = vpop.f32.mrb[0].mxu0
      %v357 = vadd.f32 %v251, %v356
      %v358 = vpop.f32.mrb[0].mxu0
      %v359 = vpop.f32.mrb[0].mxu0
      %v360 = vadd.f32 %v251, %v359
      %v361 = vpop.f32.mrb[0].mxu0
      %362 = vmatprep.mubr.bf16.mxu0 0
      %363 = vmatmul.mubr.bf16.gmra.mrb[0].mxu0 %v298
      %v364 = vpop.f32.mrb[0].mxu0
      %v365 = vadd.f32 %v251, %v364
      %v366 = vpop.f32.mrb[0].mxu0
      %v367 = vpop.f32.mrb[0].mxu0
      %v368 = vadd.f32 %v251, %v367
      %v369 = vpop.f32.mrb[0].mxu0
      %370 = vmatprep.mubr.bf16.mxu0 0
      %371 = vmatmul.mubr.bf16.gmra.mrb[0].mxu0 %v301
      %v372 = vpop.f32.mrb[0].mxu0
      %v373 = vadd.f32 %v251, %v372
      %v374 = vpop.f32.mrb[0].mxu0
      %v375 = vpop.f32.mrb[0].mxu0
      %v376 = vadd.f32 %v251, %v375
      %v377 = vpop.f32.mrb[0].mxu0
      %378 = vmatprep.mubr.bf16.mxu0 0
      %379 = vmatmul.mubr.bf16.gmra.mrb[0].mxu0 %v304
      %v380 = vpop.f32.mrb[0].mxu0
      %v381 = vadd.f32 %v251, %v380
      %v382 = vpop.f32.mrb[0].mxu0
      %v383 = vpop.f32.mrb[0].mxu0
      %v384 = vadd.f32 %v251, %v383
      %v385 = vpop.f32.mrb[0].mxu0
      %386 = vmatprep.mubr.bf16.mxu0 0
      %387 = vmatmul.mubr.bf16.gmra.mrb[0].mxu0 %v307
      %v388 = vpop.f32.mrb[0].mxu0
      %v389 = vadd.f32 %v251, %v388
      %v390 = vpop.f32.mrb[0].mxu0
      %v391 = vpop.f32.mrb[0].mxu0
      %v392 = vadd.f32 %v251, %v391
      %v393 = vpop.f32.mrb[0].mxu0
      %394 = vmatprep.mubr.bf16.mxu0 0
      %395 = vmatmul.mubr.bf16.gmra.mrb[0].mxu0 %v310
      %v396 = vpop.f32.mrb[0].mxu0
      %v397 = vadd.f32 %v251, %v396
      %v398 = vpop.f32.mrb[0].mxu0
      %v399 = vpop.f32.mrb[0].mxu0
      %v400 = vadd.f32 %v251, %v399
      %v401 = vpop.f32.mrb[0].mxu0
      %402 = vmatprep.mubr.bf16.mxu0 0
      %403 = vmatmul.mubr.bf16.gmra.mrb[0].mxu0 %v313
      %v404 = vpop.f32.mrb[0].mxu0
      %v405 = vadd.f32 %v251, %v404
      %v406 = vpop.f32.mrb[0].mxu0
      %v407 = vpop.f32.mrb[0].mxu0
      %v408 = vadd.f32 %v251, %v407
      %v409 = vpop.f32.mrb[0].mxu0
      %410 = vmatprep.mubr.bf16.mxu0 0
      %411 = vmatmul.mubr.bf16.gmra.mrb[0].mxu0 %v316
      %v412 = vpop.f32.mrb[0].mxu0
      %v413 = vadd.f32 %v251, %v412
      %v414 = vpop.f32.mrb[0].mxu0
      %v415 = vpop.f32.mrb[0].mxu0
      %v416 = vadd.f32 %v251, %v415
      %v417 = vpop.f32.mrb[0].mxu0
      %418 = vdwg.mxu0
      %v419 = vld [vmem:[%s3] sm:$0x3]
      %v420 = vld [vmem:[%s4] sm:$0x1]
      %v422 = vlaneseq
      %v423 = vshrl.u32 %v422, 7
      %v424 = vsub.s32 0, %v423
      %v425 = vrot.slane %v420, %v424
      %v428 = vsel %vm318, %v419, 0
      %430 = vmatprep.subr.bf16.mxu0 0
      %431 = vmatpush1.bf16.msra.mxu0 %v428
      %432 = vmatprep.subr.bf16.mxu0 0
      %433 = vmatpush1.bf16.msra.mxu0 0
      %434 = vmatprep.subr.bf16.mxu0 0
      %435 = vmatpush1.bf16.msra.mxu0 0
      %436 = vmatprep.subr.bf16.mxu0 0
      %437 = vmatpush1.bf16.msra.mxu0 0
      %438 = vmatprep.subr.bf16.mxu0 0
      %439 = vmatpush1.bf16.msra.mxu0 0
      %440 = vmatprep.subr.bf16.mxu0 0
      %441 = vmatpush1.bf16.msra.mxu0 0
      %442 = vmatprep.subr.bf16.mxu0 0
      %443 = vmatpush1.bf16.msra.mxu0 0
      %444 = vmatprep.subr.bf16.mxu0 0
      %445 = vmatpush1.bf16.msra.mxu0 0
      %446 = vmatprep.subr.bf16.mxu0 0
      %447 = vmatpush1.bf16.msra.mxu0 0
      %448 = vmatprep.subr.bf16.mxu0 0
      %449 = vmatpush1.bf16.msra.mxu0 0
      %450 = vmatprep.subr.bf16.mxu0 0
      %451 = vmatpush1.bf16.msra.mxu0 0
      %452 = vmatprep.subr.bf16.mxu0 0
      %453 = vmatpush1.bf16.msra.mxu0 0
      %454 = vmatprep.subr.bf16.mxu0 0
      %455 = vmatpush1.bf16.msra.mxu0 0
      %456 = vmatprep.subr.bf16.mxu0 0
      %457 = vmatpush1.bf16.msra.mxu0 0
      %458 = vmatprep.subr.bf16.mxu0 0
      %459 = vmatpush1.bf16.msra.mxu0 0
      %460 = vmatprep.subr.bf16.mxu0 0
      %461 = vmatpush1.bf16.msra.mxu0 0
      %462 = vmatprep.mubr.bf16.mxu0 0
      %463 = vmatmul.mubr.bf16.gmra.mrb[0].mxu0 %v295
      %v464 = vpop.f32.mrb[0].mxu0
      %v465 = vadd.f32 %v425, %v464
      %v466 = vpop.f32.mrb[0].mxu0
      %v467 = vpop.f32.mrb[0].mxu0
      %v468 = vadd.f32 %v425, %v467
      %v469 = vpop.f32.mrb[0].mxu0
      %470 = vmatprep.mubr.bf16.mxu0 0
      %471 = vmatmul.mubr.bf16.gmra.mrb[0].mxu0 %v298
      %v472 = vpop.f32.mrb[0].mxu0
      %v473 = vadd.f32 %v425, %v472
      %v474 = vpop.f32.mrb[0].mxu0
      %v475 = vpop.f32.mrb[0].mxu0
      %v476 = vadd.f32 %v425, %v475
      %v477 = vpop.f32.mrb[0].mxu0
      %478 = vmatprep.mubr.bf16.mxu0 0
      %479 = vmatmul.mubr.bf16.gmra.mrb[0].mxu0 %v301
      %v480 = vpop.f32.mrb[0].mxu0
      %v481 = vadd.f32 %v425, %v480
      %v482 = vpop.f32.mrb[0].mxu0
      %v483 = vpop.f32.mrb[0].mxu0
      %v484 = vadd.f32 %v425, %v483
      %v485 = vpop.f32.mrb[0].mxu0
      %486 = vmatprep.mubr.bf16.mxu0 0
      %487 = vmatmul.mubr.bf16.gmra.mrb[0].mxu0 %v304
      %v488 = vpop.f32.mrb[0].mxu0
      %v489 = vadd.f32 %v425, %v488
      %v490 = vpop.f32.mrb[0].mxu0
      %v491 = vpop.f32.mrb[0].mxu0
      %v492 = vadd.f32 %v425, %v491
      %v493 = vpop.f32.mrb[0].mxu0
      %494 = vmatprep.mubr.bf16.mxu0 0
      %495 = vmatmul.mubr.bf16.gmra.mrb[0].mxu0 %v307
      %v496 = vpop.f32.mrb[0].mxu0
      %v497 = vadd.f32 %v425, %v496
      %v498 = vpop.f32.mrb[0].mxu0
      %v499 = vpop.f32.mrb[0].mxu0
      %v500 = vadd.f32 %v425, %v499
      %v501 = vpop.f32.mrb[0].mxu0
      %502 = vmatprep.mubr.bf16.mxu0 0
      %503 = vmatmul.mubr.bf16.gmra.mrb[0].mxu0 %v310
      %v504 = vpop.f32.mrb[0].mxu0
      %v505 = vadd.f32 %v425, %v504
      %v506 = vpop.f32.mrb[0].mxu0
      %v507 = vpop.f32.mrb[0].mxu0
      %v508 = vadd.f32 %v425, %v507
      %v509 = vpop.f32.mrb[0].mxu0
      %510 = vmatprep.mubr.bf16.mxu0 0
      %511 = vmatmul.mubr.bf16.gmra.mrb[0].mxu0 %v313
      %v512 = vpop.f32.mrb[0].mxu0
      %v513 = vadd.f32 %v425, %v512
      %v514 = vpop.f32.mrb[0].mxu0
      %v515 = vpop.f32.mrb[0].mxu0
      %v516 = vadd.f32 %v425, %v515
      %v517 = vpop.f32.mrb[0].mxu0
      %518 = vmatprep.mubr.bf16.mxu0 0
      %519 = vmatmul.mubr.bf16.gmra.mrb[0].mxu0 %v316
      %v520 = vpop.f32.mrb[0].mxu0
      %v521 = vadd.f32 %v425, %v520
      %v522 = vpop.f32.mrb[0].mxu0
      %v523 = vpop.f32.mrb[0].mxu0
      %v524 = vadd.f32 %v425, %v523
      %v525 = vpop.f32.mrb[0].mxu0
      %526 = vdwg.mxu0
      %v527 = vmax.f32 %v357, 0.0
      %v528 = vmax.f32 %v360, 0.0
      %v529 = vmax.f32 %v365, 0.0
      %v530 = vmax.f32 %v368, 0.0
      %v531 = vmax.f32 %v373, 0.0
      %v532 = vmax.f32 %v376, 0.0
      %v533 = vmax.f32 %v381, 0.0
      %v534 = vmax.f32 %v384, 0.0
      %v535 = vmax.f32 %v389, 0.0
      %v536 = vmax.f32 %v392, 0.0
      %v537 = vmax.f32 %v397, 0.0
      %v538 = vmax.f32 %v400, 0.0
      %v539 = vmax.f32 %v405, 0.0
      %v540 = vmax.f32 %v408, 0.0
      %v541 = vmax.f32 %v413, 0.0
      %v542 = vmax.f32 %v416, 0.0
      %vm543 = vcmp.ge.f32.partialorder %v465, 0.0
      %vm544 = vcmp.ge.f32.partialorder %v468, 0.0
      %vm545 = vcmp.ge.f32.partialorder %v473, 0.0
      %vm546 = vcmp.ge.f32.partialorder %v476, 0.0
      %vm547 = vcmp.ge.f32.partialorder %v481, 0.0
      %vm548 = vcmp.ge.f32.partialorder %v484, 0.0
      %vm549 = vcmp.ge.f32.partialorder %v489, 0.0
      %vm550 = vcmp.ge.f32.partialorder %v492, 0.0
      %vm551 = vcmp.ge.f32.partialorder %v497, 0.0
      %vm552 = vcmp.ge.f32.partialorder %v500, 0.0
      %vm553 = vcmp.ge.f32.partialorder %v505, 0.0
      %vm554 = vcmp.ge.f32.partialorder %v508, 0.0
      %vm555 = vcmp.ge.f32.partialorder %v513, 0.0
      %vm556 = vcmp.ge.f32.partialorder %v516, 0.0
      %vm557 = vcmp.ge.f32.partialorder %v521, 0.0
      %vm558 = vcmp.ge.f32.partialorder %v524, 0.0
      %v559 = vmul.f32 %v465, 0.2
      %v560 = vmul.f32 %v468, 0.2
      %v561 = vmul.f32 %v473, 0.2
      %v562 = vmul.f32 %v476, 0.2
      %v563 = vmul.f32 %v481, 0.2
      %v564 = vmul.f32 %v484, 0.2
      %v565 = vmul.f32 %v489, 0.2
      %v566 = vmul.f32 %v492, 0.2
      %v567 = vmul.f32 %v497, 0.2
      %v568 = vmul.f32 %v500, 0.2
      %v569 = vmul.f32 %v505, 0.2
      %v570 = vmul.f32 %v508, 0.2
      %v571 = vmul.f32 %v513, 0.2
      %v572 = vmul.f32 %v516, 0.2
      %v573 = vmul.f32 %v521, 0.2
      %v574 = vmul.f32 %v524, 0.2
      %v575 = vsel %vm543, %v465, %v559
      %v576 = vsel %vm544, %v468, %v560
      %v577 = vsel %vm545, %v473, %v561
      %v578 = vsel %vm546, %v476, %v562
      %v579 = vsel %vm547, %v481, %v563
      %v580 = vsel %vm548, %v484, %v564
      %v581 = vsel %vm549, %v489, %v565
      %v582 = vsel %vm550, %v492, %v566
      %v583 = vsel %vm551, %v497, %v567
      %v584 = vsel %vm552, %v500, %v568
      %v585 = vsel %vm553, %v505, %v569
      %v586 = vsel %vm554, %v508, %v570
      %v587 = vsel %vm555, %v513, %v571
      %v588 = vsel %vm556, %v516, %v572
      %v589 = vsel %vm557, %v521, %v573
      %v590 = vsel %vm558, %v524, %v574
      %v591 = vadd.f32 %v527, %v575
      %v592 = vadd.f32 %v528, %v576
      %v593 = vadd.f32 %v529, %v577
      %v594 = vadd.f32 %v530, %v578
      %v595 = vadd.f32 %v531, %v579
      %v596 = vadd.f32 %v532, %v580
      %v597 = vadd.f32 %v533, %v581
      %v598 = vadd.f32 %v534, %v582
      %v599 = vadd.f32 %v535, %v583
      %v600 = vadd.f32 %v536, %v584
      %v601 = vadd.f32 %v537, %v585
      %v602 = vadd.f32 %v538, %v586
      %v603 = vadd.f32 %v539, %v587
      %v604 = vadd.f32 %v540, %v588
      %v605 = vadd.f32 %v541, %v589
      %v606 = vadd.f32 %v542, %v590
      %vm607 = vcmask 48128
      %608 = vst.msk [vmem:[%s226] sm:$0xff] %vm607, %v591
      %609 = vst.msk [vmem:[%s226 + $0x8] sm:$0xff] %vm607, %v592
      %610 = vst.msk [vmem:[%s226 + $0x10] sm:$0xff] %vm607, %v593
      %611 = vst.msk [vmem:[%s226 + $0x18] sm:$0xff] %vm607, %v594
      %612 = vst.msk [vmem:[%s226 + $0x20] sm:$0xff] %vm607, %v595
      %613 = vst.msk [vmem:[%s226 + $0x28] sm:$0xff] %vm607, %v596
      %614 = vst.msk [vmem:[%s226 + $0x30] sm:$0xff] %vm607, %v597
      %615 = vst.msk [vmem:[%s226 + $0x38] sm:$0xff] %vm607, %v598
      %616 = vst.msk [vmem:[%s226 + $0x40] sm:$0xff] %vm607, %v599
      %617 = vst.msk [vmem:[%s226 + $0x48] sm:$0xff] %vm607, %v600
      %618 = vst.msk [vmem:[%s226 + $0x50] sm:$0xff] %vm607, %v601
      %619 = vst.msk [vmem:[%s226 + $0x58] sm:$0xff] %vm607, %v602
      %620 = vst.msk [vmem:[%s226 + $0x60] sm:$0xff] %vm607, %v603
      %621 = vst.msk [vmem:[%s226 + $0x68] sm:$0xff] %vm607, %v604
      %622 = vst.msk [vmem:[%s226 + $0x70] sm:$0xff] %vm607, %v605
      %623 = vst.msk [vmem:[%s226 + $0x78] sm:$0xff] %vm607, %v606
      %s624 = smul.u32 16, %s16
      %p625 = scmp.lt.s32.totalorder %s624, 511
      %s626 = scalar_select %p625, %s624, 511
      %s627 = smul.addr %s626, 8
      %s628 = scalar_lea.vmem %s5, %s627
      // Predicated region
      $region41: #{estimation_stage_forward.22} parent=39 // pred_check
        %p629 = pneg %p144
      $region42: #{estimation_stage_forward.22} parent=39 // pred_check_branch
        %631 = sbr.rel (%p629) target = $region44
      $region43: #{estimation_stage_forward.22} parent=39 // pred_region
        %s632 = smul.u32 16, %s16
      $region44: #{estimation_stage_forward.22} parent=39 // pred_fallthru
        _
    $region40: #{estimation_stage_forward.22} parent=5 // pred_fallthru
      _
    %p633 = scmp.le.s32.totalorder 2, %s11
    // Predicated region
    $region45: #{estimation_stage_forward.22} parent=5 // pred_check
      %p634 = pneg %p633
    $region46: #{estimation_stage_forward.22} parent=5 // pred_check_branch
      %636 = sbr.rel (%p634) target = $region48
    $region47: #{estimation_stage_forward.22} parent=5 // pred_region
      %s637 = ssub.s32 %s11, 2
      // Predicated region
      $region49: #{estimation_stage_forward.22} parent=47 // pred_check
        %p638 = pneg %p150
      $region50: #{estimation_stage_forward.22} parent=47 // pred_check_branch
        %640 = sbr.rel (%p638) target = $region52
      $region51: #{estimation_stage_forward.22} parent=47 // pred_region
        %s641 = smul.u32 16, %s17
        %p642 = scmp.lt.s32.totalorder %s641, 511
        %s643 = scalar_select %p642, %s641, 511
        %s644 = smul.addr %s643, 8
        %s645 = scalar_lea.vmem %s5, %s644
      $region52: #{estimation_stage_forward.22} parent=47 // pred_fallthru
        _
    $region48: #{estimation_stage_forward.22} parent=5 // pred_fallthru
      _
  $region6: #{estimation_stage_forward.22} parent=0 // loop_footer
    %s15 = sadd.s32 1, %s11
  $region7: #{estimation_stage_forward.22} parent=0 // loop_footer_branch
    %10 = sbr.rel target = $region3
  $region8: #{estimation_stage_forward.22} parent=0 // loop_exit
    _

// kernel: estimation_stage_forward.23
$region0: #{estimation_stage_forward.23}
  #allocation0 [shape = 'u32[]', space=smem, size = 0x4, offset = 0x4, fixed_abs, tag = 'smem constant byte address 0x4 - core index']
  #allocation1 [shape = 'u32[144,128]{1,0:T(1,128)}', space=vmem, size = 0x12000, scoped, tag = 'internal scratch']
  %s0 = inlined_call_operand.vmem [shape: bf16[1024,24], index: 0, kind: input, shape index: {}]
  %s1 = inlined_call_operand.vmem [shape: bf16[24,12], index: 1, kind: input, shape index: {}]
  %s2 = inlined_call_operand.vmem [shape: f32[1,12], index: 2, kind: input, shape index: {}]
  %s3 = inlined_call_operand.vmem [shape: bf16[24,12], index: 3, kind: input, shape index: {}]
  %s4 = inlined_call_operand.vmem [shape: f32[1,12], index: 4, kind: input, shape index: {}]
  %s5 = inlined_call_operand.vmem [shape: f32[1024,12], index: 5, kind: output, shape index: {}]
  %s6 = sld [smem:[#allocation0]]
  $region53: #{estimation_stage_forward.23} parent=0
    _
  %s8 = ssub.s32 1, %s6
  %s9 = scalar_select 0, %s8, %s6
  loop: start=0, step=1, limit=10
  $region2: #{estimation_stage_forward.23} parent=0 // loop_pre_header
    _
  $region3: #{estimation_stage_forward.23} parent=0 // loop_header
    %s11 = sphi 0, %s15
    %p12 = scmp.ge.s32.totalorder %s11, 10
    %s21 = sphi 0, %s23
    %s24 = sphi 0, %s21
    %s25 = sphi 0, %s24
    %s41 = sphi 0, %s25
    %s45 = sphi 0, %s45
    %s47 = sphi 0, %s45
    %s48 = sphi 0, %s47
    %s62 = sphi 0, %s48
    %s66 = sphi 0, %s66
    %s68 = sphi 0, %s66
    %s69 = sphi 0, %s68
    %s83 = sphi 0, %s69
    %s87 = sphi 0, %s87
    %s89 = sphi 0, %s87
    %s90 = sphi 0, %s89
    %s104 = sphi 0, %s90
    %s108 = sphi 0, %s108
    %s110 = sphi 0, %s108
    %s111 = sphi 0, %s110
    %s125 = sphi 0, %s111
    %s131 = sphi 0, %s133
    %s134 = sphi 0, %s131
    %s135 = sphi 0, %s134
    %s151 = sphi 0, %s135
  $region4: #{estimation_stage_forward.23} parent=0 // loop_header_branch
    %14 = sbr.rel (%p12) target = $region8
  $region5: #{estimation_stage_forward.23} parent=0 // loop_body
    %s16 = ssub.s32 %s11, 1
    %s17 = ssub.s32 %s11, 2
    %s18 = sadd.s32 %s11, 1
    %s19 = ssub.s32 %s11, %s18
    %p20 = scmp.eq.s32.totalorder %s19, 0
    %s22 = sadd.s32 %s21, 1
    %s23 = scalar_select %p20, %s21, %s22
    %p26 = pneg %p20
    %p27 = scmp.eq.s32.totalorder %s11, 7
    %p28 = por %p26, %p27
    %p29 = scmp.ne.s32.totalorder %s21, %s24
    %p30 = scmp.eq.s32.totalorder %s11, 0
    %p31 = por %p29, %p30
    %p32 = scmp.ne.s32.totalorder %s21, %s24
    %p33 = scmp.eq.s32.totalorder %s16, 7
    %p34 = por %p32, %p33
    %p35 = scmp.ne.s32.totalorder %s24, %s25
    %p36 = scmp.eq.s32.totalorder %s16, 0
    %p37 = por %p35, %p36
    %p38 = scmp.ne.s32.totalorder %s24, %s25
    %p39 = scmp.eq.s32.totalorder %s17, 7
    %p40 = por %p38, %p39
    %p42 = scmp.ne.s32.totalorder %s25, %s41
    %p43 = scmp.eq.s32.totalorder %s17, 0
    %p44 = por %p42, %p43
    %s46 = sadd.s32 %s45, 1
    %p49 = scmp.eq.s32.totalorder %s11, 7
    %p50 = scmp.ne.s32.totalorder %s45, %s47
    %p51 = scmp.eq.s32.totalorder %s11, 0
    %p52 = por %p50, %p51
    %p53 = scmp.ne.s32.totalorder %s45, %s47
    %p54 = scmp.eq.s32.totalorder %s16, 7
    %p55 = por %p53, %p54
    %p56 = scmp.ne.s32.totalorder %s47, %s48
    %p57 = scmp.eq.s32.totalorder %s16, 0
    %p58 = por %p56, %p57
    %p59 = scmp.ne.s32.totalorder %s47, %s48
    %p60 = scmp.eq.s32.totalorder %s17, 7
    %p61 = por %p59, %p60
    %p63 = scmp.ne.s32.totalorder %s48, %s62
    %p64 = scmp.eq.s32.totalorder %s17, 0
    %p65 = por %p63, %p64
    %s67 = sadd.s32 %s66, 1
    %p70 = scmp.eq.s32.totalorder %s11, 7
    %p71 = scmp.ne.s32.totalorder %s66, %s68
    %p72 = scmp.eq.s32.totalorder %s11, 0
    %p73 = por %p71, %p72
    %p74 = scmp.ne.s32.totalorder %s66, %s68
    %p75 = scmp.eq.s32.totalorder %s16, 7
    %p76 = por %p74, %p75
    %p77 = scmp.ne.s32.totalorder %s68, %s69
    %p78 = scmp.eq.s32.totalorder %s16, 0
    %p79 = por %p77, %p78
    %p80 = scmp.ne.s32.totalorder %s68, %s69
    %p81 = scmp.eq.s32.totalorder %s17, 7
    %p82 = por %p80, %p81
    %p84 = scmp.ne.s32.totalorder %s69, %s83
    %p85 = scmp.eq.s32.totalorder %s17, 0
    %p86 = por %p84, %p85
    %s88 = sadd.s32 %s87, 1
    %p91 = scmp.eq.s32.totalorder %s11, 7
    %p92 = scmp.ne.s32.totalorder %s87, %s89
    %p93 = scmp.eq.s32.totalorder %s11, 0
    %p94 = por %p92, %p93
    %p95 = scmp.ne.s32.totalorder %s87, %s89
    %p96 = scmp.eq.s32.totalorder %s16, 7
    %p97 = por %p95, %p96
    %p98 = scmp.ne.s32.totalorder %s89, %s90
    %p99 = scmp.eq.s32.totalorder %s16, 0
    %p100 = por %p98, %p99
    %p101 = scmp.ne.s32.totalorder %s89, %s90
    %p102 = scmp.eq.s32.totalorder %s17, 7
    %p103 = por %p101, %p102
    %p105 = scmp.ne.s32.totalorder %s90, %s104
    %p106 = scmp.eq.s32.totalorder %s17, 0
    %p107 = por %p105, %p106
    %s109 = sadd.s32 %s108, 1
    %p112 = scmp.eq.s32.totalorder %s11, 7
    %p113 = scmp.ne.s32.totalorder %s108, %s110
    %p114 = scmp.eq.s32.totalorder %s11, 0
    %p115 = por %p113, %p114
    %p116 = scmp.ne.s32.totalorder %s108, %s110
    %p117 = scmp.eq.s32.totalorder %s16, 7
    %p118 = por %p116, %p117
    %p119 = scmp.ne.s32.totalorder %s110, %s111
    %p120 = scmp.eq.s32.totalorder %s16, 0
    %p121 = por %p119, %p120
    %p122 = scmp.ne.s32.totalorder %s110, %s111
    %p123 = scmp.eq.s32.totalorder %s17, 7
    %p124 = por %p122, %p123
    %p126 = scmp.ne.s32.totalorder %s111, %s125
    %p127 = scmp.eq.s32.totalorder %s17, 0
    %p128 = por %p126, %p127
    %s129 = ssub.s32 %s11, %s18
    %p130 = scmp.eq.s32.totalorder %s129, 0
    %s132 = sadd.s32 %s131, 1
    %s133 = scalar_select %p130, %s131, %s132
    %p136 = pneg %p130
    %p137 = scmp.eq.s32.totalorder %s11, 7
    %p138 = por %p136, %p137
    %p139 = scmp.ne.s32.totalorder %s131, %s134
    %p140 = scmp.eq.s32.totalorder %s11, 0
    %p141 = por %p139, %p140
    %p142 = scmp.ne.s32.totalorder %s131, %s134
    %p143 = scmp.eq.s32.totalorder %s16, 7
    %p144 = por %p142, %p143
    %p145 = scmp.ne.s32.totalorder %s134, %s135
    %p146 = scmp.eq.s32.totalorder %s16, 0
    %p147 = por %p145, %p146
    %p148 = scmp.ne.s32.totalorder %s134, %s135
    %p149 = scmp.eq.s32.totalorder %s17, 7
    %p150 = por %p148, %p149
    %p152 = scmp.ne.s32.totalorder %s135, %s151
    %p153 = scmp.eq.s32.totalorder %s17, 0
    %p154 = por %p152, %p153
    %p155 = scmp.le.s32.totalorder 1, %s11
    %p156 = scmp.lt.s32.totalorder %s11, 9
    %p157 = pnand %p155, %p156
    %p158 = pneg %p157
    // Predicated region
    $region9: #{estimation_stage_forward.23} parent=5 // pred_check
      _
    $region10: #{estimation_stage_forward.23} parent=5 // pred_check_branch
      %160 = sbr.rel (%p157) target = $region12
    $region11: #{estimation_stage_forward.23} parent=5 // pred_region
      %s161 = ssub.s32 %s11, 1
      // Predicated region
      $region13: #{estimation_stage_forward.23} parent=11 // pred_check
        %p162 = pneg %p58
      $region14: #{estimation_stage_forward.23} parent=11 // pred_check_branch
        %164 = sbr.rel (%p162) target = $region16
      $region15: #{estimation_stage_forward.23} parent=11 // pred_region
        _
      $region16: #{estimation_stage_forward.23} parent=11 // pred_fallthru
        _
      // Predicated region
      $region17: #{estimation_stage_forward.23} parent=11 // pred_check
        %p165 = pneg %p79
      $region18: #{estimation_stage_forward.23} parent=11 // pred_check_branch
        %167 = sbr.rel (%p165) target = $region20
      $region19: #{estimation_stage_forward.23} parent=11 // pred_region
        _
      $region20: #{estimation_stage_forward.23} parent=11 // pred_fallthru
        _
      // Predicated region
      $region21: #{estimation_stage_forward.23} parent=11 // pred_check
        %p168 = pneg %p100
      $region22: #{estimation_stage_forward.23} parent=11 // pred_check_branch
        %170 = sbr.rel (%p168) target = $region24
      $region23: #{estimation_stage_forward.23} parent=11 // pred_region
        _
      $region24: #{estimation_stage_forward.23} parent=11 // pred_fallthru
        _
      // Predicated region
      $region25: #{estimation_stage_forward.23} parent=11 // pred_check
        %p171 = pneg %p121
      $region26: #{estimation_stage_forward.23} parent=11 // pred_check_branch
        %173 = sbr.rel (%p171) target = $region28
      $region27: #{estimation_stage_forward.23} parent=11 // pred_region
        _
      $region28: #{estimation_stage_forward.23} parent=11 // pred_fallthru
        _
    $region12: #{estimation_stage_forward.23} parent=5 // pred_fallthru
      _
    %p174 = scmp.lt.s32.totalorder %s11, 8
    // Predicated region
    $region29: #{estimation_stage_forward.23} parent=5 // pred_check
      %p175 = pneg %p174
    $region30: #{estimation_stage_forward.23} parent=5 // pred_check_branch
      %177 = sbr.rel (%p175) target = $region32
    $region31: #{estimation_stage_forward.23} parent=5 // pred_region
      // Predicated region
      $region33: #{estimation_stage_forward.23} parent=31 // pred_check
        %p178 = pneg %p31
      $region34: #{estimation_stage_forward.23} parent=31 // pred_check_branch
        %180 = sbr.rel (%p178) target = $region36
      $region35: #{estimation_stage_forward.23} parent=31 // pred_region
        %s181 = smul.u32 16, %s11
        %p182 = scmp.lt.s32.totalorder %s181, 127
        %s183 = scalar_select %p182, %s181, 127
        %s184 = smul.addr %s183, 4
        %s185 = scalar_lea.vmem %s0, %s184
        %s186 = smul.u32 16, %s11
      $region36: #{estimation_stage_forward.23} parent=31 // pred_fallthru
        _
    $region32: #{estimation_stage_forward.23} parent=5 // pred_fallthru
      _
    %p187 = scmp.le.s32.totalorder 1, %s11
    %p188 = scmp.lt.s32.totalorder %s11, 9
    %p189 = pnand %p187, %p188
    %p190 = pneg %p189
    // Predicated region
    $region37: #{estimation_stage_forward.23} parent=5 // pred_check
      _
    $region38: #{estimation_stage_forward.23} parent=5 // pred_check_branch
      %192 = sbr.rel (%p189) target = $region40
    $region39: #{estimation_stage_forward.23} parent=5 // pred_region
      %s193 = ssub.s32 %s11, 1
      %s194 = smul.u32 16, %s16
      %p195 = scmp.lt.s32.totalorder %s194, 127
      %s196 = scalar_select %p195, %s194, 127
      %s197 = smul.addr %s196, 4
      %s198 = scalar_lea.vmem %s0, %s197
      %p199 = pneg %p37
      %p200 = pneg %p34
      %p201 = pneg %p58
      %p202 = pneg %p55
      %p203 = pneg %p79
      %p204 = pneg %p76
      %p205 = pneg %p100
      %p206 = pneg %p97
      %p207 = pneg %p121
      %p208 = pneg %p118
      %p209 = pneg %p147
      %p210 = pneg %p144
      %s211 = smul.u32 16, %s16
      %p212 = scmp.lt.s32.totalorder %s211, 127
      %s213 = scalar_select %p212, %s211, 127
      %s214 = smul.addr %s213, 8
      %s215 = scalar_lea.vmem %s5, %s214
      %s216 = smul.u32 16, %s16
      %p217 = scmp.lt.s32.totalorder %s216, 127
      %s218 = scalar_select %p217, %s216, 127
      %s219 = smul.addr %s218, 4
      %s220 = scalar_lea.vmem %s0, %s219
      %s221 = smul.u32 16, %s16
      %s222 = smul.u32 16, %s16
      %p223 = scmp.lt.s32.totalorder %s222, 127
      %s224 = scalar_select %p223, %s222, 127
      %s225 = smul.addr %s224, 8
      %s226 = scalar_lea.vmem %s5, %s225
      %s227 = smul.u32 16, %s16
      %v229 = vld [vmem:[%s220] sm:$0xf]
      %v230 = vld [vmem:[%s220 + $0x4] sm:$0xf]
      %v231 = vld [vmem:[%s220 + $0x8] sm:$0xf]
      %v232 = vld [vmem:[%s220 + $0xc] sm:$0xf]
      %v233 = vld [vmem:[%s220 + $0x10] sm:$0xf]
      %v234 = vld [vmem:[%s220 + $0x14] sm:$0xf]
      %v235 = vld [vmem:[%s220 + $0x18] sm:$0xf]
      %v236 = vld [vmem:[%s220 + $0x1c] sm:$0xf]
      %v237 = vld [vmem:[%s220 + $0x20] sm:$0xf]
      %v238 = vld [vmem:[%s220 + $0x24] sm:$0xf]
      %v239 = vld [vmem:[%s220 + $0x28] sm:$0xf]
      %v240 = vld [vmem:[%s220 + $0x2c] sm:$0xf]
      %v241 = vld [vmem:[%s220 + $0x30] sm:$0xf]
      %v242 = vld [vmem:[%s220 + $0x34] sm:$0xf]
      %v243 = vld [vmem:[%s220 + $0x38] sm:$0xf]
      %v244 = vld [vmem:[%s220 + $0x3c] sm:$0xf]
      %v245 = vld [vmem:[%s1] sm:$0xf]
      %v246 = vld [vmem:[%s1 + $0x4] sm:$0xf]
      %v247 = vld [vmem:[%s1 + $0x8] sm:$0xf]
      %v248 = vld [vmem:[%s2] sm:$0x1]
      %v250 = vlaneseq
      %v251 = vshrl.u32 %v250, 7
      %v252 = vsub.s32 0, %v251
      %v253 = vrot.slane %v248, %v252
      %v271 = vunpack.c.l.b16 %v229
      %v272 = vunpack.c.l.b16 %v230
      %v273 = vunpack.c.l.b16 %v231
      %v274 = vunpack.c.l.b16 %v232
      %v275 = vunpack.c.l.b16 %v233
      %v276 = vunpack.c.l.b16 %v234
      %v277 = vunpack.c.l.b16 %v235
      %v278 = vunpack.c.l.b16 %v236
      %v279 = vunpack.c.l.b16 %v237
      %v280 = vunpack.c.l.b16 %v238
      %v281 = vunpack.c.l.b16 %v239
      %v282 = vunpack.c.l.b16 %v240
      %v283 = vunpack.c.l.b16 %v241
      %v284 = vunpack.c.l.b16 %v242
      %v285 = vunpack.c.l.b16 %v243
      %v286 = vunpack.c.l.b16 %v244
      %v287 = vpack.c.b16 %v272, %v271
      %v288 = vpack.c.b16 %v274, %v273
      %v289 = vpack.c.b16 %v276, %v275
      %v290 = vpack.c.b16 %v278, %v277
      %v291 = vpack.c.b16 %v280, %v279
      %v292 = vpack.c.b16 %v282, %v281
      %v293 = vpack.c.b16 %v284, %v283
      %v294 = vpack.c.b16 %v286, %v285
      %v298 = vunpack.c.l.b16 %v245
      %v299 = vunpack.c.l.b16 %v246
      %v300 = vunpack.c.l.b16 %v247
      %v301 = vpack.c.b16 %v299, %v298
      %v302 = vpack.c.b16 %v300, %v300
      %vm304 = vcmask 195584
      %v306 = vsel %vm304, %v287, 0
      %v309 = vsel %vm304, %v288, 0
      %v312 = vsel %vm304, %v289, 0
      %v315 = vsel %vm304, %v290, 0
      %v318 = vsel %vm304, %v291, 0
      %v321 = vsel %vm304, %v292, 0
      %v324 = vsel %vm304, %v293, 0
      %v327 = vsel %vm304, %v294, 0
      %vm329 = vcmask 1043456
      %v331 = vsel %vm329, %v302, 0
      %333 = vmatprep.subr.bf16.mxu0 0
      %334 = vmatpush1.bf16.msra.mxu0 %v301
      %335 = vmatprep.subr.bf16.mxu0 0
      %336 = vmatpush1.bf16.msra.mxu0 %v331
      %337 = vmatprep.subr.bf16.mxu0 0
      %338 = vmatpush1.bf16.msra.mxu0 0
      %339 = vmatprep.subr.bf16.mxu0 0
      %340 = vmatpush1.bf16.msra.mxu0 0
      %341 = vmatprep.subr.bf16.mxu0 0
      %342 = vmatpush1.bf16.msra.mxu0 0
      %343 = vmatprep.subr.bf16.mxu0 0
      %344 = vmatpush1.bf16.msra.mxu0 0
      %345 = vmatprep.subr.bf16.mxu0 0
      %346 = vmatpush1.bf16.msra.mxu0 0
      %347 = vmatprep.subr.bf16.mxu0 0
      %348 = vmatpush1.bf16.msra.mxu0 0
      %349 = vmatprep.subr.bf16.mxu0 0
      %350 = vmatpush1.bf16.msra.mxu0 0
      %351 = vmatprep.subr.bf16.mxu0 0
      %352 = vmatpush1.bf16.msra.mxu0 0
      %353 = vmatprep.subr.bf16.mxu0 0
      %354 = vmatpush1.bf16.msra.mxu0 0
      %355 = vmatprep.subr.bf16.mxu0 0
      %356 = vmatpush1.bf16.msra.mxu0 0
      %357 = vmatprep.subr.bf16.mxu0 0
      %358 = vmatpush1.bf16.msra.mxu0 0
      %359 = vmatprep.subr.bf16.mxu0 0
      %360 = vmatpush1.bf16.msra.mxu0 0
      %361 = vmatprep.subr.bf16.mxu0 0
      %362 = vmatpush1.bf16.msra.mxu0 0
      %363 = vmatprep.subr.bf16.mxu0 0
      %364 = vmatpush1.bf16.msra.mxu0 0
      %365 = vmatprep.mubr.bf16.mxu0 0
      %366 = vmatmul.mubr.bf16.gmra.mrb[0].mxu0 %v306
      %v367 = vpop.f32.mrb[0].mxu0
      %v368 = vadd.f32 %v253, %v367
      %v369 = vpop.f32.mrb[0].mxu0
      %v370 = vpop.f32.mrb[0].mxu0
      %v371 = vadd.f32 %v253, %v370
      %v372 = vpop.f32.mrb[0].mxu0
      %373 = vmatprep.mubr.bf16.mxu0 0
      %374 = vmatmul.mubr.bf16.gmra.mrb[0].mxu0 %v309
      %v375 = vpop.f32.mrb[0].mxu0
      %v376 = vadd.f32 %v253, %v375
      %v377 = vpop.f32.mrb[0].mxu0
      %v378 = vpop.f32.mrb[0].mxu0
      %v379 = vadd.f32 %v253, %v378
      %v380 = vpop.f32.mrb[0].mxu0
      %381 = vmatprep.mubr.bf16.mxu0 0
      %382 = vmatmul.mubr.bf16.gmra.mrb[0].mxu0 %v312
      %v383 = vpop.f32.mrb[0].mxu0
      %v384 = vadd.f32 %v253, %v383
      %v385 = vpop.f32.mrb[0].mxu0
      %v386 = vpop.f32.mrb[0].mxu0
      %v387 = vadd.f32 %v253, %v386
      %v388 = vpop.f32.mrb[0].mxu0
      %389 = vmatprep.mubr.bf16.mxu0 0
      %390 = vmatmul.mubr.bf16.gmra.mrb[0].mxu0 %v315
      %v391 = vpop.f32.mrb[0].mxu0
      %v392 = vadd.f32 %v253, %v391
      %v393 = vpop.f32.mrb[0].mxu0
      %v394 = vpop.f32.mrb[0].mxu0
      %v395 = vadd.f32 %v253, %v394
      %v396 = vpop.f32.mrb[0].mxu0
      %397 = vmatprep.mubr.bf16.mxu0 0
      %398 = vmatmul.mubr.bf16.gmra.mrb[0].mxu0 %v318
      %v399 = vpop.f32.mrb[0].mxu0
      %v400 = vadd.f32 %v253, %v399
      %v401 = vpop.f32.mrb[0].mxu0
      %v402 = vpop.f32.mrb[0].mxu0
      %v403 = vadd.f32 %v253, %v402
      %v404 = vpop.f32.mrb[0].mxu0
      %405 = vmatprep.mubr.bf16.mxu0 0
      %406 = vmatmul.mubr.bf16.gmra.mrb[0].mxu0 %v321
      %v407 = vpop.f32.mrb[0].mxu0
      %v408 = vadd.f32 %v253, %v407
      %v409 = vpop.f32.mrb[0].mxu0
      %v410 = vpop.f32.mrb[0].mxu0
      %v411 = vadd.f32 %v253, %v410
      %v412 = vpop.f32.mrb[0].mxu0
      %413 = vmatprep.mubr.bf16.mxu0 0
      %414 = vmatmul.mubr.bf16.gmra.mrb[0].mxu0 %v324
      %v415 = vpop.f32.mrb[0].mxu0
      %v416 = vadd.f32 %v253, %v415
      %v417 = vpop.f32.mrb[0].mxu0
      %v418 = vpop.f32.mrb[0].mxu0
      %v419 = vadd.f32 %v253, %v418
      %v420 = vpop.f32.mrb[0].mxu0
      %421 = vmatprep.mubr.bf16.mxu0 0
      %422 = vmatmul.mubr.bf16.gmra.mrb[0].mxu0 %v327
      %v423 = vpop.f32.mrb[0].mxu0
      %v424 = vadd.f32 %v253, %v423
      %v425 = vpop.f32.mrb[0].mxu0
      %v426 = vpop.f32.mrb[0].mxu0
      %v427 = vadd.f32 %v253, %v426
      %v428 = vpop.f32.mrb[0].mxu0
      %429 = vdwg.mxu0
      %v430 = vld [vmem:[%s3] sm:$0xf]
      %v431 = vld [vmem:[%s3 + $0x4] sm:$0xf]
      %v432 = vld [vmem:[%s3 + $0x8] sm:$0xf]
      %v433 = vld [vmem:[%s4] sm:$0x1]
      %v435 = vlaneseq
      %v436 = vshrl.u32 %v435, 7
      %v437 = vsub.s32 0, %v436
      %v438 = vrot.slane %v433, %v437
      %v443 = vunpack.c.l.b16 %v430
      %v444 = vunpack.c.l.b16 %v431
      %v445 = vunpack.c.l.b16 %v432
      %v446 = vpack.c.b16 %v444, %v443
      %v447 = vpack.c.b16 %v445, %v445
      %v450 = vsel %vm329, %v447, 0
      %452 = vmatprep.subr.bf16.mxu0 0
      %453 = vmatpush1.bf16.msra.mxu0 %v446
      %454 = vmatprep.subr.bf16.mxu0 0
      %455 = vmatpush1.bf16.msra.mxu0 %v450
      %456 = vmatprep.subr.bf16.mxu0 0
      %457 = vmatpush1.bf16.msra.mxu0 0
      %458 = vmatprep.subr.bf16.mxu0 0
      %459 = vmatpush1.bf16.msra.mxu0 0
      %460 = vmatprep.subr.bf16.mxu0 0
      %461 = vmatpush1.bf16.msra.mxu0 0
      %462 = vmatprep.subr.bf16.mxu0 0
      %463 = vmatpush1.bf16.msra.mxu0 0
      %464 = vmatprep.subr.bf16.mxu0 0
      %465 = vmatpush1.bf16.msra.mxu0 0
      %466 = vmatprep.subr.bf16.mxu0 0
      %467 = vmatpush1.bf16.msra.mxu0 0
      %468 = vmatprep.subr.bf16.mxu0 0
      %469 = vmatpush1.bf16.msra.mxu0 0
      %470 = vmatprep.subr.bf16.mxu0 0
      %471 = vmatpush1.bf16.msra.mxu0 0
      %472 = vmatprep.subr.bf16.mxu0 0
      %473 = vmatpush1.bf16.msra.mxu0 0
      %474 = vmatprep.subr.bf16.mxu0 0
      %475 = vmatpush1.bf16.msra.mxu0 0
      %476 = vmatprep.subr.bf16.mxu0 0
      %477 = vmatpush1.bf16.msra.mxu0 0
      %478 = vmatprep.subr.bf16.mxu0 0
      %479 = vmatpush1.bf16.msra.mxu0 0
      %480 = vmatprep.subr.bf16.mxu0 0
      %481 = vmatpush1.bf16.msra.mxu0 0
      %482 = vmatprep.subr.bf16.mxu0 0
      %483 = vmatpush1.bf16.msra.mxu0 0
      %484 = vmatprep.mubr.bf16.mxu0 0
      %485 = vmatmul.mubr.bf16.gmra.mrb[0].mxu0 %v306
      %v486 = vpop.f32.mrb[0].mxu0
      %v487 = vadd.f32 %v438, %v486
      %v488 = vpop.f32.mrb[0].mxu0
      %v489 = vpop.f32.mrb[0].mxu0
      %v490 = vadd.f32 %v438, %v489
      %v491 = vpop.f32.mrb[0].mxu0
      %492 = vmatprep.mubr.bf16.mxu0 0
      %493 = vmatmul.mubr.bf16.gmra.mrb[0].mxu0 %v309
      %v494 = vpop.f32.mrb[0].mxu0
      %v495 = vadd.f32 %v438, %v494
      %v496 = vpop.f32.mrb[0].mxu0
      %v497 = vpop.f32.mrb[0].mxu0
      %v498 = vadd.f32 %v438, %v497
      %v499 = vpop.f32.mrb[0].mxu0
      %500 = vmatprep.mubr.bf16.mxu0 0
      %501 = vmatmul.mubr.bf16.gmra.mrb[0].mxu0 %v312
      %v502 = vpop.f32.mrb[0].mxu0
      %v503 = vadd.f32 %v438, %v502
      %v504 = vpop.f32.mrb[0].mxu0
      %v505 = vpop.f32.mrb[0].mxu0
      %v506 = vadd.f32 %v438, %v505
      %v507 = vpop.f32.mrb[0].mxu0
      %508 = vmatprep.mubr.bf16.mxu0 0
      %509 = vmatmul.mubr.bf16.gmra.mrb[0].mxu0 %v315
      %v510 = vpop.f32.mrb[0].mxu0
      %v511 = vadd.f32 %v438, %v510
      %v512 = vpop.f32.mrb[0].mxu0
      %v513 = vpop.f32.mrb[0].mxu0
      %v514 = vadd.f32 %v438, %v513
      %v515 = vpop.f32.mrb[0].mxu0
      %516 = vmatprep.mubr.bf16.mxu0 0
      %517 = vmatmul.mubr.bf16.gmra.mrb[0].mxu0 %v318
      %v518 = vpop.f32.mrb[0].mxu0
      %v519 = vadd.f32 %v438, %v518
      %v520 = vpop.f32.mrb[0].mxu0
      %v521 = vpop.f32.mrb[0].mxu0
      %v522 = vadd.f32 %v438, %v521
      %v523 = vpop.f32.mrb[0].mxu0
      %524 = vmatprep.mubr.bf16.mxu0 0
      %525 = vmatmul.mubr.bf16.gmra.mrb[0].mxu0 %v321
      %v526 = vpop.f32.mrb[0].mxu0
      %v527 = vadd.f32 %v438, %v526
      %v528 = vpop.f32.mrb[0].mxu0
      %v529 = vpop.f32.mrb[0].mxu0
      %v530 = vadd.f32 %v438, %v529
      %v531 = vpop.f32.mrb[0].mxu0
      %532 = vmatprep.mubr.bf16.mxu0 0
      %533 = vmatmul.mubr.bf16.gmra.mrb[0].mxu0 %v324
      %v534 = vpop.f32.mrb[0].mxu0
      %v535 = vadd.f32 %v438, %v534
      %v536 = vpop.f32.mrb[0].mxu0
      %v537 = vpop.f32.mrb[0].mxu0
      %v538 = vadd.f32 %v438, %v537
      %v539 = vpop.f32.mrb[0].mxu0
      %540 = vmatprep.mubr.bf16.mxu0 0
      %541 = vmatmul.mubr.bf16.gmra.mrb[0].mxu0 %v327
      %v542 = vpop.f32.mrb[0].mxu0
      %v543 = vadd.f32 %v438, %v542
      %v544 = vpop.f32.mrb[0].mxu0
      %v545 = vpop.f32.mrb[0].mxu0
      %v546 = vadd.f32 %v438, %v545
      %v547 = vpop.f32.mrb[0].mxu0
      %548 = vdwg.mxu0
      %v549 = vmax.f32 %v368, 0.0
      %v550 = vmax.f32 %v371, 0.0
      %v551 = vmax.f32 %v376, 0.0
      %v552 = vmax.f32 %v379, 0.0
      %v553 = vmax.f32 %v384, 0.0
      %v554 = vmax.f32 %v387, 0.0
      %v555 = vmax.f32 %v392, 0.0
      %v556 = vmax.f32 %v395, 0.0
      %v557 = vmax.f32 %v400, 0.0
      %v558 = vmax.f32 %v403, 0.0
      %v559 = vmax.f32 %v408, 0.0
      %v560 = vmax.f32 %v411, 0.0
      %v561 = vmax.f32 %v416, 0.0
      %v562 = vmax.f32 %v419, 0.0
      %v563 = vmax.f32 %v424, 0.0
      %v564 = vmax.f32 %v427, 0.0
      %vm565 = vcmp.ge.f32.partialorder %v487, 0.0
      %vm566 = vcmp.ge.f32.partialorder %v490, 0.0
      %vm567 = vcmp.ge.f32.partialorder %v495, 0.0
      %vm568 = vcmp.ge.f32.partialorder %v498, 0.0
      %vm569 = vcmp.ge.f32.partialorder %v503, 0.0
      %vm570 = vcmp.ge.f32.partialorder %v506, 0.0
      %vm571 = vcmp.ge.f32.partialorder %v511, 0.0
      %vm572 = vcmp.ge.f32.partialorder %v514, 0.0
      %vm573 = vcmp.ge.f32.partialorder %v519, 0.0
      %vm574 = vcmp.ge.f32.partialorder %v522, 0.0
      %vm575 = vcmp.ge.f32.partialorder %v527, 0.0
      %vm576 = vcmp.ge.f32.partialorder %v530, 0.0
      %vm577 = vcmp.ge.f32.partialorder %v535, 0.0
      %vm578 = vcmp.ge.f32.partialorder %v538, 0.0
      %vm579 = vcmp.ge.f32.partialorder %v543, 0.0
      %vm580 = vcmp.ge.f32.partialorder %v546, 0.0
      %v581 = vmul.f32 %v487, 0.2
      %v582 = vmul.f32 %v490, 0.2
      %v583 = vmul.f32 %v495, 0.2
      %v584 = vmul.f32 %v498, 0.2
      %v585 = vmul.f32 %v503, 0.2
      %v586 = vmul.f32 %v506, 0.2
      %v587 = vmul.f32 %v511, 0.2
      %v588 = vmul.f32 %v514, 0.2
      %v589 = vmul.f32 %v519, 0.2
      %v590 = vmul.f32 %v522, 0.2
      %v591 = vmul.f32 %v527, 0.2
      %v592 = vmul.f32 %v530, 0.2
      %v593 = vmul.f32 %v535, 0.2
      %v594 = vmul.f32 %v538, 0.2
      %v595 = vmul.f32 %v543, 0.2
      %v596 = vmul.f32 %v546, 0.2
      %v597 = vsel %vm565, %v487, %v581
      %v598 = vsel %vm566, %v490, %v582
      %v599 = vsel %vm567, %v495, %v583
      %v600 = vsel %vm568, %v498, %v584
      %v601 = vsel %vm569, %v503, %v585
      %v602 = vsel %vm570, %v506, %v586
      %v603 = vsel %vm571, %v511, %v587
      %v604 = vsel %vm572, %v514, %v588
      %v605 = vsel %vm573, %v519, %v589
      %v606 = vsel %vm574, %v522, %v590
      %v607 = vsel %vm575, %v527, %v591
      %v608 = vsel %vm576, %v530, %v592
      %v609 = vsel %vm577, %v535, %v593
      %v610 = vsel %vm578, %v538, %v594
      %v611 = vsel %vm579, %v543, %v595
      %v612 = vsel %vm580, %v546, %v596
      %v613 = vadd.f32 %v549, %v597
      %v614 = vadd.f32 %v550, %v598
      %v615 = vadd.f32 %v551, %v599
      %v616 = vadd.f32 %v552, %v600
      %v617 = vadd.f32 %v553, %v601
      %v618 = vadd.f32 %v554, %v602
      %v619 = vadd.f32 %v555, %v603
      %v620 = vadd.f32 %v556, %v604
      %v621 = vadd.f32 %v557, %v605
      %v622 = vadd.f32 %v558, %v606
      %v623 = vadd.f32 %v559, %v607
      %v624 = vadd.f32 %v560, %v608
      %v625 = vadd.f32 %v561, %v609
      %v626 = vadd.f32 %v562, %v610
      %v627 = vadd.f32 %v563, %v611
      %v628 = vadd.f32 %v564, %v612
      %vm629 = vcmask 97280
      %630 = vst.msk [vmem:[%s226] sm:$0xff] %vm629, %v613
      %631 = vst.msk [vmem:[%s226 + $0x8] sm:$0xff] %vm629, %v614
      %632 = vst.msk [vmem:[%s226 + $0x10] sm:$0xff] %vm629, %v615
      %633 = vst.msk [vmem:[%s226 + $0x18] sm:$0xff] %vm629, %v616
      %634 = vst.msk [vmem:[%s226 + $0x20] sm:$0xff] %vm629, %v617
      %635 = vst.msk [vmem:[%s226 + $0x28] sm:$0xff] %vm629, %v618
      %636 = vst.msk [vmem:[%s226 + $0x30] sm:$0xff] %vm629, %v619
      %637 = vst.msk [vmem:[%s226 + $0x38] sm:$0xff] %vm629, %v620
      %638 = vst.msk [vmem:[%s226 + $0x40] sm:$0xff] %vm629, %v621
      %639 = vst.msk [vmem:[%s226 + $0x48] sm:$0xff] %vm629, %v622
      %640 = vst.msk [vmem:[%s226 + $0x50] sm:$0xff] %vm629, %v623
      %641 = vst.msk [vmem:[%s226 + $0x58] sm:$0xff] %vm629, %v624
      %642 = vst.msk [vmem:[%s226 + $0x60] sm:$0xff] %vm629, %v625
      %643 = vst.msk [vmem:[%s226 + $0x68] sm:$0xff] %vm629, %v626
      %644 = vst.msk [vmem:[%s226 + $0x70] sm:$0xff] %vm629, %v627
      %645 = vst.msk [vmem:[%s226 + $0x78] sm:$0xff] %vm629, %v628
      %s646 = smul.u32 16, %s16
      %p647 = scmp.lt.s32.totalorder %s646, 127
      %s648 = scalar_select %p647, %s646, 127
      %s649 = smul.addr %s648, 8
      %s650 = scalar_lea.vmem %s5, %s649
      // Predicated region
      $region41: #{estimation_stage_forward.23} parent=39 // pred_check
        %p651 = pneg %p144
      $region42: #{estimation_stage_forward.23} parent=39 // pred_check_branch
        %653 = sbr.rel (%p651) target = $region44
      $region43: #{estimation_stage_forward.23} parent=39 // pred_region
        %s654 = smul.u32 16, %s16
      $region44: #{estimation_stage_forward.23} parent=39 // pred_fallthru
        _
    $region40: #{estimation_stage_forward.23} parent=5 // pred_fallthru
      _
    %p655 = scmp.le.s32.totalorder 2, %s11
    // Predicated region
    $region45: #{estimation_stage_forward.23} parent=5 // pred_check
      %p656 = pneg %p655
    $region46: #{estimation_stage_forward.23} parent=5 // pred_check_branch
      %658 = sbr.rel (%p656) target = $region48
    $region47: #{estimation_stage_forward.23} parent=5 // pred_region
      %s659 = ssub.s32 %s11, 2
      // Predicated region
      $region49: #{estimation_stage_forward.23} parent=47 // pred_check
        %p660 = pneg %p150
      $region50: #{estimation_stage_forward.23} parent=47 // pred_check_branch
        %662 = sbr.rel (%p660) target = $region52
      $region51: #{estimation_stage_forward.23} parent=47 // pred_region
        %s663 = smul.u32 16, %s17
        %p664 = scmp.lt.s32.totalorder %s663, 127
        %s665 = scalar_select %p664, %s663, 127
        %s666 = smul.addr %s665, 8
        %s667 = scalar_lea.vmem %s5, %s666
      $region52: #{estimation_stage_forward.23} parent=47 // pred_fallthru
        _
    $region48: #{estimation_stage_forward.23} parent=5 // pred_fallthru
      _
  $region6: #{estimation_stage_forward.23} parent=0 // loop_footer
    %s15 = sadd.s32 1, %s11
  $region7: #{estimation_stage_forward.23} parent=0 // loop_footer_branch
    %10 = sbr.rel target = $region3
  $region8: #{estimation_stage_forward.23} parent=0 // loop_exit
    _

// kernel: estimation_stage_forward.24
$region0: #{estimation_stage_forward.24}
  #allocation0 [shape = 'u32[]', space=smem, size = 0x4, offset = 0x4, fixed_abs, tag = 'smem constant byte address 0x4 - core index']
  #allocation1 [shape = 'u32[144,128]{1,0:T(1,128)}', space=vmem, size = 0x12000, scoped, tag = 'internal scratch']
  %s0 = inlined_call_operand.vmem [shape: bf16[256,96], index: 0, kind: input, shape index: {}]
  %s1 = inlined_call_operand.vmem [shape: bf16[96,24], index: 1, kind: input, shape index: {}]
  %s2 = inlined_call_operand.vmem [shape: f32[1,24], index: 2, kind: input, shape index: {}]
  %s3 = inlined_call_operand.vmem [shape: f32[256,24], index: 3, kind: output, shape index: {}]
  %s4 = sld [smem:[#allocation0]]
  $region45: #{estimation_stage_forward.24} parent=0
    _
  %s6 = ssub.s32 1, %s4
  %s7 = scalar_select 0, %s6, %s4
  loop: start=0, step=1, limit=4
  $region2: #{estimation_stage_forward.24} parent=0 // loop_pre_header
    _
  $region3: #{estimation_stage_forward.24} parent=0 // loop_header
    %s9 = sphi 0, %s13
    %p10 = scmp.ge.s32.totalorder %s9, 4
    %s19 = sphi 0, %s21
    %s22 = sphi 0, %s19
    %s23 = sphi 0, %s22
    %s39 = sphi 0, %s23
    %s43 = sphi 0, %s43
    %s45 = sphi 0, %s43
    %s46 = sphi 0, %s45
    %s60 = sphi 0, %s46
    %s64 = sphi 0, %s64
    %s66 = sphi 0, %s64
    %s67 = sphi 0, %s66
    %s81 = sphi 0, %s67
    %s87 = sphi 0, %s89
    %s90 = sphi 0, %s87
    %s91 = sphi 0, %s90
    %s107 = sphi 0, %s91
  $region4: #{estimation_stage_forward.24} parent=0 // loop_header_branch
    %12 = sbr.rel (%p10) target = $region8
  $region5: #{estimation_stage_forward.24} parent=0 // loop_body
    %s14 = ssub.s32 %s9, 1
    %s15 = ssub.s32 %s9, 2
    %s16 = sadd.s32 %s9, 1
    %s17 = ssub.s32 %s9, %s16
    %p18 = scmp.eq.s32.totalorder %s17, 0
    %s20 = sadd.s32 %s19, 1
    %s21 = scalar_select %p18, %s19, %s20
    %p24 = pneg %p18
    %p25 = scmp.eq.s32.totalorder %s9, 1
    %p26 = por %p24, %p25
    %p27 = scmp.ne.s32.totalorder %s19, %s22
    %p28 = scmp.eq.s32.totalorder %s9, 0
    %p29 = por %p27, %p28
    %p30 = scmp.ne.s32.totalorder %s19, %s22
    %p31 = scmp.eq.s32.totalorder %s14, 1
    %p32 = por %p30, %p31
    %p33 = scmp.ne.s32.totalorder %s22, %s23
    %p34 = scmp.eq.s32.totalorder %s14, 0
    %p35 = por %p33, %p34
    %p36 = scmp.ne.s32.totalorder %s22, %s23
    %p37 = scmp.eq.s32.totalorder %s15, 1
    %p38 = por %p36, %p37
    %p40 = scmp.ne.s32.totalorder %s23, %s39
    %p41 = scmp.eq.s32.totalorder %s15, 0
    %p42 = por %p40, %p41
    %s44 = sadd.s32 %s43, 1
    %p47 = scmp.eq.s32.totalorder %s9, 1
    %p48 = scmp.ne.s32.totalorder %s43, %s45
    %p49 = scmp.eq.s32.totalorder %s9, 0
    %p50 = por %p48, %p49
    %p51 = scmp.ne.s32.totalorder %s43, %s45
    %p52 = scmp.eq.s32.totalorder %s14, 1
    %p53 = por %p51, %p52
    %p54 = scmp.ne.s32.totalorder %s45, %s46
    %p55 = scmp.eq.s32.totalorder %s14, 0
    %p56 = por %p54, %p55
    %p57 = scmp.ne.s32.totalorder %s45, %s46
    %p58 = scmp.eq.s32.totalorder %s15, 1
    %p59 = por %p57, %p58
    %p61 = scmp.ne.s32.totalorder %s46, %s60
    %p62 = scmp.eq.s32.totalorder %s15, 0
    %p63 = por %p61, %p62
    %s65 = sadd.s32 %s64, 1
    %p68 = scmp.eq.s32.totalorder %s9, 1
    %p69 = scmp.ne.s32.totalorder %s64, %s66
    %p70 = scmp.eq.s32.totalorder %s9, 0
    %p71 = por %p69, %p70
    %p72 = scmp.ne.s32.totalorder %s64, %s66
    %p73 = scmp.eq.s32.totalorder %s14, 1
    %p74 = por %p72, %p73
    %p75 = scmp.ne.s32.totalorder %s66, %s67
    %p76 = scmp.eq.s32.totalorder %s14, 0
    %p77 = por %p75, %p76
    %p78 = scmp.ne.s32.totalorder %s66, %s67
    %p79 = scmp.eq.s32.totalorder %s15, 1
    %p80 = por %p78, %p79
    %p82 = scmp.ne.s32.totalorder %s67, %s81
    %p83 = scmp.eq.s32.totalorder %s15, 0
    %p84 = por %p82, %p83
    %s85 = ssub.s32 %s9, %s16
    %p86 = scmp.eq.s32.totalorder %s85, 0
    %s88 = sadd.s32 %s87, 1
    %s89 = scalar_select %p86, %s87, %s88
    %p92 = pneg %p86
    %p93 = scmp.eq.s32.totalorder %s9, 1
    %p94 = por %p92, %p93
    %p95 = scmp.ne.s32.totalorder %s87, %s90
    %p96 = scmp.eq.s32.totalorder %s9, 0
    %p97 = por %p95, %p96
    %p98 = scmp.ne.s32.totalorder %s87, %s90
    %p99 = scmp.eq.s32.totalorder %s14, 1
    %p100 = por %p98, %p99
    %p101 = scmp.ne.s32.totalorder %s90, %s91
    %p102 = scmp.eq.s32.totalorder %s14, 0
    %p103 = por %p101, %p102
    %p104 = scmp.ne.s32.totalorder %s90, %s91
    %p105 = scmp.eq.s32.totalorder %s15, 1
    %p106 = por %p104, %p105
    %p108 = scmp.ne.s32.totalorder %s91, %s107
    %p109 = scmp.eq.s32.totalorder %s15, 0
    %p110 = por %p108, %p109
    %p111 = scmp.le.s32.totalorder 1, %s9
    %p112 = scmp.lt.s32.totalorder %s9, 3
    %p113 = pnand %p111, %p112
    %p114 = pneg %p113
    // Predicated region
    $region9: #{estimation_stage_forward.24} parent=5 // pred_check
      _
    $region10: #{estimation_stage_forward.24} parent=5 // pred_check_branch
      %116 = sbr.rel (%p113) target = $region12
    $region11: #{estimation_stage_forward.24} parent=5 // pred_region
      %s117 = ssub.s32 %s9, 1
      // Predicated region
      $region13: #{estimation_stage_forward.24} parent=11 // pred_check
        %p118 = pneg %p56
      $region14: #{estimation_stage_forward.24} parent=11 // pred_check_branch
        %120 = sbr.rel (%p118) target = $region16
      $region15: #{estimation_stage_forward.24} parent=11 // pred_region
        _
      $region16: #{estimation_stage_forward.24} parent=11 // pred_fallthru
        _
      // Predicated region
      $region17: #{estimation_stage_forward.24} parent=11 // pred_check
        %p121 = pneg %p77
      $region18: #{estimation_stage_forward.24} parent=11 // pred_check_branch
        %123 = sbr.rel (%p121) target = $region20
      $region19: #{estimation_stage_forward.24} parent=11 // pred_region
        _
      $region20: #{estimation_stage_forward.24} parent=11 // pred_fallthru
        _
    $region12: #{estimation_stage_forward.24} parent=5 // pred_fallthru
      _
    %p124 = scmp.lt.s32.totalorder %s9, 2
    // Predicated region
    $region21: #{estimation_stage_forward.24} parent=5 // pred_check
      %p125 = pneg %p124
    $region22: #{estimation_stage_forward.24} parent=5 // pred_check_branch
      %127 = sbr.rel (%p125) target = $region24
    $region23: #{estimation_stage_forward.24} parent=5 // pred_region
      // Predicated region
      $region25: #{estimation_stage_forward.24} parent=23 // pred_check
        %p128 = pneg %p29
      $region26: #{estimation_stage_forward.24} parent=23 // pred_check_branch
        %130 = sbr.rel (%p128) target = $region28
      $region27: #{estimation_stage_forward.24} parent=23 // pred_region
        %s131 = smul.u32 16, %s9
        %p132 = scmp.lt.s32.totalorder %s131, 31
        %s133 = scalar_select %p132, %s131, 31
        %s134 = smul.addr %s133, 4
        %s135 = scalar_lea.vmem %s0, %s134
        %s136 = smul.u32 16, %s9
      $region28: #{estimation_stage_forward.24} parent=23 // pred_fallthru
        _
    $region24: #{estimation_stage_forward.24} parent=5 // pred_fallthru
      _
    %p137 = scmp.le.s32.totalorder 1, %s9
    %p138 = scmp.lt.s32.totalorder %s9, 3
    %p139 = pnand %p137, %p138
    %p140 = pneg %p139
    // Predicated region
    $region29: #{estimation_stage_forward.24} parent=5 // pred_check
      _
    $region30: #{estimation_stage_forward.24} parent=5 // pred_check_branch
      %142 = sbr.rel (%p139) target = $region32
    $region31: #{estimation_stage_forward.24} parent=5 // pred_region
      %s143 = ssub.s32 %s9, 1
      %s144 = smul.u32 16, %s14
      %p145 = scmp.lt.s32.totalorder %s144, 31
      %s146 = scalar_select %p145, %s144, 31
      %s147 = smul.addr %s146, 4
      %s148 = scalar_lea.vmem %s0, %s147
      %p149 = pneg %p35
      %p150 = pneg %p32
      %p151 = pneg %p56
      %p152 = pneg %p53
      %p153 = pneg %p77
      %p154 = pneg %p74
      %p155 = pneg %p103
      %p156 = pneg %p100
      %s157 = smul.u32 16, %s14
      %p158 = scmp.lt.s32.totalorder %s157, 31
      %s159 = scalar_select %p158, %s157, 31
      %s160 = smul.addr %s159, 8
      %s161 = scalar_lea.vmem %s3, %s160
      %s162 = smul.u32 16, %s14
      %p163 = scmp.lt.s32.totalorder %s162, 31
      %s164 = scalar_select %p163, %s162, 31
      %s165 = smul.addr %s164, 4
      %s166 = scalar_lea.vmem %s0, %s165
      %s167 = smul.u32 16, %s14
      %s168 = smul.u32 16, %s14
      %p169 = scmp.lt.s32.totalorder %s168, 31
      %s170 = scalar_select %p169, %s168, 31
      %s171 = smul.addr %s170, 8
      %s172 = scalar_lea.vmem %s3, %s171
      %s173 = smul.u32 16, %s14
      %v175 = vld [vmem:[%s166] sm:$0xf]
      %v176 = vld [vmem:[%s166 + $0x4] sm:$0xf]
      %v177 = vld [vmem:[%s166 + $0x8] sm:$0xf]
      %v178 = vld [vmem:[%s166 + $0xc] sm:$0xf]
      %v179 = vld [vmem:[%s166 + $0x10] sm:$0xf]
      %v180 = vld [vmem:[%s166 + $0x14] sm:$0xf]
      %v181 = vld [vmem:[%s166 + $0x18] sm:$0xf]
      %v182 = vld [vmem:[%s166 + $0x1c] sm:$0xf]
      %v183 = vld [vmem:[%s166 + $0x20] sm:$0xf]
      %v184 = vld [vmem:[%s166 + $0x24] sm:$0xf]
      %v185 = vld [vmem:[%s166 + $0x28] sm:$0xf]
      %v186 = vld [vmem:[%s166 + $0x2c] sm:$0xf]
      %v187 = vld [vmem:[%s166 + $0x30] sm:$0xf]
      %v188 = vld [vmem:[%s166 + $0x34] sm:$0xf]
      %v189 = vld [vmem:[%s166 + $0x38] sm:$0xf]
      %v190 = vld [vmem:[%s166 + $0x3c] sm:$0xf]
      %v191 = vld [vmem:[%s1] sm:$0xf]
      %v192 = vld [vmem:[%s1 + $0x4] sm:$0xf]
      %v193 = vld [vmem:[%s1 + $0x8] sm:$0xf]
      %v194 = vld [vmem:[%s1 + $0xc] sm:$0xf]
      %v195 = vld [vmem:[%s1 + $0x10] sm:$0xf]
      %v196 = vld [vmem:[%s1 + $0x14] sm:$0xf]
      %v197 = vld [vmem:[%s1 + $0x18] sm:$0xf]
      %v198 = vld [vmem:[%s1 + $0x1c] sm:$0xf]
      %v199 = vld [vmem:[%s1 + $0x20] sm:$0xf]
      %v200 = vld [vmem:[%s1 + $0x24] sm:$0xf]
      %v201 = vld [vmem:[%s1 + $0x28] sm:$0xf]
      %v202 = vld [vmem:[%s1 + $0x2c] sm:$0xf]
      %v203 = vld [vmem:[%s2] sm:$0x1]
      %v205 = vlaneseq
      %v206 = vshrl.u32 %v205, 7
      %v207 = vsub.s32 0, %v206
      %v208 = vrot.slane %v203, %v207
      %v226 = vunpack.c.l.b16 %v175
      %v227 = vunpack.c.l.b16 %v176
      %v228 = vunpack.c.l.b16 %v177
      %v229 = vunpack.c.l.b16 %v178
      %v230 = vunpack.c.l.b16 %v179
      %v231 = vunpack.c.l.b16 %v180
      %v232 = vunpack.c.l.b16 %v181
      %v233 = vunpack.c.l.b16 %v182
      %v234 = vunpack.c.l.b16 %v183
      %v235 = vunpack.c.l.b16 %v184
      %v236 = vunpack.c.l.b16 %v185
      %v237 = vunpack.c.l.b16 %v186
      %v238 = vunpack.c.l.b16 %v187
      %v239 = vunpack.c.l.b16 %v188
      %v240 = vunpack.c.l.b16 %v189
      %v241 = vunpack.c.l.b16 %v190
      %v242 = vpack.c.b16 %v227, %v226
      %v243 = vpack.c.b16 %v229, %v228
      %v244 = vpack.c.b16 %v231, %v230
      %v245 = vpack.c.b16 %v233, %v232
      %v246 = vpack.c.b16 %v235, %v234
      %v247 = vpack.c.b16 %v237, %v236
      %v248 = vpack.c.b16 %v239, %v238
      %v249 = vpack.c.b16 %v241, %v240
      %v262 = vunpack.c.l.b16 %v191
      %v263 = vunpack.c.l.b16 %v192
      %v264 = vunpack.c.l.b16 %v193
      %v265 = vunpack.c.l.b16 %v194
      %v266 = vunpack.c.l.b16 %v195
      %v267 = vunpack.c.l.b16 %v196
      %v268 = vunpack.c.l.b16 %v197
      %v269 = vunpack.c.l.b16 %v198
      %v270 = vunpack.c.l.b16 %v199
      %v271 = vunpack.c.l.b16 %v200
      %v272 = vunpack.c.l.b16 %v201
      %v273 = vunpack.c.l.b16 %v202
      %v274 = vpack.c.b16 %v263, %v262
      %v275 = vpack.c.b16 %v265, %v264
      %v276 = vpack.c.b16 %v267, %v266
      %v277 = vpack.c.b16 %v269, %v268
      %v278 = vpack.c.b16 %v271, %v270
      %v279 = vpack.c.b16 %v273, %v272
      %vm286 = vcmask 785408
      %v288 = vsel %vm286, %v242, 0
      %v291 = vsel %vm286, %v243, 0
      %v294 = vsel %vm286, %v244, 0
      %v297 = vsel %vm286, %v245, 0
      %v300 = vsel %vm286, %v246, 0
      %v303 = vsel %vm286, %v247, 0
      %v306 = vsel %vm286, %v248, 0
      %v309 = vsel %vm286, %v249, 0
      %311 = vmatprep.subr.bf16.mxu0 0
      %312 = vmatpush1.bf16.msra.mxu0 %v274
      %313 = vmatprep.subr.bf16.mxu0 0
      %314 = vmatpush1.bf16.msra.mxu0 %v275
      %315 = vmatprep.subr.bf16.mxu0 0
      %316 = vmatpush1.bf16.msra.mxu0 %v276
      %317 = vmatprep.subr.bf16.mxu0 0
      %318 = vmatpush1.bf16.msra.mxu0 %v277
      %319 = vmatprep.subr.bf16.mxu0 0
      %320 = vmatpush1.bf16.msra.mxu0 %v278
      %321 = vmatprep.subr.bf16.mxu0 0
      %322 = vmatpush1.bf16.msra.mxu0 %v279
      %323 = vmatprep.subr.bf16.mxu0 0
      %324 = vmatpush1.bf16.msra.mxu0 0
      %325 = vmatprep.subr.bf16.mxu0 0
      %326 = vmatpush1.bf16.msra.mxu0 0
      %327 = vmatprep.subr.bf16.mxu0 0
      %328 = vmatpush1.bf16.msra.mxu0 0
      %329 = vmatprep.subr.bf16.mxu0 0
      %330 = vmatpush1.bf16.msra.mxu0 0
      %331 = vmatprep.subr.bf16.mxu0 0
      %332 = vmatpush1.bf16.msra.mxu0 0
      %333 = vmatprep.subr.bf16.mxu0 0
      %334 = vmatpush1.bf16.msra.mxu0 0
      %335 = vmatprep.subr.bf16.mxu0 0
      %336 = vmatpush1.bf16.msra.mxu0 0
      %337 = vmatprep.subr.bf16.mxu0 0
      %338 = vmatpush1.bf16.msra.mxu0 0
      %339 = vmatprep.subr.bf16.mxu0 0
      %340 = vmatpush1.bf16.msra.mxu0 0
      %341 = vmatprep.subr.bf16.mxu0 0
      %342 = vmatpush1.bf16.msra.mxu0 0
      %343 = vmatprep.mubr.bf16.mxu0 0
      %344 = vmatmul.mubr.bf16.gmra.mrb[0].mxu0 %v288
      %v345 = vpop.f32.mrb[0].mxu0
      %v346 = vadd.f32 %v208, %v345
      %v347 = vpop.f32.mrb[0].mxu0
      %v348 = vpop.f32.mrb[0].mxu0
      %v349 = vadd.f32 %v208, %v348
      %v350 = vpop.f32.mrb[0].mxu0
      %351 = vmatprep.mubr.bf16.mxu0 0
      %352 = vmatmul.mubr.bf16.gmra.mrb[0].mxu0 %v291
      %v353 = vpop.f32.mrb[0].mxu0
      %v354 = vadd.f32 %v208, %v353
      %v355 = vpop.f32.mrb[0].mxu0
      %v356 = vpop.f32.mrb[0].mxu0
      %v357 = vadd.f32 %v208, %v356
      %v358 = vpop.f32.mrb[0].mxu0
      %359 = vmatprep.mubr.bf16.mxu0 0
      %360 = vmatmul.mubr.bf16.gmra.mrb[0].mxu0 %v294
      %v361 = vpop.f32.mrb[0].mxu0
      %v362 = vadd.f32 %v208, %v361
      %v363 = vpop.f32.mrb[0].mxu0
      %v364 = vpop.f32.mrb[0].mxu0
      %v365 = vadd.f32 %v208, %v364
      %v366 = vpop.f32.mrb[0].mxu0
      %367 = vmatprep.mubr.bf16.mxu0 0
      %368 = vmatmul.mubr.bf16.gmra.mrb[0].mxu0 %v297
      %v369 = vpop.f32.mrb[0].mxu0
      %v370 = vadd.f32 %v208, %v369
      %v371 = vpop.f32.mrb[0].mxu0
      %v372 = vpop.f32.mrb[0].mxu0
      %v373 = vadd.f32 %v208, %v372
      %v374 = vpop.f32.mrb[0].mxu0
      %375 = vmatprep.mubr.bf16.mxu0 0
      %376 = vmatmul.mubr.bf16.gmra.mrb[0].mxu0 %v300
      %v377 = vpop.f32.mrb[0].mxu0
      %v378 = vadd.f32 %v208, %v377
      %v379 = vpop.f32.mrb[0].mxu0
      %v380 = vpop.f32.mrb[0].mxu0
      %v381 = vadd.f32 %v208, %v380
      %v382 = vpop.f32.mrb[0].mxu0
      %383 = vmatprep.mubr.bf16.mxu0 0
      %384 = vmatmul.mubr.bf16.gmra.mrb[0].mxu0 %v303
      %v385 = vpop.f32.mrb[0].mxu0
      %v386 = vadd.f32 %v208, %v385
      %v387 = vpop.f32.mrb[0].mxu0
      %v388 = vpop.f32.mrb[0].mxu0
      %v389 = vadd.f32 %v208, %v388
      %v390 = vpop.f32.mrb[0].mxu0
      %391 = vmatprep.mubr.bf16.mxu0 0
      %392 = vmatmul.mubr.bf16.gmra.mrb[0].mxu0 %v306
      %v393 = vpop.f32.mrb[0].mxu0
      %v394 = vadd.f32 %v208, %v393
      %v395 = vpop.f32.mrb[0].mxu0
      %v396 = vpop.f32.mrb[0].mxu0
      %v397 = vadd.f32 %v208, %v396
      %v398 = vpop.f32.mrb[0].mxu0
      %399 = vmatprep.mubr.bf16.mxu0 0
      %400 = vmatmul.mubr.bf16.gmra.mrb[0].mxu0 %v309
      %v401 = vpop.f32.mrb[0].mxu0
      %v402 = vadd.f32 %v208, %v401
      %v403 = vpop.f32.mrb[0].mxu0
      %v404 = vpop.f32.mrb[0].mxu0
      %v405 = vadd.f32 %v208, %v404
      %v406 = vpop.f32.mrb[0].mxu0
      %407 = vdwg.mxu0
      %v408 = vmax.f32 %v346, 0.0
      %v409 = vmax.f32 %v349, 0.0
      %v410 = vmax.f32 %v354, 0.0
      %v411 = vmax.f32 %v357, 0.0
      %v412 = vmax.f32 %v362, 0.0
      %v413 = vmax.f32 %v365, 0.0
      %v414 = vmax.f32 %v370, 0.0
      %v415 = vmax.f32 %v373, 0.0
      %v416 = vmax.f32 %v378, 0.0
      %v417 = vmax.f32 %v381, 0.0
      %v418 = vmax.f32 %v386, 0.0
      %v419 = vmax.f32 %v389, 0.0
      %v420 = vmax.f32 %v394, 0.0
      %v421 = vmax.f32 %v397, 0.0
      %v422 = vmax.f32 %v402, 0.0
      %v423 = vmax.f32 %v405, 0.0
      %vm424 = vcmask 195584
      %425 = vst.msk [vmem:[%s172] sm:$0xff] %vm424, %v408
      %426 = vst.msk [vmem:[%s172 + $0x8] sm:$0xff] %vm424, %v409
      %427 = vst.msk [vmem:[%s172 + $0x10] sm:$0xff] %vm424, %v410
      %428 = vst.msk [vmem:[%s172 + $0x18] sm:$0xff] %vm424, %v411
      %429 = vst.msk [vmem:[%s172 + $0x20] sm:$0xff] %vm424, %v412
      %430 = vst.msk [vmem:[%s172 + $0x28] sm:$0xff] %vm424, %v413
      %431 = vst.msk [vmem:[%s172 + $0x30] sm:$0xff] %vm424, %v414
      %432 = vst.msk [vmem:[%s172 + $0x38] sm:$0xff] %vm424, %v415
      %433 = vst.msk [vmem:[%s172 + $0x40] sm:$0xff] %vm424, %v416
      %434 = vst.msk [vmem:[%s172 + $0x48] sm:$0xff] %vm424, %v417
      %435 = vst.msk [vmem:[%s172 + $0x50] sm:$0xff] %vm424, %v418
      %436 = vst.msk [vmem:[%s172 + $0x58] sm:$0xff] %vm424, %v419
      %437 = vst.msk [vmem:[%s172 + $0x60] sm:$0xff] %vm424, %v420
      %438 = vst.msk [vmem:[%s172 + $0x68] sm:$0xff] %vm424, %v421
      %439 = vst.msk [vmem:[%s172 + $0x70] sm:$0xff] %vm424, %v422
      %440 = vst.msk [vmem:[%s172 + $0x78] sm:$0xff] %vm424, %v423
      %s441 = smul.u32 16, %s14
      %p442 = scmp.lt.s32.totalorder %s441, 31
      %s443 = scalar_select %p442, %s441, 31
      %s444 = smul.addr %s443, 8
      %s445 = scalar_lea.vmem %s3, %s444
      // Predicated region
      $region33: #{estimation_stage_forward.24} parent=31 // pred_check
        %p446 = pneg %p100
      $region34: #{estimation_stage_forward.24} parent=31 // pred_check_branch
        %448 = sbr.rel (%p446) target = $region36
      $region35: #{estimation_stage_forward.24} parent=31 // pred_region
        %s449 = smul.u32 16, %s14
      $region36: #{estimation_stage_forward.24} parent=31 // pred_fallthru
        _
    $region32: #{estimation_stage_forward.24} parent=5 // pred_fallthru
      _
    %p450 = scmp.le.s32.totalorder 2, %s9
    // Predicated region
    $region37: #{estimation_stage_forward.24} parent=5 // pred_check
      %p451 = pneg %p450
    $region38: #{estimation_stage_forward.24} parent=5 // pred_check_branch
      %453 = sbr.rel (%p451) target = $region40
    $region39: #{estimation_stage_forward.24} parent=5 // pred_region
      %s454 = ssub.s32 %s9, 2
      // Predicated region
      $region41: #{estimation_stage_forward.24} parent=39 // pred_check
        %p455 = pneg %p106
      $region42: #{estimation_stage_forward.24} parent=39 // pred_check_branch
        %457 = sbr.rel (%p455) target = $region44
      $region43: #{estimation_stage_forward.24} parent=39 // pred_region
        %s458 = smul.u32 16, %s15
        %p459 = scmp.lt.s32.totalorder %s458, 31
        %s460 = scalar_select %p459, %s458, 31
        %s461 = smul.addr %s460, 8
        %s462 = scalar_lea.vmem %s3, %s461
      $region44: #{estimation_stage_forward.24} parent=39 // pred_fallthru
        _
    $region40: #{estimation_stage_forward.24} parent=5 // pred_fallthru
      _
  $region6: #{estimation_stage_forward.24} parent=0 // loop_footer
    %s13 = sadd.s32 1, %s9
  $region7: #{estimation_stage_forward.24} parent=0 // loop_footer_branch
    %8 = sbr.rel target = $region3
  $region8: #{estimation_stage_forward.24} parent=0 // loop_exit
    _

// kernel: estimation_stage_forward.25
$region0: #{estimation_stage_forward.25}
  #allocation0 [shape = 'u32[]', space=smem, size = 0x4, offset = 0x4, fixed_abs, tag = 'smem constant byte address 0x4 - core index']
  #allocation1 [shape = 'u32[144,128]{1,0:T(1,128)}', space=vmem, size = 0x12000, scoped, tag = 'internal scratch']
  %s0 = inlined_call_operand.vmem [shape: bf16[64,192], index: 0, kind: input, shape index: {}]
  %s1 = inlined_call_operand.vmem [shape: bf16[192,48], index: 1, kind: input, shape index: {}]
  %s2 = inlined_call_operand.vmem [shape: f32[1,48], index: 2, kind: input, shape index: {}]
  %s3 = inlined_call_operand.vmem [shape: f32[64,48], index: 3, kind: output, shape index: {}]
  %s4 = sld [smem:[#allocation0]]
  $region22: #{estimation_stage_forward.25} parent=0
    _
  %s6 = ssub.s32 1, %s4
  %s7 = scalar_select 0, %s6, %s4
  // Predicated region
  $region2: #{estimation_stage_forward.25} parent=0 // pred_check
    _
  $region3: #{estimation_stage_forward.25} parent=0 // pred_check_branch
    %9 = sbr.rel (0) target = $region5
  $region4: #{estimation_stage_forward.25} parent=0 // pred_region
    _
  $region5: #{estimation_stage_forward.25} parent=0 // pred_fallthru
    _
  // Predicated region
  $region6: #{estimation_stage_forward.25} parent=0 // pred_check
    _
  $region7: #{estimation_stage_forward.25} parent=0 // pred_check_branch
    %11 = sbr.rel (0) target = $region9
  $region8: #{estimation_stage_forward.25} parent=0 // pred_region
    _
  $region9: #{estimation_stage_forward.25} parent=0 // pred_fallthru
    _
  // Predicated region
  $region10: #{estimation_stage_forward.25} parent=0 // pred_check
    _
  $region11: #{estimation_stage_forward.25} parent=0 // pred_check_branch
    %13 = sbr.rel (0) target = $region13
  $region12: #{estimation_stage_forward.25} parent=0 // pred_region
    _
  $region13: #{estimation_stage_forward.25} parent=0 // pred_fallthru
    _
  %v15 = vld [vmem:[%s0] sm:$0xff]
  %v16 = vld [vmem:[%s0 + $0x8] sm:$0xff]
  %v17 = vld [vmem:[%s0 + $0x10] sm:$0xff]
  %v18 = vld [vmem:[%s0 + $0x18] sm:$0xff]
  %v19 = vld [vmem:[%s0 + $0x20] sm:$0xff]
  %v20 = vld [vmem:[%s0 + $0x28] sm:$0xff]
  %v21 = vld [vmem:[%s0 + $0x30] sm:$0xff]
  %v22 = vld [vmem:[%s0 + $0x38] sm:$0xff]
  %v23 = vld [vmem:[%s1] sm:$0xf]
  %v24 = vld [vmem:[%s1 + $0x4] sm:$0xf]
  %v25 = vld [vmem:[%s1 + $0x8] sm:$0xf]
  %v26 = vld [vmem:[%s1 + $0xc] sm:$0xf]
  %v27 = vld [vmem:[%s1 + $0x10] sm:$0xf]
  %v28 = vld [vmem:[%s1 + $0x14] sm:$0xf]
  %v29 = vld [vmem:[%s1 + $0x18] sm:$0xf]
  %v30 = vld [vmem:[%s1 + $0x1c] sm:$0xf]
  %v31 = vld [vmem:[%s1 + $0x20] sm:$0xf]
  %v32 = vld [vmem:[%s1 + $0x24] sm:$0xf]
  %v33 = vld [vmem:[%s1 + $0x28] sm:$0xf]
  %v34 = vld [vmem:[%s1 + $0x2c] sm:$0xf]
  %v35 = vld [vmem:[%s1 + $0x30] sm:$0xf]
  %v36 = vld [vmem:[%s1 + $0x34] sm:$0xf]
  %v37 = vld [vmem:[%s1 + $0x38] sm:$0xf]
  %v38 = vld [vmem:[%s1 + $0x3c] sm:$0xf]
  %v39 = vld [vmem:[%s1 + $0x40] sm:$0xf]
  %v40 = vld [vmem:[%s1 + $0x44] sm:$0xf]
  %v41 = vld [vmem:[%s1 + $0x48] sm:$0xf]
  %v42 = vld [vmem:[%s1 + $0x4c] sm:$0xf]
  %v43 = vld [vmem:[%s1 + $0x50] sm:$0xf]
  %v44 = vld [vmem:[%s1 + $0x54] sm:$0xf]
  %v45 = vld [vmem:[%s1 + $0x58] sm:$0xf]
  %v46 = vld [vmem:[%s1 + $0x5c] sm:$0xf]
  %v47 = vld [vmem:[%s2] sm:$0x1]
  %v49 = vlaneseq
  %v50 = vshrl.u32 %v49, 7
  %v51 = vsub.s32 0, %v50
  %v52 = vrot.slane %v47, %v51
  %v62 = vunpack.c.l.b16 %v15
  %v63 = vunpack.c.h.b16 %v15
  %v64 = vunpack.c.l.b16 %v16
  %v65 = vunpack.c.h.b16 %v16
  %v66 = vunpack.c.l.b16 %v17
  %v67 = vunpack.c.h.b16 %v17
  %v68 = vunpack.c.l.b16 %v18
  %v69 = vunpack.c.h.b16 %v18
  %v70 = vunpack.c.l.b16 %v19
  %v71 = vunpack.c.h.b16 %v19
  %v72 = vunpack.c.l.b16 %v20
  %v73 = vunpack.c.h.b16 %v20
  %v74 = vunpack.c.l.b16 %v21
  %v75 = vunpack.c.h.b16 %v21
  %v76 = vunpack.c.l.b16 %v22
  %v77 = vunpack.c.h.b16 %v22
  %v78 = vpack.c.b16 %v64, %v62
  %v79 = vpack.c.b16 %v65, %v63
  %v80 = vpack.c.b16 %v68, %v66
  %v81 = vpack.c.b16 %v69, %v67
  %v82 = vpack.c.b16 %v72, %v70
  %v83 = vpack.c.b16 %v73, %v71
  %v84 = vpack.c.b16 %v76, %v74
  %v85 = vpack.c.b16 %v77, %v75
  %v114 = vunpack.c.l.b16 %v23
  %v115 = vunpack.c.l.b16 %v24
  %v116 = vunpack.c.l.b16 %v25
  %v117 = vunpack.c.l.b16 %v26
  %v118 = vunpack.c.l.b16 %v27
  %v119 = vunpack.c.l.b16 %v28
  %v120 = vunpack.c.l.b16 %v29
  %v121 = vunpack.c.l.b16 %v30
  %v122 = vunpack.c.l.b16 %v31
  %v123 = vunpack.c.l.b16 %v32
  %v124 = vunpack.c.l.b16 %v33
  %v125 = vunpack.c.l.b16 %v34
  %v126 = vunpack.c.l.b16 %v35
  %v127 = vunpack.c.l.b16 %v36
  %v128 = vunpack.c.l.b16 %v37
  %v129 = vunpack.c.l.b16 %v38
  %v130 = vunpack.c.l.b16 %v39
  %v131 = vunpack.c.l.b16 %v40
  %v132 = vunpack.c.l.b16 %v41
  %v133 = vunpack.c.l.b16 %v42
  %v134 = vunpack.c.l.b16 %v43
  %v135 = vunpack.c.l.b16 %v44
  %v136 = vunpack.c.l.b16 %v45
  %v137 = vunpack.c.l.b16 %v46
  %v138 = vpack.c.b16 %v115, %v114
  %v139 = vpack.c.b16 %v117, %v116
  %v140 = vpack.c.b16 %v119, %v118
  %v141 = vpack.c.b16 %v121, %v120
  %v142 = vpack.c.b16 %v123, %v122
  %v143 = vpack.c.b16 %v125, %v124
  %v144 = vpack.c.b16 %v127, %v126
  %v145 = vpack.c.b16 %v129, %v128
  %v146 = vpack.c.b16 %v131, %v130
  %v147 = vpack.c.b16 %v133, %v132
  %v148 = vpack.c.b16 %v135, %v134
  %v149 = vpack.c.b16 %v137, %v136
  %vm162 = vcmask 523264
  %v164 = vsel %vm162, %v79, 0
  %v167 = vsel %vm162, %v81, 0
  %v170 = vsel %vm162, %v83, 0
  %v173 = vsel %vm162, %v85, 0
  %175 = vmatprep.subr.bf16.mxu0 0
  %176 = vmatpush1.bf16.msra.mxu0 %v138
  %177 = vmatprep.subr.bf16.mxu0 0
  %178 = vmatpush1.bf16.msra.mxu0 %v139
  %179 = vmatprep.subr.bf16.mxu0 0
  %180 = vmatpush1.bf16.msra.mxu0 %v140
  %181 = vmatprep.subr.bf16.mxu0 0
  %182 = vmatpush1.bf16.msra.mxu0 %v141
  %183 = vmatprep.subr.bf16.mxu0 0
  %184 = vmatpush1.bf16.msra.mxu0 %v142
  %185 = vmatprep.subr.bf16.mxu0 0
  %186 = vmatpush1.bf16.msra.mxu0 %v143
  %187 = vmatprep.subr.bf16.mxu0 0
  %188 = vmatpush1.bf16.msra.mxu0 %v144
  %189 = vmatprep.subr.bf16.mxu0 0
  %190 = vmatpush1.bf16.msra.mxu0 %v145
  %191 = vmatprep.subr.bf16.mxu0 0
  %192 = vmatpush1.bf16.msra.mxu0 %v146
  %193 = vmatprep.subr.bf16.mxu0 0
  %194 = vmatpush1.bf16.msra.mxu0 %v147
  %195 = vmatprep.subr.bf16.mxu0 0
  %196 = vmatpush1.bf16.msra.mxu0 %v148
  %197 = vmatprep.subr.bf16.mxu0 0
  %198 = vmatpush1.bf16.msra.mxu0 %v149
  %199 = vmatprep.subr.bf16.mxu0 0
  %200 = vmatpush1.bf16.msra.mxu0 0
  %201 = vmatprep.subr.bf16.mxu0 0
  %202 = vmatpush1.bf16.msra.mxu0 0
  %203 = vmatprep.subr.bf16.mxu0 0
  %204 = vmatpush1.bf16.msra.mxu0 0
  %205 = vmatprep.subr.bf16.mxu0 0
  %206 = vmatpush1.bf16.msra.mxu0 0
  %207 = vmatprep.mubr.bf16.mxu0 %v164
  %208 = vmatmul.mubr.bf16.gmra.mrb[0].mxu0 %v78
  %v209 = vpop.f32.mrb[0].mxu0
  %v210 = vadd.f32 %v52, %v209
  %v211 = vpop.f32.mrb[0].mxu0
  %v212 = vpop.f32.mrb[0].mxu0
  %v213 = vadd.f32 %v52, %v212
  %v214 = vpop.f32.mrb[0].mxu0
  %215 = vmatprep.mubr.bf16.mxu0 %v167
  %216 = vmatmul.mubr.bf16.gmra.mrb[0].mxu0 %v80
  %v217 = vpop.f32.mrb[0].mxu0
  %v218 = vadd.f32 %v52, %v217
  %v219 = vpop.f32.mrb[0].mxu0
  %v220 = vpop.f32.mrb[0].mxu0
  %v221 = vadd.f32 %v52, %v220
  %v222 = vpop.f32.mrb[0].mxu0
  %223 = vmatprep.mubr.bf16.mxu0 %v170
  %224 = vmatmul.mubr.bf16.gmra.mrb[0].mxu0 %v82
  %v225 = vpop.f32.mrb[0].mxu0
  %v226 = vadd.f32 %v52, %v225
  %v227 = vpop.f32.mrb[0].mxu0
  %v228 = vpop.f32.mrb[0].mxu0
  %v229 = vadd.f32 %v52, %v228
  %v230 = vpop.f32.mrb[0].mxu0
  %231 = vmatprep.mubr.bf16.mxu0 %v173
  %232 = vmatmul.mubr.bf16.gmra.mrb[0].mxu0 %v84
  %v233 = vpop.f32.mrb[0].mxu0
  %v234 = vadd.f32 %v52, %v233
  %v235 = vpop.f32.mrb[0].mxu0
  %v236 = vpop.f32.mrb[0].mxu0
  %v237 = vadd.f32 %v52, %v236
  %v238 = vpop.f32.mrb[0].mxu0
  %239 = vdwg.mxu0
  %v240 = vmax.f32 %v210, 0.0
  %v241 = vmax.f32 %v213, 0.0
  %v242 = vmax.f32 %v218, 0.0
  %v243 = vmax.f32 %v221, 0.0
  %v244 = vmax.f32 %v226, 0.0
  %v245 = vmax.f32 %v229, 0.0
  %v246 = vmax.f32 %v234, 0.0
  %v247 = vmax.f32 %v237, 0.0
  %vm248 = vcmask 392192
  %249 = vst.msk [vmem:[%s3] sm:$0xff] %vm248, %v240
  %250 = vst.msk [vmem:[%s3 + $0x8] sm:$0xff] %vm248, %v241
  %251 = vst.msk [vmem:[%s3 + $0x10] sm:$0xff] %vm248, %v242
  %252 = vst.msk [vmem:[%s3 + $0x18] sm:$0xff] %vm248, %v243
  %253 = vst.msk [vmem:[%s3 + $0x20] sm:$0xff] %vm248, %v244
  %254 = vst.msk [vmem:[%s3 + $0x28] sm:$0xff] %vm248, %v245
  %255 = vst.msk [vmem:[%s3 + $0x30] sm:$0xff] %vm248, %v246
  %256 = vst.msk [vmem:[%s3 + $0x38] sm:$0xff] %vm248, %v247
  // Predicated region
  $region14: #{estimation_stage_forward.25} parent=0 // pred_check
    _
  $region15: #{estimation_stage_forward.25} parent=0 // pred_check_branch
    %258 = sbr.rel (0) target = $region17
  $region16: #{estimation_stage_forward.25} parent=0 // pred_region
    _
  $region17: #{estimation_stage_forward.25} parent=0 // pred_fallthru
    _
  // Predicated region
  $region18: #{estimation_stage_forward.25} parent=0 // pred_check
    _
  $region19: #{estimation_stage_forward.25} parent=0 // pred_check_branch
    %260 = sbr.rel (0) target = $region21
  $region20: #{estimation_stage_forward.25} parent=0 // pred_region
    _
  $region21: #{estimation_stage_forward.25} parent=0 // pred_fallthru
    _

// kernel: estimation_stage_forward.26
$region0: #{estimation_stage_forward.26}
  #allocation0 [shape = 'u32[]', space=smem, size = 0x4, offset = 0x4, fixed_abs, tag = 'smem constant byte address 0x4 - core index']
  #allocation1 [shape = 'u32[144,128]{1,0:T(1,128)}', space=vmem, size = 0x12000, scoped, tag = 'internal scratch']
  %s0 = inlined_call_operand.vmem [shape: bf16[16,576], index: 0, kind: input, shape index: {}]
  %s1 = inlined_call_operand.vmem [shape: bf16[576,96], index: 1, kind: input, shape index: {}]
  %s2 = inlined_call_operand.vmem [shape: f32[1,96], index: 2, kind: input, shape index: {}]
  %s3 = inlined_call_operand.vmem [shape: f32[16,96], index: 3, kind: output, shape index: {}]
  %s4 = sld [smem:[#allocation0]]
  $region22: #{estimation_stage_forward.26} parent=0
    _
  %s6 = ssub.s32 1, %s4
  %s7 = scalar_select 0, %s6, %s4
  // Predicated region
  $region2: #{estimation_stage_forward.26} parent=0 // pred_check
    _
  $region3: #{estimation_stage_forward.26} parent=0 // pred_check_branch
    %9 = sbr.rel (0) target = $region5
  $region4: #{estimation_stage_forward.26} parent=0 // pred_region
    _
  $region5: #{estimation_stage_forward.26} parent=0 // pred_fallthru
    _
  // Predicated region
  $region6: #{estimation_stage_forward.26} parent=0 // pred_check
    _
  $region7: #{estimation_stage_forward.26} parent=0 // pred_check_branch
    %11 = sbr.rel (0) target = $region9
  $region8: #{estimation_stage_forward.26} parent=0 // pred_region
    _
  $region9: #{estimation_stage_forward.26} parent=0 // pred_fallthru
    _
  // Predicated region
  $region10: #{estimation_stage_forward.26} parent=0 // pred_check
    _
  $region11: #{estimation_stage_forward.26} parent=0 // pred_check_branch
    %13 = sbr.rel (0) target = $region13
  $region12: #{estimation_stage_forward.26} parent=0 // pred_region
    _
  $region13: #{estimation_stage_forward.26} parent=0 // pred_fallthru
    _
  %v15 = vld [vmem:[%s0] sm:$0xff]
  %v16 = vld [vmem:[%s0 + $0x8] sm:$0xff]
  %v17 = vld [vmem:[%s0 + $0x10] sm:$0xf]
  %v18 = vld [vmem:[%s0 + $0x14] sm:$0xff]
  %v19 = vld [vmem:[%s0 + $0x1c] sm:$0xff]
  %v20 = vld [vmem:[%s0 + $0x24] sm:$0xf]
  %v21 = vld [vmem:[%s1] sm:$0xf]
  %v22 = vld [vmem:[%s1 + $0x4] sm:$0xf]
  %v23 = vld [vmem:[%s1 + $0x8] sm:$0xf]
  %v24 = vld [vmem:[%s1 + $0xc] sm:$0xf]
  %v25 = vld [vmem:[%s1 + $0x10] sm:$0xf]
  %v26 = vld [vmem:[%s1 + $0x14] sm:$0xf]
  %v27 = vld [vmem:[%s1 + $0x18] sm:$0xf]
  %v28 = vld [vmem:[%s1 + $0x1c] sm:$0xf]
  %v29 = vld [vmem:[%s1 + $0x20] sm:$0xf]
  %v30 = vld [vmem:[%s1 + $0x24] sm:$0xf]
  %v31 = vld [vmem:[%s1 + $0x28] sm:$0xf]
  %v32 = vld [vmem:[%s1 + $0x2c] sm:$0xf]
  %v33 = vld [vmem:[%s1 + $0x30] sm:$0xf]
  %v34 = vld [vmem:[%s1 + $0x34] sm:$0xf]
  %v35 = vld [vmem:[%s1 + $0x38] sm:$0xf]
  %v36 = vld [vmem:[%s1 + $0x3c] sm:$0xf]
  %v37 = vld [vmem:[%s1 + $0x40] sm:$0xf]
  %v38 = vld [vmem:[%s1 + $0x44] sm:$0xf]
  %v39 = vld [vmem:[%s1 + $0x48] sm:$0xf]
  %v40 = vld [vmem:[%s1 + $0x4c] sm:$0xf]
  %v41 = vld [vmem:[%s1 + $0x50] sm:$0xf]
  %v42 = vld [vmem:[%s1 + $0x54] sm:$0xf]
  %v43 = vld [vmem:[%s1 + $0x58] sm:$0xf]
  %v44 = vld [vmem:[%s1 + $0x5c] sm:$0xf]
  %v45 = vld [vmem:[%s1 + $0x60] sm:$0xf]
  %v46 = vld [vmem:[%s1 + $0x64] sm:$0xf]
  %v47 = vld [vmem:[%s1 + $0x68] sm:$0xf]
  %v48 = vld [vmem:[%s1 + $0x6c] sm:$0xf]
  %v49 = vld [vmem:[%s1 + $0x70] sm:$0xf]
  %v50 = vld [vmem:[%s1 + $0x74] sm:$0xf]
  %v51 = vld [vmem:[%s1 + $0x78] sm:$0xf]
  %v52 = vld [vmem:[%s1 + $0x7c] sm:$0xf]
  %v53 = vld [vmem:[%s1 + $0x80] sm:$0xf]
  %v54 = vld [vmem:[%s1 + $0x84] sm:$0xf]
  %v55 = vld [vmem:[%s1 + $0x88] sm:$0xf]
  %v56 = vld [vmem:[%s1 + $0x8c] sm:$0xf]
  %v57 = vld [vmem:[%s1 + $0x90] sm:$0xf]
  %v58 = vld [vmem:[%s1 + $0x94] sm:$0xf]
  %v59 = vld [vmem:[%s1 + $0x98] sm:$0xf]
  %v60 = vld [vmem:[%s1 + $0x9c] sm:$0xf]
  %v61 = vld [vmem:[%s1 + $0xa0] sm:$0xf]
  %v62 = vld [vmem:[%s1 + $0xa4] sm:$0xf]
  %v63 = vld [vmem:[%s1 + $0xa8] sm:$0xf]
  %v64 = vld [vmem:[%s1 + $0xac] sm:$0xf]
  %v65 = vld [vmem:[%s1 + $0xb0] sm:$0xf]
  %v66 = vld [vmem:[%s1 + $0xb4] sm:$0xf]
  %v67 = vld [vmem:[%s1 + $0xb8] sm:$0xf]
  %v68 = vld [vmem:[%s1 + $0xbc] sm:$0xf]
  %v69 = vld [vmem:[%s1 + $0xc0] sm:$0xf]
  %v70 = vld [vmem:[%s1 + $0xc4] sm:$0xf]
  %v71 = vld [vmem:[%s1 + $0xc8] sm:$0xf]
  %v72 = vld [vmem:[%s1 + $0xcc] sm:$0xf]
  %v73 = vld [vmem:[%s1 + $0xd0] sm:$0xf]
  %v74 = vld [vmem:[%s1 + $0xd4] sm:$0xf]
  %v75 = vld [vmem:[%s1 + $0xd8] sm:$0xf]
  %v76 = vld [vmem:[%s1 + $0xdc] sm:$0xf]
  %v77 = vld [vmem:[%s1 + $0xe0] sm:$0xf]
  %v78 = vld [vmem:[%s1 + $0xe4] sm:$0xf]
  %v79 = vld [vmem:[%s1 + $0xe8] sm:$0xf]
  %v80 = vld [vmem:[%s1 + $0xec] sm:$0xf]
  %v81 = vld [vmem:[%s1 + $0xf0] sm:$0xf]
  %v82 = vld [vmem:[%s1 + $0xf4] sm:$0xf]
  %v83 = vld [vmem:[%s1 + $0xf8] sm:$0xf]
  %v84 = vld [vmem:[%s1 + $0xfc] sm:$0xf]
  %v85 = vld [vmem:[%s1 + $0x100] sm:$0xf]
  %v86 = vld [vmem:[%s1 + $0x104] sm:$0xf]
  %v87 = vld [vmem:[%s1 + $0x108] sm:$0xf]
  %v88 = vld [vmem:[%s1 + $0x10c] sm:$0xf]
  %v89 = vld [vmem:[%s1 + $0x110] sm:$0xf]
  %v90 = vld [vmem:[%s1 + $0x114] sm:$0xf]
  %v91 = vld [vmem:[%s1 + $0x118] sm:$0xf]
  %v92 = vld [vmem:[%s1 + $0x11c] sm:$0xf]
  %v93 = vld [vmem:[%s2] sm:$0x1]
  %v95 = vlaneseq
  %v96 = vshrl.u32 %v95, 7
  %v97 = vsub.s32 0, %v96
  %v98 = vrot.slane %v93, %v97
  %v106 = vunpack.c.l.b16 %v15
  %v107 = vunpack.c.h.b16 %v15
  %v108 = vunpack.c.l.b16 %v16
  %v109 = vunpack.c.h.b16 %v16
  %v110 = vunpack.c.l.b16 %v17
  %v111 = vunpack.c.l.b16 %v18
  %v112 = vunpack.c.h.b16 %v18
  %v113 = vunpack.c.l.b16 %v19
  %v114 = vunpack.c.h.b16 %v19
  %v115 = vunpack.c.l.b16 %v20
  %v116 = vpack.c.b16 %v111, %v106
  %v117 = vpack.c.b16 %v112, %v107
  %v118 = vpack.c.b16 %v113, %v108
  %v119 = vpack.c.b16 %v114, %v109
  %v120 = vpack.c.b16 %v115, %v110
  %v197 = vunpack.c.l.b16 %v21
  %v198 = vunpack.c.l.b16 %v22
  %v199 = vunpack.c.l.b16 %v23
  %v200 = vunpack.c.l.b16 %v24
  %v201 = vunpack.c.l.b16 %v25
  %v202 = vunpack.c.l.b16 %v26
  %v203 = vunpack.c.l.b16 %v27
  %v204 = vunpack.c.l.b16 %v28
  %v205 = vunpack.c.l.b16 %v29
  %v206 = vunpack.c.l.b16 %v30
  %v207 = vunpack.c.l.b16 %v31
  %v208 = vunpack.c.l.b16 %v32
  %v209 = vunpack.c.l.b16 %v33
  %v210 = vunpack.c.l.b16 %v34
  %v211 = vunpack.c.l.b16 %v35
  %v212 = vunpack.c.l.b16 %v36
  %v213 = vunpack.c.l.b16 %v37
  %v214 = vunpack.c.l.b16 %v38
  %v215 = vunpack.c.l.b16 %v39
  %v216 = vunpack.c.l.b16 %v40
  %v217 = vunpack.c.l.b16 %v41
  %v218 = vunpack.c.l.b16 %v42
  %v219 = vunpack.c.l.b16 %v43
  %v220 = vunpack.c.l.b16 %v44
  %v221 = vunpack.c.l.b16 %v45
  %v222 = vunpack.c.l.b16 %v46
  %v223 = vunpack.c.l.b16 %v47
  %v224 = vunpack.c.l.b16 %v48
  %v225 = vunpack.c.l.b16 %v49
  %v226 = vunpack.c.l.b16 %v50
  %v227 = vunpack.c.l.b16 %v51
  %v228 = vunpack.c.l.b16 %v52
  %v229 = vunpack.c.l.b16 %v53
  %v230 = vunpack.c.l.b16 %v54
  %v231 = vunpack.c.l.b16 %v55
  %v232 = vunpack.c.l.b16 %v56
  %v233 = vunpack.c.l.b16 %v57
  %v234 = vunpack.c.l.b16 %v58
  %v235 = vunpack.c.l.b16 %v59
  %v236 = vunpack.c.l.b16 %v60
  %v237 = vunpack.c.l.b16 %v61
  %v238 = vunpack.c.l.b16 %v62
  %v239 = vunpack.c.l.b16 %v63
  %v240 = vunpack.c.l.b16 %v64
  %v241 = vunpack.c.l.b16 %v65
  %v242 = vunpack.c.l.b16 %v66
  %v243 = vunpack.c.l.b16 %v67
  %v244 = vunpack.c.l.b16 %v68
  %v245 = vunpack.c.l.b16 %v69
  %v246 = vunpack.c.l.b16 %v70
  %v247 = vunpack.c.l.b16 %v71
  %v248 = vunpack.c.l.b16 %v72
  %v249 = vunpack.c.l.b16 %v73
  %v250 = vunpack.c.l.b16 %v74
  %v251 = vunpack.c.l.b16 %v75
  %v252 = vunpack.c.l.b16 %v76
  %v253 = vunpack.c.l.b16 %v77
  %v254 = vunpack.c.l.b16 %v78
  %v255 = vunpack.c.l.b16 %v79
  %v256 = vunpack.c.l.b16 %v80
  %v257 = vunpack.c.l.b16 %v81
  %v258 = vunpack.c.l.b16 %v82
  %v259 = vunpack.c.l.b16 %v83
  %v260 = vunpack.c.l.b16 %v84
  %v261 = vunpack.c.l.b16 %v85
  %v262 = vunpack.c.l.b16 %v86
  %v263 = vunpack.c.l.b16 %v87
  %v264 = vunpack.c.l.b16 %v88
  %v265 = vunpack.c.l.b16 %v89
  %v266 = vunpack.c.l.b16 %v90
  %v267 = vunpack.c.l.b16 %v91
  %v268 = vunpack.c.l.b16 %v92
  %v269 = vpack.c.b16 %v198, %v197
  %v270 = vpack.c.b16 %v200, %v199
  %v271 = vpack.c.b16 %v202, %v201
  %v272 = vpack.c.b16 %v204, %v203
  %v273 = vpack.c.b16 %v206, %v205
  %v274 = vpack.c.b16 %v208, %v207
  %v275 = vpack.c.b16 %v210, %v209
  %v276 = vpack.c.b16 %v212, %v211
  %v277 = vpack.c.b16 %v214, %v213
  %v278 = vpack.c.b16 %v216, %v215
  %v279 = vpack.c.b16 %v218, %v217
  %v280 = vpack.c.b16 %v220, %v219
  %v281 = vpack.c.b16 %v222, %v221
  %v282 = vpack.c.b16 %v224, %v223
  %v283 = vpack.c.b16 %v226, %v225
  %v284 = vpack.c.b16 %v228, %v227
  %v285 = vpack.c.b16 %v230, %v229
  %v286 = vpack.c.b16 %v232, %v231
  %v287 = vpack.c.b16 %v234, %v233
  %v288 = vpack.c.b16 %v236, %v235
  %v289 = vpack.c.b16 %v238, %v237
  %v290 = vpack.c.b16 %v240, %v239
  %v291 = vpack.c.b16 %v242, %v241
  %v292 = vpack.c.b16 %v244, %v243
  %v293 = vpack.c.b16 %v246, %v245
  %v294 = vpack.c.b16 %v248, %v247
  %v295 = vpack.c.b16 %v250, %v249
  %v296 = vpack.c.b16 %v252, %v251
  %v297 = vpack.c.b16 %v254, %v253
  %v298 = vpack.c.b16 %v256, %v255
  %v299 = vpack.c.b16 %v258, %v257
  %v300 = vpack.c.b16 %v260, %v259
  %v301 = vpack.c.b16 %v262, %v261
  %v302 = vpack.c.b16 %v264, %v263
  %v303 = vpack.c.b16 %v266, %v265
  %v304 = vpack.c.b16 %v268, %v267
  %vm341 = vcmask 523264
  %v343 = vsel %vm341, %v120, 0
  %345 = vmatprep.subr.bf16.mxu0 0
  %346 = vmatpush1.bf16.msra.mxu0 %v269
  %347 = vmatprep.subr.bf16.mxu0 0
  %348 = vmatpush1.bf16.msra.mxu0 %v270
  %349 = vmatprep.subr.bf16.mxu0 0
  %350 = vmatpush1.bf16.msra.mxu0 %v271
  %351 = vmatprep.subr.bf16.mxu0 0
  %352 = vmatpush1.bf16.msra.mxu0 %v272
  %353 = vmatprep.subr.bf16.mxu0 0
  %354 = vmatpush1.bf16.msra.mxu0 %v273
  %355 = vmatprep.subr.bf16.mxu0 0
  %356 = vmatpush1.bf16.msra.mxu0 %v274
  %357 = vmatprep.subr.bf16.mxu0 0
  %358 = vmatpush1.bf16.msra.mxu0 %v275
  %359 = vmatprep.subr.bf16.mxu0 0
  %360 = vmatpush1.bf16.msra.mxu0 %v276
  %361 = vmatprep.subr.bf16.mxu0 0
  %362 = vmatpush1.bf16.msra.mxu0 %v277
  %363 = vmatprep.subr.bf16.mxu0 0
  %364 = vmatpush1.bf16.msra.mxu0 %v278
  %365 = vmatprep.subr.bf16.mxu0 0
  %366 = vmatpush1.bf16.msra.mxu0 %v279
  %367 = vmatprep.subr.bf16.mxu0 0
  %368 = vmatpush1.bf16.msra.mxu0 %v280
  %369 = vmatprep.subr.bf16.mxu0 0
  %370 = vmatpush1.bf16.msra.mxu0 %v281
  %371 = vmatprep.subr.bf16.mxu0 0
  %372 = vmatpush1.bf16.msra.mxu0 %v282
  %373 = vmatprep.subr.bf16.mxu0 0
  %374 = vmatpush1.bf16.msra.mxu0 %v283
  %375 = vmatprep.subr.bf16.mxu0 0
  %376 = vmatpush1.bf16.msra.mxu0 %v284
  %377 = vmatprep.mubr.bf16.mxu0 %v117
  %378 = vmatmul.mubr.bf16.gmra.mrb[0].mxu0 %v116
  %v379 = vpop.f32.mrb[0].mxu0
  %v380 = vadd.f32 %v98, %v379
  %v381 = vpop.f32.mrb[0].mxu0
  %v382 = vpop.f32.mrb[0].mxu0
  %v383 = vadd.f32 %v98, %v382
  %v384 = vpop.f32.mrb[0].mxu0
  %385 = vdwg.mxu0
  %386 = vmatprep.subr.bf16.mxu0 0
  %387 = vmatpush1.bf16.msra.mxu0 %v285
  %388 = vmatprep.subr.bf16.mxu0 0
  %389 = vmatpush1.bf16.msra.mxu0 %v286
  %390 = vmatprep.subr.bf16.mxu0 0
  %391 = vmatpush1.bf16.msra.mxu0 %v287
  %392 = vmatprep.subr.bf16.mxu0 0
  %393 = vmatpush1.bf16.msra.mxu0 %v288
  %394 = vmatprep.subr.bf16.mxu0 0
  %395 = vmatpush1.bf16.msra.mxu0 %v289
  %396 = vmatprep.subr.bf16.mxu0 0
  %397 = vmatpush1.bf16.msra.mxu0 %v290
  %398 = vmatprep.subr.bf16.mxu0 0
  %399 = vmatpush1.bf16.msra.mxu0 %v291
  %400 = vmatprep.subr.bf16.mxu0 0
  %401 = vmatpush1.bf16.msra.mxu0 %v292
  %402 = vmatprep.subr.bf16.mxu0 0
  %403 = vmatpush1.bf16.msra.mxu0 %v293
  %404 = vmatprep.subr.bf16.mxu0 0
  %405 = vmatpush1.bf16.msra.mxu0 %v294
  %406 = vmatprep.subr.bf16.mxu0 0
  %407 = vmatpush1.bf16.msra.mxu0 %v295
  %408 = vmatprep.subr.bf16.mxu0 0
  %409 = vmatpush1.bf16.msra.mxu0 %v296
  %410 = vmatprep.subr.bf16.mxu0 0
  %411 = vmatpush1.bf16.msra.mxu0 %v297
  %412 = vmatprep.subr.bf16.mxu0 0
  %413 = vmatpush1.bf16.msra.mxu0 %v298
  %414 = vmatprep.subr.bf16.mxu0 0
  %415 = vmatpush1.bf16.msra.mxu0 %v299
  %416 = vmatprep.subr.bf16.mxu0 0
  %417 = vmatpush1.bf16.msra.mxu0 %v300
  %418 = vmatprep.mubr.bf16.mxu0 %v119
  %419 = vmatmul.mubr.bf16.gmra.mrb[0].mxu0 %v118
  %v420 = vpop.f32.mrb[0].mxu0
  %v421 = vadd.f32 %v380, %v420
  %v422 = vpop.f32.mrb[0].mxu0
  %v423 = vpop.f32.mrb[0].mxu0
  %v424 = vadd.f32 %v383, %v423
  %v425 = vpop.f32.mrb[0].mxu0
  %426 = vdwg.mxu0
  %427 = vmatprep.subr.bf16.mxu0 0
  %428 = vmatpush1.bf16.msra.mxu0 %v301
  %429 = vmatprep.subr.bf16.mxu0 0
  %430 = vmatpush1.bf16.msra.mxu0 %v302
  %431 = vmatprep.subr.bf16.mxu0 0
  %432 = vmatpush1.bf16.msra.mxu0 %v303
  %433 = vmatprep.subr.bf16.mxu0 0
  %434 = vmatpush1.bf16.msra.mxu0 %v304
  %435 = vmatprep.subr.bf16.mxu0 0
  %436 = vmatpush1.bf16.msra.mxu0 0
  %437 = vmatprep.subr.bf16.mxu0 0
  %438 = vmatpush1.bf16.msra.mxu0 0
  %439 = vmatprep.subr.bf16.mxu0 0
  %440 = vmatpush1.bf16.msra.mxu0 0
  %441 = vmatprep.subr.bf16.mxu0 0
  %442 = vmatpush1.bf16.msra.mxu0 0
  %443 = vmatprep.subr.bf16.mxu0 0
  %444 = vmatpush1.bf16.msra.mxu0 0
  %445 = vmatprep.subr.bf16.mxu0 0
  %446 = vmatpush1.bf16.msra.mxu0 0
  %447 = vmatprep.subr.bf16.mxu0 0
  %448 = vmatpush1.bf16.msra.mxu0 0
  %449 = vmatprep.subr.bf16.mxu0 0
  %450 = vmatpush1.bf16.msra.mxu0 0
  %451 = vmatprep.subr.bf16.mxu0 0
  %452 = vmatpush1.bf16.msra.mxu0 0
  %453 = vmatprep.subr.bf16.mxu0 0
  %454 = vmatpush1.bf16.msra.mxu0 0
  %455 = vmatprep.subr.bf16.mxu0 0
  %456 = vmatpush1.bf16.msra.mxu0 0
  %457 = vmatprep.subr.bf16.mxu0 0
  %458 = vmatpush1.bf16.msra.mxu0 0
  %459 = vmatprep.mubr.bf16.mxu0 0
  %460 = vmatmul.mubr.bf16.gmra.mrb[0].mxu0 %v343
  %v461 = vpop.f32.mrb[0].mxu0
  %v462 = vadd.f32 %v421, %v461
  %v463 = vpop.f32.mrb[0].mxu0
  %v464 = vpop.f32.mrb[0].mxu0
  %v465 = vadd.f32 %v424, %v464
  %v466 = vpop.f32.mrb[0].mxu0
  %467 = vdwg.mxu0
  %v468 = vmax.f32 %v462, 0.0
  %v469 = vmax.f32 %v465, 0.0
  %vm470 = vcmask 785408
  %471 = vst.msk [vmem:[%s3] sm:$0xff] %vm470, %v468
  %472 = vst.msk [vmem:[%s3 + $0x8] sm:$0xff] %vm470, %v469
  // Predicated region
  $region14: #{estimation_stage_forward.26} parent=0 // pred_check
    _
  $region15: #{estimation_stage_forward.26} parent=0 // pred_check_branch
    %474 = sbr.rel (0) target = $region17
  $region16: #{estimation_stage_forward.26} parent=0 // pred_region
    _
  $region17: #{estimation_stage_forward.26} parent=0 // pred_fallthru
    _
  // Predicated region
  $region18: #{estimation_stage_forward.26} parent=0 // pred_check
    _
  $region19: #{estimation_stage_forward.26} parent=0 // pred_check_branch
    %476 = sbr.rel (0) target = $region21
  $region20: #{estimation_stage_forward.26} parent=0 // pred_region
    _
  $region21: #{estimation_stage_forward.26} parent=0 // pred_fallthru
    _

// kernel: estimation_stage_forward.27
$region0: #{estimation_stage_forward.27}
  #allocation0 [shape = 'u32[]', space=smem, size = 0x4, offset = 0x4, fixed_abs, tag = 'smem constant byte address 0x4 - core index']
  #allocation1 [shape = 'u32[144,128]{1,0:T(1,128)}', space=vmem, size = 0x12000, scoped, tag = 'internal scratch']
  %s0 = inlined_call_operand.vmem [shape: bf16[16,96], index: 0, kind: input, shape index: {}]
  %s1 = inlined_call_operand.vmem [shape: bf16[96,384], index: 1, kind: input, shape index: {}]
  %s2 = inlined_call_operand.vmem [shape: f32[1,384], index: 2, kind: input, shape index: {}]
  %s3 = inlined_call_operand.vmem [shape: f32[16,384], index: 3, kind: output, shape index: {}]
  %s4 = sld [smem:[#allocation0]]
  $region22: #{estimation_stage_forward.27} parent=0
    _
  %s6 = ssub.s32 1, %s4
  %s7 = scalar_select 0, %s6, %s4
  // Predicated region
  $region2: #{estimation_stage_forward.27} parent=0 // pred_check
    _
  $region3: #{estimation_stage_forward.27} parent=0 // pred_check_branch
    %9 = sbr.rel (0) target = $region5
  $region4: #{estimation_stage_forward.27} parent=0 // pred_region
    _
  $region5: #{estimation_stage_forward.27} parent=0 // pred_fallthru
    _
  // Predicated region
  $region6: #{estimation_stage_forward.27} parent=0 // pred_check
    _
  $region7: #{estimation_stage_forward.27} parent=0 // pred_check_branch
    %11 = sbr.rel (0) target = $region9
  $region8: #{estimation_stage_forward.27} parent=0 // pred_region
    _
  $region9: #{estimation_stage_forward.27} parent=0 // pred_fallthru
    _
  // Predicated region
  $region10: #{estimation_stage_forward.27} parent=0 // pred_check
    _
  $region11: #{estimation_stage_forward.27} parent=0 // pred_check_branch
    %13 = sbr.rel (0) target = $region13
  $region12: #{estimation_stage_forward.27} parent=0 // pred_region
    _
  $region13: #{estimation_stage_forward.27} parent=0 // pred_fallthru
    _
  %v15 = vld [vmem:[%s0] sm:$0xf]
  %v16 = vld [vmem:[%s0 + $0x4] sm:$0xf]
  %v17 = vld [vmem:[%s1] sm:$0xff]
  %v18 = vld [vmem:[%s1 + $0x8] sm:$0xf]
  %v19 = vld [vmem:[%s1 + $0xc] sm:$0xff]
  %v20 = vld [vmem:[%s1 + $0x14] sm:$0xf]
  %v21 = vld [vmem:[%s1 + $0x18] sm:$0xff]
  %v22 = vld [vmem:[%s1 + $0x20] sm:$0xf]
  %v23 = vld [vmem:[%s1 + $0x24] sm:$0xff]
  %v24 = vld [vmem:[%s1 + $0x2c] sm:$0xf]
  %v25 = vld [vmem:[%s1 + $0x30] sm:$0xff]
  %v26 = vld [vmem:[%s1 + $0x38] sm:$0xf]
  %v27 = vld [vmem:[%s1 + $0x3c] sm:$0xff]
  %v28 = vld [vmem:[%s1 + $0x44] sm:$0xf]
  %v29 = vld [vmem:[%s1 + $0x48] sm:$0xff]
  %v30 = vld [vmem:[%s1 + $0x50] sm:$0xf]
  %v31 = vld [vmem:[%s1 + $0x54] sm:$0xff]
  %v32 = vld [vmem:[%s1 + $0x5c] sm:$0xf]
  %v33 = vld [vmem:[%s1 + $0x60] sm:$0xff]
  %v34 = vld [vmem:[%s1 + $0x68] sm:$0xf]
  %v35 = vld [vmem:[%s1 + $0x6c] sm:$0xff]
  %v36 = vld [vmem:[%s1 + $0x74] sm:$0xf]
  %v37 = vld [vmem:[%s1 + $0x78] sm:$0xff]
  %v38 = vld [vmem:[%s1 + $0x80] sm:$0xf]
  %v39 = vld [vmem:[%s1 + $0x84] sm:$0xff]
  %v40 = vld [vmem:[%s1 + $0x8c] sm:$0xf]
  %v41 = vld [vmem:[%s2] sm:$0x7]
  %v43 = vlaneseq
  %v44 = vshrl.u32 %v43, 7
  %v45 = vsub.s32 0, %v44
  %v46 = vrot.slane %v41, %v45
  %v47 = vlaneseq
  %v48 = vshrl.u32 %v47, 7
  %v49 = vsub.s32 1, %v48
  %v50 = vrot.slane %v41, %v49
  %v51 = vlaneseq
  %v52 = vshrl.u32 %v51, 7
  %v53 = vsub.s32 2, %v52
  %v54 = vrot.slane %v41, %v53
  %v60 = vunpack.c.l.b16 %v15
  %v61 = vunpack.c.l.b16 %v16
  %v62 = vpack.c.b16 %v61, %v60
  %v87 = vunpack.c.l.b16 %v17
  %v88 = vunpack.c.h.b16 %v17
  %v89 = vunpack.c.l.b16 %v18
  %v90 = vunpack.c.l.b16 %v19
  %v91 = vunpack.c.h.b16 %v19
  %v92 = vunpack.c.l.b16 %v20
  %v93 = vunpack.c.l.b16 %v21
  %v94 = vunpack.c.h.b16 %v21
  %v95 = vunpack.c.l.b16 %v22
  %v96 = vunpack.c.l.b16 %v23
  %v97 = vunpack.c.h.b16 %v23
  %v98 = vunpack.c.l.b16 %v24
  %v99 = vunpack.c.l.b16 %v25
  %v100 = vunpack.c.h.b16 %v25
  %v101 = vunpack.c.l.b16 %v26
  %v102 = vunpack.c.l.b16 %v27
  %v103 = vunpack.c.h.b16 %v27
  %v104 = vunpack.c.l.b16 %v28
  %v105 = vunpack.c.l.b16 %v29
  %v106 = vunpack.c.h.b16 %v29
  %v107 = vunpack.c.l.b16 %v30
  %v108 = vunpack.c.l.b16 %v31
  %v109 = vunpack.c.h.b16 %v31
  %v110 = vunpack.c.l.b16 %v32
  %v111 = vunpack.c.l.b16 %v33
  %v112 = vunpack.c.h.b16 %v33
  %v113 = vunpack.c.l.b16 %v34
  %v114 = vunpack.c.l.b16 %v35
  %v115 = vunpack.c.h.b16 %v35
  %v116 = vunpack.c.l.b16 %v36
  %v117 = vunpack.c.l.b16 %v37
  %v118 = vunpack.c.h.b16 %v37
  %v119 = vunpack.c.l.b16 %v38
  %v120 = vunpack.c.l.b16 %v39
  %v121 = vunpack.c.h.b16 %v39
  %v122 = vunpack.c.l.b16 %v40
  %v123 = vpack.c.b16 %v90, %v87
  %v124 = vpack.c.b16 %v91, %v88
  %v125 = vpack.c.b16 %v92, %v89
  %v126 = vpack.c.b16 %v96, %v93
  %v127 = vpack.c.b16 %v97, %v94
  %v128 = vpack.c.b16 %v98, %v95
  %v129 = vpack.c.b16 %v102, %v99
  %v130 = vpack.c.b16 %v103, %v100
  %v131 = vpack.c.b16 %v104, %v101
  %v132 = vpack.c.b16 %v108, %v105
  %v133 = vpack.c.b16 %v109, %v106
  %v134 = vpack.c.b16 %v110, %v107
  %v135 = vpack.c.b16 %v114, %v111
  %v136 = vpack.c.b16 %v115, %v112
  %v137 = vpack.c.b16 %v116, %v113
  %v138 = vpack.c.b16 %v120, %v117
  %v139 = vpack.c.b16 %v121, %v118
  %v140 = vpack.c.b16 %v122, %v119
  %vm159 = vcmask 785408
  %v161 = vsel %vm159, %v62, 0
  %163 = vmatprep.subr.bf16.mxu0 %v124
  %164 = vmatpush1.bf16.msra.mxu0 %v123
  %165 = vmatprep.subr.bf16.mxu0 %v127
  %166 = vmatpush1.bf16.msra.mxu0 %v126
  %167 = vmatprep.subr.bf16.mxu0 %v130
  %168 = vmatpush1.bf16.msra.mxu0 %v129
  %169 = vmatprep.subr.bf16.mxu0 %v133
  %170 = vmatpush1.bf16.msra.mxu0 %v132
  %171 = vmatprep.subr.bf16.mxu0 %v136
  %172 = vmatpush1.bf16.msra.mxu0 %v135
  %173 = vmatprep.subr.bf16.mxu0 %v139
  %174 = vmatpush1.bf16.msra.mxu0 %v138
  %175 = vmatprep.subr.bf16.mxu0 0
  %176 = vmatpush1.bf16.msra.mxu0 0
  %177 = vmatprep.subr.bf16.mxu0 0
  %178 = vmatpush1.bf16.msra.mxu0 0
  %179 = vmatprep.subr.bf16.mxu0 0
  %180 = vmatpush1.bf16.msra.mxu0 0
  %181 = vmatprep.subr.bf16.mxu0 0
  %182 = vmatpush1.bf16.msra.mxu0 0
  %183 = vmatprep.subr.bf16.mxu0 0
  %184 = vmatpush1.bf16.msra.mxu0 0
  %185 = vmatprep.subr.bf16.mxu0 0
  %186 = vmatpush1.bf16.msra.mxu0 0
  %187 = vmatprep.subr.bf16.mxu0 0
  %188 = vmatpush1.bf16.msra.mxu0 0
  %189 = vmatprep.subr.bf16.mxu0 0
  %190 = vmatpush1.bf16.msra.mxu0 0
  %191 = vmatprep.subr.bf16.mxu0 0
  %192 = vmatpush1.bf16.msra.mxu0 0
  %193 = vmatprep.subr.bf16.mxu0 0
  %194 = vmatpush1.bf16.msra.mxu0 0
  %195 = vmatprep.mubr.bf16.mxu0 0
  %196 = vmatmul.mubr.bf16.gmra.mrb[0].mxu0 %v161
  %v197 = vpop.f32.mrb[0].mxu0
  %v198 = vadd.f32 %v46, %v197
  %v199 = vpop.f32.mrb[0].mxu0
  %v200 = vadd.f32 %v50, %v199
  %v201 = vpop.f32.mrb[0].mxu0
  %v202 = vadd.f32 %v46, %v201
  %v203 = vpop.f32.mrb[0].mxu0
  %v204 = vadd.f32 %v50, %v203
  %205 = vdwg.mxu0
  %206 = vmatprep.subr.bf16.mxu0 0
  %207 = vmatpush1.bf16.msra.mxu0 %v125
  %208 = vmatprep.subr.bf16.mxu0 0
  %209 = vmatpush1.bf16.msra.mxu0 %v128
  %210 = vmatprep.subr.bf16.mxu0 0
  %211 = vmatpush1.bf16.msra.mxu0 %v131
  %212 = vmatprep.subr.bf16.mxu0 0
  %213 = vmatpush1.bf16.msra.mxu0 %v134
  %214 = vmatprep.subr.bf16.mxu0 0
  %215 = vmatpush1.bf16.msra.mxu0 %v137
  %216 = vmatprep.subr.bf16.mxu0 0
  %217 = vmatpush1.bf16.msra.mxu0 %v140
  %218 = vmatprep.subr.bf16.mxu0 0
  %219 = vmatpush1.bf16.msra.mxu0 0
  %220 = vmatprep.subr.bf16.mxu0 0
  %221 = vmatpush1.bf16.msra.mxu0 0
  %222 = vmatprep.subr.bf16.mxu0 0
  %223 = vmatpush1.bf16.msra.mxu0 0
  %224 = vmatprep.subr.bf16.mxu0 0
  %225 = vmatpush1.bf16.msra.mxu0 0
  %226 = vmatprep.subr.bf16.mxu0 0
  %227 = vmatpush1.bf16.msra.mxu0 0
  %228 = vmatprep.subr.bf16.mxu0 0
  %229 = vmatpush1.bf16.msra.mxu0 0
  %230 = vmatprep.subr.bf16.mxu0 0
  %231 = vmatpush1.bf16.msra.mxu0 0
  %232 = vmatprep.subr.bf16.mxu0 0
  %233 = vmatpush1.bf16.msra.mxu0 0
  %234 = vmatprep.subr.bf16.mxu0 0
  %235 = vmatpush1.bf16.msra.mxu0 0
  %236 = vmatprep.subr.bf16.mxu0 0
  %237 = vmatpush1.bf16.msra.mxu0 0
  %238 = vmatprep.mubr.bf16.mxu0 0
  %239 = vmatmul.mubr.bf16.gmra.mrb[0].mxu0 %v161
  %v240 = vpop.f32.mrb[0].mxu0
  %v241 = vadd.f32 %v54, %v240
  %v242 = vpop.f32.mrb[0].mxu0
  %v243 = vpop.f32.mrb[0].mxu0
  %v244 = vadd.f32 %v54, %v243
  %v245 = vpop.f32.mrb[0].mxu0
  %246 = vdwg.mxu0
  %247 = vst [vmem:[%s3] sm:$0xff] %v198
  %248 = vst [vmem:[%s3 + $0x8] sm:$0xff] %v200
  %249 = vst [vmem:[%s3 + $0x10] sm:$0xff] %v241
  %250 = vst [vmem:[%s3 + $0x18] sm:$0xff] %v202
  %251 = vst [vmem:[%s3 + $0x20] sm:$0xff] %v204
  %252 = vst [vmem:[%s3 + $0x28] sm:$0xff] %v244
  // Predicated region
  $region14: #{estimation_stage_forward.27} parent=0 // pred_check
    _
  $region15: #{estimation_stage_forward.27} parent=0 // pred_check_branch
    %254 = sbr.rel (0) target = $region17
  $region16: #{estimation_stage_forward.27} parent=0 // pred_region
    _
  $region17: #{estimation_stage_forward.27} parent=0 // pred_fallthru
    _
  // Predicated region
  $region18: #{estimation_stage_forward.27} parent=0 // pred_check
    _
  $region19: #{estimation_stage_forward.27} parent=0 // pred_check_branch
    %256 = sbr.rel (0) target = $region21
  $region20: #{estimation_stage_forward.27} parent=0 // pred_region
    _
  $region21: #{estimation_stage_forward.27} parent=0 // pred_fallthru
    _

// kernel: estimation_stage_forward.28
$region0: #{estimation_stage_forward.28}
  #allocation0 [shape = 'u32[]', space=smem, size = 0x4, offset = 0x4, fixed_abs, tag = 'smem constant byte address 0x4 - core index']
  #allocation1 [shape = 'u32[144,128]{1,0:T(1,128)}', space=vmem, size = 0x12000, scoped, tag = 'internal scratch']
  %s0 = inlined_call_operand.vmem [shape: f32[5,2,384], index: 0, kind: input, shape index: {}]
  %s1 = inlined_call_operand.vmem [shape: f32[96,384], index: 1, kind: input, shape index: {}]
  %s2 = inlined_call_operand.vmem [shape: f32[5,2,96], index: 2, kind: output, shape index: {}]
  %s3 = sld [smem:[#allocation0]]
  $region25: #{estimation_stage_forward.28} parent=0
    _
  %s5 = ssub.s32 1, %s3
  %s6 = scalar_select 0, %s5, %s3
  // Predicated region
  $region2: #{estimation_stage_forward.28} parent=0 // pred_check
    _
  $region3: #{estimation_stage_forward.28} parent=0 // pred_check_branch
    %8 = sbr.rel (0) target = $region5
  $region4: #{estimation_stage_forward.28} parent=0 // pred_region
    _
  $region5: #{estimation_stage_forward.28} parent=0 // pred_fallthru
    _
  // Predicated region
  $region6: #{estimation_stage_forward.28} parent=0 // pred_check
    _
  $region7: #{estimation_stage_forward.28} parent=0 // pred_check_branch
    %10 = sbr.rel (0) target = $region9
  $region8: #{estimation_stage_forward.28} parent=0 // pred_region
    _
  $region9: #{estimation_stage_forward.28} parent=0 // pred_fallthru
    _
  %v11 = vld [vmem:[%s1] sm:$0xff]
  %v12 = vld [vmem:[%s1 + $0x8] sm:$0xff]
  %v13 = vld [vmem:[%s1 + $0x10] sm:$0xff]
  %v14 = vld [vmem:[%s1 + $0x18] sm:$0xff]
  %v15 = vld [vmem:[%s1 + $0x20] sm:$0xff]
  %v16 = vld [vmem:[%s1 + $0x28] sm:$0xff]
  %v17 = vld [vmem:[%s1 + $0x30] sm:$0xff]
  %v18 = vld [vmem:[%s1 + $0x38] sm:$0xff]
  %v19 = vld [vmem:[%s1 + $0x40] sm:$0xff]
  %v20 = vld [vmem:[%s1 + $0x48] sm:$0xff]
  %v21 = vld [vmem:[%s1 + $0x50] sm:$0xff]
  %v22 = vld [vmem:[%s1 + $0x58] sm:$0xff]
  %v23 = vld [vmem:[%s1 + $0x60] sm:$0xff]
  %v24 = vld [vmem:[%s1 + $0x68] sm:$0xff]
  %v25 = vld [vmem:[%s1 + $0x70] sm:$0xff]
  %v26 = vld [vmem:[%s1 + $0x78] sm:$0xff]
  %v27 = vld [vmem:[%s1 + $0x80] sm:$0xff]
  %v28 = vld [vmem:[%s1 + $0x88] sm:$0xff]
  %v29 = vld [vmem:[%s1 + $0x90] sm:$0xff]
  %v30 = vld [vmem:[%s1 + $0x98] sm:$0xff]
  %v31 = vld [vmem:[%s1 + $0xa0] sm:$0xff]
  %v32 = vld [vmem:[%s1 + $0xa8] sm:$0xff]
  %v33 = vld [vmem:[%s1 + $0xb0] sm:$0xff]
  %v34 = vld [vmem:[%s1 + $0xb8] sm:$0xff]
  %v35 = vld [vmem:[%s1 + $0xc0] sm:$0xff]
  %v36 = vld [vmem:[%s1 + $0xc8] sm:$0xff]
  %v37 = vld [vmem:[%s1 + $0xd0] sm:$0xff]
  %v38 = vld [vmem:[%s1 + $0xd8] sm:$0xff]
  %v39 = vld [vmem:[%s1 + $0xe0] sm:$0xff]
  %v40 = vld [vmem:[%s1 + $0xe8] sm:$0xff]
  %v41 = vld [vmem:[%s1 + $0xf0] sm:$0xff]
  %v42 = vld [vmem:[%s1 + $0xf8] sm:$0xff]
  %v43 = vld [vmem:[%s1 + $0x100] sm:$0xff]
  %v44 = vld [vmem:[%s1 + $0x108] sm:$0xff]
  %v45 = vld [vmem:[%s1 + $0x110] sm:$0xff]
  %v46 = vld [vmem:[%s1 + $0x118] sm:$0xff]
  loop: start=0, step=1, limit=5
  $region10: #{estimation_stage_forward.28} parent=0 // loop_pre_header
    _
  $region11: #{estimation_stage_forward.28} parent=0 // loop_header
    %s48 = sphi 0, %s52
    %p49 = scmp.ge.s32.totalorder %s48, 5
    %v53 = vphi 0.0, %v267
    %v54 = vphi 0.0, %v258
  $region12: #{estimation_stage_forward.28} parent=0 // loop_header_branch
    %51 = sbr.rel (%p49) target = $region16
  $region13: #{estimation_stage_forward.28} parent=0 // loop_body
    %s55 = smul.u32 %s48, 3
    %s56 = smul.addr %s55, 2
    %s57 = scalar_lea.vmem %s0, %s56
    %v58 = vld [vmem:[%s57] sm:$0x3f]
    %vm59 = vcmask 785408
    %v61 = vsel %vm59, %v53, 0
    %63 = vmatprep.subr.mxu0 %v12
    %64 = vmatpush1.msra.mxu0 %v11
    %65 = vmatprep.subr.mxu0 %v15
    %66 = vmatpush1.msra.mxu0 %v14
    %67 = vmatprep.subr.mxu0 %v18
    %68 = vmatpush1.msra.mxu0 %v17
    %69 = vmatprep.subr.mxu0 %v21
    %70 = vmatpush1.msra.mxu0 %v20
    %71 = vmatprep.subr.mxu0 %v24
    %72 = vmatpush1.msra.mxu0 %v23
    %73 = vmatprep.subr.mxu0 %v27
    %74 = vmatpush1.msra.mxu0 %v26
    %75 = vmatprep.subr.mxu0 %v30
    %76 = vmatpush1.msra.mxu0 %v29
    %77 = vmatprep.subr.mxu0 %v33
    %78 = vmatpush1.msra.mxu0 %v32
    %79 = vmatprep.subr.mxu0 %v36
    %80 = vmatpush1.msra.mxu0 %v35
    %81 = vmatprep.subr.mxu0 %v39
    %82 = vmatpush1.msra.mxu0 %v38
    %83 = vmatprep.subr.mxu0 %v42
    %84 = vmatpush1.msra.mxu0 %v41
    %85 = vmatprep.subr.mxu0 %v45
    %86 = vmatpush1.msra.mxu0 %v44
    %87 = vmatprep.subr.mxu0 0.0
    %88 = vmatpush1.msra.mxu0 0.0
    %89 = vmatprep.subr.mxu0 0.0
    %90 = vmatpush1.msra.mxu0 0.0
    %91 = vmatprep.subr.mxu0 0.0
    %92 = vmatpush1.msra.mxu0 0.0
    %93 = vmatprep.subr.mxu0 0.0
    %94 = vmatpush1.msra.mxu0 0.0
    %95 = vmatprep.subr.mxu0 0.0
    %96 = vmatpush1.msra.mxu0 0.0
    %97 = vmatprep.subr.mxu0 0.0
    %98 = vmatpush1.msra.mxu0 0.0
    %99 = vmatprep.subr.mxu0 0.0
    %100 = vmatpush1.msra.mxu0 0.0
    %101 = vmatprep.subr.mxu0 0.0
    %102 = vmatpush1.msra.mxu0 0.0
    %103 = vmatprep.subr.mxu0 0.0
    %104 = vmatpush1.msra.mxu0 0.0
    %105 = vmatprep.subr.mxu0 0.0
    %106 = vmatpush1.msra.mxu0 0.0
    %107 = vmatprep.subr.mxu0 0.0
    %108 = vmatpush1.msra.mxu0 0.0
    %109 = vmatprep.subr.mxu0 0.0
    %110 = vmatpush1.msra.mxu0 0.0
    %111 = vmatprep.subr.mxu0 0.0
    %112 = vmatpush1.msra.mxu0 0.0
    %113 = vmatprep.subr.mxu0 0.0
    %114 = vmatpush1.msra.mxu0 0.0
    %115 = vmatprep.subr.mxu0 0.0
    %116 = vmatpush1.msra.mxu0 0.0
    %117 = vmatprep.subr.mxu0 0.0
    %118 = vmatpush1.msra.mxu0 0.0
    %119 = vmatprep.subr.mxu0 0.0
    %120 = vmatpush1.msra.mxu0 0.0
    %121 = vmatprep.subr.mxu0 0.0
    %122 = vmatpush1.msra.mxu0 0.0
    %123 = vmatprep.subr.mxu0 0.0
    %124 = vmatpush1.msra.mxu0 0.0
    %125 = vmatprep.subr.mxu0 0.0
    %126 = vmatpush1.msra.mxu0 0.0
    %127 = vmatprep.mubr.f32.mxu0 0.0
    %128 = vmatmul.mubr.f32.gmra.mrb[0].mxu0 %v61
    %v129 = vpop.f32.mrb[0].mxu0
    %v130 = vadd.f32 0.0, %v129
    %v131 = vpop.f32.mrb[0].mxu0
    %v132 = vadd.f32 0.0, %v131
    %133 = vdwg.mxu0
    %134 = vmatprep.subr.mxu0 0.0
    %135 = vmatpush1.msra.mxu0 %v13
    %136 = vmatprep.subr.mxu0 0.0
    %137 = vmatpush1.msra.mxu0 %v16
    %138 = vmatprep.subr.mxu0 0.0
    %139 = vmatpush1.msra.mxu0 %v19
    %140 = vmatprep.subr.mxu0 0.0
    %141 = vmatpush1.msra.mxu0 %v22
    %142 = vmatprep.subr.mxu0 0.0
    %143 = vmatpush1.msra.mxu0 %v25
    %144 = vmatprep.subr.mxu0 0.0
    %145 = vmatpush1.msra.mxu0 %v28
    %146 = vmatprep.subr.mxu0 0.0
    %147 = vmatpush1.msra.mxu0 %v31
    %148 = vmatprep.subr.mxu0 0.0
    %149 = vmatpush1.msra.mxu0 %v34
    %150 = vmatprep.subr.mxu0 0.0
    %151 = vmatpush1.msra.mxu0 %v37
    %152 = vmatprep.subr.mxu0 0.0
    %153 = vmatpush1.msra.mxu0 %v40
    %154 = vmatprep.subr.mxu0 0.0
    %155 = vmatpush1.msra.mxu0 %v43
    %156 = vmatprep.subr.mxu0 0.0
    %157 = vmatpush1.msra.mxu0 %v46
    %158 = vmatprep.subr.mxu0 0.0
    %159 = vmatpush1.msra.mxu0 0.0
    %160 = vmatprep.subr.mxu0 0.0
    %161 = vmatpush1.msra.mxu0 0.0
    %162 = vmatprep.subr.mxu0 0.0
    %163 = vmatpush1.msra.mxu0 0.0
    %164 = vmatprep.subr.mxu0 0.0
    %165 = vmatpush1.msra.mxu0 0.0
    %166 = vmatprep.subr.mxu0 0.0
    %167 = vmatpush1.msra.mxu0 0.0
    %168 = vmatprep.subr.mxu0 0.0
    %169 = vmatpush1.msra.mxu0 0.0
    %170 = vmatprep.subr.mxu0 0.0
    %171 = vmatpush1.msra.mxu0 0.0
    %172 = vmatprep.subr.mxu0 0.0
    %173 = vmatpush1.msra.mxu0 0.0
    %174 = vmatprep.subr.mxu0 0.0
    %175 = vmatpush1.msra.mxu0 0.0
    %176 = vmatprep.subr.mxu0 0.0
    %177 = vmatpush1.msra.mxu0 0.0
    %178 = vmatprep.subr.mxu0 0.0
    %179 = vmatpush1.msra.mxu0 0.0
    %180 = vmatprep.subr.mxu0 0.0
    %181 = vmatpush1.msra.mxu0 0.0
    %182 = vmatprep.subr.mxu0 0.0
    %183 = vmatpush1.msra.mxu0 0.0
    %184 = vmatprep.subr.mxu0 0.0
    %185 = vmatpush1.msra.mxu0 0.0
    %186 = vmatprep.subr.mxu0 0.0
    %187 = vmatpush1.msra.mxu0 0.0
    %188 = vmatprep.subr.mxu0 0.0
    %189 = vmatpush1.msra.mxu0 0.0
    %190 = vmatprep.subr.mxu0 0.0
    %191 = vmatpush1.msra.mxu0 0.0
    %192 = vmatprep.subr.mxu0 0.0
    %193 = vmatpush1.msra.mxu0 0.0
    %194 = vmatprep.subr.mxu0 0.0
    %195 = vmatpush1.msra.mxu0 0.0
    %196 = vmatprep.subr.mxu0 0.0
    %197 = vmatpush1.msra.mxu0 0.0
    %198 = vmatprep.mubr.f32.mxu0 0.0
    %199 = vmatmul.mubr.f32.gmra.mrb[0].mxu0 %v61
    %v200 = vpop.f32.mrb[0].mxu0
    %v201 = vadd.f32 0.0, %v200
    %v202 = vpop.f32.mrb[0].mxu0
    %203 = vdwg.mxu0
    %v207 = vcombine.low %v130, %v132
    %v209 = vunpack.c.l.s4 1983009808
    %v210 = vunpack.c.0.s8 %v209
    %v211 = vlaneseq
    %v212 = vshrl.u32 %v211, 7
    %v213 = vsub.s32 %v210, %v212
    %v214 = vrot.slane %v207, %v213
    %v216 = vunpack.c.l.s4 1983009808
    %v217 = vunpack.c.0.s8 %v216
    %v218 = vlaneseq
    %v219 = vshrl.u32 %v218, 7
    %v220 = vsub.s32 %v217, %v219
    %v221 = vrot.slane %v201, %v220
    %v222 = vcombine.low %v214, %v221
    %v224 = vadd.f32 %v58, %v222
    %v225 = vxor.u32 %v224, 2147483648
    %v226 = vmul.f32 %v225, 1.442695
    %v227 = vpow.pop %v226
    %v228 = vadd.f32 %v227, 1.0
    %v229 = vrcp.pop %v228
    %v230 = vmul.f32 1.0, %v229
    %232 = vrot.lane.b32.xlu0 %v224, 64
    %v233 = vpop.permute.xlu0 %232
    %v234 = vrot.slane %v233, 2
    %v235 = vrot.slane %v233, 4
    %vm236 = vcmask 523264
    %v237 = vsel %vm236, %v234, %v235
    %v239 = vtanh.pop %v237
    %240 = vrot.lane.b32.xlu0 %v224, 96
    %v241 = vpop.permute.xlu0 %240
    %v242 = vrot.slane %v241, 4
    %v244 = vxor.u32 %v242, 2147483648
    %v245 = vmul.f32 %v244, 1.442695
    %v246 = vpow.pop %v245
    %v247 = vadd.f32 %v246, 1.0
    %v248 = vrcp.pop %v247
    %v249 = vmul.f32 1.0, %v248
    %v250 = vmul.f32 %v230, %v54
    %v251 = vmul.f32 %v230, %v239
    %253 = vrot.lane.b32.xlu0 %v251, 96
    %v254 = vpop.permute.xlu0 %253
    %v255 = vrot.slane %v254, 6
    %v256 = vsel %vm59, %v255, %v254
    %v258 = vadd.f32 %v250, %v256
    %v259 = vtanh.pop %v258
    %261 = vrot.lane.b32.xlu0 %v259, 32
    %v262 = vpop.permute.xlu0 %261
    %v263 = vrot.slane %v262, 2
    %vm264 = vcmask 261120
    %v265 = vsel %vm264, %v262, %v263
    %v267 = vmul.f32 %v249, %v265
    %s268 = smul.u32 %s48, 2
    %s269 = scalar_lea.vmem %s2, %s268
    %vm270 = vcmask 779264
    %271 = vst.msk [vmem:[%s269] sm:$0x3] %vm270, %v267
  $region14: #{estimation_stage_forward.28} parent=0 // loop_footer
    %s52 = sadd.s32 1, %s48
  $region15: #{estimation_stage_forward.28} parent=0 // loop_footer_branch
    %47 = sbr.rel target = $region11
  $region16: #{estimation_stage_forward.28} parent=0 // loop_exit
    _
  // Predicated region
  $region17: #{estimation_stage_forward.28} parent=0 // pred_check
    _
  $region18: #{estimation_stage_forward.28} parent=0 // pred_check_branch
    %273 = sbr.rel (0) target = $region20
  $region19: #{estimation_stage_forward.28} parent=0 // pred_region
    _
  $region20: #{estimation_stage_forward.28} parent=0 // pred_fallthru
    _
  // Predicated region
  $region21: #{estimation_stage_forward.28} parent=0 // pred_check
    _
  $region22: #{estimation_stage_forward.28} parent=0 // pred_check_branch
    %275 = sbr.rel (0) target = $region24
  $region23: #{estimation_stage_forward.28} parent=0 // pred_region
    _
  $region24: #{estimation_stage_forward.28} parent=0 // pred_fallthru
    _

// kernel: estimation_stage_forward.34
$region0: #{estimation_stage_forward.34}
  #allocation0 [shape = 'u32[]', space=smem, size = 0x4, offset = 0x4, fixed_abs, tag = 'smem constant byte address 0x4 - core index']
  #allocation1 [shape = 'u32[144,128]{1,0:T(1,128)}', space=vmem, size = 0x12000, scoped, tag = 'internal scratch']
  #allocation2 [shape = 'f32[32,96]{1,0:T(8,128)}', space=vmem, size = 0x4000, scoped, tag = 'scratch operand']
  #allocation3 [shape = 'f32[1]{0:T(128)S(6)}', space=smem, size = 0x200, scoped, tag = 'scoped memory for estimation_stage_forward.34']
  %s0 = inlined_call_operand.<no memory space> [shape: f32[1], index: 0, kind: input, shape index: {}]
  %s1 = inlined_call_operand.vmem [shape: f32[3,96], index: 1, kind: input, shape index: {}]
  %s2 = inlined_call_operand.vmem [shape: bf16[96,48], index: 2, kind: input, shape index: {}]
  %s3 = inlined_call_operand.vmem [shape: f32[1,48], index: 3, kind: input, shape index: {}]
  %s4 = inlined_call_operand.vmem [shape: f32[2,16,96], index: 4, kind: input, shape index: {}]
  %s5 = inlined_call_operand.vmem [shape: f32[2,16,48], index: 5, kind: output, shape index: {}]
  %s6 = sld [smem:[#allocation0]]
  $region30: #{estimation_stage_forward.34} parent=0
    _
  %s8 = ssub.s32 1, %s6
  %s9 = scalar_select 0, %s8, %s6
  %10 = sst [smem:[#allocation3]] %s0
  // Predicated region
  $region2: #{estimation_stage_forward.34} parent=0 // pred_check
    _
  $region3: #{estimation_stage_forward.34} parent=0 // pred_check_branch
    %12 = sbr.rel (0) target = $region5
  $region4: #{estimation_stage_forward.34} parent=0 // pred_region
    _
  $region5: #{estimation_stage_forward.34} parent=0 // pred_fallthru
    _
  // Predicated region
  $region6: #{estimation_stage_forward.34} parent=0 // pred_check
    _
  $region7: #{estimation_stage_forward.34} parent=0 // pred_check_branch
    %14 = sbr.rel (0) target = $region9
  $region8: #{estimation_stage_forward.34} parent=0 // pred_region
    _
  $region9: #{estimation_stage_forward.34} parent=0 // pred_fallthru
    _
  // Predicated region
  $region10: #{estimation_stage_forward.34} parent=0 // pred_check
    _
  $region11: #{estimation_stage_forward.34} parent=0 // pred_check_branch
    %16 = sbr.rel (0) target = $region13
  $region12: #{estimation_stage_forward.34} parent=0 // pred_region
    _
  $region13: #{estimation_stage_forward.34} parent=0 // pred_fallthru
    _
  // Predicated region
  $region14: #{estimation_stage_forward.34} parent=0 // pred_check
    _
  $region15: #{estimation_stage_forward.34} parent=0 // pred_check_branch
    %18 = sbr.rel (0) target = $region17
  $region16: #{estimation_stage_forward.34} parent=0 // pred_region
    _
  $region17: #{estimation_stage_forward.34} parent=0 // pred_fallthru
    _
  // Predicated region
  $region18: #{estimation_stage_forward.34} parent=0 // pred_check
    _
  $region19: #{estimation_stage_forward.34} parent=0 // pred_check_branch
    %20 = sbr.rel (0) target = $region21
  $region20: #{estimation_stage_forward.34} parent=0 // pred_region
    _
  $region21: #{estimation_stage_forward.34} parent=0 // pred_fallthru
    _
  %v22 = vld [vmem:[%s2] sm:$0xf]
  %v23 = vld [vmem:[%s2 + $0x4] sm:$0xf]
  %v24 = vld [vmem:[%s2 + $0x8] sm:$0xf]
  %v25 = vld [vmem:[%s2 + $0xc] sm:$0xf]
  %v26 = vld [vmem:[%s2 + $0x10] sm:$0xf]
  %v27 = vld [vmem:[%s2 + $0x14] sm:$0xf]
  %v28 = vld [vmem:[%s2 + $0x18] sm:$0xf]
  %v29 = vld [vmem:[%s2 + $0x1c] sm:$0xf]
  %v30 = vld [vmem:[%s2 + $0x20] sm:$0xf]
  %v31 = vld [vmem:[%s2 + $0x24] sm:$0xf]
  %v32 = vld [vmem:[%s2 + $0x28] sm:$0xf]
  %v33 = vld [vmem:[%s2 + $0x2c] sm:$0xf]
  %v34 = vld [vmem:[%s3] sm:$0x1]
  %v35 = vld [vmem:[%s1] sm:$0x1]
  %v36 = vld [vmem:[%s1 + $0x1] sm:$0x1]
  %v37 = vld [vmem:[%s1 + $0x2] sm:$0x1]
  %s38 = sld [smem:[#allocation3]]
  %v39 = vld [vmem:[%s4] sm:$0xff]
  %v40 = vld [vmem:[%s4 + $0x8] sm:$0xff]
  %v41 = vstv %s38
  %v42 = vmul.f32 %v41, %v39
  %v43 = vmul.f32 %v41, %v40
  %vm44 = vcmask 785408
  %45 = vst.msk [vmem:[#allocation2] sm:$0xff] %vm44, 0.0
  %46 = vst.msk [vmem:[#allocation2 + $0x8] sm:$0xff] %vm44, 0.0
  %47 = vst.msk [vmem:[#allocation2 + $0x10] sm:$0xff] %vm44, 0.0
  %48 = vst.msk [vmem:[#allocation2 + $0x18] sm:$0xff] %vm44, 0.0
  %49 = vst.msk [vmem:[#allocation2 + $0x8] sm:$0xff] %vm44, %v42
  %50 = vst.msk [vmem:[#allocation2 + $0x10] sm:$0xff] %vm44, %v43
  %v51 = vld [vmem:[#allocation2 + $0x7] sm:$0xff]
  %v52 = vld [vmem:[#allocation2 + $0xf] sm:$0xff]
  %v53 = vlaneseq
  %v54 = vshrl.u32 %v53, 7
  %v55 = vsub.s32 0, %v54
  %v56 = vrot.slane %v35, %v55
  %v57 = vmul.f32 %v56, %v51
  %v58 = vmul.f32 %v56, %v52
  %v59 = vlaneseq
  %v60 = vshrl.u32 %v59, 7
  %v61 = vsub.s32 0, %v60
  %v62 = vrot.slane %v36, %v61
  %v63 = vmul.f32 %v62, %v42
  %v64 = vmul.f32 %v62, %v43
  %v65 = vadd.f32 %v57, %v63
  %v66 = vadd.f32 %v58, %v64
  %v67 = vld [vmem:[#allocation2 + $0x9] sm:$0xff]
  %v68 = vld [vmem:[#allocation2 + $0x11] sm:$0xff]
  %v69 = vlaneseq
  %v70 = vshrl.u32 %v69, 7
  %v71 = vsub.s32 0, %v70
  %v72 = vrot.slane %v37, %v71
  %v73 = vmul.f32 %v72, %v67
  %v74 = vmul.f32 %v72, %v68
  %v75 = vadd.f32 %v65, %v73
  %v76 = vadd.f32 %v66, %v74
  %v77 = vpack.c.bf16 %v76, %v75
  %v79 = vlaneseq
  %v80 = vshrl.u32 %v79, 7
  %v81 = vsub.s32 0, %v80
  %v82 = vrot.slane %v34, %v81
  %v96 = vunpack.c.l.b16 %v22
  %v97 = vunpack.c.l.b16 %v23
  %v98 = vunpack.c.l.b16 %v24
  %v99 = vunpack.c.l.b16 %v25
  %v100 = vunpack.c.l.b16 %v26
  %v101 = vunpack.c.l.b16 %v27
  %v102 = vunpack.c.l.b16 %v28
  %v103 = vunpack.c.l.b16 %v29
  %v104 = vunpack.c.l.b16 %v30
  %v105 = vunpack.c.l.b16 %v31
  %v106 = vunpack.c.l.b16 %v32
  %v107 = vunpack.c.l.b16 %v33
  %v108 = vpack.c.b16 %v97, %v96
  %v109 = vpack.c.b16 %v99, %v98
  %v110 = vpack.c.b16 %v101, %v100
  %v111 = vpack.c.b16 %v103, %v102
  %v112 = vpack.c.b16 %v105, %v104
  %v113 = vpack.c.b16 %v107, %v106
  %v121 = vsel %vm44, %v77, 0
  %123 = vmatprep.subr.bf16.mxu0 0
  %124 = vmatpush1.bf16.msra.mxu0 %v108
  %125 = vmatprep.subr.bf16.mxu0 0
  %126 = vmatpush1.bf16.msra.mxu0 %v109
  %127 = vmatprep.subr.bf16.mxu0 0
  %128 = vmatpush1.bf16.msra.mxu0 %v110
  %129 = vmatprep.subr.bf16.mxu0 0
  %130 = vmatpush1.bf16.msra.mxu0 %v111
  %131 = vmatprep.subr.bf16.mxu0 0
  %132 = vmatpush1.bf16.msra.mxu0 %v112
  %133 = vmatprep.subr.bf16.mxu0 0
  %134 = vmatpush1.bf16.msra.mxu0 %v113
  %135 = vmatprep.subr.bf16.mxu0 0
  %136 = vmatpush1.bf16.msra.mxu0 0
  %137 = vmatprep.subr.bf16.mxu0 0
  %138 = vmatpush1.bf16.msra.mxu0 0
  %139 = vmatprep.subr.bf16.mxu0 0
  %140 = vmatpush1.bf16.msra.mxu0 0
  %141 = vmatprep.subr.bf16.mxu0 0
  %142 = vmatpush1.bf16.msra.mxu0 0
  %143 = vmatprep.subr.bf16.mxu0 0
  %144 = vmatpush1.bf16.msra.mxu0 0
  %145 = vmatprep.subr.bf16.mxu0 0
  %146 = vmatpush1.bf16.msra.mxu0 0
  %147 = vmatprep.subr.bf16.mxu0 0
  %148 = vmatpush1.bf16.msra.mxu0 0
  %149 = vmatprep.subr.bf16.mxu0 0
  %150 = vmatpush1.bf16.msra.mxu0 0
  %151 = vmatprep.subr.bf16.mxu0 0
  %152 = vmatpush1.bf16.msra.mxu0 0
  %153 = vmatprep.subr.bf16.mxu0 0
  %154 = vmatpush1.bf16.msra.mxu0 0
  %155 = vmatprep.mubr.bf16.mxu0 0
  %156 = vmatmul.mubr.bf16.gmra.mrb[0].mxu0 %v121
  %v157 = vpop.f32.mrb[0].mxu0
  %v158 = vadd.f32 %v82, %v157
  %v159 = vpop.f32.mrb[0].mxu0
  %v160 = vpop.f32.mrb[0].mxu0
  %v161 = vadd.f32 %v82, %v160
  %v162 = vpop.f32.mrb[0].mxu0
  %163 = vdwg.mxu0
  %v164 = vmul.f32 %v158, 0.9995004
  %v165 = vmul.f32 %v161, 0.9995004
  %vm166 = vcmask 392192
  %167 = vst.msk [vmem:[%s5] sm:$0xff] %vm166, %v164
  %168 = vst.msk [vmem:[%s5 + $0x8] sm:$0xff] %vm166, %v165
  %s169 = sld [smem:[#allocation3]]
  %s170 = scalar_lea.vmem %s4, 16
  %v171 = vld [vmem:[%s170] sm:$0xff]
  %v172 = vld [vmem:[%s170 + $0x8] sm:$0xff]
  %v173 = vstv %s169
  %v174 = vmul.f32 %v173, %v171
  %v175 = vmul.f32 %v173, %v172
  %176 = vst.msk [vmem:[#allocation2] sm:$0xff] %vm44, 0.0
  %177 = vst.msk [vmem:[#allocation2 + $0x8] sm:$0xff] %vm44, 0.0
  %178 = vst.msk [vmem:[#allocation2 + $0x10] sm:$0xff] %vm44, 0.0
  %179 = vst.msk [vmem:[#allocation2 + $0x18] sm:$0xff] %vm44, 0.0
  %180 = vst.msk [vmem:[#allocation2 + $0x8] sm:$0xff] %vm44, %v174
  %181 = vst.msk [vmem:[#allocation2 + $0x10] sm:$0xff] %vm44, %v175
  %v182 = vld [vmem:[#allocation2 + $0x7] sm:$0xff]
  %v183 = vld [vmem:[#allocation2 + $0xf] sm:$0xff]
  %v184 = vmul.f32 %v56, %v182
  %v185 = vmul.f32 %v56, %v183
  %v186 = vmul.f32 %v62, %v174
  %v187 = vmul.f32 %v62, %v175
  %v188 = vadd.f32 %v184, %v186
  %v189 = vadd.f32 %v185, %v187
  %v190 = vld [vmem:[#allocation2 + $0x9] sm:$0xff]
  %v191 = vld [vmem:[#allocation2 + $0x11] sm:$0xff]
  %v192 = vmul.f32 %v72, %v190
  %v193 = vmul.f32 %v72, %v191
  %v194 = vadd.f32 %v188, %v192
  %v195 = vadd.f32 %v189, %v193
  %v196 = vpack.c.bf16 %v195, %v194
  %v198 = vsel %vm44, %v196, 0
  %200 = vmatprep.subr.bf16.mxu0 0
  %201 = vmatpush1.bf16.msra.mxu0 %v108
  %202 = vmatprep.subr.bf16.mxu0 0
  %203 = vmatpush1.bf16.msra.mxu0 %v109
  %204 = vmatprep.subr.bf16.mxu0 0
  %205 = vmatpush1.bf16.msra.mxu0 %v110
  %206 = vmatprep.subr.bf16.mxu0 0
  %207 = vmatpush1.bf16.msra.mxu0 %v111
  %208 = vmatprep.subr.bf16.mxu0 0
  %209 = vmatpush1.bf16.msra.mxu0 %v112
  %210 = vmatprep.subr.bf16.mxu0 0
  %211 = vmatpush1.bf16.msra.mxu0 %v113
  %212 = vmatprep.subr.bf16.mxu0 0
  %213 = vmatpush1.bf16.msra.mxu0 0
  %214 = vmatprep.subr.bf16.mxu0 0
  %215 = vmatpush1.bf16.msra.mxu0 0
  %216 = vmatprep.subr.bf16.mxu0 0
  %217 = vmatpush1.bf16.msra.mxu0 0
  %218 = vmatprep.subr.bf16.mxu0 0
  %219 = vmatpush1.bf16.msra.mxu0 0
  %220 = vmatprep.subr.bf16.mxu0 0
  %221 = vmatpush1.bf16.msra.mxu0 0
  %222 = vmatprep.subr.bf16.mxu0 0
  %223 = vmatpush1.bf16.msra.mxu0 0
  %224 = vmatprep.subr.bf16.mxu0 0
  %225 = vmatpush1.bf16.msra.mxu0 0
  %226 = vmatprep.subr.bf16.mxu0 0
  %227 = vmatpush1.bf16.msra.mxu0 0
  %228 = vmatprep.subr.bf16.mxu0 0
  %229 = vmatpush1.bf16.msra.mxu0 0
  %230 = vmatprep.subr.bf16.mxu0 0
  %231 = vmatpush1.bf16.msra.mxu0 0
  %232 = vmatprep.mubr.bf16.mxu0 0
  %233 = vmatmul.mubr.bf16.gmra.mrb[0].mxu0 %v198
  %v234 = vpop.f32.mrb[0].mxu0
  %v235 = vadd.f32 %v82, %v234
  %v236 = vpop.f32.mrb[0].mxu0
  %v237 = vpop.f32.mrb[0].mxu0
  %v238 = vadd.f32 %v82, %v237
  %v239 = vpop.f32.mrb[0].mxu0
  %240 = vdwg.mxu0
  %v241 = vmul.f32 %v235, 0.9995004
  %v242 = vmul.f32 %v238, 0.9995004
  %s243 = scalar_lea.vmem %s5, 16
  %244 = vst.msk [vmem:[%s243] sm:$0xff] %vm166, %v241
  %245 = vst.msk [vmem:[%s243 + $0x8] sm:$0xff] %vm166, %v242
  // Predicated region
  $region22: #{estimation_stage_forward.34} parent=0 // pred_check
    _
  $region23: #{estimation_stage_forward.34} parent=0 // pred_check_branch
    %247 = sbr.rel (0) target = $region25
  $region24: #{estimation_stage_forward.34} parent=0 // pred_region
    _
  $region25: #{estimation_stage_forward.34} parent=0 // pred_fallthru
    _
  // Predicated region
  $region26: #{estimation_stage_forward.34} parent=0 // pred_check
    _
  $region27: #{estimation_stage_forward.34} parent=0 // pred_check_branch
    %249 = sbr.rel (0) target = $region29
  $region28: #{estimation_stage_forward.34} parent=0 // pred_region
    _
  $region29: #{estimation_stage_forward.34} parent=0 // pred_fallthru
    _

// kernel: estimation_stage_forward.35
$region0: #{estimation_stage_forward.35}
  #allocation0 [shape = 'u32[]', space=smem, size = 0x4, offset = 0x4, fixed_abs, tag = 'smem constant byte address 0x4 - core index']
  #allocation1 [shape = 'u32[144,128]{1,0:T(1,128)}', space=vmem, size = 0x12000, scoped, tag = 'internal scratch']
  #allocation2 [shape = 'f32[32,48]{1,0:T(8,128)}', space=vmem, size = 0x4000, scoped, tag = 'scratch operand']
  %s0 = inlined_call_operand.vmem [shape: f32[2], index: 0, kind: input, shape index: {}]
  %s1 = inlined_call_operand.vmem [shape: f32[3,48], index: 1, kind: input, shape index: {}]
  %s2 = inlined_call_operand.vmem [shape: bf16[48,48], index: 2, kind: input, shape index: {}]
  %s3 = inlined_call_operand.vmem [shape: f32[1,48], index: 3, kind: input, shape index: {}]
  %s4 = inlined_call_operand.vmem [shape: f32[2,16,48], index: 4, kind: input, shape index: {}]
  %s5 = inlined_call_operand.vmem [shape: f32[2,16,48], index: 5, kind: input, shape index: {}]
  %s6 = inlined_call_operand.vmem [shape: f32[2,16,48], index: 6, kind: output, shape index: {}]
  %s7 = sld [smem:[#allocation0]]
  $region38: #{estimation_stage_forward.35} parent=0
    _
  %s9 = ssub.s32 1, %s7
  %s10 = scalar_select 0, %s9, %s7
  $region1: #{estimation_stage_forward.35} parent=0
    #allocation3 [shape = 'u8[512]{0}', space=smem, size = 0x200, scoped, tag = 'input window, operand 0, single buffered']
    #allocation4 [shape = 's32[1]{0}', space=sflag, size = 0x4, scoped, tag = 'scoped memory for estimation_stage_forward.35']
    %11 = vsyncpa [#allocation4], 0
    // Predicated region
    $region2: #{estimation_stage_forward.35} parent=1 // pred_check
      _
    $region3: #{estimation_stage_forward.35} parent=1 // pred_check_branch
      %13 = sbr.rel (0) target = $region5
    $region4: #{estimation_stage_forward.35} parent=1 // pred_region
      %s15 = ssub.s32 16, 16
      %16 = vsyncadd [#allocation4], %s15
      %s18 = sshll.u32 %s0, 4
      %s19 = int_to_ptr.vmem [resolvable:$true] %s18
      %21 = dma.vmem_to_smem %s19, 16, [#allocation3], [#allocation4]
    $region5: #{estimation_stage_forward.35} parent=1 // pred_fallthru
      _
    // Predicated region
    $region6: #{estimation_stage_forward.35} parent=1 // pred_check
      _
    $region7: #{estimation_stage_forward.35} parent=1 // pred_check_branch
      %23 = sbr.rel (0) target = $region9
    $region8: #{estimation_stage_forward.35} parent=1 // pred_region
      _
    $region9: #{estimation_stage_forward.35} parent=1 // pred_fallthru
      _
    // Predicated region
    $region10: #{estimation_stage_forward.35} parent=1 // pred_check
      _
    $region11: #{estimation_stage_forward.35} parent=1 // pred_check_branch
      %25 = sbr.rel (0) target = $region13
    $region12: #{estimation_stage_forward.35} parent=1 // pred_region
      _
    $region13: #{estimation_stage_forward.35} parent=1 // pred_fallthru
      _
    // Predicated region
    $region14: #{estimation_stage_forward.35} parent=1 // pred_check
      _
    $region15: #{estimation_stage_forward.35} parent=1 // pred_check_branch
      %27 = sbr.rel (0) target = $region17
    $region16: #{estimation_stage_forward.35} parent=1 // pred_region
      _
    $region17: #{estimation_stage_forward.35} parent=1 // pred_fallthru
      _
    // Predicated region
    $region18: #{estimation_stage_forward.35} parent=1 // pred_check
      _
    $region19: #{estimation_stage_forward.35} parent=1 // pred_check_branch
      %29 = sbr.rel (0) target = $region21
    $region20: #{estimation_stage_forward.35} parent=1 // pred_region
      _
    $region21: #{estimation_stage_forward.35} parent=1 // pred_fallthru
      _
    // Predicated region
    $region22: #{estimation_stage_forward.35} parent=1 // pred_check
      _
    $region23: #{estimation_stage_forward.35} parent=1 // pred_check_branch
      %31 = sbr.rel (0) target = $region25
    $region24: #{estimation_stage_forward.35} parent=1 // pred_region
      _
    $region25: #{estimation_stage_forward.35} parent=1 // pred_fallthru
      _
    // Predicated region
    $region26: #{estimation_stage_forward.35} parent=1 // pred_check
      _
    $region27: #{estimation_stage_forward.35} parent=1 // pred_check_branch
      %33 = sbr.rel (0) target = $region29
    $region28: #{estimation_stage_forward.35} parent=1 // pred_region
      %34 = dma.done [#allocation4], 16
    $region29: #{estimation_stage_forward.35} parent=1 // pred_fallthru
      _
    %35 = sfence
    %v37 = vld [vmem:[%s2] sm:$0xf]
    %v38 = vld [vmem:[%s2 + $0x4] sm:$0xf]
    %v39 = vld [vmem:[%s2 + $0x8] sm:$0xf]
    %v40 = vld [vmem:[%s2 + $0xc] sm:$0xf]
    %v41 = vld [vmem:[%s2 + $0x10] sm:$0xf]
    %v42 = vld [vmem:[%s2 + $0x14] sm:$0xf]
    %v43 = vld [vmem:[%s3] sm:$0x1]
    %v44 = vld [vmem:[%s1] sm:$0x1]
    %v45 = vld [vmem:[%s1 + $0x1] sm:$0x1]
    %v46 = vld [vmem:[%s1 + $0x2] sm:$0x1]
    %s47 = sld [smem:[#allocation3]]
    %v48 = vld [vmem:[%s4] sm:$0xff]
    %v49 = vld [vmem:[%s4 + $0x8] sm:$0xff]
    %v50 = vstv %s47
    %v51 = vmul.f32 %v50, %v48
    %v52 = vmul.f32 %v50, %v49
    %s53 = sld [smem:[#allocation3 + $0x1]]
    %v54 = vld [vmem:[%s5] sm:$0xff]
    %v55 = vld [vmem:[%s5 + $0x8] sm:$0xff]
    %v56 = vstv %s53
    %v57 = vmul.f32 %v56, %v54
    %v58 = vmul.f32 %v56, %v55
    %v59 = vadd.f32 %v51, %v57
    %v60 = vadd.f32 %v52, %v58
    %v61 = vxor.u32 %v59, 2147483648
    %v62 = vxor.u32 %v60, 2147483648
    %v63 = vmul.f32 %v61, 1.442695
    %v64 = vpow.pop %v63
    %v65 = vmul.f32 %v62, 1.442695
    %v66 = vpow.pop %v65
    %v67 = vadd.f32 %v64, 1.0
    %v68 = vadd.f32 %v66, 1.0
    %v69 = vrcp.pop %v67
    %v70 = vmul.f32 1.0, %v69
    %v71 = vrcp.pop %v68
    %v72 = vmul.f32 1.0, %v71
    %v73 = vmul.f32 %v59, %v70
    %v74 = vmul.f32 %v60, %v72
    %vm75 = vcmask 392192
    %76 = vst.msk [vmem:[#allocation2] sm:$0xff] %vm75, 0.0
    %77 = vst.msk [vmem:[#allocation2 + $0x8] sm:$0xff] %vm75, 0.0
    %78 = vst.msk [vmem:[#allocation2 + $0x10] sm:$0xff] %vm75, 0.0
    %79 = vst.msk [vmem:[#allocation2 + $0x18] sm:$0xff] %vm75, 0.0
    %80 = vst.msk [vmem:[#allocation2 + $0x8] sm:$0xff] %vm75, %v73
    %81 = vst.msk [vmem:[#allocation2 + $0x10] sm:$0xff] %vm75, %v74
    %v82 = vld [vmem:[#allocation2 + $0x7] sm:$0xff]
    %v83 = vld [vmem:[#allocation2 + $0xf] sm:$0xff]
    %v84 = vlaneseq
    %v85 = vshrl.u32 %v84, 7
    %v86 = vsub.s32 0, %v85
    %v87 = vrot.slane %v44, %v86
    %v88 = vmul.f32 %v87, %v82
    %v89 = vmul.f32 %v87, %v83
    %v90 = vlaneseq
    %v91 = vshrl.u32 %v90, 7
    %v92 = vsub.s32 0, %v91
    %v93 = vrot.slane %v45, %v92
    %v94 = vmul.f32 %v93, %v73
    %v95 = vmul.f32 %v93, %v74
    %v96 = vadd.f32 %v88, %v94
    %v97 = vadd.f32 %v89, %v95
    %v98 = vld [vmem:[#allocation2 + $0x9] sm:$0xff]
    %v99 = vld [vmem:[#allocation2 + $0x11] sm:$0xff]
    %v100 = vlaneseq
    %v101 = vshrl.u32 %v100, 7
    %v102 = vsub.s32 0, %v101
    %v103 = vrot.slane %v46, %v102
    %v104 = vmul.f32 %v103, %v98
    %v105 = vmul.f32 %v103, %v99
    %v106 = vadd.f32 %v96, %v104
    %v107 = vadd.f32 %v97, %v105
    %v108 = vpack.c.bf16 %v107, %v106
    %v110 = vlaneseq
    %v111 = vshrl.u32 %v110, 7
    %v112 = vsub.s32 0, %v111
    %v113 = vrot.slane %v43, %v112
    %v121 = vunpack.c.l.b16 %v37
    %v122 = vunpack.c.l.b16 %v38
    %v123 = vunpack.c.l.b16 %v39
    %v124 = vunpack.c.l.b16 %v40
    %v125 = vunpack.c.l.b16 %v41
    %v126 = vunpack.c.l.b16 %v42
    %v127 = vpack.c.b16 %v122, %v121
    %v128 = vpack.c.b16 %v124, %v123
    %v129 = vpack.c.b16 %v126, %v125
    %v134 = vsel %vm75, %v108, 0
    %136 = vmatprep.subr.bf16.mxu0 0
    %137 = vmatpush1.bf16.msra.mxu0 %v127
    %138 = vmatprep.subr.bf16.mxu0 0
    %139 = vmatpush1.bf16.msra.mxu0 %v128
    %140 = vmatprep.subr.bf16.mxu0 0
    %141 = vmatpush1.bf16.msra.mxu0 %v129
    %142 = vmatprep.subr.bf16.mxu0 0
    %143 = vmatpush1.bf16.msra.mxu0 0
    %144 = vmatprep.subr.bf16.mxu0 0
    %145 = vmatpush1.bf16.msra.mxu0 0
    %146 = vmatprep.subr.bf16.mxu0 0
    %147 = vmatpush1.bf16.msra.mxu0 0
    %148 = vmatprep.subr.bf16.mxu0 0
    %149 = vmatpush1.bf16.msra.mxu0 0
    %150 = vmatprep.subr.bf16.mxu0 0
    %151 = vmatpush1.bf16.msra.mxu0 0
    %152 = vmatprep.subr.bf16.mxu0 0
    %153 = vmatpush1.bf16.msra.mxu0 0
    %154 = vmatprep.subr.bf16.mxu0 0
    %155 = vmatpush1.bf16.msra.mxu0 0
    %156 = vmatprep.subr.bf16.mxu0 0
    %157 = vmatpush1.bf16.msra.mxu0 0
    %158 = vmatprep.subr.bf16.mxu0 0
    %159 = vmatpush1.bf16.msra.mxu0 0
    %160 = vmatprep.subr.bf16.mxu0 0
    %161 = vmatpush1.bf16.msra.mxu0 0
    %162 = vmatprep.subr.bf16.mxu0 0
    %163 = vmatpush1.bf16.msra.mxu0 0
    %164 = vmatprep.subr.bf16.mxu0 0
    %165 = vmatpush1.bf16.msra.mxu0 0
    %166 = vmatprep.subr.bf16.mxu0 0
    %167 = vmatpush1.bf16.msra.mxu0 0
    %168 = vmatprep.mubr.bf16.mxu0 0
    %169 = vmatmul.mubr.bf16.gmra.mrb[0].mxu0 %v134
    %v170 = vpop.f32.mrb[0].mxu0
    %v171 = vadd.f32 %v113, %v170
    %v172 = vpop.f32.mrb[0].mxu0
    %v173 = vpop.f32.mrb[0].mxu0
    %v174 = vadd.f32 %v113, %v173
    %v175 = vpop.f32.mrb[0].mxu0
    %176 = vdwg.mxu0
    %v177 = vmul.f32 %v171, 0.9995004
    %v178 = vmul.f32 %v174, 0.9995004
    %179 = vst.msk [vmem:[%s6] sm:$0xff] %vm75, %v177
    %180 = vst.msk [vmem:[%s6 + $0x8] sm:$0xff] %vm75, %v178
    %s181 = sld [smem:[#allocation3]]
    %s182 = scalar_lea.vmem %s4, 16
    %v183 = vld [vmem:[%s182] sm:$0xff]
    %v184 = vld [vmem:[%s182 + $0x8] sm:$0xff]
    %v185 = vstv %s181
    %v186 = vmul.f32 %v185, %v183
    %v187 = vmul.f32 %v185, %v184
    %s188 = sld [smem:[#allocation3 + $0x1]]
    %s189 = scalar_lea.vmem %s5, 16
    %v190 = vld [vmem:[%s189] sm:$0xff]
    %v191 = vld [vmem:[%s189 + $0x8] sm:$0xff]
    %v192 = vstv %s188
    %v193 = vmul.f32 %v192, %v190
    %v194 = vmul.f32 %v192, %v191
    %v195 = vadd.f32 %v186, %v193
    %v196 = vadd.f32 %v187, %v194
    %v197 = vxor.u32 %v195, 2147483648
    %v198 = vxor.u32 %v196, 2147483648
    %v199 = vmul.f32 %v197, 1.442695
    %v200 = vpow.pop %v199
    %v201 = vmul.f32 %v198, 1.442695
    %v202 = vpow.pop %v201
    %v203 = vadd.f32 %v200, 1.0
    %v204 = vadd.f32 %v202, 1.0
    %v205 = vrcp.pop %v203
    %v206 = vmul.f32 1.0, %v205
    %v207 = vrcp.pop %v204
    %v208 = vmul.f32 1.0, %v207
    %v209 = vmul.f32 %v195, %v206
    %v210 = vmul.f32 %v196, %v208
    %211 = vst.msk [vmem:[#allocation2] sm:$0xff] %vm75, 0.0
    %212 = vst.msk [vmem:[#allocation2 + $0x8] sm:$0xff] %vm75, 0.0
    %213 = vst.msk [vmem:[#allocation2 + $0x10] sm:$0xff] %vm75, 0.0
    %214 = vst.msk [vmem:[#allocation2 + $0x18] sm:$0xff] %vm75, 0.0
    %215 = vst.msk [vmem:[#allocation2 + $0x8] sm:$0xff] %vm75, %v209
    %216 = vst.msk [vmem:[#allocation2 + $0x10] sm:$0xff] %vm75, %v210
    %v217 = vld [vmem:[#allocation2 + $0x7] sm:$0xff]
    %v218 = vld [vmem:[#allocation2 + $0xf] sm:$0xff]
    %v219 = vmul.f32 %v87, %v217
    %v220 = vmul.f32 %v87, %v218
    %v221 = vmul.f32 %v93, %v209
    %v222 = vmul.f32 %v93, %v210
    %v223 = vadd.f32 %v219, %v221
    %v224 = vadd.f32 %v220, %v222
    %v225 = vld [vmem:[#allocation2 + $0x9] sm:$0xff]
    %v226 = vld [vmem:[#allocation2 + $0x11] sm:$0xff]
    %v227 = vmul.f32 %v103, %v225
    %v228 = vmul.f32 %v103, %v226
    %v229 = vadd.f32 %v223, %v227
    %v230 = vadd.f32 %v224, %v228
    %v231 = vpack.c.bf16 %v230, %v229
    %v233 = vsel %vm75, %v231, 0
    %235 = vmatprep.subr.bf16.mxu0 0
    %236 = vmatpush1.bf16.msra.mxu0 %v127
    %237 = vmatprep.subr.bf16.mxu0 0
    %238 = vmatpush1.bf16.msra.mxu0 %v128
    %239 = vmatprep.subr.bf16.mxu0 0
    %240 = vmatpush1.bf16.msra.mxu0 %v129
    %241 = vmatprep.subr.bf16.mxu0 0
    %242 = vmatpush1.bf16.msra.mxu0 0
    %243 = vmatprep.subr.bf16.mxu0 0
    %244 = vmatpush1.bf16.msra.mxu0 0
    %245 = vmatprep.subr.bf16.mxu0 0
    %246 = vmatpush1.bf16.msra.mxu0 0
    %247 = vmatprep.subr.bf16.mxu0 0
    %248 = vmatpush1.bf16.msra.mxu0 0
    %249 = vmatprep.subr.bf16.mxu0 0
    %250 = vmatpush1.bf16.msra.mxu0 0
    %251 = vmatprep.subr.bf16.mxu0 0
    %252 = vmatpush1.bf16.msra.mxu0 0
    %253 = vmatprep.subr.bf16.mxu0 0
    %254 = vmatpush1.bf16.msra.mxu0 0
    %255 = vmatprep.subr.bf16.mxu0 0
    %256 = vmatpush1.bf16.msra.mxu0 0
    %257 = vmatprep.subr.bf16.mxu0 0
    %258 = vmatpush1.bf16.msra.mxu0 0
    %259 = vmatprep.subr.bf16.mxu0 0
    %260 = vmatpush1.bf16.msra.mxu0 0
    %261 = vmatprep.subr.bf16.mxu0 0
    %262 = vmatpush1.bf16.msra.mxu0 0
    %263 = vmatprep.subr.bf16.mxu0 0
    %264 = vmatpush1.bf16.msra.mxu0 0
    %265 = vmatprep.subr.bf16.mxu0 0
    %266 = vmatpush1.bf16.msra.mxu0 0
    %267 = vmatprep.mubr.bf16.mxu0 0
    %268 = vmatmul.mubr.bf16.gmra.mrb[0].mxu0 %v233
    %v269 = vpop.f32.mrb[0].mxu0
    %v270 = vadd.f32 %v113, %v269
    %v271 = vpop.f32.mrb[0].mxu0
    %v272 = vpop.f32.mrb[0].mxu0
    %v273 = vadd.f32 %v113, %v272
    %v274 = vpop.f32.mrb[0].mxu0
    %275 = vdwg.mxu0
    %v276 = vmul.f32 %v270, 0.9995004
    %v277 = vmul.f32 %v273, 0.9995004
    %s278 = scalar_lea.vmem %s6, 16
    %279 = vst.msk [vmem:[%s278] sm:$0xff] %vm75, %v276
    %280 = vst.msk [vmem:[%s278 + $0x8] sm:$0xff] %vm75, %v277
    // Predicated region
    $region30: #{estimation_stage_forward.35} parent=1 // pred_check
      _
    $region31: #{estimation_stage_forward.35} parent=1 // pred_check_branch
      %282 = sbr.rel (0) target = $region33
    $region32: #{estimation_stage_forward.35} parent=1 // pred_region
      _
    $region33: #{estimation_stage_forward.35} parent=1 // pred_fallthru
      _
    // Predicated region
    $region34: #{estimation_stage_forward.35} parent=1 // pred_check
      _
    $region35: #{estimation_stage_forward.35} parent=1 // pred_check_branch
      %284 = sbr.rel (0) target = $region37
    $region36: #{estimation_stage_forward.35} parent=1 // pred_region
      _
    $region37: #{estimation_stage_forward.35} parent=1 // pred_fallthru
      _
    %285 = vsyncpa [#allocation4], 1

// kernel: estimation_stage_forward.32
$region0: #{estimation_stage_forward.32}
  #allocation0 [shape = 'u32[]', space=smem, size = 0x4, offset = 0x4, fixed_abs, tag = 'smem constant byte address 0x4 - core index']
  #allocation1 [shape = 'u32[144,128]{1,0:T(1,128)}', space=vmem, size = 0x12000, scoped, tag = 'internal scratch']
  #allocation2 [shape = 'f32[31,24]{1,0:T(8,128)}', space=vmem, size = 0x4000, scoped, tag = 'scratch operand']
  #allocation3 [shape = 'f32[1]{0:T(128)S(6)}', space=smem, size = 0x200, scoped, tag = 'scoped memory for estimation_stage_forward.32']
  %s0 = inlined_call_operand.<no memory space> [shape: f32[1], index: 0, kind: input, shape index: {}]
  %s1 = inlined_call_operand.vmem [shape: f32[3,24], index: 1, kind: input, shape index: {}]
  %s2 = inlined_call_operand.vmem [shape: bf16[24,48], index: 2, kind: input, shape index: {}]
  %s3 = inlined_call_operand.vmem [shape: f32[1,48], index: 3, kind: input, shape index: {}]
  %s4 = inlined_call_operand.vmem [shape: f32[2,15,24], index: 4, kind: input, shape index: {}]
  %s5 = inlined_call_operand.vmem [shape: f32[2,15,48], index: 5, kind: output, shape index: {}]
  %s6 = sld [smem:[#allocation0]]
  $region30: #{estimation_stage_forward.32} parent=0
    _
  %s8 = ssub.s32 1, %s6
  %s9 = scalar_select 0, %s8, %s6
  %10 = sst [smem:[#allocation3]] %s0
  // Predicated region
  $region2: #{estimation_stage_forward.32} parent=0 // pred_check
    _
  $region3: #{estimation_stage_forward.32} parent=0 // pred_check_branch
    %12 = sbr.rel (0) target = $region5
  $region4: #{estimation_stage_forward.32} parent=0 // pred_region
    _
  $region5: #{estimation_stage_forward.32} parent=0 // pred_fallthru
    _
  // Predicated region
  $region6: #{estimation_stage_forward.32} parent=0 // pred_check
    _
  $region7: #{estimation_stage_forward.32} parent=0 // pred_check_branch
    %14 = sbr.rel (0) target = $region9
  $region8: #{estimation_stage_forward.32} parent=0 // pred_region
    _
  $region9: #{estimation_stage_forward.32} parent=0 // pred_fallthru
    _
  // Predicated region
  $region10: #{estimation_stage_forward.32} parent=0 // pred_check
    _
  $region11: #{estimation_stage_forward.32} parent=0 // pred_check_branch
    %16 = sbr.rel (0) target = $region13
  $region12: #{estimation_stage_forward.32} parent=0 // pred_region
    _
  $region13: #{estimation_stage_forward.32} parent=0 // pred_fallthru
    _
  // Predicated region
  $region14: #{estimation_stage_forward.32} parent=0 // pred_check
    _
  $region15: #{estimation_stage_forward.32} parent=0 // pred_check_branch
    %18 = sbr.rel (0) target = $region17
  $region16: #{estimation_stage_forward.32} parent=0 // pred_region
    _
  $region17: #{estimation_stage_forward.32} parent=0 // pred_fallthru
    _
  // Predicated region
  $region18: #{estimation_stage_forward.32} parent=0 // pred_check
    _
  $region19: #{estimation_stage_forward.32} parent=0 // pred_check_branch
    %20 = sbr.rel (0) target = $region21
  $region20: #{estimation_stage_forward.32} parent=0 // pred_region
    _
  $region21: #{estimation_stage_forward.32} parent=0 // pred_fallthru
    _
  %v22 = vld [vmem:[%s2] sm:$0xf]
  %v23 = vld [vmem:[%s2 + $0x4] sm:$0xf]
  %v24 = vld [vmem:[%s2 + $0x8] sm:$0xf]
  %v25 = vld [vmem:[%s3] sm:$0x1]
  %v26 = vld [vmem:[%s1] sm:$0x1]
  %v27 = vld [vmem:[%s1 + $0x1] sm:$0x1]
  %v28 = vld [vmem:[%s1 + $0x2] sm:$0x1]
  %s29 = sld [smem:[#allocation3]]
  %v30 = vld [vmem:[%s4] sm:$0xff]
  %v31 = vld [vmem:[%s4 + $0x8] sm:$0x7f]
  %v32 = vstv %s29
  %v33 = vmul.f32 %v32, %v30
  %v34 = vmul.f32 %v32, %v31
  %vm35 = vcmask 195584
  %36 = vst.msk [vmem:[#allocation2] sm:$0xff] %vm35, 0.0
  %37 = vst.msk [vmem:[#allocation2 + $0x8] sm:$0xff] %vm35, 0.0
  %38 = vst.msk [vmem:[#allocation2 + $0x10] sm:$0xff] %vm35, 0.0
  %vm39 = vcmask 194560
  %40 = vst.msk [vmem:[#allocation2 + $0x18] sm:$0x7f] %vm39, 0.0
  %41 = vst.msk [vmem:[#allocation2 + $0x8] sm:$0xff] %vm35, %v33
  %42 = vst.msk [vmem:[#allocation2 + $0x10] sm:$0x7f] %vm39, %v34
  %v43 = vld [vmem:[#allocation2 + $0x7] sm:$0xff]
  %v44 = vld [vmem:[#allocation2 + $0xf] sm:$0x7f]
  %v45 = vlaneseq
  %v46 = vshrl.u32 %v45, 7
  %v47 = vsub.s32 0, %v46
  %v48 = vrot.slane %v26, %v47
  %v49 = vmul.f32 %v48, %v43
  %v50 = vmul.f32 %v48, %v44
  %v51 = vlaneseq
  %v52 = vshrl.u32 %v51, 7
  %v53 = vsub.s32 0, %v52
  %v54 = vrot.slane %v27, %v53
  %v55 = vmul.f32 %v54, %v33
  %v56 = vmul.f32 %v54, %v34
  %v57 = vadd.f32 %v49, %v55
  %v58 = vadd.f32 %v50, %v56
  %v59 = vld [vmem:[#allocation2 + $0x9] sm:$0xff]
  %v60 = vld [vmem:[#allocation2 + $0x11] sm:$0x7f]
  %v61 = vlaneseq
  %v62 = vshrl.u32 %v61, 7
  %v63 = vsub.s32 0, %v62
  %v64 = vrot.slane %v28, %v63
  %v65 = vmul.f32 %v64, %v59
  %v66 = vmul.f32 %v64, %v60
  %v67 = vadd.f32 %v57, %v65
  %v68 = vadd.f32 %v58, %v66
  %v69 = vpack.c.bf16 %v68, %v67
  %v71 = vlaneseq
  %v72 = vshrl.u32 %v71, 7
  %v73 = vsub.s32 0, %v72
  %v74 = vrot.slane %v25, %v73
  %v79 = vunpack.c.l.b16 %v22
  %v80 = vunpack.c.l.b16 %v23
  %v81 = vunpack.c.l.b16 %v24
  %v82 = vpack.c.b16 %v80, %v79
  %v83 = vpack.c.b16 %v81, %v81
  %v86 = vsel %vm35, %v69, 0
  %vm88 = vcmask 1043456
  %v90 = vsel %vm88, %v83, 0
  %92 = vmatprep.subr.bf16.mxu0 0
  %93 = vmatpush1.bf16.msra.mxu0 %v82
  %94 = vmatprep.subr.bf16.mxu0 0
  %95 = vmatpush1.bf16.msra.mxu0 %v90
  %96 = vmatprep.subr.bf16.mxu0 0
  %97 = vmatpush1.bf16.msra.mxu0 0
  %98 = vmatprep.subr.bf16.mxu0 0
  %99 = vmatpush1.bf16.msra.mxu0 0
  %100 = vmatprep.subr.bf16.mxu0 0
  %101 = vmatpush1.bf16.msra.mxu0 0
  %102 = vmatprep.subr.bf16.mxu0 0
  %103 = vmatpush1.bf16.msra.mxu0 0
  %104 = vmatprep.subr.bf16.mxu0 0
  %105 = vmatpush1.bf16.msra.mxu0 0
  %106 = vmatprep.subr.bf16.mxu0 0
  %107 = vmatpush1.bf16.msra.mxu0 0
  %108 = vmatprep.subr.bf16.mxu0 0
  %109 = vmatpush1.bf16.msra.mxu0 0
  %110 = vmatprep.subr.bf16.mxu0 0
  %111 = vmatpush1.bf16.msra.mxu0 0
  %112 = vmatprep.subr.bf16.mxu0 0
  %113 = vmatpush1.bf16.msra.mxu0 0
  %114 = vmatprep.subr.bf16.mxu0 0
  %115 = vmatpush1.bf16.msra.mxu0 0
  %116 = vmatprep.subr.bf16.mxu0 0
  %117 = vmatpush1.bf16.msra.mxu0 0
  %118 = vmatprep.subr.bf16.mxu0 0
  %119 = vmatpush1.bf16.msra.mxu0 0
  %120 = vmatprep.subr.bf16.mxu0 0
  %121 = vmatpush1.bf16.msra.mxu0 0
  %122 = vmatprep.subr.bf16.mxu0 0
  %123 = vmatpush1.bf16.msra.mxu0 0
  %124 = vmatprep.mubr.bf16.mxu0 0
  %125 = vmatmul.mubr.bf16.gmra.mrb[0].mxu0 %v86
  %v126 = vpop.f32.mrb[0].mxu0
  %v127 = vadd.f32 %v74, %v126
  %v128 = vpop.f32.mrb[0].mxu0
  %v129 = vpop.f32.mrb[0].mxu0
  %v130 = vadd.f32 %v74, %v129
  %v131 = vpop.f32.mrb[0].mxu0
  %132 = vdwg.mxu0
  %v133 = vmul.f32 %v127, 0.9995004
  %v134 = vmul.f32 %v130, 0.9995004
  %vm135 = vcmask 392192
  %136 = vst.msk [vmem:[%s5] sm:$0xff] %vm135, %v133
  %vm137 = vcmask 391168
  %138 = vst.msk [vmem:[%s5 + $0x8] sm:$0x7f] %vm137, %v134
  %s139 = sld [smem:[#allocation3]]
  %s140 = scalar_lea.vmem %s4, 16
  %v141 = vld [vmem:[%s140] sm:$0xff]
  %v142 = vld [vmem:[%s140 + $0x8] sm:$0x7f]
  %v143 = vstv %s139
  %v144 = vmul.f32 %v143, %v141
  %v145 = vmul.f32 %v143, %v142
  %146 = vst.msk [vmem:[#allocation2] sm:$0xff] %vm35, 0.0
  %147 = vst.msk [vmem:[#allocation2 + $0x8] sm:$0xff] %vm35, 0.0
  %148 = vst.msk [vmem:[#allocation2 + $0x10] sm:$0xff] %vm35, 0.0
  %149 = vst.msk [vmem:[#allocation2 + $0x18] sm:$0x7f] %vm39, 0.0
  %150 = vst.msk [vmem:[#allocation2 + $0x8] sm:$0xff] %vm35, %v144
  %151 = vst.msk [vmem:[#allocation2 + $0x10] sm:$0x7f] %vm39, %v145
  %v152 = vld [vmem:[#allocation2 + $0x7] sm:$0xff]
  %v153 = vld [vmem:[#allocation2 + $0xf] sm:$0x7f]
  %v154 = vmul.f32 %v48, %v152
  %v155 = vmul.f32 %v48, %v153
  %v156 = vmul.f32 %v54, %v144
  %v157 = vmul.f32 %v54, %v145
  %v158 = vadd.f32 %v154, %v156
  %v159 = vadd.f32 %v155, %v157
  %v160 = vld [vmem:[#allocation2 + $0x9] sm:$0xff]
  %v161 = vld [vmem:[#allocation2 + $0x11] sm:$0x7f]
  %v162 = vmul.f32 %v64, %v160
  %v163 = vmul.f32 %v64, %v161
  %v164 = vadd.f32 %v158, %v162
  %v165 = vadd.f32 %v159, %v163
  %v166 = vpack.c.bf16 %v165, %v164
  %v168 = vsel %vm35, %v166, 0
  %170 = vmatprep.subr.bf16.mxu0 0
  %171 = vmatpush1.bf16.msra.mxu0 %v82
  %172 = vmatprep.subr.bf16.mxu0 0
  %173 = vmatpush1.bf16.msra.mxu0 %v90
  %174 = vmatprep.subr.bf16.mxu0 0
  %175 = vmatpush1.bf16.msra.mxu0 0
  %176 = vmatprep.subr.bf16.mxu0 0
  %177 = vmatpush1.bf16.msra.mxu0 0
  %178 = vmatprep.subr.bf16.mxu0 0
  %179 = vmatpush1.bf16.msra.mxu0 0
  %180 = vmatprep.subr.bf16.mxu0 0
  %181 = vmatpush1.bf16.msra.mxu0 0
  %182 = vmatprep.subr.bf16.mxu0 0
  %183 = vmatpush1.bf16.msra.mxu0 0
  %184 = vmatprep.subr.bf16.mxu0 0
  %185 = vmatpush1.bf16.msra.mxu0 0
  %186 = vmatprep.subr.bf16.mxu0 0
  %187 = vmatpush1.bf16.msra.mxu0 0
  %188 = vmatprep.subr.bf16.mxu0 0
  %189 = vmatpush1.bf16.msra.mxu0 0
  %190 = vmatprep.subr.bf16.mxu0 0
  %191 = vmatpush1.bf16.msra.mxu0 0
  %192 = vmatprep.subr.bf16.mxu0 0
  %193 = vmatpush1.bf16.msra.mxu0 0
  %194 = vmatprep.subr.bf16.mxu0 0
  %195 = vmatpush1.bf16.msra.mxu0 0
  %196 = vmatprep.subr.bf16.mxu0 0
  %197 = vmatpush1.bf16.msra.mxu0 0
  %198 = vmatprep.subr.bf16.mxu0 0
  %199 = vmatpush1.bf16.msra.mxu0 0
  %200 = vmatprep.subr.bf16.mxu0 0
  %201 = vmatpush1.bf16.msra.mxu0 0
  %202 = vmatprep.mubr.bf16.mxu0 0
  %203 = vmatmul.mubr.bf16.gmra.mrb[0].mxu0 %v168
  %v204 = vpop.f32.mrb[0].mxu0
  %v205 = vadd.f32 %v74, %v204
  %v206 = vpop.f32.mrb[0].mxu0
  %v207 = vpop.f32.mrb[0].mxu0
  %v208 = vadd.f32 %v74, %v207
  %v209 = vpop.f32.mrb[0].mxu0
  %210 = vdwg.mxu0
  %v211 = vmul.f32 %v205, 0.9995004
  %v212 = vmul.f32 %v208, 0.9995004
  %s213 = scalar_lea.vmem %s5, 16
  %214 = vst.msk [vmem:[%s213] sm:$0xff] %vm135, %v211
  %215 = vst.msk [vmem:[%s213 + $0x8] sm:$0x7f] %vm137, %v212
  // Predicated region
  $region22: #{estimation_stage_forward.32} parent=0 // pred_check
    _
  $region23: #{estimation_stage_forward.32} parent=0 // pred_check_branch
    %217 = sbr.rel (0) target = $region25
  $region24: #{estimation_stage_forward.32} parent=0 // pred_region
    _
  $region25: #{estimation_stage_forward.32} parent=0 // pred_fallthru
    _
  // Predicated region
  $region26: #{estimation_stage_forward.32} parent=0 // pred_check
    _
  $region27: #{estimation_stage_forward.32} parent=0 // pred_check_branch
    %219 = sbr.rel (0) target = $region29
  $region28: #{estimation_stage_forward.32} parent=0 // pred_region
    _
  $region29: #{estimation_stage_forward.32} parent=0 // pred_fallthru
    _

// kernel: estimation_stage_forward.31
$region0: #{estimation_stage_forward.31}
  #allocation0 [shape = 'u32[]', space=smem, size = 0x4, offset = 0x4, fixed_abs, tag = 'smem constant byte address 0x4 - core index']
  #allocation1 [shape = 'u32[144,128]{1,0:T(1,128)}', space=vmem, size = 0x12000, scoped, tag = 'internal scratch']
  #allocation2 [shape = 'f32[32,12]{1,0:T(8,128)}', space=vmem, size = 0x4000, scoped, tag = 'scratch operand']
  #allocation3 [shape = 'f32[1]{0:T(128)S(6)}', space=smem, size = 0x200, scoped, tag = 'scoped memory for estimation_stage_forward.31']
  %s0 = inlined_call_operand.<no memory space> [shape: f32[1], index: 0, kind: input, shape index: {}]
  %s1 = inlined_call_operand.vmem [shape: f32[3,12], index: 1, kind: input, shape index: {}]
  %s2 = inlined_call_operand.vmem [shape: bf16[12,48], index: 2, kind: input, shape index: {}]
  %s3 = inlined_call_operand.vmem [shape: f32[1,48], index: 3, kind: input, shape index: {}]
  %s4 = inlined_call_operand.vmem [shape: f32[2,16,12], index: 4, kind: input, shape index: {}]
  %s5 = inlined_call_operand.vmem [shape: f32[2,16,48], index: 5, kind: output, shape index: {}]
  %s6 = sld [smem:[#allocation0]]
  $region30: #{estimation_stage_forward.31} parent=0
    _
  %s8 = ssub.s32 1, %s6
  %s9 = scalar_select 0, %s8, %s6
  %10 = sst [smem:[#allocation3]] %s0
  // Predicated region
  $region2: #{estimation_stage_forward.31} parent=0 // pred_check
    _
  $region3: #{estimation_stage_forward.31} parent=0 // pred_check_branch
    %12 = sbr.rel (0) target = $region5
  $region4: #{estimation_stage_forward.31} parent=0 // pred_region
    _
  $region5: #{estimation_stage_forward.31} parent=0 // pred_fallthru
    _
  // Predicated region
  $region6: #{estimation_stage_forward.31} parent=0 // pred_check
    _
  $region7: #{estimation_stage_forward.31} parent=0 // pred_check_branch
    %14 = sbr.rel (0) target = $region9
  $region8: #{estimation_stage_forward.31} parent=0 // pred_region
    _
  $region9: #{estimation_stage_forward.31} parent=0 // pred_fallthru
    _
  // Predicated region
  $region10: #{estimation_stage_forward.31} parent=0 // pred_check
    _
  $region11: #{estimation_stage_forward.31} parent=0 // pred_check_branch
    %16 = sbr.rel (0) target = $region13
  $region12: #{estimation_stage_forward.31} parent=0 // pred_region
    _
  $region13: #{estimation_stage_forward.31} parent=0 // pred_fallthru
    _
  // Predicated region
  $region14: #{estimation_stage_forward.31} parent=0 // pred_check
    _
  $region15: #{estimation_stage_forward.31} parent=0 // pred_check_branch
    %18 = sbr.rel (0) target = $region17
  $region16: #{estimation_stage_forward.31} parent=0 // pred_region
    _
  $region17: #{estimation_stage_forward.31} parent=0 // pred_fallthru
    _
  // Predicated region
  $region18: #{estimation_stage_forward.31} parent=0 // pred_check
    _
  $region19: #{estimation_stage_forward.31} parent=0 // pred_check_branch
    %20 = sbr.rel (0) target = $region21
  $region20: #{estimation_stage_forward.31} parent=0 // pred_region
    _
  $region21: #{estimation_stage_forward.31} parent=0 // pred_fallthru
    _
  %v22 = vld [vmem:[%s2] sm:$0xf]
  %v23 = vld [vmem:[%s2 + $0x4] sm:$0x3]
  %v24 = vld [vmem:[%s3] sm:$0x1]
  %v25 = vld [vmem:[%s1] sm:$0x1]
  %v26 = vld [vmem:[%s1 + $0x1] sm:$0x1]
  %v27 = vld [vmem:[%s1 + $0x2] sm:$0x1]
  %s28 = sld [smem:[#allocation3]]
  %v29 = vld [vmem:[%s4] sm:$0xff]
  %v30 = vld [vmem:[%s4 + $0x8] sm:$0xff]
  %v31 = vstv %s28
  %v32 = vmul.f32 %v31, %v29
  %v33 = vmul.f32 %v31, %v30
  %vm34 = vcmask 97280
  %35 = vst.msk [vmem:[#allocation2] sm:$0xff] %vm34, 0.0
  %36 = vst.msk [vmem:[#allocation2 + $0x8] sm:$0xff] %vm34, 0.0
  %37 = vst.msk [vmem:[#allocation2 + $0x10] sm:$0xff] %vm34, 0.0
  %38 = vst.msk [vmem:[#allocation2 + $0x18] sm:$0xff] %vm34, 0.0
  %39 = vst.msk [vmem:[#allocation2 + $0x8] sm:$0xff] %vm34, %v32
  %40 = vst.msk [vmem:[#allocation2 + $0x10] sm:$0xff] %vm34, %v33
  %v41 = vld [vmem:[#allocation2 + $0x7] sm:$0xff]
  %v42 = vld [vmem:[#allocation2 + $0xf] sm:$0xff]
  %v43 = vlaneseq
  %v44 = vshrl.u32 %v43, 7
  %v45 = vsub.s32 0, %v44
  %v46 = vrot.slane %v25, %v45
  %v47 = vmul.f32 %v46, %v41
  %v48 = vmul.f32 %v46, %v42
  %v49 = vlaneseq
  %v50 = vshrl.u32 %v49, 7
  %v51 = vsub.s32 0, %v50
  %v52 = vrot.slane %v26, %v51
  %v53 = vmul.f32 %v52, %v32
  %v54 = vmul.f32 %v52, %v33
  %v55 = vadd.f32 %v47, %v53
  %v56 = vadd.f32 %v48, %v54
  %v57 = vld [vmem:[#allocation2 + $0x9] sm:$0xff]
  %v58 = vld [vmem:[#allocation2 + $0x11] sm:$0xff]
  %v59 = vlaneseq
  %v60 = vshrl.u32 %v59, 7
  %v61 = vsub.s32 0, %v60
  %v62 = vrot.slane %v27, %v61
  %v63 = vmul.f32 %v62, %v57
  %v64 = vmul.f32 %v62, %v58
  %v65 = vadd.f32 %v55, %v63
  %v66 = vadd.f32 %v56, %v64
  %v67 = vpack.c.bf16 %v66, %v65
  %v69 = vlaneseq
  %v70 = vshrl.u32 %v69, 7
  %v71 = vsub.s32 0, %v70
  %v72 = vrot.slane %v24, %v71
  %v76 = vunpack.c.l.b16 %v22
  %v77 = vunpack.c.l.b16 %v23
  %v78 = vpack.c.b16 %v77, %v76
  %v80 = vsel %vm34, %v67, 0
  %vm82 = vcmask 1045504
  %v84 = vsel %vm82, %v78, 0
  %86 = vmatprep.subr.bf16.mxu0 0
  %87 = vmatpush1.bf16.msra.mxu0 %v84
  %88 = vmatprep.subr.bf16.mxu0 0
  %89 = vmatpush1.bf16.msra.mxu0 0
  %90 = vmatprep.subr.bf16.mxu0 0
  %91 = vmatpush1.bf16.msra.mxu0 0
  %92 = vmatprep.subr.bf16.mxu0 0
  %93 = vmatpush1.bf16.msra.mxu0 0
  %94 = vmatprep.subr.bf16.mxu0 0
  %95 = vmatpush1.bf16.msra.mxu0 0
  %96 = vmatprep.subr.bf16.mxu0 0
  %97 = vmatpush1.bf16.msra.mxu0 0
  %98 = vmatprep.subr.bf16.mxu0 0
  %99 = vmatpush1.bf16.msra.mxu0 0
  %100 = vmatprep.subr.bf16.mxu0 0
  %101 = vmatpush1.bf16.msra.mxu0 0
  %102 = vmatprep.subr.bf16.mxu0 0
  %103 = vmatpush1.bf16.msra.mxu0 0
  %104 = vmatprep.subr.bf16.mxu0 0
  %105 = vmatpush1.bf16.msra.mxu0 0
  %106 = vmatprep.subr.bf16.mxu0 0
  %107 = vmatpush1.bf16.msra.mxu0 0
  %108 = vmatprep.subr.bf16.mxu0 0
  %109 = vmatpush1.bf16.msra.mxu0 0
  %110 = vmatprep.subr.bf16.mxu0 0
  %111 = vmatpush1.bf16.msra.mxu0 0
  %112 = vmatprep.subr.bf16.mxu0 0
  %113 = vmatpush1.bf16.msra.mxu0 0
  %114 = vmatprep.subr.bf16.mxu0 0
  %115 = vmatpush1.bf16.msra.mxu0 0
  %116 = vmatprep.subr.bf16.mxu0 0
  %117 = vmatpush1.bf16.msra.mxu0 0
  %118 = vmatprep.mubr.bf16.mxu0 0
  %119 = vmatmul.mubr.bf16.gmra.mrb[0].mxu0 %v80
  %v120 = vpop.f32.mrb[0].mxu0
  %v121 = vadd.f32 %v72, %v120
  %v122 = vpop.f32.mrb[0].mxu0
  %v123 = vpop.f32.mrb[0].mxu0
  %v124 = vadd.f32 %v72, %v123
  %v125 = vpop.f32.mrb[0].mxu0
  %126 = vdwg.mxu0
  %v127 = vmul.f32 %v121, 0.9995004
  %v128 = vmul.f32 %v124, 0.9995004
  %vm129 = vcmask 392192
  %130 = vst.msk [vmem:[%s5] sm:$0xff] %vm129, %v127
  %131 = vst.msk [vmem:[%s5 + $0x8] sm:$0xff] %vm129, %v128
  %s132 = sld [smem:[#allocation3]]
  %s133 = scalar_lea.vmem %s4, 16
  %v134 = vld [vmem:[%s133] sm:$0xff]
  %v135 = vld [vmem:[%s133 + $0x8] sm:$0xff]
  %v136 = vstv %s132
  %v137 = vmul.f32 %v136, %v134
  %v138 = vmul.f32 %v136, %v135
  %139 = vst.msk [vmem:[#allocation2] sm:$0xff] %vm34, 0.0
  %140 = vst.msk [vmem:[#allocation2 + $0x8] sm:$0xff] %vm34, 0.0
  %141 = vst.msk [vmem:[#allocation2 + $0x10] sm:$0xff] %vm34, 0.0
  %142 = vst.msk [vmem:[#allocation2 + $0x18] sm:$0xff] %vm34, 0.0
  %143 = vst.msk [vmem:[#allocation2 + $0x8] sm:$0xff] %vm34, %v137
  %144 = vst.msk [vmem:[#allocation2 + $0x10] sm:$0xff] %vm34, %v138
  %v145 = vld [vmem:[#allocation2 + $0x7] sm:$0xff]
  %v146 = vld [vmem:[#allocation2 + $0xf] sm:$0xff]
  %v147 = vmul.f32 %v46, %v145
  %v148 = vmul.f32 %v46, %v146
  %v149 = vmul.f32 %v52, %v137
  %v150 = vmul.f32 %v52, %v138
  %v151 = vadd.f32 %v147, %v149
  %v152 = vadd.f32 %v148, %v150
  %v153 = vld [vmem:[#allocation2 + $0x9] sm:$0xff]
  %v154 = vld [vmem:[#allocation2 + $0x11] sm:$0xff]
  %v155 = vmul.f32 %v62, %v153
  %v156 = vmul.f32 %v62, %v154
  %v157 = vadd.f32 %v151, %v155
  %v158 = vadd.f32 %v152, %v156
  %v159 = vpack.c.bf16 %v158, %v157
  %v161 = vsel %vm34, %v159, 0
  %163 = vmatprep.subr.bf16.mxu0 0
  %164 = vmatpush1.bf16.msra.mxu0 %v84
  %165 = vmatprep.subr.bf16.mxu0 0
  %166 = vmatpush1.bf16.msra.mxu0 0
  %167 = vmatprep.subr.bf16.mxu0 0
  %168 = vmatpush1.bf16.msra.mxu0 0
  %169 = vmatprep.subr.bf16.mxu0 0
  %170 = vmatpush1.bf16.msra.mxu0 0
  %171 = vmatprep.subr.bf16.mxu0 0
  %172 = vmatpush1.bf16.msra.mxu0 0
  %173 = vmatprep.subr.bf16.mxu0 0
  %174 = vmatpush1.bf16.msra.mxu0 0
  %175 = vmatprep.subr.bf16.mxu0 0
  %176 = vmatpush1.bf16.msra.mxu0 0
  %177 = vmatprep.subr.bf16.mxu0 0
  %178 = vmatpush1.bf16.msra.mxu0 0
  %179 = vmatprep.subr.bf16.mxu0 0
  %180 = vmatpush1.bf16.msra.mxu0 0
  %181 = vmatprep.subr.bf16.mxu0 0
  %182 = vmatpush1.bf16.msra.mxu0 0
  %183 = vmatprep.subr.bf16.mxu0 0
  %184 = vmatpush1.bf16.msra.mxu0 0
  %185 = vmatprep.subr.bf16.mxu0 0
  %186 = vmatpush1.bf16.msra.mxu0 0
  %187 = vmatprep.subr.bf16.mxu0 0
  %188 = vmatpush1.bf16.msra.mxu0 0
  %189 = vmatprep.subr.bf16.mxu0 0
  %190 = vmatpush1.bf16.msra.mxu0 0
  %191 = vmatprep.subr.bf16.mxu0 0
  %192 = vmatpush1.bf16.msra.mxu0 0
  %193 = vmatprep.subr.bf16.mxu0 0
  %194 = vmatpush1.bf16.msra.mxu0 0
  %195 = vmatprep.mubr.bf16.mxu0 0
  %196 = vmatmul.mubr.bf16.gmra.mrb[0].mxu0 %v161
  %v197 = vpop.f32.mrb[0].mxu0
  %v198 = vadd.f32 %v72, %v197
  %v199 = vpop.f32.mrb[0].mxu0
  %v200 = vpop.f32.mrb[0].mxu0
  %v201 = vadd.f32 %v72, %v200
  %v202 = vpop.f32.mrb[0].mxu0
  %203 = vdwg.mxu0
  %v204 = vmul.f32 %v198, 0.9995004
  %v205 = vmul.f32 %v201, 0.9995004
  %s206 = scalar_lea.vmem %s5, 16
  %207 = vst.msk [vmem:[%s206] sm:$0xff] %vm129, %v204
  %208 = vst.msk [vmem:[%s206 + $0x8] sm:$0xff] %vm129, %v205
  // Predicated region
  $region22: #{estimation_stage_forward.31} parent=0 // pred_check
    _
  $region23: #{estimation_stage_forward.31} parent=0 // pred_check_branch
    %210 = sbr.rel (0) target = $region25
  $region24: #{estimation_stage_forward.31} parent=0 // pred_region
    _
  $region25: #{estimation_stage_forward.31} parent=0 // pred_fallthru
    _
  // Predicated region
  $region26: #{estimation_stage_forward.31} parent=0 // pred_check
    _
  $region27: #{estimation_stage_forward.31} parent=0 // pred_check_branch
    %212 = sbr.rel (0) target = $region29
  $region28: #{estimation_stage_forward.31} parent=0 // pred_region
    _
  $region29: #{estimation_stage_forward.31} parent=0 // pred_fallthru
    _

// kernel: estimation_stage_forward.39
$region0: #{estimation_stage_forward.39}
  #allocation0 [shape = 'u32[]', space=smem, size = 0x4, offset = 0x4, fixed_abs, tag = 'smem constant byte address 0x4 - core index']
  #allocation1 [shape = 'u32[144,128]{1,0:T(1,128)}', space=vmem, size = 0x12000, scoped, tag = 'internal scratch']
  #allocation2 [shape = 'f32[32,48]{1,0:T(8,128)}', space=vmem, size = 0x4000, scoped, tag = 'scratch operand']
  %s0 = inlined_call_operand.vmem [shape: f32[3], index: 0, kind: input, shape index: {}]
  %s1 = inlined_call_operand.vmem [shape: f32[3,48], index: 1, kind: input, shape index: {}]
  %s2 = inlined_call_operand.vmem [shape: bf16[48,48], index: 2, kind: input, shape index: {}]
  %s3 = inlined_call_operand.vmem [shape: f32[1,48], index: 3, kind: input, shape index: {}]
  %s4 = inlined_call_operand.vmem [shape: f32[2,16,48], index: 4, kind: input, shape index: {}]
  %s5 = inlined_call_operand.vmem [shape: f32[2,16,48], index: 5, kind: input, shape index: {}]
  %s6 = inlined_call_operand.vmem [shape: f32[2,16,48], index: 6, kind: input, shape index: {}]
  %s7 = inlined_call_operand.vmem [shape: f32[2,16,48], index: 7, kind: output, shape index: {}]
  %s8 = sld [smem:[#allocation0]]
  $region42: #{estimation_stage_forward.39} parent=0
    _
  %s10 = ssub.s32 1, %s8
  %s11 = scalar_select 0, %s10, %s8
  $region1: #{estimation_stage_forward.39} parent=0
    #allocation3 [shape = 'u8[512]{0}', space=smem, size = 0x200, scoped, tag = 'input window, operand 0, single buffered']
    #allocation4 [shape = 's32[1]{0}', space=sflag, size = 0x4, scoped, tag = 'scoped memory for estimation_stage_forward.39']
    %12 = vsyncpa [#allocation4], 0
    // Predicated region
    $region2: #{estimation_stage_forward.39} parent=1 // pred_check
      _
    $region3: #{estimation_stage_forward.39} parent=1 // pred_check_branch
      %14 = sbr.rel (0) target = $region5
    $region4: #{estimation_stage_forward.39} parent=1 // pred_region
      %s16 = ssub.s32 16, 16
      %17 = vsyncadd [#allocation4], %s16
      %s19 = sshll.u32 %s0, 4
      %s20 = int_to_ptr.vmem [resolvable:$true] %s19
      %22 = dma.vmem_to_smem %s20, 16, [#allocation3], [#allocation4]
    $region5: #{estimation_stage_forward.39} parent=1 // pred_fallthru
      _
    // Predicated region
    $region6: #{estimation_stage_forward.39} parent=1 // pred_check
      _
    $region7: #{estimation_stage_forward.39} parent=1 // pred_check_branch
      %24 = sbr.rel (0) target = $region9
    $region8: #{estimation_stage_forward.39} parent=1 // pred_region
      _
    $region9: #{estimation_stage_forward.39} parent=1 // pred_fallthru
      _
    // Predicated region
    $region10: #{estimation_stage_forward.39} parent=1 // pred_check
      _
    $region11: #{estimation_stage_forward.39} parent=1 // pred_check_branch
      %26 = sbr.rel (0) target = $region13
    $region12: #{estimation_stage_forward.39} parent=1 // pred_region
      _
    $region13: #{estimation_stage_forward.39} parent=1 // pred_fallthru
      _
    // Predicated region
    $region14: #{estimation_stage_forward.39} parent=1 // pred_check
      _
    $region15: #{estimation_stage_forward.39} parent=1 // pred_check_branch
      %28 = sbr.rel (0) target = $region17
    $region16: #{estimation_stage_forward.39} parent=1 // pred_region
      _
    $region17: #{estimation_stage_forward.39} parent=1 // pred_fallthru
      _
    // Predicated region
    $region18: #{estimation_stage_forward.39} parent=1 // pred_check
      _
    $region19: #{estimation_stage_forward.39} parent=1 // pred_check_branch
      %30 = sbr.rel (0) target = $region21
    $region20: #{estimation_stage_forward.39} parent=1 // pred_region
      _
    $region21: #{estimation_stage_forward.39} parent=1 // pred_fallthru
      _
    // Predicated region
    $region22: #{estimation_stage_forward.39} parent=1 // pred_check
      _
    $region23: #{estimation_stage_forward.39} parent=1 // pred_check_branch
      %32 = sbr.rel (0) target = $region25
    $region24: #{estimation_stage_forward.39} parent=1 // pred_region
      _
    $region25: #{estimation_stage_forward.39} parent=1 // pred_fallthru
      _
    // Predicated region
    $region26: #{estimation_stage_forward.39} parent=1 // pred_check
      _
    $region27: #{estimation_stage_forward.39} parent=1 // pred_check_branch
      %34 = sbr.rel (0) target = $region29
    $region28: #{estimation_stage_forward.39} parent=1 // pred_region
      _
    $region29: #{estimation_stage_forward.39} parent=1 // pred_fallthru
      _
    // Predicated region
    $region30: #{estimation_stage_forward.39} parent=1 // pred_check
      _
    $region31: #{estimation_stage_forward.39} parent=1 // pred_check_branch
      %36 = sbr.rel (0) target = $region33
    $region32: #{estimation_stage_forward.39} parent=1 // pred_region
      %37 = dma.done [#allocation4], 16
    $region33: #{estimation_stage_forward.39} parent=1 // pred_fallthru
      _
    %38 = sfence
    %v40 = vld [vmem:[%s2] sm:$0xf]
    %v41 = vld [vmem:[%s2 + $0x4] sm:$0xf]
    %v42 = vld [vmem:[%s2 + $0x8] sm:$0xf]
    %v43 = vld [vmem:[%s2 + $0xc] sm:$0xf]
    %v44 = vld [vmem:[%s2 + $0x10] sm:$0xf]
    %v45 = vld [vmem:[%s2 + $0x14] sm:$0xf]
    %v46 = vld [vmem:[%s3] sm:$0x1]
    %v47 = vld [vmem:[%s1] sm:$0x1]
    %v48 = vld [vmem:[%s1 + $0x1] sm:$0x1]
    %v49 = vld [vmem:[%s1 + $0x2] sm:$0x1]
    %s50 = sld [smem:[#allocation3]]
    %v51 = vld [vmem:[%s4] sm:$0xff]
    %v52 = vld [vmem:[%s4 + $0x8] sm:$0xff]
    %v53 = vstv %s50
    %v54 = vmul.f32 %v53, %v51
    %v55 = vmul.f32 %v53, %v52
    %s56 = sld [smem:[#allocation3 + $0x1]]
    %v57 = vld [vmem:[%s5] sm:$0xff]
    %v58 = vld [vmem:[%s5 + $0x8] sm:$0xff]
    %v59 = vstv %s56
    %v60 = vmul.f32 %v59, %v57
    %v61 = vmul.f32 %v59, %v58
    %v62 = vadd.f32 %v54, %v60
    %v63 = vadd.f32 %v55, %v61
    %s64 = sld [smem:[#allocation3 + $0x2]]
    %v65 = vld [vmem:[%s6] sm:$0xff]
    %v66 = vld [vmem:[%s6 + $0x8] sm:$0xff]
    %v67 = vstv %s64
    %v68 = vmul.f32 %v67, %v65
    %v69 = vmul.f32 %v67, %v66
    %v70 = vadd.f32 %v62, %v68
    %v71 = vadd.f32 %v63, %v69
    %v72 = vxor.u32 %v70, 2147483648
    %v73 = vxor.u32 %v71, 2147483648
    %v74 = vmul.f32 %v72, 1.442695
    %v75 = vpow.pop %v74
    %v76 = vmul.f32 %v73, 1.442695
    %v77 = vpow.pop %v76
    %v78 = vadd.f32 %v75, 1.0
    %v79 = vadd.f32 %v77, 1.0
    %v80 = vrcp.pop %v78
    %v81 = vmul.f32 1.0, %v80
    %v82 = vrcp.pop %v79
    %v83 = vmul.f32 1.0, %v82
    %v84 = vmul.f32 %v70, %v81
    %v85 = vmul.f32 %v71, %v83
    %vm86 = vcmask 392192
    %87 = vst.msk [vmem:[#allocation2] sm:$0xff] %vm86, 0.0
    %88 = vst.msk [vmem:[#allocation2 + $0x8] sm:$0xff] %vm86, 0.0
    %89 = vst.msk [vmem:[#allocation2 + $0x10] sm:$0xff] %vm86, 0.0
    %90 = vst.msk [vmem:[#allocation2 + $0x18] sm:$0xff] %vm86, 0.0
    %91 = vst.msk [vmem:[#allocation2 + $0x8] sm:$0xff] %vm86, %v84
    %92 = vst.msk [vmem:[#allocation2 + $0x10] sm:$0xff] %vm86, %v85
    %v93 = vld [vmem:[#allocation2 + $0x7] sm:$0xff]
    %v94 = vld [vmem:[#allocation2 + $0xf] sm:$0xff]
    %v95 = vlaneseq
    %v96 = vshrl.u32 %v95, 7
    %v97 = vsub.s32 0, %v96
    %v98 = vrot.slane %v47, %v97
    %v99 = vmul.f32 %v98, %v93
    %v100 = vmul.f32 %v98, %v94
    %v101 = vlaneseq
    %v102 = vshrl.u32 %v101, 7
    %v103 = vsub.s32 0, %v102
    %v104 = vrot.slane %v48, %v103
    %v105 = vmul.f32 %v104, %v84
    %v106 = vmul.f32 %v104, %v85
    %v107 = vadd.f32 %v99, %v105
    %v108 = vadd.f32 %v100, %v106
    %v109 = vld [vmem:[#allocation2 + $0x9] sm:$0xff]
    %v110 = vld [vmem:[#allocation2 + $0x11] sm:$0xff]
    %v111 = vlaneseq
    %v112 = vshrl.u32 %v111, 7
    %v113 = vsub.s32 0, %v112
    %v114 = vrot.slane %v49, %v113
    %v115 = vmul.f32 %v114, %v109
    %v116 = vmul.f32 %v114, %v110
    %v117 = vadd.f32 %v107, %v115
    %v118 = vadd.f32 %v108, %v116
    %v119 = vpack.c.bf16 %v118, %v117
    %v121 = vlaneseq
    %v122 = vshrl.u32 %v121, 7
    %v123 = vsub.s32 0, %v122
    %v124 = vrot.slane %v46, %v123
    %v132 = vunpack.c.l.b16 %v40
    %v133 = vunpack.c.l.b16 %v41
    %v134 = vunpack.c.l.b16 %v42
    %v135 = vunpack.c.l.b16 %v43
    %v136 = vunpack.c.l.b16 %v44
    %v137 = vunpack.c.l.b16 %v45
    %v138 = vpack.c.b16 %v133, %v132
    %v139 = vpack.c.b16 %v135, %v134
    %v140 = vpack.c.b16 %v137, %v136
    %v145 = vsel %vm86, %v119, 0
    %147 = vmatprep.subr.bf16.mxu0 0
    %148 = vmatpush1.bf16.msra.mxu0 %v138
    %149 = vmatprep.subr.bf16.mxu0 0
    %150 = vmatpush1.bf16.msra.mxu0 %v139
    %151 = vmatprep.subr.bf16.mxu0 0
    %152 = vmatpush1.bf16.msra.mxu0 %v140
    %153 = vmatprep.subr.bf16.mxu0 0
    %154 = vmatpush1.bf16.msra.mxu0 0
    %155 = vmatprep.subr.bf16.mxu0 0
    %156 = vmatpush1.bf16.msra.mxu0 0
    %157 = vmatprep.subr.bf16.mxu0 0
    %158 = vmatpush1.bf16.msra.mxu0 0
    %159 = vmatprep.subr.bf16.mxu0 0
    %160 = vmatpush1.bf16.msra.mxu0 0
    %161 = vmatprep.subr.bf16.mxu0 0
    %162 = vmatpush1.bf16.msra.mxu0 0
    %163 = vmatprep.subr.bf16.mxu0 0
    %164 = vmatpush1.bf16.msra.mxu0 0
    %165 = vmatprep.subr.bf16.mxu0 0
    %166 = vmatpush1.bf16.msra.mxu0 0
    %167 = vmatprep.subr.bf16.mxu0 0
    %168 = vmatpush1.bf16.msra.mxu0 0
    %169 = vmatprep.subr.bf16.mxu0 0
    %170 = vmatpush1.bf16.msra.mxu0 0
    %171 = vmatprep.subr.bf16.mxu0 0
    %172 = vmatpush1.bf16.msra.mxu0 0
    %173 = vmatprep.subr.bf16.mxu0 0
    %174 = vmatpush1.bf16.msra.mxu0 0
    %175 = vmatprep.subr.bf16.mxu0 0
    %176 = vmatpush1.bf16.msra.mxu0 0
    %177 = vmatprep.subr.bf16.mxu0 0
    %178 = vmatpush1.bf16.msra.mxu0 0
    %179 = vmatprep.mubr.bf16.mxu0 0
    %180 = vmatmul.mubr.bf16.gmra.mrb[0].mxu0 %v145
    %v181 = vpop.f32.mrb[0].mxu0
    %v182 = vadd.f32 %v124, %v181
    %v183 = vpop.f32.mrb[0].mxu0
    %v184 = vpop.f32.mrb[0].mxu0
    %v185 = vadd.f32 %v124, %v184
    %v186 = vpop.f32.mrb[0].mxu0
    %187 = vdwg.mxu0
    %v188 = vmul.f32 %v182, 0.9995004
    %v189 = vmul.f32 %v185, 0.9995004
    %190 = vst.msk [vmem:[%s7] sm:$0xff] %vm86, %v188
    %191 = vst.msk [vmem:[%s7 + $0x8] sm:$0xff] %vm86, %v189
    %s192 = sld [smem:[#allocation3]]
    %s193 = scalar_lea.vmem %s4, 16
    %v194 = vld [vmem:[%s193] sm:$0xff]
    %v195 = vld [vmem:[%s193 + $0x8] sm:$0xff]
    %v196 = vstv %s192
    %v197 = vmul.f32 %v196, %v194
    %v198 = vmul.f32 %v196, %v195
    %s199 = sld [smem:[#allocation3 + $0x1]]
    %s200 = scalar_lea.vmem %s5, 16
    %v201 = vld [vmem:[%s200] sm:$0xff]
    %v202 = vld [vmem:[%s200 + $0x8] sm:$0xff]
    %v203 = vstv %s199
    %v204 = vmul.f32 %v203, %v201
    %v205 = vmul.f32 %v203, %v202
    %v206 = vadd.f32 %v197, %v204
    %v207 = vadd.f32 %v198, %v205
    %s208 = sld [smem:[#allocation3 + $0x2]]
    %s209 = scalar_lea.vmem %s6, 16
    %v210 = vld [vmem:[%s209] sm:$0xff]
    %v211 = vld [vmem:[%s209 + $0x8] sm:$0xff]
    %v212 = vstv %s208
    %v213 = vmul.f32 %v212, %v210
    %v214 = vmul.f32 %v212, %v211
    %v215 = vadd.f32 %v206, %v213
    %v216 = vadd.f32 %v207, %v214
    %v217 = vxor.u32 %v215, 2147483648
    %v218 = vxor.u32 %v216, 2147483648
    %v219 = vmul.f32 %v217, 1.442695
    %v220 = vpow.pop %v219
    %v221 = vmul.f32 %v218, 1.442695
    %v222 = vpow.pop %v221
    %v223 = vadd.f32 %v220, 1.0
    %v224 = vadd.f32 %v222, 1.0
    %v225 = vrcp.pop %v223
    %v226 = vmul.f32 1.0, %v225
    %v227 = vrcp.pop %v224
    %v228 = vmul.f32 1.0, %v227
    %v229 = vmul.f32 %v215, %v226
    %v230 = vmul.f32 %v216, %v228
    %231 = vst.msk [vmem:[#allocation2] sm:$0xff] %vm86, 0.0
    %232 = vst.msk [vmem:[#allocation2 + $0x8] sm:$0xff] %vm86, 0.0
    %233 = vst.msk [vmem:[#allocation2 + $0x10] sm:$0xff] %vm86, 0.0
    %234 = vst.msk [vmem:[#allocation2 + $0x18] sm:$0xff] %vm86, 0.0
    %235 = vst.msk [vmem:[#allocation2 + $0x8] sm:$0xff] %vm86, %v229
    %236 = vst.msk [vmem:[#allocation2 + $0x10] sm:$0xff] %vm86, %v230
    %v237 = vld [vmem:[#allocation2 + $0x7] sm:$0xff]
    %v238 = vld [vmem:[#allocation2 + $0xf] sm:$0xff]
    %v239 = vmul.f32 %v98, %v237
    %v240 = vmul.f32 %v98, %v238
    %v241 = vmul.f32 %v104, %v229
    %v242 = vmul.f32 %v104, %v230
    %v243 = vadd.f32 %v239, %v241
    %v244 = vadd.f32 %v240, %v242
    %v245 = vld [vmem:[#allocation2 + $0x9] sm:$0xff]
    %v246 = vld [vmem:[#allocation2 + $0x11] sm:$0xff]
    %v247 = vmul.f32 %v114, %v245
    %v248 = vmul.f32 %v114, %v246
    %v249 = vadd.f32 %v243, %v247
    %v250 = vadd.f32 %v244, %v248
    %v251 = vpack.c.bf16 %v250, %v249
    %v253 = vsel %vm86, %v251, 0
    %255 = vmatprep.subr.bf16.mxu0 0
    %256 = vmatpush1.bf16.msra.mxu0 %v138
    %257 = vmatprep.subr.bf16.mxu0 0
    %258 = vmatpush1.bf16.msra.mxu0 %v139
    %259 = vmatprep.subr.bf16.mxu0 0
    %260 = vmatpush1.bf16.msra.mxu0 %v140
    %261 = vmatprep.subr.bf16.mxu0 0
    %262 = vmatpush1.bf16.msra.mxu0 0
    %263 = vmatprep.subr.bf16.mxu0 0
    %264 = vmatpush1.bf16.msra.mxu0 0
    %265 = vmatprep.subr.bf16.mxu0 0
    %266 = vmatpush1.bf16.msra.mxu0 0
    %267 = vmatprep.subr.bf16.mxu0 0
    %268 = vmatpush1.bf16.msra.mxu0 0
    %269 = vmatprep.subr.bf16.mxu0 0
    %270 = vmatpush1.bf16.msra.mxu0 0
    %271 = vmatprep.subr.bf16.mxu0 0
    %272 = vmatpush1.bf16.msra.mxu0 0
    %273 = vmatprep.subr.bf16.mxu0 0
    %274 = vmatpush1.bf16.msra.mxu0 0
    %275 = vmatprep.subr.bf16.mxu0 0
    %276 = vmatpush1.bf16.msra.mxu0 0
    %277 = vmatprep.subr.bf16.mxu0 0
    %278 = vmatpush1.bf16.msra.mxu0 0
    %279 = vmatprep.subr.bf16.mxu0 0
    %280 = vmatpush1.bf16.msra.mxu0 0
    %281 = vmatprep.subr.bf16.mxu0 0
    %282 = vmatpush1.bf16.msra.mxu0 0
    %283 = vmatprep.subr.bf16.mxu0 0
    %284 = vmatpush1.bf16.msra.mxu0 0
    %285 = vmatprep.subr.bf16.mxu0 0
    %286 = vmatpush1.bf16.msra.mxu0 0
    %287 = vmatprep.mubr.bf16.mxu0 0
    %288 = vmatmul.mubr.bf16.gmra.mrb[0].mxu0 %v253
    %v289 = vpop.f32.mrb[0].mxu0
    %v290 = vadd.f32 %v124, %v289
    %v291 = vpop.f32.mrb[0].mxu0
    %v292 = vpop.f32.mrb[0].mxu0
    %v293 = vadd.f32 %v124, %v292
    %v294 = vpop.f32.mrb[0].mxu0
    %295 = vdwg.mxu0
    %v296 = vmul.f32 %v290, 0.9995004
    %v297 = vmul.f32 %v293, 0.9995004
    %s298 = scalar_lea.vmem %s7, 16
    %299 = vst.msk [vmem:[%s298] sm:$0xff] %vm86, %v296
    %300 = vst.msk [vmem:[%s298 + $0x8] sm:$0xff] %vm86, %v297
    // Predicated region
    $region34: #{estimation_stage_forward.39} parent=1 // pred_check
      _
    $region35: #{estimation_stage_forward.39} parent=1 // pred_check_branch
      %302 = sbr.rel (0) target = $region37
    $region36: #{estimation_stage_forward.39} parent=1 // pred_region
      _
    $region37: #{estimation_stage_forward.39} parent=1 // pred_fallthru
      _
    // Predicated region
    $region38: #{estimation_stage_forward.39} parent=1 // pred_check
      _
    $region39: #{estimation_stage_forward.39} parent=1 // pred_check_branch
      %304 = sbr.rel (0) target = $region41
    $region40: #{estimation_stage_forward.39} parent=1 // pred_region
      _
    $region41: #{estimation_stage_forward.39} parent=1 // pred_fallthru
      _
    %305 = vsyncpa [#allocation4], 1

// kernel: estimation_stage_forward.43
$region0: #{estimation_stage_forward.43}
  #allocation0 [shape = 'u32[]', space=smem, size = 0x4, offset = 0x4, fixed_abs, tag = 'smem constant byte address 0x4 - core index']
  #allocation1 [shape = 'u32[144,128]{1,0:T(1,128)}', space=vmem, size = 0x12000, scoped, tag = 'internal scratch']
  %s0 = inlined_call_operand.vmem [shape: bf16[32,240], index: 0, kind: input, shape index: {}]
  %s1 = inlined_call_operand.vmem [shape: bf16[240,360], index: 1, kind: input, shape index: {}]
  %s2 = inlined_call_operand.vmem [shape: f32[1,360], index: 2, kind: input, shape index: {}]
  %s3 = inlined_call_operand.hbm [shape: f32[32,360], index: 3, kind: output, shape index: {}]
  %s4 = sld [smem:[#allocation0]]
  $region22: #{estimation_stage_forward.43} parent=0
    _
  %s6 = ssub.s32 1, %s4
  %s7 = scalar_select 0, %s6, %s4
  $region1: #{estimation_stage_forward.43} parent=0
    #allocation2 [shape = 'u8[49152]{0}', space=vmem, size = 0xc000, scoped, tag = 'output window, operand 0, single buffered']
    #allocation3 [shape = 's32[1]{0}', space=sflag, size = 0x4, scoped, tag = 'scoped memory for estimation_stage_forward.43']
    %8 = vsyncpa [#allocation3], 0
    // Predicated region
    $region2: #{estimation_stage_forward.43} parent=1 // pred_check
      _
    $region3: #{estimation_stage_forward.43} parent=1 // pred_check_branch
      %10 = sbr.rel (0) target = $region5
    $region4: #{estimation_stage_forward.43} parent=1 // pred_region
      _
    $region5: #{estimation_stage_forward.43} parent=1 // pred_fallthru
      _
    // Predicated region
    $region6: #{estimation_stage_forward.43} parent=1 // pred_check
      _
    $region7: #{estimation_stage_forward.43} parent=1 // pred_check_branch
      %12 = sbr.rel (0) target = $region9
    $region8: #{estimation_stage_forward.43} parent=1 // pred_region
      _
    $region9: #{estimation_stage_forward.43} parent=1 // pred_fallthru
      _
    // Predicated region
    $region10: #{estimation_stage_forward.43} parent=1 // pred_check
      _
    $region11: #{estimation_stage_forward.43} parent=1 // pred_check_branch
      %14 = sbr.rel (0) target = $region13
    $region12: #{estimation_stage_forward.43} parent=1 // pred_region
      _
    $region13: #{estimation_stage_forward.43} parent=1 // pred_fallthru
      _
    %v16 = vld [vmem:[%s0] sm:$0xff]
    %v17 = vld [vmem:[%s0 + $0x8] sm:$0xff]
    %v18 = vld [vmem:[%s0 + $0x10] sm:$0xff]
    %v19 = vld [vmem:[%s0 + $0x18] sm:$0xff]
    %v20 = vld [vmem:[%s1] sm:$0xff]
    %v21 = vld [vmem:[%s1 + $0x8] sm:$0xf]
    %v22 = vld [vmem:[%s1 + $0xc] sm:$0xff]
    %v23 = vld [vmem:[%s1 + $0x14] sm:$0xf]
    %v24 = vld [vmem:[%s1 + $0x18] sm:$0xff]
    %v25 = vld [vmem:[%s1 + $0x20] sm:$0xf]
    %v26 = vld [vmem:[%s1 + $0x24] sm:$0xff]
    %v27 = vld [vmem:[%s1 + $0x2c] sm:$0xf]
    %v28 = vld [vmem:[%s1 + $0x30] sm:$0xff]
    %v29 = vld [vmem:[%s1 + $0x38] sm:$0xf]
    %v30 = vld [vmem:[%s1 + $0x3c] sm:$0xff]
    %v31 = vld [vmem:[%s1 + $0x44] sm:$0xf]
    %v32 = vld [vmem:[%s1 + $0x48] sm:$0xff]
    %v33 = vld [vmem:[%s1 + $0x50] sm:$0xf]
    %v34 = vld [vmem:[%s1 + $0x54] sm:$0xff]
    %v35 = vld [vmem:[%s1 + $0x5c] sm:$0xf]
    %v36 = vld [vmem:[%s1 + $0x60] sm:$0xff]
    %v37 = vld [vmem:[%s1 + $0x68] sm:$0xf]
    %v38 = vld [vmem:[%s1 + $0x6c] sm:$0xff]
    %v39 = vld [vmem:[%s1 + $0x74] sm:$0xf]
    %v40 = vld [vmem:[%s1 + $0x78] sm:$0xff]
    %v41 = vld [vmem:[%s1 + $0x80] sm:$0xf]
    %v42 = vld [vmem:[%s1 + $0x84] sm:$0xff]
    %v43 = vld [vmem:[%s1 + $0x8c] sm:$0xf]
    %v44 = vld [vmem:[%s1 + $0x90] sm:$0xff]
    %v45 = vld [vmem:[%s1 + $0x98] sm:$0xf]
    %v46 = vld [vmem:[%s1 + $0x9c] sm:$0xff]
    %v47 = vld [vmem:[%s1 + $0xa4] sm:$0xf]
    %v48 = vld [vmem:[%s1 + $0xa8] sm:$0xff]
    %v49 = vld [vmem:[%s1 + $0xb0] sm:$0xf]
    %v50 = vld [vmem:[%s1 + $0xb4] sm:$0xff]
    %v51 = vld [vmem:[%s1 + $0xbc] sm:$0xf]
    %v52 = vld [vmem:[%s1 + $0xc0] sm:$0xff]
    %v53 = vld [vmem:[%s1 + $0xc8] sm:$0xf]
    %v54 = vld [vmem:[%s1 + $0xcc] sm:$0xff]
    %v55 = vld [vmem:[%s1 + $0xd4] sm:$0xf]
    %v56 = vld [vmem:[%s1 + $0xd8] sm:$0xff]
    %v57 = vld [vmem:[%s1 + $0xe0] sm:$0xf]
    %v58 = vld [vmem:[%s1 + $0xe4] sm:$0xff]
    %v59 = vld [vmem:[%s1 + $0xec] sm:$0xf]
    %v60 = vld [vmem:[%s1 + $0xf0] sm:$0xff]
    %v61 = vld [vmem:[%s1 + $0xf8] sm:$0xf]
    %v62 = vld [vmem:[%s1 + $0xfc] sm:$0xff]
    %v63 = vld [vmem:[%s1 + $0x104] sm:$0xf]
    %v64 = vld [vmem:[%s1 + $0x108] sm:$0xff]
    %v65 = vld [vmem:[%s1 + $0x110] sm:$0xf]
    %v66 = vld [vmem:[%s1 + $0x114] sm:$0xff]
    %v67 = vld [vmem:[%s1 + $0x11c] sm:$0xf]
    %v68 = vld [vmem:[%s1 + $0x120] sm:$0xff]
    %v69 = vld [vmem:[%s1 + $0x128] sm:$0xf]
    %v70 = vld [vmem:[%s1 + $0x12c] sm:$0xff]
    %v71 = vld [vmem:[%s1 + $0x134] sm:$0xf]
    %v72 = vld [vmem:[%s1 + $0x138] sm:$0xff]
    %v73 = vld [vmem:[%s1 + $0x140] sm:$0xf]
    %v74 = vld [vmem:[%s1 + $0x144] sm:$0xff]
    %v75 = vld [vmem:[%s1 + $0x14c] sm:$0xf]
    %v76 = vld [vmem:[%s1 + $0x150] sm:$0xff]
    %v77 = vld [vmem:[%s1 + $0x158] sm:$0xf]
    %v78 = vld [vmem:[%s1 + $0x15c] sm:$0xff]
    %v79 = vld [vmem:[%s1 + $0x164] sm:$0xf]
    %v80 = vld [vmem:[%s2] sm:$0x7]
    %v82 = vlaneseq
    %v83 = vshrl.u32 %v82, 7
    %v84 = vsub.s32 0, %v83
    %v85 = vrot.slane %v80, %v84
    %v86 = vlaneseq
    %v87 = vshrl.u32 %v86, 7
    %v88 = vsub.s32 1, %v87
    %v89 = vrot.slane %v80, %v88
    %v90 = vlaneseq
    %v91 = vshrl.u32 %v90, 7
    %v92 = vsub.s32 2, %v91
    %v93 = vrot.slane %v80, %v92
    %v101 = vunpack.c.l.b16 %v16
    %v102 = vunpack.c.h.b16 %v16
    %v103 = vunpack.c.l.b16 %v17
    %v104 = vunpack.c.h.b16 %v17
    %v105 = vunpack.c.l.b16 %v18
    %v106 = vunpack.c.h.b16 %v18
    %v107 = vunpack.c.l.b16 %v19
    %v108 = vunpack.c.h.b16 %v19
    %v109 = vpack.c.b16 %v103, %v101
    %v110 = vpack.c.b16 %v104, %v102
    %v111 = vpack.c.b16 %v107, %v105
    %v112 = vpack.c.b16 %v108, %v106
    %v175 = vunpack.c.l.b16 %v20
    %v176 = vunpack.c.h.b16 %v20
    %v177 = vunpack.c.l.b16 %v21
    %v178 = vunpack.c.l.b16 %v22
    %v179 = vunpack.c.h.b16 %v22
    %v180 = vunpack.c.l.b16 %v23
    %v181 = vunpack.c.l.b16 %v24
    %v182 = vunpack.c.h.b16 %v24
    %v183 = vunpack.c.l.b16 %v25
    %v184 = vunpack.c.l.b16 %v26
    %v185 = vunpack.c.h.b16 %v26
    %v186 = vunpack.c.l.b16 %v27
    %v187 = vunpack.c.l.b16 %v28
    %v188 = vunpack.c.h.b16 %v28
    %v189 = vunpack.c.l.b16 %v29
    %v190 = vunpack.c.l.b16 %v30
    %v191 = vunpack.c.h.b16 %v30
    %v192 = vunpack.c.l.b16 %v31
    %v193 = vunpack.c.l.b16 %v32
    %v194 = vunpack.c.h.b16 %v32
    %v195 = vunpack.c.l.b16 %v33
    %v196 = vunpack.c.l.b16 %v34
    %v197 = vunpack.c.h.b16 %v34
    %v198 = vunpack.c.l.b16 %v35
    %v199 = vunpack.c.l.b16 %v36
    %v200 = vunpack.c.h.b16 %v36
    %v201 = vunpack.c.l.b16 %v37
    %v202 = vunpack.c.l.b16 %v38
    %v203 = vunpack.c.h.b16 %v38
    %v204 = vunpack.c.l.b16 %v39
    %v205 = vunpack.c.l.b16 %v40
    %v206 = vunpack.c.h.b16 %v40
    %v207 = vunpack.c.l.b16 %v41
    %v208 = vunpack.c.l.b16 %v42
    %v209 = vunpack.c.h.b16 %v42
    %v210 = vunpack.c.l.b16 %v43
    %v211 = vunpack.c.l.b16 %v44
    %v212 = vunpack.c.h.b16 %v44
    %v213 = vunpack.c.l.b16 %v45
    %v214 = vunpack.c.l.b16 %v46
    %v215 = vunpack.c.h.b16 %v46
    %v216 = vunpack.c.l.b16 %v47
    %v217 = vunpack.c.l.b16 %v48
    %v218 = vunpack.c.h.b16 %v48
    %v219 = vunpack.c.l.b16 %v49
    %v220 = vunpack.c.l.b16 %v50
    %v221 = vunpack.c.h.b16 %v50
    %v222 = vunpack.c.l.b16 %v51
    %v223 = vunpack.c.l.b16 %v52
    %v224 = vunpack.c.h.b16 %v52
    %v225 = vunpack.c.l.b16 %v53
    %v226 = vunpack.c.l.b16 %v54
    %v227 = vunpack.c.h.b16 %v54
    %v228 = vunpack.c.l.b16 %v55
    %v229 = vunpack.c.l.b16 %v56
    %v230 = vunpack.c.h.b16 %v56
    %v231 = vunpack.c.l.b16 %v57
    %v232 = vunpack.c.l.b16 %v58
    %v233 = vunpack.c.h.b16 %v58
    %v234 = vunpack.c.l.b16 %v59
    %v235 = vunpack.c.l.b16 %v60
    %v236 = vunpack.c.h.b16 %v60
    %v237 = vunpack.c.l.b16 %v61
    %v238 = vunpack.c.l.b16 %v62
    %v239 = vunpack.c.h.b16 %v62
    %v240 = vunpack.c.l.b16 %v63
    %v241 = vunpack.c.l.b16 %v64
    %v242 = vunpack.c.h.b16 %v64
    %v243 = vunpack.c.l.b16 %v65
    %v244 = vunpack.c.l.b16 %v66
    %v245 = vunpack.c.h.b16 %v66
    %v246 = vunpack.c.l.b16 %v67
    %v247 = vunpack.c.l.b16 %v68
    %v248 = vunpack.c.h.b16 %v68
    %v249 = vunpack.c.l.b16 %v69
    %v250 = vunpack.c.l.b16 %v70
    %v251 = vunpack.c.h.b16 %v70
    %v252 = vunpack.c.l.b16 %v71
    %v253 = vunpack.c.l.b16 %v72
    %v254 = vunpack.c.h.b16 %v72
    %v255 = vunpack.c.l.b16 %v73
    %v256 = vunpack.c.l.b16 %v74
    %v257 = vunpack.c.h.b16 %v74
    %v258 = vunpack.c.l.b16 %v75
    %v259 = vunpack.c.l.b16 %v76
    %v260 = vunpack.c.h.b16 %v76
    %v261 = vunpack.c.l.b16 %v77
    %v262 = vunpack.c.l.b16 %v78
    %v263 = vunpack.c.h.b16 %v78
    %v264 = vunpack.c.l.b16 %v79
    %v265 = vpack.c.b16 %v178, %v175
    %v266 = vpack.c.b16 %v179, %v176
    %v267 = vpack.c.b16 %v180, %v177
    %v268 = vpack.c.b16 %v184, %v181
    %v269 = vpack.c.b16 %v185, %v182
    %v270 = vpack.c.b16 %v186, %v183
    %v271 = vpack.c.b16 %v190, %v187
    %v272 = vpack.c.b16 %v191, %v188
    %v273 = vpack.c.b16 %v192, %v189
    %v274 = vpack.c.b16 %v196, %v193
    %v275 = vpack.c.b16 %v197, %v194
    %v276 = vpack.c.b16 %v198, %v195
    %v277 = vpack.c.b16 %v202, %v199
    %v278 = vpack.c.b16 %v203, %v200
    %v279 = vpack.c.b16 %v204, %v201
    %v280 = vpack.c.b16 %v208, %v205
    %v281 = vpack.c.b16 %v209, %v206
    %v282 = vpack.c.b16 %v210, %v207
    %v283 = vpack.c.b16 %v214, %v211
    %v284 = vpack.c.b16 %v215, %v212
    %v285 = vpack.c.b16 %v216, %v213
    %v286 = vpack.c.b16 %v220, %v217
    %v287 = vpack.c.b16 %v221, %v218
    %v288 = vpack.c.b16 %v222, %v219
    %v289 = vpack.c.b16 %v226, %v223
    %v290 = vpack.c.b16 %v227, %v224
    %v291 = vpack.c.b16 %v228, %v225
    %v292 = vpack.c.b16 %v232, %v229
    %v293 = vpack.c.b16 %v233, %v230
    %v294 = vpack.c.b16 %v234, %v231
    %v295 = vpack.c.b16 %v238, %v235
    %v296 = vpack.c.b16 %v239, %v236
    %v297 = vpack.c.b16 %v240, %v237
    %v298 = vpack.c.b16 %v244, %v241
    %v299 = vpack.c.b16 %v245, %v242
    %v300 = vpack.c.b16 %v246, %v243
    %v301 = vpack.c.b16 %v250, %v247
    %v302 = vpack.c.b16 %v251, %v248
    %v303 = vpack.c.b16 %v252, %v249
    %v304 = vpack.c.b16 %v256, %v253
    %v305 = vpack.c.b16 %v257, %v254
    %v306 = vpack.c.b16 %v258, %v255
    %v307 = vpack.c.b16 %v262, %v259
    %v308 = vpack.c.b16 %v263, %v260
    %v309 = vpack.c.b16 %v264, %v261
    %vm355 = vcmask 916480
    %v357 = vsel %vm355, %v110, 0
    %v360 = vsel %vm355, %v112, 0
    %362 = vmatprep.subr.bf16.mxu0 %v266
    %363 = vmatpush1.bf16.msra.mxu0 %v265
    %364 = vmatprep.subr.bf16.mxu0 %v269
    %365 = vmatpush1.bf16.msra.mxu0 %v268
    %366 = vmatprep.subr.bf16.mxu0 %v272
    %367 = vmatpush1.bf16.msra.mxu0 %v271
    %368 = vmatprep.subr.bf16.mxu0 %v275
    %369 = vmatpush1.bf16.msra.mxu0 %v274
    %370 = vmatprep.subr.bf16.mxu0 %v278
    %371 = vmatpush1.bf16.msra.mxu0 %v277
    %372 = vmatprep.subr.bf16.mxu0 %v281
    %373 = vmatpush1.bf16.msra.mxu0 %v280
    %374 = vmatprep.subr.bf16.mxu0 %v284
    %375 = vmatpush1.bf16.msra.mxu0 %v283
    %376 = vmatprep.subr.bf16.mxu0 %v287
    %377 = vmatpush1.bf16.msra.mxu0 %v286
    %378 = vmatprep.subr.bf16.mxu0 %v290
    %379 = vmatpush1.bf16.msra.mxu0 %v289
    %380 = vmatprep.subr.bf16.mxu0 %v293
    %381 = vmatpush1.bf16.msra.mxu0 %v292
    %382 = vmatprep.subr.bf16.mxu0 %v296
    %383 = vmatpush1.bf16.msra.mxu0 %v295
    %384 = vmatprep.subr.bf16.mxu0 %v299
    %385 = vmatpush1.bf16.msra.mxu0 %v298
    %386 = vmatprep.subr.bf16.mxu0 %v302
    %387 = vmatpush1.bf16.msra.mxu0 %v301
    %388 = vmatprep.subr.bf16.mxu0 %v305
    %389 = vmatpush1.bf16.msra.mxu0 %v304
    %390 = vmatprep.subr.bf16.mxu0 %v308
    %391 = vmatpush1.bf16.msra.mxu0 %v307
    %392 = vmatprep.subr.bf16.mxu0 0
    %393 = vmatpush1.bf16.msra.mxu0 0
    %394 = vmatprep.mubr.bf16.mxu0 %v357
    %395 = vmatmul.mubr.bf16.gmra.mrb[0].mxu0 %v109
    %v396 = vpop.f32.mrb[0].mxu0
    %v397 = vadd.f32 %v85, %v396
    %v398 = vpop.f32.mrb[0].mxu0
    %v399 = vadd.f32 %v89, %v398
    %v400 = vpop.f32.mrb[0].mxu0
    %v401 = vadd.f32 %v85, %v400
    %v402 = vpop.f32.mrb[0].mxu0
    %v403 = vadd.f32 %v89, %v402
    %404 = vmatprep.mubr.bf16.mxu0 %v360
    %405 = vmatmul.mubr.bf16.gmra.mrb[0].mxu0 %v111
    %v406 = vpop.f32.mrb[0].mxu0
    %v407 = vadd.f32 %v85, %v406
    %v408 = vpop.f32.mrb[0].mxu0
    %v409 = vadd.f32 %v89, %v408
    %v410 = vpop.f32.mrb[0].mxu0
    %v411 = vadd.f32 %v85, %v410
    %v412 = vpop.f32.mrb[0].mxu0
    %v413 = vadd.f32 %v89, %v412
    %414 = vdwg.mxu0
    %415 = vmatprep.subr.bf16.mxu0 0
    %416 = vmatpush1.bf16.msra.mxu0 %v267
    %417 = vmatprep.subr.bf16.mxu0 0
    %418 = vmatpush1.bf16.msra.mxu0 %v270
    %419 = vmatprep.subr.bf16.mxu0 0
    %420 = vmatpush1.bf16.msra.mxu0 %v273
    %421 = vmatprep.subr.bf16.mxu0 0
    %422 = vmatpush1.bf16.msra.mxu0 %v276
    %423 = vmatprep.subr.bf16.mxu0 0
    %424 = vmatpush1.bf16.msra.mxu0 %v279
    %425 = vmatprep.subr.bf16.mxu0 0
    %426 = vmatpush1.bf16.msra.mxu0 %v282
    %427 = vmatprep.subr.bf16.mxu0 0
    %428 = vmatpush1.bf16.msra.mxu0 %v285
    %429 = vmatprep.subr.bf16.mxu0 0
    %430 = vmatpush1.bf16.msra.mxu0 %v288
    %431 = vmatprep.subr.bf16.mxu0 0
    %432 = vmatpush1.bf16.msra.mxu0 %v291
    %433 = vmatprep.subr.bf16.mxu0 0
    %434 = vmatpush1.bf16.msra.mxu0 %v294
    %435 = vmatprep.subr.bf16.mxu0 0
    %436 = vmatpush1.bf16.msra.mxu0 %v297
    %437 = vmatprep.subr.bf16.mxu0 0
    %438 = vmatpush1.bf16.msra.mxu0 %v300
    %439 = vmatprep.subr.bf16.mxu0 0
    %440 = vmatpush1.bf16.msra.mxu0 %v303
    %441 = vmatprep.subr.bf16.mxu0 0
    %442 = vmatpush1.bf16.msra.mxu0 %v306
    %443 = vmatprep.subr.bf16.mxu0 0
    %444 = vmatpush1.bf16.msra.mxu0 %v309
    %445 = vmatprep.subr.bf16.mxu0 0
    %446 = vmatpush1.bf16.msra.mxu0 0
    %447 = vmatprep.mubr.bf16.mxu0 %v357
    %448 = vmatmul.mubr.bf16.gmra.mrb[0].mxu0 %v109
    %v449 = vpop.f32.mrb[0].mxu0
    %v450 = vadd.f32 %v93, %v449
    %v451 = vpop.f32.mrb[0].mxu0
    %v452 = vpop.f32.mrb[0].mxu0
    %v453 = vadd.f32 %v93, %v452
    %v454 = vpop.f32.mrb[0].mxu0
    %455 = vmatprep.mubr.bf16.mxu0 %v360
    %456 = vmatmul.mubr.bf16.gmra.mrb[0].mxu0 %v111
    %v457 = vpop.f32.mrb[0].mxu0
    %v458 = vadd.f32 %v93, %v457
    %v459 = vpop.f32.mrb[0].mxu0
    %v460 = vpop.f32.mrb[0].mxu0
    %v461 = vadd.f32 %v93, %v460
    %v462 = vpop.f32.mrb[0].mxu0
    %463 = vdwg.mxu0
    %v464 = vxor.u32 %v397, 2147483648
    %v465 = vxor.u32 %v399, 2147483648
    %v466 = vxor.u32 %v450, 2147483648
    %v467 = vxor.u32 %v401, 2147483648
    %v468 = vxor.u32 %v403, 2147483648
    %v469 = vxor.u32 %v453, 2147483648
    %v470 = vxor.u32 %v407, 2147483648
    %v471 = vxor.u32 %v409, 2147483648
    %v472 = vxor.u32 %v458, 2147483648
    %v473 = vxor.u32 %v411, 2147483648
    %v474 = vxor.u32 %v413, 2147483648
    %v475 = vxor.u32 %v461, 2147483648
    %v476 = vmul.f32 %v464, 1.442695
    %v477 = vpow.pop %v476
    %v478 = vmul.f32 %v465, 1.442695
    %v479 = vpow.pop %v478
    %v480 = vmul.f32 %v466, 1.442695
    %v481 = vpow.pop %v480
    %v482 = vmul.f32 %v467, 1.442695
    %v483 = vpow.pop %v482
    %v484 = vmul.f32 %v468, 1.442695
    %v485 = vpow.pop %v484
    %v486 = vmul.f32 %v469, 1.442695
    %v487 = vpow.pop %v486
    %v488 = vmul.f32 %v470, 1.442695
    %v489 = vpow.pop %v488
    %v490 = vmul.f32 %v471, 1.442695
    %v491 = vpow.pop %v490
    %v492 = vmul.f32 %v472, 1.442695
    %v493 = vpow.pop %v492
    %v494 = vmul.f32 %v473, 1.442695
    %v495 = vpow.pop %v494
    %v496 = vmul.f32 %v474, 1.442695
    %v497 = vpow.pop %v496
    %v498 = vmul.f32 %v475, 1.442695
    %v499 = vpow.pop %v498
    %v500 = vadd.f32 %v477, 1.0
    %v501 = vadd.f32 %v479, 1.0
    %v502 = vadd.f32 %v481, 1.0
    %v503 = vadd.f32 %v483, 1.0
    %v504 = vadd.f32 %v485, 1.0
    %v505 = vadd.f32 %v487, 1.0
    %v506 = vadd.f32 %v489, 1.0
    %v507 = vadd.f32 %v491, 1.0
    %v508 = vadd.f32 %v493, 1.0
    %v509 = vadd.f32 %v495, 1.0
    %v510 = vadd.f32 %v497, 1.0
    %v511 = vadd.f32 %v499, 1.0
    %v512 = vrcp.pop %v500
    %v513 = vmul.f32 1.0, %v512
    %v514 = vrcp.pop %v501
    %v515 = vmul.f32 1.0, %v514
    %v516 = vrcp.pop %v502
    %v517 = vmul.f32 1.0, %v516
    %v518 = vrcp.pop %v503
    %v519 = vmul.f32 1.0, %v518
    %v520 = vrcp.pop %v504
    %v521 = vmul.f32 1.0, %v520
    %v522 = vrcp.pop %v505
    %v523 = vmul.f32 1.0, %v522
    %v524 = vrcp.pop %v506
    %v525 = vmul.f32 1.0, %v524
    %v526 = vrcp.pop %v507
    %v527 = vmul.f32 1.0, %v526
    %v528 = vrcp.pop %v508
    %v529 = vmul.f32 1.0, %v528
    %v530 = vrcp.pop %v509
    %v531 = vmul.f32 1.0, %v530
    %v532 = vrcp.pop %v510
    %v533 = vmul.f32 1.0, %v532
    %v534 = vrcp.pop %v511
    %v535 = vmul.f32 1.0, %v534
    %536 = vst [vmem:[#allocation2] sm:$0xff] %v513
    %537 = vst [vmem:[#allocation2 + $0x8] sm:$0xff] %v515
    %vm538 = vcmask 850944
    %539 = vst.msk [vmem:[#allocation2 + $0x10] sm:$0xff] %vm538, %v517
    %540 = vst [vmem:[#allocation2 + $0x18] sm:$0xff] %v519
    %541 = vst [vmem:[#allocation2 + $0x20] sm:$0xff] %v521
    %542 = vst.msk [vmem:[#allocation2 + $0x28] sm:$0xff] %vm538, %v523
    %543 = vst [vmem:[#allocation2 + $0x30] sm:$0xff] %v525
    %544 = vst [vmem:[#allocation2 + $0x38] sm:$0xff] %v527
    %545 = vst.msk [vmem:[#allocation2 + $0x40] sm:$0xff] %vm538, %v529
    %546 = vst [vmem:[#allocation2 + $0x48] sm:$0xff] %v531
    %547 = vst [vmem:[#allocation2 + $0x50] sm:$0xff] %v533
    %548 = vst.msk [vmem:[#allocation2 + $0x58] sm:$0xff] %vm538, %v535
    // Predicated region
    $region14: #{estimation_stage_forward.43} parent=1 // pred_check
      _
    $region15: #{estimation_stage_forward.43} parent=1 // pred_check_branch
      %550 = sbr.rel (0) target = $region17
    $region16: #{estimation_stage_forward.43} parent=1 // pred_region
      %s552 = ssub.s32 1536, 1536
      %553 = vsyncadd [#allocation3], %s552
      %s554 = sshll.u32 [#allocation2], 4
      %s555 = int_to_ptr.vmem [resolvable:$true] %s554
      %560 = dma.vmem_to_hbm [thread:$0]  %s555, 1536, %s3, [#allocation3], 384, 384, 24
    $region17: #{estimation_stage_forward.43} parent=1 // pred_fallthru
      _
    // Predicated region
    $region18: #{estimation_stage_forward.43} parent=1 // pred_check
      _
    $region19: #{estimation_stage_forward.43} parent=1 // pred_check_branch
      %562 = sbr.rel (0) target = $region21
    $region20: #{estimation_stage_forward.43} parent=1 // pred_region
      %563 = dma.done [#allocation3], 1536
    $region21: #{estimation_stage_forward.43} parent=1 // pred_fallthru
      _
    %564 = vsyncpa [#allocation3], 1

</llo_original>
